<compile_context>
chip_gen: v6e
topology: v6e:2x2x1
jax: 0.10.0
libtpu: 0.0.40
codegen_flags: <defaults>
</compile_context>

<pallas_src>
import functools

import jax
import jax.numpy as jnp
from jax.experimental import pallas as pl
from jax.experimental.pallas import tpu as pltpu

LANE = 128  # TPU lane width; feature dims and src padding are multiples of this.


def _round_up(a, b):
    return (a + b - 1) // b * b


# ----------------------------------------------------------------------------
# One RGCN conv layer:  out = relu?( x @ root + bias + sum_r maxagg_r(x) @ W_r )
# ----------------------------------------------------------------------------
def _rgcn_layer_kernel(adj_ref, x_ref, w_ref, root_ref, bias_ref, out_ref,
                       *, tile_dst, n_src, src_chunk, apply_relu):
    i = pl.program_id(0)          # dst row tile ("parallel")
    r = pl.program_id(1)          # relation      ("arbitrary", accumulation axis)

    # --- init: root transform + bias, once per dst tile -----------------------
    @pl.when(r == 0)
    def _():
        d0 = pl.multiple_of(i * tile_dst, tile_dst)
        x_dst = x_ref[pl.ds(d0, tile_dst), :].astype(jnp.bfloat16)
        out_ref[...] = (
            jnp.dot(x_dst, root_ref[...], preferred_element_type=jnp.float32)
            + bias_ref[...]
        )

    # --- masked max-aggregation over src (chunked); features stay on lanes ----
    #   h[d, f] = max_{s : adj[r, d, s] != 0} x[s, f]   (0 if no incoming edge)
    f_in = x_ref.shape[1]
    n_chunks = n_src // src_chunk

    def chunk_body(c, h):
        s0 = pl.multiple_of(c * src_chunk, src_chunk)
        m = adj_ref[:, pl.ds(s0, src_chunk)].astype(jnp.int32)   # [tile_dst, chunk]
        xs = x_ref[pl.ds(s0, src_chunk), :]                       # [chunk, f_in] fp32
        big = jnp.where(m[:, :, None] > 0, xs[None, :, :], -jnp.inf)
        return jnp.maximum(h, jnp.max(big, axis=1))               # sublane reduce

    h = jnp.full((tile_dst, f_in), -jnp.inf, dtype=jnp.float32)
    if n_chunks == 1:
        h = chunk_body(0, h)
    else:
        h = jax.lax.fori_loop(0, n_chunks, chunk_body, h)
    # -inf sentinel already encodes "no in-edge"; single elementwise fixup.
    h = jnp.where(h == -jnp.inf, 0.0, h)

    # --- dense per-relation transform on the MXU (bf16 in, fp32 accumulate) ---
    out_ref[...] += jnp.dot(h.astype(jnp.bfloat16), w_ref[...],
                            preferred_element_type=jnp.float32)

    if apply_relu:
        @pl.when(r == pl.num_programs(1) - 1)
        def _():
            out_ref[...] = jnp.maximum(out_ref[...], 0.0)


def rgcn_conv_layer(x_p, adj_i8, w_rel, root, bias, *, apply_relu,
                    tile_dst=64, src_chunk=128):
    """One relation-typed conv layer on padded, lane-dense inputs.

    x_p    : [N_p, Fin_p]       fp32
    adj_i8 : [R, N_p, N_p]      int8  (adj[r, dst, src] != 0 <=> edge)
    w_rel  : [R, Fin_p, Fout_p] bf16  (dense per-relation weight)
    root   : [Fin_p, Fout_p]    bf16
    bias   : [1, Fout_p]        fp32
    """
    R, Fin_p, Fout_p = w_rel.shape
    N_p = x_p.shape[0]
    assert N_p % tile_dst == 0 and N_p % src_chunk == 0

    kernel = functools.partial(
        _rgcn_layer_kernel, tile_dst=tile_dst, n_src=N_p,
        src_chunk=src_chunk, apply_relu=apply_relu)

    return pl.pallas_call(
        kernel,
        out_shape=jax.ShapeDtypeStruct((N_p, Fout_p), jnp.float32),
        grid=(N_p // tile_dst, R),
        in_specs=[
            pl.BlockSpec((None, tile_dst, N_p), lambda i, r: (r, i, 0)),   # adj[r] dst rows (int8)
            pl.BlockSpec((N_p, Fin_p), lambda i, r: (0, 0)),               # x (resident, fp32)
            pl.BlockSpec((None, Fin_p, Fout_p), lambda i, r: (r, 0, 0)),   # W_r (bf16, pipelined)
            pl.BlockSpec((Fin_p, Fout_p), lambda i, r: (0, 0)),            # root (bf16, resident)
            pl.BlockSpec((1, Fout_p), lambda i, r: (0, 0)),                # bias (fp32)
        ],
        out_specs=pl.BlockSpec((tile_dst, Fout_p), lambda i, r: (i, 0)),   # fp32 accumulator
        compiler_params=pltpu.CompilerParams(
            dimension_semantics=("parallel", "arbitrary"),
            vmem_limit_bytes=48 * 1024 * 1024),
    )(adj_i8, x_p, w_rel, root, bias)


# ----------------------------------------------------------------------------
# Full RGCN forward (mirrors the torch module: forward(x, edge_index, edge_type))
# ----------------------------------------------------------------------------
def _pad2(a, rows, cols):
    return jnp.pad(a, ((0, rows - a.shape[0]), (0, cols - a.shape[1])))


def rgcn_forward(x, edge_index, edge_type, params, num_relations):
    N, Fin = x.shape
    R = num_relations
    nb, fin_b, fhid_b = params["w1"].shape[1:]
    Fhid = nb * fhid_b
    Fout = params["basis2"].shape[-1]

    # lane/sublane-friendly padded sizes
    N_p = _round_up(N, LANE)
    Fin_p = _round_up(Fin, LANE)
    Fhid_p = _round_up(Fhid, LANE)
    Fout_p = _round_up(Fout, LANE)

    # densify edge list -> int8 per-relation adjacency mask adj[r, dst, src]
    # (edge multiplicity is irrelevant for 'max' aggregation)
    src, dst = edge_index[0], edge_index[1]
    adj = jnp.zeros((R, N_p, N_p), jnp.int8).at[edge_type, dst, src].set(1)

    x_p = _pad2(x.astype(jnp.float32), N_p, Fin_p)

    # layer 1: expand block-diagonal decomposition to dense [R, Fin, Fhid]
    w1 = params["w1"]                                      # [R, nb, fin_b, fhid_b]
    w1_dense = jnp.zeros((R, Fin, Fhid), jnp.float32)
    for b in range(nb):
        w1_dense = w1_dense.at[:, b * fin_b:(b + 1) * fin_b,
                               b * fhid_b:(b + 1) * fhid_b].set(w1[:, b])
    w1_p = jnp.pad(w1_dense, ((0, 0), (0, Fin_p - Fin),
                              (0, Fhid_p - Fhid))).astype(jnp.bfloat16)
    root1_p = _pad2(params["root1"], Fin_p, Fhid_p).astype(jnp.bfloat16)
    b1_p = jnp.pad(params["b1"], (0, Fhid_p - Fhid)).reshape(1, Fhid_p).astype(jnp.float32)

    # layer 2: collapse basis decomposition to dense per-relation weights
    w2_dense = jnp.einsum("rb,bio->rio", params["comp2"], params["basis2"])
    w2_p = jnp.pad(w2_dense, ((0, 0), (0, Fhid_p - Fhid),
                              (0, Fout_p - Fout))).astype(jnp.bfloat16)
    root2_p = _pad2(params["root2"], Fhid_p, Fout_p).astype(jnp.bfloat16)
    b2_p = jnp.pad(params["b2"], (0, Fout_p - Fout)).reshape(1, Fout_p).astype(jnp.float32)

    # layer 1 (ReLU fused) -> layer 2
    # TODO(synk): F.dropout(p=0.4) between layers omitted (eval mode / training=False).
    h = rgcn_conv_layer(x_p, adj, w1_p, root1_p, b1_p, apply_relu=True)
    out = rgcn_conv_layer(h, adj, w2_p, root2_p, b2_p, apply_relu=False)
    return out[:N, :Fout]


# ----------------------------------------------------------------------------
# Pure-JAX fp32 reference (for correctness check)
# ----------------------------------------------------------------------------
def _ref_max_agg(x, adj):
    big = jnp.where(adj[:, :, :, None] > 0, x[None, None, :, :], -jnp.inf)
    h = big.max(axis=2)                                       # [R, N, F]
    has = adj.sum(axis=2)[..., None] > 0
    return jnp.where(has, h, 0.0)


def rgcn_reference(x, edge_index, edge_type, params, num_relations):
    N = x.shape[0]
    R = num_relations
    src, dst = edge_index[0], edge_index[1]
    adj = jnp.zeros((R, N, N), jnp.float32).at[edge_type, dst, src].set(1.0)

    _, nb, fin_b, fhid_b = params["w1"].shape
    h = _ref_max_agg(x, adj)                                  # [R, N, Fin]
    hb = h.reshape(R, N, nb, fin_b)
    contrib = jnp.einsum("rnbc,rbcd->rnbd", hb, params["w1"]).reshape(R, N, nb * fhid_b)
    y = contrib.sum(axis=0) + x @ params["root1"] + params["b1"]
    y = jnp.maximum(y, 0.0)

    h2 = _ref_max_agg(y, adj)                                 # [R, N, Fhid]
    w2 = jnp.einsum("rb,bio->rio", params["comp2"], params["basis2"])
    out = jnp.einsum("rni,rio->no", h2, w2) + y @ params["root2"] + params["b2"]
    return out


# ----------------------------------------------------------------------------
if __name__ == "__main__":
    N, F_IN, F_HID, F_OUT = 200, 16, 32, 8
    R, NB, E = 3, 2, 600                    # num_relations, n_bases, num_edges

    key = jax.random.PRNGKey(0)
    ks = jax.random.split(key, 12)

    x = jax.random.normal(ks[0], (N, F_IN), jnp.float32)
    src = jax.random.randint(ks[1], (E,), 0, N)
    dst = jax.random.randint(ks[2], (E,), 0, N)
    edge_index = jnp.stack([src, dst])                      # [2, E]
    edge_type = jax.random.randint(ks[3], (E,), 0, R)       # [E]

    params = {
        # layer 1: block-diagonal weights [R, nb, Fin/nb, Fhid/nb]
        "w1": 0.1 * jax.random.normal(ks[4], (R, NB, F_IN // NB, F_HID // NB), jnp.float32),
        "root1": 0.1 * jax.random.normal(ks[5], (F_IN, F_HID), jnp.float32),
        "b1": 0.1 * jax.random.normal(ks[6], (F_HID,), jnp.float32),
        # layer 2: basis weights [nb, Fhid, Fout] + comp [R, nb]
        "basis2": 0.1 * jax.random.normal(ks[7], (NB, F_HID, F_OUT), jnp.float32),
        "comp2": 0.1 * jax.random.normal(ks[8], (R, NB), jnp.float32),
        "root2": 0.1 * jax.random.normal(ks[9], (F_HID, F_OUT), jnp.float32),
        "b2": 0.1 * jax.random.normal(ks[10], (F_OUT,), jnp.float32),
    }

    out = jax.block_until_ready(rgcn_forward(x, edge_index, edge_type, params, R))
    ref = jax.block_until_ready(rgcn_reference(x, edge_index, edge_type, params, R))

    assert out.shape == (N, F_OUT), out.shape
    max_err = float(jnp.abs(out - ref).max())
    # bf16 matmul inputs / fp32 accumulation vs pure-fp32 reference
    assert jnp.allclose(out, ref, rtol=2e-2, atol=2e-2), max_err

    print("KERNEL_OK")
</pallas_src>

<mosaic_0001>
module attributes {stable_mosaic.version = 11 : i64} {
  func.func @_rgcn_layer_kernel(%arg0: i32, %arg1: i32, %arg2: memref<1x64x256xi8, #tpu.memory_space<vmem>>, %arg3: memref<256x128xf32, #tpu.memory_space<vmem>>, %arg4: memref<1x128x128xbf16, #tpu.memory_space<vmem>>, %arg5: memref<128x128xbf16, #tpu.memory_space<vmem>>, %arg6: memref<1x128xf32, #tpu.memory_space<vmem>>, %arg7: memref<64x128xf32, #tpu.memory_space<vmem>>) attributes {dimension_semantics = [#tpu.dimension_semantics<parallel>, #tpu.dimension_semantics<arbitrary>], iteration_bounds = array<i64: 4, 3>, scalar_prefetch = 0 : i64, scratch_operands = 0 : i64, tpu.core_type = #tpu.core_type<tc>, window_params = [{transform_indices = @transform_0, window_bounds = array<i64: 1, 64, 256>}, {pipeline_mode = #tpu.pipeline_mode<synchronous>, transform_indices = @transform_1, window_bounds = array<i64: 256, 128>}, {transform_indices = @transform_2, window_bounds = array<i64: 1, 128, 128>}, {pipeline_mode = #tpu.pipeline_mode<synchronous>, transform_indices = @transform_3, window_bounds = array<i64: 128, 128>}, {pipeline_mode = #tpu.pipeline_mode<synchronous>, transform_indices = @transform_4, window_bounds = array<i64: 1, 128>}, {transform_indices = @transform_5, window_bounds = array<i64: 64, 128>}]} {
    %c0_i32 = arith.constant 0 : i32
    %0 = arith.cmpi eq, %arg1, %c0_i32 : i32
    %1 = arith.extui %0 : i1 to i32
    %c0_i32_0 = arith.constant 0 : i32
    %2 = arith.cmpi ne, %1, %c0_i32_0 : i32
    scf.if %2 {
      %c64_i32 = arith.constant 64 : i32
      %20 = arith.muli %arg0, %c64_i32 : i32
      %21 = tpu.assume_multiple %20, 64 : i32
      %22 = arith.index_cast %21 : i32 to index
      %c0_14 = arith.constant 0 : index
      %23 = vector.load %arg3[%22, %c0_14] : memref<256x128xf32, #tpu.memory_space<vmem>>, vector<64x128xf32>
      %24 = arith.truncf %23 : vector<64x128xf32> to vector<64x128xbf16>
      %c0_15 = arith.constant 0 : index
      %c0_16 = arith.constant 0 : index
      %25 = vector.load %arg5[%c0_15, %c0_16] : memref<128x128xbf16, #tpu.memory_space<vmem>>, vector<128x128xbf16>
      %cst_17 = arith.constant dense<0.000000e+00> : vector<64x128xf32>
      %26 = tpu.matmul %24, %25, %cst_17 {dimension_numbers = #tpu.dot_dimension_numbers<[1], [0], [0], [1], [0, 0, 1, 1], [], []>} : vector<64x128xbf16>, vector<128x128xbf16>, vector<64x128xf32> -> vector<64x128xf32>
      %c0_18 = arith.constant 0 : index
      %c0_19 = arith.constant 0 : index
      %27 = vector.load %arg6[%c0_18, %c0_19] : memref<1x128xf32, #tpu.memory_space<vmem>>, vector<1x128xf32>
      %28 = vector.broadcast %27 : vector<1x128xf32> to vector<64x128xf32>
      %29 = arith.addf %26, %28 : vector<64x128xf32>
      %c0_20 = arith.constant 0 : index
      %c0_21 = arith.constant 0 : index
      %30 = vector.load %arg7[%c0_20, %c0_21] : memref<64x128xf32, #tpu.memory_space<vmem>>, vector<64x128xf32>
      tpu.vector_store %arg7[%c0_20, %c0_21], %29 {strides = array<i32>} : memref<64x128xf32, #tpu.memory_space<vmem>>, vector<64x128xf32>,
    } else {
    }
    %cst = arith.constant 0xFF800000 : f32
    %3 = vector.broadcast %cst : f32 to vector<64x128xf32>
    %c0_i32_1 = arith.constant 0 : i32
    %c2_i32 = arith.constant 2 : i32
    %4 = arith.addi %c0_i32_1, %c2_i32 : i32
    %c1_i32 = arith.constant 1 : i32
    %5 = scf.for %arg8 = %c0_i32_1 to %4 step %c1_i32 iter_args(%arg9 = %3) -> (vector<64x128xf32>)  : i32 {
      %c128_i32 = arith.constant 128 : i32
      %20 = arith.muli %arg8, %c128_i32 : i32
      %21 = tpu.assume_multiple %20, 128 : i32
      %c0_14 = arith.constant 0 : index
      %c0_15 = arith.constant 0 : index
      %22 = arith.index_cast %21 : i32 to index
      %23 = vector.load %arg2[%c0_14, %c0_15, %22] : memref<1x64x256xi8, #tpu.memory_space<vmem>>, vector<1x64x128xi8>
      %24 = vector.shape_cast %23 : vector<1x64x128xi8> to vector<64x128xi8>
      %25 = arith.extsi %24 : vector<64x128xi8> to vector<64x128xi32>
      %26 = arith.index_cast %21 : i32 to index
      %c0_16 = arith.constant 0 : index
      %27 = vector.load %arg3[%26, %c0_16] : memref<256x128xf32, #tpu.memory_space<vmem>>, vector<128x128xf32>
      %28 = vector.shape_cast %25 : vector<64x128xi32> to vector<64x128x1xi32>
      %c0_i32_17 = arith.constant 0 : i32
      %29 = vector.broadcast %c0_i32_17 : i32 to vector<64x128x1xi32>
      %30 = arith.cmpi sgt, %28, %29 : vector<64x128x1xi32>
      %31 = vector.shape_cast %27 : vector<128x128xf32> to vector<1x128x128xf32>
      %cst_18 = arith.constant 0xFF800000 : f32
      %32 = vector.shape_cast %30 : vector<64x128x1xi1> to vector<64x128x1xi1>
      %33 = vector.broadcast %32 : vector<64x128x1xi1> to vector<64x128x128xi1>
      %34 = vector.shape_cast %31 : vector<1x128x128xf32> to vector<1x128x128xf32>
      %35 = vector.broadcast %34 : vector<1x128x128xf32> to vector<64x128x128xf32>
      %36 = vector.broadcast %cst_18 : f32 to vector<64x128x128xf32>
      %37 = arith.select %33, %35, %36 : vector<64x128x128xi1>, vector<64x128x128xf32>
      %cst_19 = arith.constant dense<0xFF800000> : vector<64x128xf32>
      %38 = vector.multi_reduction <maximumf>, %37, %cst_19 [1] : vector<64x128x128xf32> to vector<64x128xf32>
      %39 = arith.maximumf %arg9, %38 : vector<64x128xf32>
      scf.yield %39 : vector<64x128xf32>
    }
    %c2_i32_2 = arith.constant 2 : i32
    %cst_3 = arith.constant 0xFF800000 : f32
    %6 = vector.broadcast %cst_3 : f32 to vector<64x128xf32>
    %7 = arith.cmpf oeq, %5, %6 : vector<64x128xf32>
    %cst_4 = arith.constant 0.000000e+00 : f32
    %8 = vector.broadcast %cst_4 : f32 to vector<64x128xf32>
    %9 = arith.select %7, %8, %5 : vector<64x128xi1>, vector<64x128xf32>
    %c0 = arith.constant 0 : index
    %c0_5 = arith.constant 0 : index
    %10 = vector.load %arg7[%c0, %c0_5] : memref<64x128xf32, #tpu.memory_space<vmem>>, vector<64x128xf32>
    %11 = arith.truncf %9 : vector<64x128xf32> to vector<64x128xbf16>
    %c0_6 = arith.constant 0 : index
    %c0_7 = arith.constant 0 : index
    %c0_8 = arith.constant 0 : index
    %12 = vector.load %arg4[%c0_6, %c0_7, %c0_8] : memref<1x128x128xbf16, #tpu.memory_space<vmem>>, vector<1x128x128xbf16>
    %13 = vector.shape_cast %12 : vector<1x128x128xbf16> to vector<128x128xbf16>
    %cst_9 = arith.constant dense<0.000000e+00> : vector<64x128xf32>
    %14 = tpu.matmul %11, %13, %cst_9 {dimension_numbers = #tpu.dot_dimension_numbers<[1], [0], [0], [1], [0, 0, 1, 1], [], []>} : vector<64x128xbf16>, vector<128x128xbf16>, vector<64x128xf32> -> vector<64x128xf32>
    %15 = arith.addf %10, %14 : vector<64x128xf32>
    %c0_10 = arith.constant 0 : index
    %c0_11 = arith.constant 0 : index
    %16 = vector.load %arg7[%c0_10, %c0_11] : memref<64x128xf32, #tpu.memory_space<vmem>>, vector<64x128xf32>
    tpu.vector_store %arg7[%c0_10, %c0_11], %15 {strides = array<i32>} : memref<64x128xf32, #tpu.memory_space<vmem>>, vector<64x128xf32>,
    %c2_i32_12 = arith.constant 2 : i32
    %17 = arith.cmpi eq, %arg1, %c2_i32_12 : i32
    %18 = arith.extui %17 : i1 to i32
    %c0_i32_13 = arith.constant 0 : i32
    %19 = arith.cmpi ne, %18, %c0_i32_13 : i32
    scf.if %19 {
      %c0_14 = arith.constant 0 : index
      %c0_15 = arith.constant 0 : index
      %20 = vector.load %arg7[%c0_14, %c0_15] : memref<64x128xf32, #tpu.memory_space<vmem>>, vector<64x128xf32>
      %cst_16 = arith.constant 0.000000e+00 : f32
      %21 = vector.broadcast %cst_16 : f32 to vector<64x128xf32>
      %22 = arith.maximumf %20, %21 : vector<64x128xf32>
      %c0_17 = arith.constant 0 : index
      %c0_18 = arith.constant 0 : index
      %23 = vector.load %arg7[%c0_17, %c0_18] : memref<64x128xf32, #tpu.memory_space<vmem>>, vector<64x128xf32>
      tpu.vector_store %arg7[%c0_17, %c0_18], %22 {strides = array<i32>} : memref<64x128xf32, #tpu.memory_space<vmem>>, vector<64x128xf32>,
    } else {
    }
    return
  }
  func.func @transform_0(%arg0: i32, %arg1: i32) -> (i32, i32, i32) {
    %c0_i32 = arith.constant 0 : i32
    %c0_i32_0 = arith.constant 0 : i32
    return %arg1, %arg0, %c0_i32 : i32, i32, i32
  }
  func.func @transform_1(%arg0: i32, %arg1: i32) -> (i32, i32) {
    %c0_i32 = arith.constant 0 : i32
    %c0_i32_0 = arith.constant 0 : i32
    %c0_i32_1 = arith.constant 0 : i32
    return %c0_i32, %c0_i32_0 : i32, i32
  }
  func.func @transform_2(%arg0: i32, %arg1: i32) -> (i32, i32, i32) {
    %c0_i32 = arith.constant 0 : i32
    %c0_i32_0 = arith.constant 0 : i32
    %c0_i32_1 = arith.constant 0 : i32
    return %arg1, %c0_i32, %c0_i32_0 : i32, i32, i32
  }
  func.func @transform_3(%arg0: i32, %arg1: i32) -> (i32, i32) {
    %c0_i32 = arith.constant 0 : i32
    %c0_i32_0 = arith.constant 0 : i32
    %c0_i32_1 = arith.constant 0 : i32
    return %c0_i32, %c0_i32_0 : i32, i32
  }
  func.func @transform_4(%arg0: i32, %arg1: i32) -> (i32, i32) {
    %c0_i32 = arith.constant 0 : i32
    %c0_i32_0 = arith.constant 0 : i32
    %c0_i32_1 = arith.constant 0 : i32
    return %c0_i32, %c0_i32_0 : i32, i32
  }
  func.func @transform_5(%arg0: i32, %arg1: i32) -> (i32, i32) {
    %c0_i32 = arith.constant 0 : i32
    %c0_i32_0 = arith.constant 0 : i32
    return %arg0, %c0_i32 : i32, i32
  }
}

</mosaic_0001>

<llo_original>
// kernel: tpu_custom_call.1
$region0: #{tpu_custom_call.1}
  #allocation0 [shape = 'u32[]', space=smem, size = 0x4, offset = 0x4, fixed_abs, tag = 'smem constant byte address 0x4 - core index']
  #allocation1 [shape = 'u32[144,128]{1,0:T(1,128)}', space=vmem, size = 0x12000, scoped, tag = 'internal scratch']
  %s0 = inlined_call_operand.hbm [shape: s8[3,256,256], index: 0, kind: input, shape index: {}]
  %s1 = inlined_call_operand.hbm [shape: f32[256,128], index: 1, kind: input, shape index: {}]
  %s2 = inlined_call_operand.hbm [shape: bf16[3,128,128], index: 2, kind: input, shape index: {}]
  %s3 = inlined_call_operand.hbm [shape: bf16[128,128], index: 3, kind: input, shape index: {}]
  %s4 = inlined_call_operand.vmem [shape: f32[1,128], index: 4, kind: input, shape index: {}]
  %s5 = inlined_call_operand.hbm [shape: f32[256,128], index: 5, kind: output, shape index: {}]
  %s6 = sld [smem:[#allocation0]]
  $region84: #{tpu_custom_call.1} parent=0
    _
  %s8 = ssub.s32 1, %s6
  %s9 = scalar_select 0, %s8, %s6
  $region1: #{tpu_custom_call.1} parent=0
    #allocation2 [shape = 'u8[32768]{0}', space=vmem, size = 0x8000, scoped, tag = 'input window, operand 0']
    #allocation3 [shape = 's32[2]{0}', space=sflag, size = 0x8, scoped, tag = 'scoped memory for tpu_custom_call.1']
    #allocation4 [shape = 's32[2]{0}', space=sflag, size = 0x8, scoped, tag = 'scoped memory for tpu_custom_call.1']
    #allocation5 [shape = 'u8[131072]{0}', space=vmem, size = 0x20000, scoped, tag = 'input window, operand 1, single buffered']
    #allocation6 [shape = 's32[1]{0}', space=sflag, size = 0x4, scoped, tag = 'scoped memory for tpu_custom_call.1']
    #allocation7 [shape = 'u8[65536]{0}', space=vmem, size = 0x10000, scoped, tag = 'input window, operand 2']
    #allocation8 [shape = 'u8[32768]{0}', space=vmem, size = 0x8000, scoped, tag = 'input window, operand 3, single buffered']
    #allocation9 [shape = 'u8[65536]{0}', space=vmem, size = 0x10000, scoped, tag = 'output window, operand 0']
    %10 = vsyncpa [#allocation3], 0
    %s11 = scalar_lea.sflag [#allocation3], 1
    %12 = vsyncpa %s11, 0
    %13 = vsyncpa [#allocation6], 0
    %14 = vsyncpa [#allocation4], 0
    %s15 = scalar_lea.sflag [#allocation4], 1
    %16 = vsyncpa %s15, 0
    loop: start=0, step=1, limit=14
    $region2: #{tpu_custom_call.1} parent=1 // loop_pre_header
      _
    $region3: #{tpu_custom_call.1} parent=1 // loop_header
      %s18 = sphi 0, %s22
      %p19 = scmp.ge.s32.totalorder %s18, 14
      %s25 = sphi 0, %s37
      %s26 = sphi 0, %s33
      %s27 = sphi 0, %s25
      %s28 = sphi 0, %s26
      %s29 = sphi 0, %s27
      %s30 = sphi 0, %s28
      %s42 = sphi 0, %s44
      %s45 = sphi 0, %s42
      %s46 = sphi 0, %s45
      %s62 = sphi 0, %s46
      %s66 = sphi 0, %s66
      %s68 = sphi 0, %s66
      %s69 = sphi 0, %s68
      %s83 = sphi 0, %s69
      %s89 = sphi 0, %s91
      %s92 = sphi 0, %s89
      %s93 = sphi 0, %s92
      %s109 = sphi 0, %s93
      %s113 = sphi 0, %s113
      %s115 = sphi 0, %s113
      %s116 = sphi 0, %s115
      %s130 = sphi 0, %s116
      %s134 = sphi 0, %s134
      %s136 = sphi 0, %s134
      %s137 = sphi 0, %s136
      %s151 = sphi 0, %s137
      %s157 = sphi 0, %s159
      %s160 = sphi 0, %s157
      %s161 = sphi 0, %s160
      %s177 = sphi 0, %s161
    $region4: #{tpu_custom_call.1} parent=1 // loop_header_branch
      %21 = sbr.rel (%p19) target = $region8
    $region5: #{tpu_custom_call.1} parent=1 // loop_body
      %s23 = ssub.s32 %s18, 1
      %s24 = ssub.s32 %s18, 2
      %s31 = sadd.s32 1, %s26
      %p32 = scmp.ge.s32.totalorder %s31, 3
      %s33 = scalar_select %p32, 0, %s31
      %s34 = sadd.s32 1, %s25
      %s35 = scalar_select %p32, %s34, %s25
      %p36 = scmp.ge.s32.totalorder %s35, 4
      %s37 = scalar_select %p36, 0, %s35
      %s38 = ssub.s32 %s26, %s33
      %s39 = ssub.s32 %s25, %s37
      %s40 = sor.u32 %s38, %s39
      %p41 = scmp.eq.s32.totalorder %s40, 0
      %s43 = sadd.s32 %s42, 1
      %s44 = scalar_select %p41, %s42, %s43
      %p47 = pneg %p41
      %p48 = scmp.eq.s32.totalorder %s18, 11
      %p49 = por %p47, %p48
      %p50 = scmp.ne.s32.totalorder %s42, %s45
      %p51 = scmp.eq.s32.totalorder %s18, 0
      %p52 = por %p50, %p51
      %p53 = scmp.ne.s32.totalorder %s42, %s45
      %p54 = scmp.eq.s32.totalorder %s23, 11
      %p55 = por %p53, %p54
      %p56 = scmp.ne.s32.totalorder %s45, %s46
      %p57 = scmp.eq.s32.totalorder %s23, 0
      %p58 = por %p56, %p57
      %p59 = scmp.ne.s32.totalorder %s45, %s46
      %p60 = scmp.eq.s32.totalorder %s24, 11
      %p61 = por %p59, %p60
      %p63 = scmp.ne.s32.totalorder %s46, %s62
      %p64 = scmp.eq.s32.totalorder %s24, 0
      %p65 = por %p63, %p64
      %s67 = sadd.s32 %s66, 1
      %p70 = scmp.eq.s32.totalorder %s18, 11
      %p71 = scmp.ne.s32.totalorder %s66, %s68
      %p72 = scmp.eq.s32.totalorder %s18, 0
      %p73 = por %p71, %p72
      %p74 = scmp.ne.s32.totalorder %s66, %s68
      %p75 = scmp.eq.s32.totalorder %s23, 11
      %p76 = por %p74, %p75
      %p77 = scmp.ne.s32.totalorder %s68, %s69
      %p78 = scmp.eq.s32.totalorder %s23, 0
      %p79 = por %p77, %p78
      %p80 = scmp.ne.s32.totalorder %s68, %s69
      %p81 = scmp.eq.s32.totalorder %s24, 11
      %p82 = por %p80, %p81
      %p84 = scmp.ne.s32.totalorder %s69, %s83
      %p85 = scmp.eq.s32.totalorder %s24, 0
      %p86 = por %p84, %p85
      %s87 = ssub.s32 %s26, %s33
      %p88 = scmp.eq.s32.totalorder %s87, 0
      %s90 = sadd.s32 %s89, 1
      %s91 = scalar_select %p88, %s89, %s90
      %p94 = pneg %p88
      %p95 = scmp.eq.s32.totalorder %s18, 11
      %p96 = por %p94, %p95
      %p97 = scmp.ne.s32.totalorder %s89, %s92
      %p98 = scmp.eq.s32.totalorder %s18, 0
      %p99 = por %p97, %p98
      %p100 = scmp.ne.s32.totalorder %s89, %s92
      %p101 = scmp.eq.s32.totalorder %s23, 11
      %p102 = por %p100, %p101
      %p103 = scmp.ne.s32.totalorder %s92, %s93
      %p104 = scmp.eq.s32.totalorder %s23, 0
      %p105 = por %p103, %p104
      %p106 = scmp.ne.s32.totalorder %s92, %s93
      %p107 = scmp.eq.s32.totalorder %s24, 11
      %p108 = por %p106, %p107
      %p110 = scmp.ne.s32.totalorder %s93, %s109
      %p111 = scmp.eq.s32.totalorder %s24, 0
      %p112 = por %p110, %p111
      %s114 = sadd.s32 %s113, 1
      %p117 = scmp.eq.s32.totalorder %s18, 11
      %p118 = scmp.ne.s32.totalorder %s113, %s115
      %p119 = scmp.eq.s32.totalorder %s18, 0
      %p120 = por %p118, %p119
      %p121 = scmp.ne.s32.totalorder %s113, %s115
      %p122 = scmp.eq.s32.totalorder %s23, 11
      %p123 = por %p121, %p122
      %p124 = scmp.ne.s32.totalorder %s115, %s116
      %p125 = scmp.eq.s32.totalorder %s23, 0
      %p126 = por %p124, %p125
      %p127 = scmp.ne.s32.totalorder %s115, %s116
      %p128 = scmp.eq.s32.totalorder %s24, 11
      %p129 = por %p127, %p128
      %p131 = scmp.ne.s32.totalorder %s116, %s130
      %p132 = scmp.eq.s32.totalorder %s24, 0
      %p133 = por %p131, %p132
      %s135 = sadd.s32 %s134, 1
      %p138 = scmp.eq.s32.totalorder %s18, 11
      %p139 = scmp.ne.s32.totalorder %s134, %s136
      %p140 = scmp.eq.s32.totalorder %s18, 0
      %p141 = por %p139, %p140
      %p142 = scmp.ne.s32.totalorder %s134, %s136
      %p143 = scmp.eq.s32.totalorder %s23, 11
      %p144 = por %p142, %p143
      %p145 = scmp.ne.s32.totalorder %s136, %s137
      %p146 = scmp.eq.s32.totalorder %s23, 0
      %p147 = por %p145, %p146
      %p148 = scmp.ne.s32.totalorder %s136, %s137
      %p149 = scmp.eq.s32.totalorder %s24, 11
      %p150 = por %p148, %p149
      %p152 = scmp.ne.s32.totalorder %s137, %s151
      %p153 = scmp.eq.s32.totalorder %s24, 0
      %p154 = por %p152, %p153
      %s155 = ssub.s32 %s25, %s37
      %p156 = scmp.eq.s32.totalorder %s155, 0
      %s158 = sadd.s32 %s157, 1
      %s159 = scalar_select %p156, %s157, %s158
      %p162 = pneg %p156
      %p163 = scmp.eq.s32.totalorder %s18, 11
      %p164 = por %p162, %p163
      %p165 = scmp.ne.s32.totalorder %s157, %s160
      %p166 = scmp.eq.s32.totalorder %s18, 0
      %p167 = por %p165, %p166
      %p168 = scmp.ne.s32.totalorder %s157, %s160
      %p169 = scmp.eq.s32.totalorder %s23, 11
      %p170 = por %p168, %p169
      %p171 = scmp.ne.s32.totalorder %s160, %s161
      %p172 = scmp.eq.s32.totalorder %s23, 0
      %p173 = por %p171, %p172
      %p174 = scmp.ne.s32.totalorder %s160, %s161
      %p175 = scmp.eq.s32.totalorder %s24, 11
      %p176 = por %p174, %p175
      %p178 = scmp.ne.s32.totalorder %s161, %s177
      %p179 = scmp.eq.s32.totalorder %s24, 0
      %p180 = por %p178, %p179
      %p181 = scmp.le.s32.totalorder 1, %s18
      %p182 = scmp.lt.s32.totalorder %s18, 13
      %p183 = pnand %p181, %p182
      %p184 = pneg %p183
      // Predicated region
      $region9: #{tpu_custom_call.1} parent=5 // pred_check
        _
      $region10: #{tpu_custom_call.1} parent=5 // pred_check_branch
        %186 = sbr.rel (%p183) target = $region12
      $region11: #{tpu_custom_call.1} parent=5 // pred_region
        %s187 = ssub.s32 %s18, 1
        // Predicated region
        $region13: #{tpu_custom_call.1} parent=11 // pred_check
          %p188 = pneg %p79
        $region14: #{tpu_custom_call.1} parent=11 // pred_check_branch
          %190 = sbr.rel (%p188) target = $region16
        $region15: #{tpu_custom_call.1} parent=11 // pred_region
          %s192 = ssub.s32 4096, 4096
          %193 = vsyncadd [#allocation6], %s192
          %s194 = sshll.u32 [#allocation5], 4
          %s195 = int_to_ptr.vmem [resolvable:$true] %s194
          %200 = dma.hbm_to_vmem [thread:$0]  %s1, 4096, %s195, [#allocation6], 128, 128, 8
        $region16: #{tpu_custom_call.1} parent=11 // pred_fallthru
          _
        // Predicated region
        $region17: #{tpu_custom_call.1} parent=11 // pred_check
          %p201 = pneg %p126
        $region18: #{tpu_custom_call.1} parent=11 // pred_check_branch
          %203 = sbr.rel (%p201) target = $region20
        $region19: #{tpu_custom_call.1} parent=11 // pred_region
          %s205 = ssub.s32 1024, 1024
          %206 = vsyncadd [#allocation6], %s205
          %s207 = sshll.u32 [#allocation8], 4
          %s208 = int_to_ptr.vmem [resolvable:$true] %s207
          %213 = dma.hbm_to_vmem [thread:$0]  %s3, 1024, %s208, [#allocation6], 64, 64, 4
        $region20: #{tpu_custom_call.1} parent=11 // pred_fallthru
          _
        // Predicated region
        $region21: #{tpu_custom_call.1} parent=11 // pred_check
          %p214 = pneg %p147
        $region22: #{tpu_custom_call.1} parent=11 // pred_check_branch
          %216 = sbr.rel (%p214) target = $region24
        $region23: #{tpu_custom_call.1} parent=11 // pred_region
          _
        $region24: #{tpu_custom_call.1} parent=11 // pred_fallthru
          _
      $region12: #{tpu_custom_call.1} parent=5 // pred_fallthru
        _
      %p217 = scmp.lt.s32.totalorder %s18, 12
      // Predicated region
      $region25: #{tpu_custom_call.1} parent=5 // pred_check
        %p218 = pneg %p217
      $region26: #{tpu_custom_call.1} parent=5 // pred_check_branch
        %220 = sbr.rel (%p218) target = $region28
      $region27: #{tpu_custom_call.1} parent=5 // pred_region
        // Predicated region
        $region29: #{tpu_custom_call.1} parent=27 // pred_check
          %p221 = pneg %p52
        $region30: #{tpu_custom_call.1} parent=27 // pred_check_branch
          %223 = sbr.rel (%p221) target = $region32
        $region31: #{tpu_custom_call.1} parent=27 // pred_region
          %s224 = sand.u32 %s18, 1
          %s225 = scalar_lea.sflag [#allocation3], %s224
          %s226 = sand.u32 %s42, 1
          %s227 = smul.addr %s226, 32
          %s228 = scalar_lea.vmem [#allocation2], %s227
          %s229 = smul.u32 2, %s25
          %s231 = ssub.s32 512, 512
          %232 = vsyncadd %s225, %s231
          %s233 = smul.addr %s229, 2
          %s234 = smul.addr %s26, 16
          %s235 = sadd.s32 %s233, %s234
          %s236 = smul.addr %s235, 128
          %s237 = scalar_lea.hbm %s0, %s236
          %s238 = sshll.u32 %s228, 4
          %s239 = int_to_ptr.vmem [resolvable:$true] %s238
          %244 = dma.hbm_to_vmem [thread:$0]  %s237, 512, %s239, %s225, 256, 256, 16
        $region32: #{tpu_custom_call.1} parent=27 // pred_fallthru
          _
        // Predicated region
        $region33: #{tpu_custom_call.1} parent=27 // pred_check
          %p245 = pneg %p99
        $region34: #{tpu_custom_call.1} parent=27 // pred_check_branch
          %247 = sbr.rel (%p245) target = $region36
        $region35: #{tpu_custom_call.1} parent=27 // pred_region
          %s248 = sand.u32 %s18, 1
          %s249 = scalar_lea.sflag [#allocation3], %s248
          %s250 = sand.u32 %s89, 1
          %s251 = smul.addr %s250, 64
          %s252 = scalar_lea.vmem [#allocation7], %s251
          %s254 = ssub.s32 1024, 1024
          %255 = vsyncadd %s249, %s254
          %s256 = smul.addr %s26, 16
          %s257 = smul.addr %s256, 64
          %s258 = scalar_lea.hbm %s2, %s257
          %s259 = sshll.u32 %s252, 4
          %s260 = int_to_ptr.vmem [resolvable:$true] %s259
          %265 = dma.hbm_to_vmem [thread:$0]  %s258, 1024, %s260, %s249, 64, 64, 4
        $region36: #{tpu_custom_call.1} parent=27 // pred_fallthru
          _
      $region28: #{tpu_custom_call.1} parent=5 // pred_fallthru
        _
      %p266 = scmp.le.s32.totalorder 1, %s18
      %p267 = scmp.lt.s32.totalorder %s18, 13
      %p268 = pnand %p266, %p267
      %p269 = pneg %p268
      // Predicated region
      $region37: #{tpu_custom_call.1} parent=5 // pred_check
        _
      $region38: #{tpu_custom_call.1} parent=5 // pred_check_branch
        %271 = sbr.rel (%p268) target = $region40
      $region39: #{tpu_custom_call.1} parent=5 // pred_region
        %s272 = ssub.s32 %s18, 1
        %s273 = sand.u32 %s23, 1
        %s274 = scalar_lea.sflag [#allocation3], %s273
        %s275 = sand.u32 %s45, 1
        %s276 = smul.addr %s275, 32
        %s277 = scalar_lea.vmem [#allocation2], %s276
        // Predicated region
        $region41: #{tpu_custom_call.1} parent=39 // pred_check
          %p278 = pneg %p58
        $region42: #{tpu_custom_call.1} parent=39 // pred_check_branch
          %280 = sbr.rel (%p278) target = $region44
        $region43: #{tpu_custom_call.1} parent=39 // pred_region
          %281 = dma.done %s274, 512
        $region44: #{tpu_custom_call.1} parent=39 // pred_fallthru
          _
        // Predicated region
        $region45: #{tpu_custom_call.1} parent=39 // pred_check
          %p282 = pneg %p79
        $region46: #{tpu_custom_call.1} parent=39 // pred_check_branch
          %284 = sbr.rel (%p282) target = $region48
        $region47: #{tpu_custom_call.1} parent=39 // pred_region
          %285 = dma.done [#allocation6], 4096
        $region48: #{tpu_custom_call.1} parent=39 // pred_fallthru
          _
        %s286 = sand.u32 %s23, 1
        %s287 = scalar_lea.sflag [#allocation3], %s286
        %s288 = sand.u32 %s92, 1
        %s289 = smul.addr %s288, 64
        %s290 = scalar_lea.vmem [#allocation7], %s289
        // Predicated region
        $region49: #{tpu_custom_call.1} parent=39 // pred_check
          %p291 = pneg %p105
        $region50: #{tpu_custom_call.1} parent=39 // pred_check_branch
          %293 = sbr.rel (%p291) target = $region52
        $region51: #{tpu_custom_call.1} parent=39 // pred_region
          %294 = dma.done %s287, 1024
        $region52: #{tpu_custom_call.1} parent=39 // pred_fallthru
          _
        // Predicated region
        $region53: #{tpu_custom_call.1} parent=39 // pred_check
          %p295 = pneg %p126
        $region54: #{tpu_custom_call.1} parent=39 // pred_check_branch
          %297 = sbr.rel (%p295) target = $region56
        $region55: #{tpu_custom_call.1} parent=39 // pred_region
          %298 = dma.done [#allocation6], 1024
        $region56: #{tpu_custom_call.1} parent=39 // pred_fallthru
          _
        %s299 = sand.u32 %s23, 1
        %s300 = scalar_lea.sflag [#allocation3], %s299
        %s301 = sand.u32 %s45, 1
        %s302 = smul.addr %s301, 32
        %s303 = scalar_lea.vmem [#allocation2], %s302
        %p304 = pneg %p58
        %p305 = pneg %p55
        %p306 = pneg %p79
        %p307 = pneg %p76
        %s308 = sand.u32 %s23, 1
        %s309 = scalar_lea.sflag [#allocation3], %s308
        %s310 = sand.u32 %s92, 1
        %s311 = smul.addr %s310, 64
        %s312 = scalar_lea.vmem [#allocation7], %s311
        %p313 = pneg %p105
        %p314 = pneg %p102
        %p315 = pneg %p126
        %p316 = pneg %p123
        %p317 = pneg %p147
        %p318 = pneg %p144
        %p319 = pneg %p173
        %p320 = pneg %p170
        %s321 = sand.u32 %s160, 1
        %s322 = scalar_lea.sflag [#allocation4], %s321
        %s323 = sand.u32 %s160, 1
        %s324 = smul.addr %s323, 64
        %s325 = scalar_lea.vmem [#allocation9], %s324
        %s326 = smul.u32 2, %s27
        %s327 = smul.u32 8, %s27
        %p329 = scmp.eq.s32.totalorder %s28, 0
        // Predicated region
        $region57: #{tpu_custom_call.1} parent=39 // pred_check
          %p330 = pneg %p329
        $region58: #{tpu_custom_call.1} parent=39 // pred_check_branch
          %332 = sbr.rel (%p330) target = $region60
        $region59: #{tpu_custom_call.1} parent=39 // pred_region
          %s333 = smul.u32 %s27, 64
          %s334 = scalar_lea.vmem [#allocation5], %s333
          %v335 = vld [vmem:[%s334] sm:$0xff]
          %v336 = vld [vmem:[%s334 + $0x8] sm:$0xff]
          %v337 = vld [vmem:[%s334 + $0x10] sm:$0xff]
          %v338 = vld [vmem:[%s334 + $0x18] sm:$0xff]
          %v339 = vld [vmem:[%s334 + $0x20] sm:$0xff]
          %v340 = vld [vmem:[%s334 + $0x28] sm:$0xff]
          %v341 = vld [vmem:[%s334 + $0x30] sm:$0xff]
          %v342 = vld [vmem:[%s334 + $0x38] sm:$0xff]
          %v343 = vpack.c.bf16 %v336, %v335
          %v344 = vpack.c.bf16 %v338, %v337
          %v345 = vpack.c.bf16 %v340, %v339
          %v346 = vpack.c.bf16 %v342, %v341
          %v347 = vld [vmem:[#allocation8] sm:$0xf]
          %v348 = vld [vmem:[#allocation8 + $0x4] sm:$0xf]
          %v349 = vld [vmem:[#allocation8 + $0x8] sm:$0xf]
          %v350 = vld [vmem:[#allocation8 + $0xc] sm:$0xf]
          %v351 = vld [vmem:[#allocation8 + $0x10] sm:$0xf]
          %v352 = vld [vmem:[#allocation8 + $0x14] sm:$0xf]
          %v353 = vld [vmem:[#allocation8 + $0x18] sm:$0xf]
          %v354 = vld [vmem:[#allocation8 + $0x1c] sm:$0xf]
          %v355 = vld [vmem:[#allocation8 + $0x20] sm:$0xf]
          %v356 = vld [vmem:[#allocation8 + $0x24] sm:$0xf]
          %v357 = vld [vmem:[#allocation8 + $0x28] sm:$0xf]
          %v358 = vld [vmem:[#allocation8 + $0x2c] sm:$0xf]
          %v359 = vld [vmem:[#allocation8 + $0x30] sm:$0xf]
          %v360 = vld [vmem:[#allocation8 + $0x34] sm:$0xf]
          %v361 = vld [vmem:[#allocation8 + $0x38] sm:$0xf]
          %v362 = vld [vmem:[#allocation8 + $0x3c] sm:$0xf]
          %v363 = vld [vmem:[%s4] sm:$0x1]
          %v365 = vlaneseq
          %v366 = vshrl.u32 %v365, 7
          %v367 = vsub.s32 0, %v366
          %v368 = vrot.slane %v363, %v367
          %v386 = vunpack.c.l.b16 %v347
          %v387 = vunpack.c.l.b16 %v348
          %v388 = vunpack.c.l.b16 %v349
          %v389 = vunpack.c.l.b16 %v350
          %v390 = vunpack.c.l.b16 %v351
          %v391 = vunpack.c.l.b16 %v352
          %v392 = vunpack.c.l.b16 %v353
          %v393 = vunpack.c.l.b16 %v354
          %v394 = vunpack.c.l.b16 %v355
          %v395 = vunpack.c.l.b16 %v356
          %v396 = vunpack.c.l.b16 %v357
          %v397 = vunpack.c.l.b16 %v358
          %v398 = vunpack.c.l.b16 %v359
          %v399 = vunpack.c.l.b16 %v360
          %v400 = vunpack.c.l.b16 %v361
          %v401 = vunpack.c.l.b16 %v362
          %v402 = vpack.c.b16 %v387, %v386
          %v403 = vpack.c.b16 %v389, %v388
          %v404 = vpack.c.b16 %v391, %v390
          %v405 = vpack.c.b16 %v393, %v392
          %v406 = vpack.c.b16 %v395, %v394
          %v407 = vpack.c.b16 %v397, %v396
          %v408 = vpack.c.b16 %v399, %v398
          %v409 = vpack.c.b16 %v401, %v400
          %418 = vmatprep.subr.bf16.mxu0 0
          %419 = vmatpush1.bf16.msra.mxu0 %v409
          %420 = vmatprep.subr.bf16.mxu0 0
          %421 = vmatpush1.bf16.msra.mxu0 %v408
          %422 = vmatprep.subr.bf16.mxu0 0
          %423 = vmatpush1.bf16.msra.mxu0 %v407
          %424 = vmatprep.subr.bf16.mxu0 0
          %425 = vmatpush1.bf16.msra.mxu0 %v406
          %426 = vmatprep.subr.bf16.mxu0 0
          %427 = vmatpush1.bf16.msra.mxu0 %v405
          %428 = vmatprep.subr.bf16.mxu0 0
          %429 = vmatpush1.bf16.msra.mxu0 %v404
          %430 = vmatprep.subr.bf16.mxu0 0
          %431 = vmatpush1.bf16.msra.mxu0 %v403
          %432 = vmatprep.subr.bf16.mxu0 0
          %433 = vmatpush1.bf16.msra.mxu0 %v402
          %434 = vmatprep.subr.bf16.mxu0 0
          %435 = vmatpush2.bf16.msra.mxu0 0
          %436 = vmatprep.subr.bf16.mxu0 0
          %437 = vmatpush2.bf16.msra.mxu0 0
          %438 = vmatprep.subr.bf16.mxu0 0
          %439 = vmatpush2.bf16.msra.mxu0 0
          %440 = vmatprep.subr.bf16.mxu0 0
          %441 = vmatpush2.bf16.msra.mxu0 0
          %442 = vmatprep.subr.bf16.mxu0 0
          %443 = vmatpush2.bf16.msra.mxu0 0
          %444 = vmatprep.subr.bf16.mxu0 0
          %445 = vmatpush2.bf16.msra.mxu0 0
          %446 = vmatprep.subr.bf16.mxu0 0
          %447 = vmatpush2.bf16.msra.mxu0 0
          %448 = vmatprep.subr.bf16.mxu0 0
          %449 = vmatpush2.bf16.msra.mxu0 0
          %450 = vmatprep.mubr.bf16.mxu0 0
          %451 = vmatmul.mubr.bf16.gmra.mxu0 %v343
          %v452 = vpop.f32.mrf.mxu0
          %v453 = vadd.f32 %v368, %v452
          %v454 = vpop.f32.mrf.mxu0
          %v455 = vpop.f32.mrf.mxu0
          %v456 = vadd.f32 %v368, %v455
          %v457 = vpop.f32.mrf.mxu0
          %458 = vmatprep.mubr.bf16.mxu0 0
          %459 = vmatmul.mubr.bf16.gmra.mxu0 %v344
          %v460 = vpop.f32.mrf.mxu0
          %v461 = vadd.f32 %v368, %v460
          %v462 = vpop.f32.mrf.mxu0
          %v463 = vpop.f32.mrf.mxu0
          %v464 = vadd.f32 %v368, %v463
          %v465 = vpop.f32.mrf.mxu0
          %466 = vmatprep.mubr.bf16.mxu0 0
          %467 = vmatmul.mubr.bf16.gmra.mxu0 %v345
          %v468 = vpop.f32.mrf.mxu0
          %v469 = vadd.f32 %v368, %v468
          %v470 = vpop.f32.mrf.mxu0
          %v471 = vpop.f32.mrf.mxu0
          %v472 = vadd.f32 %v368, %v471
          %v473 = vpop.f32.mrf.mxu0
          %474 = vmatprep.mubr.bf16.mxu0 0
          %475 = vmatmul.mubr.bf16.gmra.mxu0 %v346
          %v476 = vpop.f32.mrf.mxu0
          %v477 = vadd.f32 %v368, %v476
          %v478 = vpop.f32.mrf.mxu0
          %v479 = vpop.f32.mrf.mxu0
          %v480 = vadd.f32 %v368, %v479
          %v481 = vpop.f32.mrf.mxu0
          %482 = vdwg.mxu0
          %483 = vst [vmem:[%s325] sm:$0xff] %v453
          %484 = vst [vmem:[%s325 + $0x8] sm:$0xff] %v456
          %485 = vst [vmem:[%s325 + $0x10] sm:$0xff] %v461
          %486 = vst [vmem:[%s325 + $0x18] sm:$0xff] %v464
          %487 = vst [vmem:[%s325 + $0x20] sm:$0xff] %v469
          %488 = vst [vmem:[%s325 + $0x28] sm:$0xff] %v472
          %489 = vst [vmem:[%s325 + $0x30] sm:$0xff] %v477
          %490 = vst [vmem:[%s325 + $0x38] sm:$0xff] %v480
        $region60: #{tpu_custom_call.1} parent=39 // pred_fallthru
          _
        loop: start=0, step=1, limit=2
        $region61: #{tpu_custom_call.1} parent=39 // loop_pre_header
          _
        $region62: #{tpu_custom_call.1} parent=39 // loop_header
          %s492 = sphi 0, %s496
          %p493 = scmp.ge.s32.totalorder %s492, 2
          %v497 = vphi -inf, %v10321
          %v498 = vphi -inf, %v10322
          %v499 = vphi -inf, %v10323
          %v500 = vphi -inf, %v10324
          %v501 = vphi -inf, %v10325
          %v502 = vphi -inf, %v10326
          %v503 = vphi -inf, %v10327
          %v504 = vphi -inf, %v10328
          %v505 = vphi -inf, %v10329
          %v506 = vphi -inf, %v10330
          %v507 = vphi -inf, %v10331
          %v508 = vphi -inf, %v10332
          %v509 = vphi -inf, %v10333
          %v510 = vphi -inf, %v10334
          %v511 = vphi -inf, %v10335
          %v512 = vphi -inf, %v10336
          %v513 = vphi -inf, %v10337
          %v514 = vphi -inf, %v10338
          %v515 = vphi -inf, %v10339
          %v516 = vphi -inf, %v10340
          %v517 = vphi -inf, %v10341
          %v518 = vphi -inf, %v10342
          %v519 = vphi -inf, %v10343
          %v520 = vphi -inf, %v10344
          %v521 = vphi -inf, %v10345
          %v522 = vphi -inf, %v10346
          %v523 = vphi -inf, %v10347
          %v524 = vphi -inf, %v10348
          %v525 = vphi -inf, %v10349
          %v526 = vphi -inf, %v10350
          %v527 = vphi -inf, %v10351
          %v528 = vphi -inf, %v10352
          %v529 = vphi -inf, %v10353
          %v530 = vphi -inf, %v10354
          %v531 = vphi -inf, %v10355
          %v532 = vphi -inf, %v10356
          %v533 = vphi -inf, %v10357
          %v534 = vphi -inf, %v10358
          %v535 = vphi -inf, %v10359
          %v536 = vphi -inf, %v10360
          %v537 = vphi -inf, %v10361
          %v538 = vphi -inf, %v10362
          %v539 = vphi -inf, %v10363
          %v540 = vphi -inf, %v10364
          %v541 = vphi -inf, %v10365
          %v542 = vphi -inf, %v10366
          %v543 = vphi -inf, %v10367
          %v544 = vphi -inf, %v10368
          %v545 = vphi -inf, %v10369
          %v546 = vphi -inf, %v10370
          %v547 = vphi -inf, %v10371
          %v548 = vphi -inf, %v10372
          %v549 = vphi -inf, %v10373
          %v550 = vphi -inf, %v10374
          %v551 = vphi -inf, %v10375
          %v552 = vphi -inf, %v10376
          %v553 = vphi -inf, %v10377
          %v554 = vphi -inf, %v10378
          %v555 = vphi -inf, %v10379
          %v556 = vphi -inf, %v10380
          %v557 = vphi -inf, %v10381
          %v558 = vphi -inf, %v10382
          %v559 = vphi -inf, %v10383
          %v560 = vphi -inf, %v10384
        $region63: #{tpu_custom_call.1} parent=39 // loop_header_branch
          %495 = sbr.rel (%p493) target = $region67
        $region64: #{tpu_custom_call.1} parent=39 // loop_body
          %s561 = smul.u32 %s492, 128
          %s562 = sshra.s32 %s561, 7
          %s563 = sand.u32 %s561, 127
          %s564 = smul.addr %s562, 8
          %s565 = scalar_lea.vmem %s277, %s564 [#allocation2]
          %v566 = vld [vmem:[%s565] sm:$0xff]
          %v567 = vld [vmem:[%s565 + $0x10] sm:$0xff]
          %v568 = vunpack.c.0.s8 %v566
          %v569 = vunpack.c.1.s8 %v566
          %v570 = vunpack.c.2.s8 %v566
          %v571 = vunpack.c.3.s8 %v566
          %v572 = vunpack.c.0.s8 %v567
          %v573 = vunpack.c.1.s8 %v567
          %v574 = vunpack.c.2.s8 %v567
          %v575 = vunpack.c.3.s8 %v567
          %s576 = scalar_lea.vmem [#allocation5], %s561
          %v577 = vld [vmem:[%s576] sm:$0xff]
          %v578 = vld [vmem:[%s576 + $0x8] sm:$0xff]
          %v579 = vld [vmem:[%s576 + $0x10] sm:$0xff]
          %v580 = vld [vmem:[%s576 + $0x18] sm:$0xff]
          %v581 = vld [vmem:[%s576 + $0x20] sm:$0xff]
          %v582 = vld [vmem:[%s576 + $0x28] sm:$0xff]
          %v583 = vld [vmem:[%s576 + $0x30] sm:$0xff]
          %v584 = vld [vmem:[%s576 + $0x38] sm:$0xff]
          %v585 = vld [vmem:[%s576 + $0x40] sm:$0xff]
          %v586 = vld [vmem:[%s576 + $0x48] sm:$0xff]
          %v587 = vld [vmem:[%s576 + $0x50] sm:$0xff]
          %v588 = vld [vmem:[%s576 + $0x58] sm:$0xff]
          %v589 = vld [vmem:[%s576 + $0x60] sm:$0xff]
          %v590 = vld [vmem:[%s576 + $0x68] sm:$0xff]
          %v591 = vld [vmem:[%s576 + $0x70] sm:$0xff]
          %v592 = vld [vmem:[%s576 + $0x78] sm:$0xff]
          %v593 = vlaneseq
          %v594 = vshrl.u32 %v593, 7
          %v595 = vsub.s32 0, %v594
          %v596 = vrot.slane %v568, %v595
          %598 = vbcast.lane.b32.xlu0 %v596, 256
          %v599 = vpop.permute.xlu0 %598
          %s601 = sor.u32 256, 8
          %602 = vbcast.lane.b32.xlu0 %v596, %s601
          %v603 = vpop.permute.xlu0 %602
          %s605 = sor.u32 256, 16
          %606 = vbcast.lane.b32.xlu0 %v596, %s605
          %v607 = vpop.permute.xlu0 %606
          %s609 = sor.u32 256, 24
          %610 = vbcast.lane.b32.xlu0 %v596, %s609
          %v611 = vpop.permute.xlu0 %610
          %s613 = sor.u32 256, 32
          %614 = vbcast.lane.b32.xlu0 %v596, %s613
          %v615 = vpop.permute.xlu0 %614
          %s617 = sor.u32 256, 40
          %618 = vbcast.lane.b32.xlu0 %v596, %s617
          %v619 = vpop.permute.xlu0 %618
          %s621 = sor.u32 256, 48
          %622 = vbcast.lane.b32.xlu0 %v596, %s621
          %v623 = vpop.permute.xlu0 %622
          %s625 = sor.u32 256, 56
          %626 = vbcast.lane.b32.xlu0 %v596, %s625
          %v627 = vpop.permute.xlu0 %626
          %s629 = sor.u32 256, 64
          %630 = vbcast.lane.b32.xlu0 %v596, %s629
          %v631 = vpop.permute.xlu0 %630
          %s633 = sor.u32 256, 72
          %634 = vbcast.lane.b32.xlu0 %v596, %s633
          %v635 = vpop.permute.xlu0 %634
          %s637 = sor.u32 256, 80
          %638 = vbcast.lane.b32.xlu0 %v596, %s637
          %v639 = vpop.permute.xlu0 %638
          %s641 = sor.u32 256, 88
          %642 = vbcast.lane.b32.xlu0 %v596, %s641
          %v643 = vpop.permute.xlu0 %642
          %s645 = sor.u32 256, 96
          %646 = vbcast.lane.b32.xlu0 %v596, %s645
          %v647 = vpop.permute.xlu0 %646
          %s649 = sor.u32 256, 104
          %650 = vbcast.lane.b32.xlu0 %v596, %s649
          %v651 = vpop.permute.xlu0 %650
          %s653 = sor.u32 256, 112
          %654 = vbcast.lane.b32.xlu0 %v596, %s653
          %v655 = vpop.permute.xlu0 %654
          %s657 = sor.u32 256, 120
          %658 = vbcast.lane.b32.xlu0 %v596, %s657
          %v659 = vpop.permute.xlu0 %658
          %v660 = vlaneseq
          %v661 = vshrl.u32 %v660, 7
          %v662 = vsub.s32 1, %v661
          %v663 = vrot.slane %v568, %v662
          %665 = vbcast.lane.b32.xlu0 %v663, 256
          %v666 = vpop.permute.xlu0 %665
          %s668 = sor.u32 256, 8
          %669 = vbcast.lane.b32.xlu0 %v663, %s668
          %v670 = vpop.permute.xlu0 %669
          %s672 = sor.u32 256, 16
          %673 = vbcast.lane.b32.xlu0 %v663, %s672
          %v674 = vpop.permute.xlu0 %673
          %s676 = sor.u32 256, 24
          %677 = vbcast.lane.b32.xlu0 %v663, %s676
          %v678 = vpop.permute.xlu0 %677
          %s680 = sor.u32 256, 32
          %681 = vbcast.lane.b32.xlu0 %v663, %s680
          %v682 = vpop.permute.xlu0 %681
          %s684 = sor.u32 256, 40
          %685 = vbcast.lane.b32.xlu0 %v663, %s684
          %v686 = vpop.permute.xlu0 %685
          %s688 = sor.u32 256, 48
          %689 = vbcast.lane.b32.xlu0 %v663, %s688
          %v690 = vpop.permute.xlu0 %689
          %s692 = sor.u32 256, 56
          %693 = vbcast.lane.b32.xlu0 %v663, %s692
          %v694 = vpop.permute.xlu0 %693
          %s696 = sor.u32 256, 64
          %697 = vbcast.lane.b32.xlu0 %v663, %s696
          %v698 = vpop.permute.xlu0 %697
          %s700 = sor.u32 256, 72
          %701 = vbcast.lane.b32.xlu0 %v663, %s700
          %v702 = vpop.permute.xlu0 %701
          %s704 = sor.u32 256, 80
          %705 = vbcast.lane.b32.xlu0 %v663, %s704
          %v706 = vpop.permute.xlu0 %705
          %s708 = sor.u32 256, 88
          %709 = vbcast.lane.b32.xlu0 %v663, %s708
          %v710 = vpop.permute.xlu0 %709
          %s712 = sor.u32 256, 96
          %713 = vbcast.lane.b32.xlu0 %v663, %s712
          %v714 = vpop.permute.xlu0 %713
          %s716 = sor.u32 256, 104
          %717 = vbcast.lane.b32.xlu0 %v663, %s716
          %v718 = vpop.permute.xlu0 %717
          %s720 = sor.u32 256, 112
          %721 = vbcast.lane.b32.xlu0 %v663, %s720
          %v722 = vpop.permute.xlu0 %721
          %s724 = sor.u32 256, 120
          %725 = vbcast.lane.b32.xlu0 %v663, %s724
          %v726 = vpop.permute.xlu0 %725
          %v727 = vlaneseq
          %v728 = vshrl.u32 %v727, 7
          %v729 = vsub.s32 2, %v728
          %v730 = vrot.slane %v568, %v729
          %732 = vbcast.lane.b32.xlu0 %v730, 256
          %v733 = vpop.permute.xlu0 %732
          %s735 = sor.u32 256, 8
          %736 = vbcast.lane.b32.xlu0 %v730, %s735
          %v737 = vpop.permute.xlu0 %736
          %s739 = sor.u32 256, 16
          %740 = vbcast.lane.b32.xlu0 %v730, %s739
          %v741 = vpop.permute.xlu0 %740
          %s743 = sor.u32 256, 24
          %744 = vbcast.lane.b32.xlu0 %v730, %s743
          %v745 = vpop.permute.xlu0 %744
          %s747 = sor.u32 256, 32
          %748 = vbcast.lane.b32.xlu0 %v730, %s747
          %v749 = vpop.permute.xlu0 %748
          %s751 = sor.u32 256, 40
          %752 = vbcast.lane.b32.xlu0 %v730, %s751
          %v753 = vpop.permute.xlu0 %752
          %s755 = sor.u32 256, 48
          %756 = vbcast.lane.b32.xlu0 %v730, %s755
          %v757 = vpop.permute.xlu0 %756
          %s759 = sor.u32 256, 56
          %760 = vbcast.lane.b32.xlu0 %v730, %s759
          %v761 = vpop.permute.xlu0 %760
          %s763 = sor.u32 256, 64
          %764 = vbcast.lane.b32.xlu0 %v730, %s763
          %v765 = vpop.permute.xlu0 %764
          %s767 = sor.u32 256, 72
          %768 = vbcast.lane.b32.xlu0 %v730, %s767
          %v769 = vpop.permute.xlu0 %768
          %s771 = sor.u32 256, 80
          %772 = vbcast.lane.b32.xlu0 %v730, %s771
          %v773 = vpop.permute.xlu0 %772
          %s775 = sor.u32 256, 88
          %776 = vbcast.lane.b32.xlu0 %v730, %s775
          %v777 = vpop.permute.xlu0 %776
          %s779 = sor.u32 256, 96
          %780 = vbcast.lane.b32.xlu0 %v730, %s779
          %v781 = vpop.permute.xlu0 %780
          %s783 = sor.u32 256, 104
          %784 = vbcast.lane.b32.xlu0 %v730, %s783
          %v785 = vpop.permute.xlu0 %784
          %s787 = sor.u32 256, 112
          %788 = vbcast.lane.b32.xlu0 %v730, %s787
          %v789 = vpop.permute.xlu0 %788
          %s791 = sor.u32 256, 120
          %792 = vbcast.lane.b32.xlu0 %v730, %s791
          %v793 = vpop.permute.xlu0 %792
          %v794 = vlaneseq
          %v795 = vshrl.u32 %v794, 7
          %v796 = vsub.s32 3, %v795
          %v797 = vrot.slane %v568, %v796
          %799 = vbcast.lane.b32.xlu0 %v797, 256
          %v800 = vpop.permute.xlu0 %799
          %s802 = sor.u32 256, 8
          %803 = vbcast.lane.b32.xlu0 %v797, %s802
          %v804 = vpop.permute.xlu0 %803
          %s806 = sor.u32 256, 16
          %807 = vbcast.lane.b32.xlu0 %v797, %s806
          %v808 = vpop.permute.xlu0 %807
          %s810 = sor.u32 256, 24
          %811 = vbcast.lane.b32.xlu0 %v797, %s810
          %v812 = vpop.permute.xlu0 %811
          %s814 = sor.u32 256, 32
          %815 = vbcast.lane.b32.xlu0 %v797, %s814
          %v816 = vpop.permute.xlu0 %815
          %s818 = sor.u32 256, 40
          %819 = vbcast.lane.b32.xlu0 %v797, %s818
          %v820 = vpop.permute.xlu0 %819
          %s822 = sor.u32 256, 48
          %823 = vbcast.lane.b32.xlu0 %v797, %s822
          %v824 = vpop.permute.xlu0 %823
          %s826 = sor.u32 256, 56
          %827 = vbcast.lane.b32.xlu0 %v797, %s826
          %v828 = vpop.permute.xlu0 %827
          %s830 = sor.u32 256, 64
          %831 = vbcast.lane.b32.xlu0 %v797, %s830
          %v832 = vpop.permute.xlu0 %831
          %s834 = sor.u32 256, 72
          %835 = vbcast.lane.b32.xlu0 %v797, %s834
          %v836 = vpop.permute.xlu0 %835
          %s838 = sor.u32 256, 80
          %839 = vbcast.lane.b32.xlu0 %v797, %s838
          %v840 = vpop.permute.xlu0 %839
          %s842 = sor.u32 256, 88
          %843 = vbcast.lane.b32.xlu0 %v797, %s842
          %v844 = vpop.permute.xlu0 %843
          %s846 = sor.u32 256, 96
          %847 = vbcast.lane.b32.xlu0 %v797, %s846
          %v848 = vpop.permute.xlu0 %847
          %s850 = sor.u32 256, 104
          %851 = vbcast.lane.b32.xlu0 %v797, %s850
          %v852 = vpop.permute.xlu0 %851
          %s854 = sor.u32 256, 112
          %855 = vbcast.lane.b32.xlu0 %v797, %s854
          %v856 = vpop.permute.xlu0 %855
          %s858 = sor.u32 256, 120
          %859 = vbcast.lane.b32.xlu0 %v797, %s858
          %v860 = vpop.permute.xlu0 %859
          %v861 = vlaneseq
          %v862 = vshrl.u32 %v861, 7
          %v863 = vsub.s32 4, %v862
          %v864 = vrot.slane %v568, %v863
          %866 = vbcast.lane.b32.xlu0 %v864, 256
          %v867 = vpop.permute.xlu0 %866
          %s869 = sor.u32 256, 8
          %870 = vbcast.lane.b32.xlu0 %v864, %s869
          %v871 = vpop.permute.xlu0 %870
          %s873 = sor.u32 256, 16
          %874 = vbcast.lane.b32.xlu0 %v864, %s873
          %v875 = vpop.permute.xlu0 %874
          %s877 = sor.u32 256, 24
          %878 = vbcast.lane.b32.xlu0 %v864, %s877
          %v879 = vpop.permute.xlu0 %878
          %s881 = sor.u32 256, 32
          %882 = vbcast.lane.b32.xlu0 %v864, %s881
          %v883 = vpop.permute.xlu0 %882
          %s885 = sor.u32 256, 40
          %886 = vbcast.lane.b32.xlu0 %v864, %s885
          %v887 = vpop.permute.xlu0 %886
          %s889 = sor.u32 256, 48
          %890 = vbcast.lane.b32.xlu0 %v864, %s889
          %v891 = vpop.permute.xlu0 %890
          %s893 = sor.u32 256, 56
          %894 = vbcast.lane.b32.xlu0 %v864, %s893
          %v895 = vpop.permute.xlu0 %894
          %s897 = sor.u32 256, 64
          %898 = vbcast.lane.b32.xlu0 %v864, %s897
          %v899 = vpop.permute.xlu0 %898
          %s901 = sor.u32 256, 72
          %902 = vbcast.lane.b32.xlu0 %v864, %s901
          %v903 = vpop.permute.xlu0 %902
          %s905 = sor.u32 256, 80
          %906 = vbcast.lane.b32.xlu0 %v864, %s905
          %v907 = vpop.permute.xlu0 %906
          %s909 = sor.u32 256, 88
          %910 = vbcast.lane.b32.xlu0 %v864, %s909
          %v911 = vpop.permute.xlu0 %910
          %s913 = sor.u32 256, 96
          %914 = vbcast.lane.b32.xlu0 %v864, %s913
          %v915 = vpop.permute.xlu0 %914
          %s917 = sor.u32 256, 104
          %918 = vbcast.lane.b32.xlu0 %v864, %s917
          %v919 = vpop.permute.xlu0 %918
          %s921 = sor.u32 256, 112
          %922 = vbcast.lane.b32.xlu0 %v864, %s921
          %v923 = vpop.permute.xlu0 %922
          %s925 = sor.u32 256, 120
          %926 = vbcast.lane.b32.xlu0 %v864, %s925
          %v927 = vpop.permute.xlu0 %926
          %v928 = vlaneseq
          %v929 = vshrl.u32 %v928, 7
          %v930 = vsub.s32 5, %v929
          %v931 = vrot.slane %v568, %v930
          %933 = vbcast.lane.b32.xlu0 %v931, 256
          %v934 = vpop.permute.xlu0 %933
          %s936 = sor.u32 256, 8
          %937 = vbcast.lane.b32.xlu0 %v931, %s936
          %v938 = vpop.permute.xlu0 %937
          %s940 = sor.u32 256, 16
          %941 = vbcast.lane.b32.xlu0 %v931, %s940
          %v942 = vpop.permute.xlu0 %941
          %s944 = sor.u32 256, 24
          %945 = vbcast.lane.b32.xlu0 %v931, %s944
          %v946 = vpop.permute.xlu0 %945
          %s948 = sor.u32 256, 32
          %949 = vbcast.lane.b32.xlu0 %v931, %s948
          %v950 = vpop.permute.xlu0 %949
          %s952 = sor.u32 256, 40
          %953 = vbcast.lane.b32.xlu0 %v931, %s952
          %v954 = vpop.permute.xlu0 %953
          %s956 = sor.u32 256, 48
          %957 = vbcast.lane.b32.xlu0 %v931, %s956
          %v958 = vpop.permute.xlu0 %957
          %s960 = sor.u32 256, 56
          %961 = vbcast.lane.b32.xlu0 %v931, %s960
          %v962 = vpop.permute.xlu0 %961
          %s964 = sor.u32 256, 64
          %965 = vbcast.lane.b32.xlu0 %v931, %s964
          %v966 = vpop.permute.xlu0 %965
          %s968 = sor.u32 256, 72
          %969 = vbcast.lane.b32.xlu0 %v931, %s968
          %v970 = vpop.permute.xlu0 %969
          %s972 = sor.u32 256, 80
          %973 = vbcast.lane.b32.xlu0 %v931, %s972
          %v974 = vpop.permute.xlu0 %973
          %s976 = sor.u32 256, 88
          %977 = vbcast.lane.b32.xlu0 %v931, %s976
          %v978 = vpop.permute.xlu0 %977
          %s980 = sor.u32 256, 96
          %981 = vbcast.lane.b32.xlu0 %v931, %s980
          %v982 = vpop.permute.xlu0 %981
          %s984 = sor.u32 256, 104
          %985 = vbcast.lane.b32.xlu0 %v931, %s984
          %v986 = vpop.permute.xlu0 %985
          %s988 = sor.u32 256, 112
          %989 = vbcast.lane.b32.xlu0 %v931, %s988
          %v990 = vpop.permute.xlu0 %989
          %s992 = sor.u32 256, 120
          %993 = vbcast.lane.b32.xlu0 %v931, %s992
          %v994 = vpop.permute.xlu0 %993
          %v995 = vlaneseq
          %v996 = vshrl.u32 %v995, 7
          %v997 = vsub.s32 6, %v996
          %v998 = vrot.slane %v568, %v997
          %1000 = vbcast.lane.b32.xlu0 %v998, 256
          %v1001 = vpop.permute.xlu0 %1000
          %s1003 = sor.u32 256, 8
          %1004 = vbcast.lane.b32.xlu0 %v998, %s1003
          %v1005 = vpop.permute.xlu0 %1004
          %s1007 = sor.u32 256, 16
          %1008 = vbcast.lane.b32.xlu0 %v998, %s1007
          %v1009 = vpop.permute.xlu0 %1008
          %s1011 = sor.u32 256, 24
          %1012 = vbcast.lane.b32.xlu0 %v998, %s1011
          %v1013 = vpop.permute.xlu0 %1012
          %s1015 = sor.u32 256, 32
          %1016 = vbcast.lane.b32.xlu0 %v998, %s1015
          %v1017 = vpop.permute.xlu0 %1016
          %s1019 = sor.u32 256, 40
          %1020 = vbcast.lane.b32.xlu0 %v998, %s1019
          %v1021 = vpop.permute.xlu0 %1020
          %s1023 = sor.u32 256, 48
          %1024 = vbcast.lane.b32.xlu0 %v998, %s1023
          %v1025 = vpop.permute.xlu0 %1024
          %s1027 = sor.u32 256, 56
          %1028 = vbcast.lane.b32.xlu0 %v998, %s1027
          %v1029 = vpop.permute.xlu0 %1028
          %s1031 = sor.u32 256, 64
          %1032 = vbcast.lane.b32.xlu0 %v998, %s1031
          %v1033 = vpop.permute.xlu0 %1032
          %s1035 = sor.u32 256, 72
          %1036 = vbcast.lane.b32.xlu0 %v998, %s1035
          %v1037 = vpop.permute.xlu0 %1036
          %s1039 = sor.u32 256, 80
          %1040 = vbcast.lane.b32.xlu0 %v998, %s1039
          %v1041 = vpop.permute.xlu0 %1040
          %s1043 = sor.u32 256, 88
          %1044 = vbcast.lane.b32.xlu0 %v998, %s1043
          %v1045 = vpop.permute.xlu0 %1044
          %s1047 = sor.u32 256, 96
          %1048 = vbcast.lane.b32.xlu0 %v998, %s1047
          %v1049 = vpop.permute.xlu0 %1048
          %s1051 = sor.u32 256, 104
          %1052 = vbcast.lane.b32.xlu0 %v998, %s1051
          %v1053 = vpop.permute.xlu0 %1052
          %s1055 = sor.u32 256, 112
          %1056 = vbcast.lane.b32.xlu0 %v998, %s1055
          %v1057 = vpop.permute.xlu0 %1056
          %s1059 = sor.u32 256, 120
          %1060 = vbcast.lane.b32.xlu0 %v998, %s1059
          %v1061 = vpop.permute.xlu0 %1060
          %v1062 = vlaneseq
          %v1063 = vshrl.u32 %v1062, 7
          %v1064 = vsub.s32 7, %v1063
          %v1065 = vrot.slane %v568, %v1064
          %1067 = vbcast.lane.b32.xlu0 %v1065, 256
          %v1068 = vpop.permute.xlu0 %1067
          %s1070 = sor.u32 256, 8
          %1071 = vbcast.lane.b32.xlu0 %v1065, %s1070
          %v1072 = vpop.permute.xlu0 %1071
          %s1074 = sor.u32 256, 16
          %1075 = vbcast.lane.b32.xlu0 %v1065, %s1074
          %v1076 = vpop.permute.xlu0 %1075
          %s1078 = sor.u32 256, 24
          %1079 = vbcast.lane.b32.xlu0 %v1065, %s1078
          %v1080 = vpop.permute.xlu0 %1079
          %s1082 = sor.u32 256, 32
          %1083 = vbcast.lane.b32.xlu0 %v1065, %s1082
          %v1084 = vpop.permute.xlu0 %1083
          %s1086 = sor.u32 256, 40
          %1087 = vbcast.lane.b32.xlu0 %v1065, %s1086
          %v1088 = vpop.permute.xlu0 %1087
          %s1090 = sor.u32 256, 48
          %1091 = vbcast.lane.b32.xlu0 %v1065, %s1090
          %v1092 = vpop.permute.xlu0 %1091
          %s1094 = sor.u32 256, 56
          %1095 = vbcast.lane.b32.xlu0 %v1065, %s1094
          %v1096 = vpop.permute.xlu0 %1095
          %s1098 = sor.u32 256, 64
          %1099 = vbcast.lane.b32.xlu0 %v1065, %s1098
          %v1100 = vpop.permute.xlu0 %1099
          %s1102 = sor.u32 256, 72
          %1103 = vbcast.lane.b32.xlu0 %v1065, %s1102
          %v1104 = vpop.permute.xlu0 %1103
          %s1106 = sor.u32 256, 80
          %1107 = vbcast.lane.b32.xlu0 %v1065, %s1106
          %v1108 = vpop.permute.xlu0 %1107
          %s1110 = sor.u32 256, 88
          %1111 = vbcast.lane.b32.xlu0 %v1065, %s1110
          %v1112 = vpop.permute.xlu0 %1111
          %s1114 = sor.u32 256, 96
          %1115 = vbcast.lane.b32.xlu0 %v1065, %s1114
          %v1116 = vpop.permute.xlu0 %1115
          %s1118 = sor.u32 256, 104
          %1119 = vbcast.lane.b32.xlu0 %v1065, %s1118
          %v1120 = vpop.permute.xlu0 %1119
          %s1122 = sor.u32 256, 112
          %1123 = vbcast.lane.b32.xlu0 %v1065, %s1122
          %v1124 = vpop.permute.xlu0 %1123
          %s1126 = sor.u32 256, 120
          %1127 = vbcast.lane.b32.xlu0 %v1065, %s1126
          %v1128 = vpop.permute.xlu0 %1127
          %v1129 = vlaneseq
          %v1130 = vshrl.u32 %v1129, 7
          %v1131 = vsub.s32 0, %v1130
          %v1132 = vrot.slane %v569, %v1131
          %1134 = vbcast.lane.b32.xlu0 %v1132, 256
          %v1135 = vpop.permute.xlu0 %1134
          %s1137 = sor.u32 256, 8
          %1138 = vbcast.lane.b32.xlu0 %v1132, %s1137
          %v1139 = vpop.permute.xlu0 %1138
          %s1141 = sor.u32 256, 16
          %1142 = vbcast.lane.b32.xlu0 %v1132, %s1141
          %v1143 = vpop.permute.xlu0 %1142
          %s1145 = sor.u32 256, 24
          %1146 = vbcast.lane.b32.xlu0 %v1132, %s1145
          %v1147 = vpop.permute.xlu0 %1146
          %s1149 = sor.u32 256, 32
          %1150 = vbcast.lane.b32.xlu0 %v1132, %s1149
          %v1151 = vpop.permute.xlu0 %1150
          %s1153 = sor.u32 256, 40
          %1154 = vbcast.lane.b32.xlu0 %v1132, %s1153
          %v1155 = vpop.permute.xlu0 %1154
          %s1157 = sor.u32 256, 48
          %1158 = vbcast.lane.b32.xlu0 %v1132, %s1157
          %v1159 = vpop.permute.xlu0 %1158
          %s1161 = sor.u32 256, 56
          %1162 = vbcast.lane.b32.xlu0 %v1132, %s1161
          %v1163 = vpop.permute.xlu0 %1162
          %s1165 = sor.u32 256, 64
          %1166 = vbcast.lane.b32.xlu0 %v1132, %s1165
          %v1167 = vpop.permute.xlu0 %1166
          %s1169 = sor.u32 256, 72
          %1170 = vbcast.lane.b32.xlu0 %v1132, %s1169
          %v1171 = vpop.permute.xlu0 %1170
          %s1173 = sor.u32 256, 80
          %1174 = vbcast.lane.b32.xlu0 %v1132, %s1173
          %v1175 = vpop.permute.xlu0 %1174
          %s1177 = sor.u32 256, 88
          %1178 = vbcast.lane.b32.xlu0 %v1132, %s1177
          %v1179 = vpop.permute.xlu0 %1178
          %s1181 = sor.u32 256, 96
          %1182 = vbcast.lane.b32.xlu0 %v1132, %s1181
          %v1183 = vpop.permute.xlu0 %1182
          %s1185 = sor.u32 256, 104
          %1186 = vbcast.lane.b32.xlu0 %v1132, %s1185
          %v1187 = vpop.permute.xlu0 %1186
          %s1189 = sor.u32 256, 112
          %1190 = vbcast.lane.b32.xlu0 %v1132, %s1189
          %v1191 = vpop.permute.xlu0 %1190
          %s1193 = sor.u32 256, 120
          %1194 = vbcast.lane.b32.xlu0 %v1132, %s1193
          %v1195 = vpop.permute.xlu0 %1194
          %v1196 = vlaneseq
          %v1197 = vshrl.u32 %v1196, 7
          %v1198 = vsub.s32 1, %v1197
          %v1199 = vrot.slane %v569, %v1198
          %1201 = vbcast.lane.b32.xlu0 %v1199, 256
          %v1202 = vpop.permute.xlu0 %1201
          %s1204 = sor.u32 256, 8
          %1205 = vbcast.lane.b32.xlu0 %v1199, %s1204
          %v1206 = vpop.permute.xlu0 %1205
          %s1208 = sor.u32 256, 16
          %1209 = vbcast.lane.b32.xlu0 %v1199, %s1208
          %v1210 = vpop.permute.xlu0 %1209
          %s1212 = sor.u32 256, 24
          %1213 = vbcast.lane.b32.xlu0 %v1199, %s1212
          %v1214 = vpop.permute.xlu0 %1213
          %s1216 = sor.u32 256, 32
          %1217 = vbcast.lane.b32.xlu0 %v1199, %s1216
          %v1218 = vpop.permute.xlu0 %1217
          %s1220 = sor.u32 256, 40
          %1221 = vbcast.lane.b32.xlu0 %v1199, %s1220
          %v1222 = vpop.permute.xlu0 %1221
          %s1224 = sor.u32 256, 48
          %1225 = vbcast.lane.b32.xlu0 %v1199, %s1224
          %v1226 = vpop.permute.xlu0 %1225
          %s1228 = sor.u32 256, 56
          %1229 = vbcast.lane.b32.xlu0 %v1199, %s1228
          %v1230 = vpop.permute.xlu0 %1229
          %s1232 = sor.u32 256, 64
          %1233 = vbcast.lane.b32.xlu0 %v1199, %s1232
          %v1234 = vpop.permute.xlu0 %1233
          %s1236 = sor.u32 256, 72
          %1237 = vbcast.lane.b32.xlu0 %v1199, %s1236
          %v1238 = vpop.permute.xlu0 %1237
          %s1240 = sor.u32 256, 80
          %1241 = vbcast.lane.b32.xlu0 %v1199, %s1240
          %v1242 = vpop.permute.xlu0 %1241
          %s1244 = sor.u32 256, 88
          %1245 = vbcast.lane.b32.xlu0 %v1199, %s1244
          %v1246 = vpop.permute.xlu0 %1245
          %s1248 = sor.u32 256, 96
          %1249 = vbcast.lane.b32.xlu0 %v1199, %s1248
          %v1250 = vpop.permute.xlu0 %1249
          %s1252 = sor.u32 256, 104
          %1253 = vbcast.lane.b32.xlu0 %v1199, %s1252
          %v1254 = vpop.permute.xlu0 %1253
          %s1256 = sor.u32 256, 112
          %1257 = vbcast.lane.b32.xlu0 %v1199, %s1256
          %v1258 = vpop.permute.xlu0 %1257
          %s1260 = sor.u32 256, 120
          %1261 = vbcast.lane.b32.xlu0 %v1199, %s1260
          %v1262 = vpop.permute.xlu0 %1261
          %v1263 = vlaneseq
          %v1264 = vshrl.u32 %v1263, 7
          %v1265 = vsub.s32 2, %v1264
          %v1266 = vrot.slane %v569, %v1265
          %1268 = vbcast.lane.b32.xlu0 %v1266, 256
          %v1269 = vpop.permute.xlu0 %1268
          %s1271 = sor.u32 256, 8
          %1272 = vbcast.lane.b32.xlu0 %v1266, %s1271
          %v1273 = vpop.permute.xlu0 %1272
          %s1275 = sor.u32 256, 16
          %1276 = vbcast.lane.b32.xlu0 %v1266, %s1275
          %v1277 = vpop.permute.xlu0 %1276
          %s1279 = sor.u32 256, 24
          %1280 = vbcast.lane.b32.xlu0 %v1266, %s1279
          %v1281 = vpop.permute.xlu0 %1280
          %s1283 = sor.u32 256, 32
          %1284 = vbcast.lane.b32.xlu0 %v1266, %s1283
          %v1285 = vpop.permute.xlu0 %1284
          %s1287 = sor.u32 256, 40
          %1288 = vbcast.lane.b32.xlu0 %v1266, %s1287
          %v1289 = vpop.permute.xlu0 %1288
          %s1291 = sor.u32 256, 48
          %1292 = vbcast.lane.b32.xlu0 %v1266, %s1291
          %v1293 = vpop.permute.xlu0 %1292
          %s1295 = sor.u32 256, 56
          %1296 = vbcast.lane.b32.xlu0 %v1266, %s1295
          %v1297 = vpop.permute.xlu0 %1296
          %s1299 = sor.u32 256, 64
          %1300 = vbcast.lane.b32.xlu0 %v1266, %s1299
          %v1301 = vpop.permute.xlu0 %1300
          %s1303 = sor.u32 256, 72
          %1304 = vbcast.lane.b32.xlu0 %v1266, %s1303
          %v1305 = vpop.permute.xlu0 %1304
          %s1307 = sor.u32 256, 80
          %1308 = vbcast.lane.b32.xlu0 %v1266, %s1307
          %v1309 = vpop.permute.xlu0 %1308
          %s1311 = sor.u32 256, 88
          %1312 = vbcast.lane.b32.xlu0 %v1266, %s1311
          %v1313 = vpop.permute.xlu0 %1312
          %s1315 = sor.u32 256, 96
          %1316 = vbcast.lane.b32.xlu0 %v1266, %s1315
          %v1317 = vpop.permute.xlu0 %1316
          %s1319 = sor.u32 256, 104
          %1320 = vbcast.lane.b32.xlu0 %v1266, %s1319
          %v1321 = vpop.permute.xlu0 %1320
          %s1323 = sor.u32 256, 112
          %1324 = vbcast.lane.b32.xlu0 %v1266, %s1323
          %v1325 = vpop.permute.xlu0 %1324
          %s1327 = sor.u32 256, 120
          %1328 = vbcast.lane.b32.xlu0 %v1266, %s1327
          %v1329 = vpop.permute.xlu0 %1328
          %v1330 = vlaneseq
          %v1331 = vshrl.u32 %v1330, 7
          %v1332 = vsub.s32 3, %v1331
          %v1333 = vrot.slane %v569, %v1332
          %1335 = vbcast.lane.b32.xlu0 %v1333, 256
          %v1336 = vpop.permute.xlu0 %1335
          %s1338 = sor.u32 256, 8
          %1339 = vbcast.lane.b32.xlu0 %v1333, %s1338
          %v1340 = vpop.permute.xlu0 %1339
          %s1342 = sor.u32 256, 16
          %1343 = vbcast.lane.b32.xlu0 %v1333, %s1342
          %v1344 = vpop.permute.xlu0 %1343
          %s1346 = sor.u32 256, 24
          %1347 = vbcast.lane.b32.xlu0 %v1333, %s1346
          %v1348 = vpop.permute.xlu0 %1347
          %s1350 = sor.u32 256, 32
          %1351 = vbcast.lane.b32.xlu0 %v1333, %s1350
          %v1352 = vpop.permute.xlu0 %1351
          %s1354 = sor.u32 256, 40
          %1355 = vbcast.lane.b32.xlu0 %v1333, %s1354
          %v1356 = vpop.permute.xlu0 %1355
          %s1358 = sor.u32 256, 48
          %1359 = vbcast.lane.b32.xlu0 %v1333, %s1358
          %v1360 = vpop.permute.xlu0 %1359
          %s1362 = sor.u32 256, 56
          %1363 = vbcast.lane.b32.xlu0 %v1333, %s1362
          %v1364 = vpop.permute.xlu0 %1363
          %s1366 = sor.u32 256, 64
          %1367 = vbcast.lane.b32.xlu0 %v1333, %s1366
          %v1368 = vpop.permute.xlu0 %1367
          %s1370 = sor.u32 256, 72
          %1371 = vbcast.lane.b32.xlu0 %v1333, %s1370
          %v1372 = vpop.permute.xlu0 %1371
          %s1374 = sor.u32 256, 80
          %1375 = vbcast.lane.b32.xlu0 %v1333, %s1374
          %v1376 = vpop.permute.xlu0 %1375
          %s1378 = sor.u32 256, 88
          %1379 = vbcast.lane.b32.xlu0 %v1333, %s1378
          %v1380 = vpop.permute.xlu0 %1379
          %s1382 = sor.u32 256, 96
          %1383 = vbcast.lane.b32.xlu0 %v1333, %s1382
          %v1384 = vpop.permute.xlu0 %1383
          %s1386 = sor.u32 256, 104
          %1387 = vbcast.lane.b32.xlu0 %v1333, %s1386
          %v1388 = vpop.permute.xlu0 %1387
          %s1390 = sor.u32 256, 112
          %1391 = vbcast.lane.b32.xlu0 %v1333, %s1390
          %v1392 = vpop.permute.xlu0 %1391
          %s1394 = sor.u32 256, 120
          %1395 = vbcast.lane.b32.xlu0 %v1333, %s1394
          %v1396 = vpop.permute.xlu0 %1395
          %v1397 = vlaneseq
          %v1398 = vshrl.u32 %v1397, 7
          %v1399 = vsub.s32 4, %v1398
          %v1400 = vrot.slane %v569, %v1399
          %1402 = vbcast.lane.b32.xlu0 %v1400, 256
          %v1403 = vpop.permute.xlu0 %1402
          %s1405 = sor.u32 256, 8
          %1406 = vbcast.lane.b32.xlu0 %v1400, %s1405
          %v1407 = vpop.permute.xlu0 %1406
          %s1409 = sor.u32 256, 16
          %1410 = vbcast.lane.b32.xlu0 %v1400, %s1409
          %v1411 = vpop.permute.xlu0 %1410
          %s1413 = sor.u32 256, 24
          %1414 = vbcast.lane.b32.xlu0 %v1400, %s1413
          %v1415 = vpop.permute.xlu0 %1414
          %s1417 = sor.u32 256, 32
          %1418 = vbcast.lane.b32.xlu0 %v1400, %s1417
          %v1419 = vpop.permute.xlu0 %1418
          %s1421 = sor.u32 256, 40
          %1422 = vbcast.lane.b32.xlu0 %v1400, %s1421
          %v1423 = vpop.permute.xlu0 %1422
          %s1425 = sor.u32 256, 48
          %1426 = vbcast.lane.b32.xlu0 %v1400, %s1425
          %v1427 = vpop.permute.xlu0 %1426
          %s1429 = sor.u32 256, 56
          %1430 = vbcast.lane.b32.xlu0 %v1400, %s1429
          %v1431 = vpop.permute.xlu0 %1430
          %s1433 = sor.u32 256, 64
          %1434 = vbcast.lane.b32.xlu0 %v1400, %s1433
          %v1435 = vpop.permute.xlu0 %1434
          %s1437 = sor.u32 256, 72
          %1438 = vbcast.lane.b32.xlu0 %v1400, %s1437
          %v1439 = vpop.permute.xlu0 %1438
          %s1441 = sor.u32 256, 80
          %1442 = vbcast.lane.b32.xlu0 %v1400, %s1441
          %v1443 = vpop.permute.xlu0 %1442
          %s1445 = sor.u32 256, 88
          %1446 = vbcast.lane.b32.xlu0 %v1400, %s1445
          %v1447 = vpop.permute.xlu0 %1446
          %s1449 = sor.u32 256, 96
          %1450 = vbcast.lane.b32.xlu0 %v1400, %s1449
          %v1451 = vpop.permute.xlu0 %1450
          %s1453 = sor.u32 256, 104
          %1454 = vbcast.lane.b32.xlu0 %v1400, %s1453
          %v1455 = vpop.permute.xlu0 %1454
          %s1457 = sor.u32 256, 112
          %1458 = vbcast.lane.b32.xlu0 %v1400, %s1457
          %v1459 = vpop.permute.xlu0 %1458
          %s1461 = sor.u32 256, 120
          %1462 = vbcast.lane.b32.xlu0 %v1400, %s1461
          %v1463 = vpop.permute.xlu0 %1462
          %v1464 = vlaneseq
          %v1465 = vshrl.u32 %v1464, 7
          %v1466 = vsub.s32 5, %v1465
          %v1467 = vrot.slane %v569, %v1466
          %1469 = vbcast.lane.b32.xlu0 %v1467, 256
          %v1470 = vpop.permute.xlu0 %1469
          %s1472 = sor.u32 256, 8
          %1473 = vbcast.lane.b32.xlu0 %v1467, %s1472
          %v1474 = vpop.permute.xlu0 %1473
          %s1476 = sor.u32 256, 16
          %1477 = vbcast.lane.b32.xlu0 %v1467, %s1476
          %v1478 = vpop.permute.xlu0 %1477
          %s1480 = sor.u32 256, 24
          %1481 = vbcast.lane.b32.xlu0 %v1467, %s1480
          %v1482 = vpop.permute.xlu0 %1481
          %s1484 = sor.u32 256, 32
          %1485 = vbcast.lane.b32.xlu0 %v1467, %s1484
          %v1486 = vpop.permute.xlu0 %1485
          %s1488 = sor.u32 256, 40
          %1489 = vbcast.lane.b32.xlu0 %v1467, %s1488
          %v1490 = vpop.permute.xlu0 %1489
          %s1492 = sor.u32 256, 48
          %1493 = vbcast.lane.b32.xlu0 %v1467, %s1492
          %v1494 = vpop.permute.xlu0 %1493
          %s1496 = sor.u32 256, 56
          %1497 = vbcast.lane.b32.xlu0 %v1467, %s1496
          %v1498 = vpop.permute.xlu0 %1497
          %s1500 = sor.u32 256, 64
          %1501 = vbcast.lane.b32.xlu0 %v1467, %s1500
          %v1502 = vpop.permute.xlu0 %1501
          %s1504 = sor.u32 256, 72
          %1505 = vbcast.lane.b32.xlu0 %v1467, %s1504
          %v1506 = vpop.permute.xlu0 %1505
          %s1508 = sor.u32 256, 80
          %1509 = vbcast.lane.b32.xlu0 %v1467, %s1508
          %v1510 = vpop.permute.xlu0 %1509
          %s1512 = sor.u32 256, 88
          %1513 = vbcast.lane.b32.xlu0 %v1467, %s1512
          %v1514 = vpop.permute.xlu0 %1513
          %s1516 = sor.u32 256, 96
          %1517 = vbcast.lane.b32.xlu0 %v1467, %s1516
          %v1518 = vpop.permute.xlu0 %1517
          %s1520 = sor.u32 256, 104
          %1521 = vbcast.lane.b32.xlu0 %v1467, %s1520
          %v1522 = vpop.permute.xlu0 %1521
          %s1524 = sor.u32 256, 112
          %1525 = vbcast.lane.b32.xlu0 %v1467, %s1524
          %v1526 = vpop.permute.xlu0 %1525
          %s1528 = sor.u32 256, 120
          %1529 = vbcast.lane.b32.xlu0 %v1467, %s1528
          %v1530 = vpop.permute.xlu0 %1529
          %v1531 = vlaneseq
          %v1532 = vshrl.u32 %v1531, 7
          %v1533 = vsub.s32 6, %v1532
          %v1534 = vrot.slane %v569, %v1533
          %1536 = vbcast.lane.b32.xlu0 %v1534, 256
          %v1537 = vpop.permute.xlu0 %1536
          %s1539 = sor.u32 256, 8
          %1540 = vbcast.lane.b32.xlu0 %v1534, %s1539
          %v1541 = vpop.permute.xlu0 %1540
          %s1543 = sor.u32 256, 16
          %1544 = vbcast.lane.b32.xlu0 %v1534, %s1543
          %v1545 = vpop.permute.xlu0 %1544
          %s1547 = sor.u32 256, 24
          %1548 = vbcast.lane.b32.xlu0 %v1534, %s1547
          %v1549 = vpop.permute.xlu0 %1548
          %s1551 = sor.u32 256, 32
          %1552 = vbcast.lane.b32.xlu0 %v1534, %s1551
          %v1553 = vpop.permute.xlu0 %1552
          %s1555 = sor.u32 256, 40
          %1556 = vbcast.lane.b32.xlu0 %v1534, %s1555
          %v1557 = vpop.permute.xlu0 %1556
          %s1559 = sor.u32 256, 48
          %1560 = vbcast.lane.b32.xlu0 %v1534, %s1559
          %v1561 = vpop.permute.xlu0 %1560
          %s1563 = sor.u32 256, 56
          %1564 = vbcast.lane.b32.xlu0 %v1534, %s1563
          %v1565 = vpop.permute.xlu0 %1564
          %s1567 = sor.u32 256, 64
          %1568 = vbcast.lane.b32.xlu0 %v1534, %s1567
          %v1569 = vpop.permute.xlu0 %1568
          %s1571 = sor.u32 256, 72
          %1572 = vbcast.lane.b32.xlu0 %v1534, %s1571
          %v1573 = vpop.permute.xlu0 %1572
          %s1575 = sor.u32 256, 80
          %1576 = vbcast.lane.b32.xlu0 %v1534, %s1575
          %v1577 = vpop.permute.xlu0 %1576
          %s1579 = sor.u32 256, 88
          %1580 = vbcast.lane.b32.xlu0 %v1534, %s1579
          %v1581 = vpop.permute.xlu0 %1580
          %s1583 = sor.u32 256, 96
          %1584 = vbcast.lane.b32.xlu0 %v1534, %s1583
          %v1585 = vpop.permute.xlu0 %1584
          %s1587 = sor.u32 256, 104
          %1588 = vbcast.lane.b32.xlu0 %v1534, %s1587
          %v1589 = vpop.permute.xlu0 %1588
          %s1591 = sor.u32 256, 112
          %1592 = vbcast.lane.b32.xlu0 %v1534, %s1591
          %v1593 = vpop.permute.xlu0 %1592
          %s1595 = sor.u32 256, 120
          %1596 = vbcast.lane.b32.xlu0 %v1534, %s1595
          %v1597 = vpop.permute.xlu0 %1596
          %v1598 = vlaneseq
          %v1599 = vshrl.u32 %v1598, 7
          %v1600 = vsub.s32 7, %v1599
          %v1601 = vrot.slane %v569, %v1600
          %1603 = vbcast.lane.b32.xlu0 %v1601, 256
          %v1604 = vpop.permute.xlu0 %1603
          %s1606 = sor.u32 256, 8
          %1607 = vbcast.lane.b32.xlu0 %v1601, %s1606
          %v1608 = vpop.permute.xlu0 %1607
          %s1610 = sor.u32 256, 16
          %1611 = vbcast.lane.b32.xlu0 %v1601, %s1610
          %v1612 = vpop.permute.xlu0 %1611
          %s1614 = sor.u32 256, 24
          %1615 = vbcast.lane.b32.xlu0 %v1601, %s1614
          %v1616 = vpop.permute.xlu0 %1615
          %s1618 = sor.u32 256, 32
          %1619 = vbcast.lane.b32.xlu0 %v1601, %s1618
          %v1620 = vpop.permute.xlu0 %1619
          %s1622 = sor.u32 256, 40
          %1623 = vbcast.lane.b32.xlu0 %v1601, %s1622
          %v1624 = vpop.permute.xlu0 %1623
          %s1626 = sor.u32 256, 48
          %1627 = vbcast.lane.b32.xlu0 %v1601, %s1626
          %v1628 = vpop.permute.xlu0 %1627
          %s1630 = sor.u32 256, 56
          %1631 = vbcast.lane.b32.xlu0 %v1601, %s1630
          %v1632 = vpop.permute.xlu0 %1631
          %s1634 = sor.u32 256, 64
          %1635 = vbcast.lane.b32.xlu0 %v1601, %s1634
          %v1636 = vpop.permute.xlu0 %1635
          %s1638 = sor.u32 256, 72
          %1639 = vbcast.lane.b32.xlu0 %v1601, %s1638
          %v1640 = vpop.permute.xlu0 %1639
          %s1642 = sor.u32 256, 80
          %1643 = vbcast.lane.b32.xlu0 %v1601, %s1642
          %v1644 = vpop.permute.xlu0 %1643
          %s1646 = sor.u32 256, 88
          %1647 = vbcast.lane.b32.xlu0 %v1601, %s1646
          %v1648 = vpop.permute.xlu0 %1647
          %s1650 = sor.u32 256, 96
          %1651 = vbcast.lane.b32.xlu0 %v1601, %s1650
          %v1652 = vpop.permute.xlu0 %1651
          %s1654 = sor.u32 256, 104
          %1655 = vbcast.lane.b32.xlu0 %v1601, %s1654
          %v1656 = vpop.permute.xlu0 %1655
          %s1658 = sor.u32 256, 112
          %1659 = vbcast.lane.b32.xlu0 %v1601, %s1658
          %v1660 = vpop.permute.xlu0 %1659
          %s1662 = sor.u32 256, 120
          %1663 = vbcast.lane.b32.xlu0 %v1601, %s1662
          %v1664 = vpop.permute.xlu0 %1663
          %v1665 = vlaneseq
          %v1666 = vshrl.u32 %v1665, 7
          %v1667 = vsub.s32 0, %v1666
          %v1668 = vrot.slane %v570, %v1667
          %1670 = vbcast.lane.b32.xlu0 %v1668, 256
          %v1671 = vpop.permute.xlu0 %1670
          %s1673 = sor.u32 256, 8
          %1674 = vbcast.lane.b32.xlu0 %v1668, %s1673
          %v1675 = vpop.permute.xlu0 %1674
          %s1677 = sor.u32 256, 16
          %1678 = vbcast.lane.b32.xlu0 %v1668, %s1677
          %v1679 = vpop.permute.xlu0 %1678
          %s1681 = sor.u32 256, 24
          %1682 = vbcast.lane.b32.xlu0 %v1668, %s1681
          %v1683 = vpop.permute.xlu0 %1682
          %s1685 = sor.u32 256, 32
          %1686 = vbcast.lane.b32.xlu0 %v1668, %s1685
          %v1687 = vpop.permute.xlu0 %1686
          %s1689 = sor.u32 256, 40
          %1690 = vbcast.lane.b32.xlu0 %v1668, %s1689
          %v1691 = vpop.permute.xlu0 %1690
          %s1693 = sor.u32 256, 48
          %1694 = vbcast.lane.b32.xlu0 %v1668, %s1693
          %v1695 = vpop.permute.xlu0 %1694
          %s1697 = sor.u32 256, 56
          %1698 = vbcast.lane.b32.xlu0 %v1668, %s1697
          %v1699 = vpop.permute.xlu0 %1698
          %s1701 = sor.u32 256, 64
          %1702 = vbcast.lane.b32.xlu0 %v1668, %s1701
          %v1703 = vpop.permute.xlu0 %1702
          %s1705 = sor.u32 256, 72
          %1706 = vbcast.lane.b32.xlu0 %v1668, %s1705
          %v1707 = vpop.permute.xlu0 %1706
          %s1709 = sor.u32 256, 80
          %1710 = vbcast.lane.b32.xlu0 %v1668, %s1709
          %v1711 = vpop.permute.xlu0 %1710
          %s1713 = sor.u32 256, 88
          %1714 = vbcast.lane.b32.xlu0 %v1668, %s1713
          %v1715 = vpop.permute.xlu0 %1714
          %s1717 = sor.u32 256, 96
          %1718 = vbcast.lane.b32.xlu0 %v1668, %s1717
          %v1719 = vpop.permute.xlu0 %1718
          %s1721 = sor.u32 256, 104
          %1722 = vbcast.lane.b32.xlu0 %v1668, %s1721
          %v1723 = vpop.permute.xlu0 %1722
          %s1725 = sor.u32 256, 112
          %1726 = vbcast.lane.b32.xlu0 %v1668, %s1725
          %v1727 = vpop.permute.xlu0 %1726
          %s1729 = sor.u32 256, 120
          %1730 = vbcast.lane.b32.xlu0 %v1668, %s1729
          %v1731 = vpop.permute.xlu0 %1730
          %v1732 = vlaneseq
          %v1733 = vshrl.u32 %v1732, 7
          %v1734 = vsub.s32 1, %v1733
          %v1735 = vrot.slane %v570, %v1734
          %1737 = vbcast.lane.b32.xlu0 %v1735, 256
          %v1738 = vpop.permute.xlu0 %1737
          %s1740 = sor.u32 256, 8
          %1741 = vbcast.lane.b32.xlu0 %v1735, %s1740
          %v1742 = vpop.permute.xlu0 %1741
          %s1744 = sor.u32 256, 16
          %1745 = vbcast.lane.b32.xlu0 %v1735, %s1744
          %v1746 = vpop.permute.xlu0 %1745
          %s1748 = sor.u32 256, 24
          %1749 = vbcast.lane.b32.xlu0 %v1735, %s1748
          %v1750 = vpop.permute.xlu0 %1749
          %s1752 = sor.u32 256, 32
          %1753 = vbcast.lane.b32.xlu0 %v1735, %s1752
          %v1754 = vpop.permute.xlu0 %1753
          %s1756 = sor.u32 256, 40
          %1757 = vbcast.lane.b32.xlu0 %v1735, %s1756
          %v1758 = vpop.permute.xlu0 %1757
          %s1760 = sor.u32 256, 48
          %1761 = vbcast.lane.b32.xlu0 %v1735, %s1760
          %v1762 = vpop.permute.xlu0 %1761
          %s1764 = sor.u32 256, 56
          %1765 = vbcast.lane.b32.xlu0 %v1735, %s1764
          %v1766 = vpop.permute.xlu0 %1765
          %s1768 = sor.u32 256, 64
          %1769 = vbcast.lane.b32.xlu0 %v1735, %s1768
          %v1770 = vpop.permute.xlu0 %1769
          %s1772 = sor.u32 256, 72
          %1773 = vbcast.lane.b32.xlu0 %v1735, %s1772
          %v1774 = vpop.permute.xlu0 %1773
          %s1776 = sor.u32 256, 80
          %1777 = vbcast.lane.b32.xlu0 %v1735, %s1776
          %v1778 = vpop.permute.xlu0 %1777
          %s1780 = sor.u32 256, 88
          %1781 = vbcast.lane.b32.xlu0 %v1735, %s1780
          %v1782 = vpop.permute.xlu0 %1781
          %s1784 = sor.u32 256, 96
          %1785 = vbcast.lane.b32.xlu0 %v1735, %s1784
          %v1786 = vpop.permute.xlu0 %1785
          %s1788 = sor.u32 256, 104
          %1789 = vbcast.lane.b32.xlu0 %v1735, %s1788
          %v1790 = vpop.permute.xlu0 %1789
          %s1792 = sor.u32 256, 112
          %1793 = vbcast.lane.b32.xlu0 %v1735, %s1792
          %v1794 = vpop.permute.xlu0 %1793
          %s1796 = sor.u32 256, 120
          %1797 = vbcast.lane.b32.xlu0 %v1735, %s1796
          %v1798 = vpop.permute.xlu0 %1797
          %v1799 = vlaneseq
          %v1800 = vshrl.u32 %v1799, 7
          %v1801 = vsub.s32 2, %v1800
          %v1802 = vrot.slane %v570, %v1801
          %1804 = vbcast.lane.b32.xlu0 %v1802, 256
          %v1805 = vpop.permute.xlu0 %1804
          %s1807 = sor.u32 256, 8
          %1808 = vbcast.lane.b32.xlu0 %v1802, %s1807
          %v1809 = vpop.permute.xlu0 %1808
          %s1811 = sor.u32 256, 16
          %1812 = vbcast.lane.b32.xlu0 %v1802, %s1811
          %v1813 = vpop.permute.xlu0 %1812
          %s1815 = sor.u32 256, 24
          %1816 = vbcast.lane.b32.xlu0 %v1802, %s1815
          %v1817 = vpop.permute.xlu0 %1816
          %s1819 = sor.u32 256, 32
          %1820 = vbcast.lane.b32.xlu0 %v1802, %s1819
          %v1821 = vpop.permute.xlu0 %1820
          %s1823 = sor.u32 256, 40
          %1824 = vbcast.lane.b32.xlu0 %v1802, %s1823
          %v1825 = vpop.permute.xlu0 %1824
          %s1827 = sor.u32 256, 48
          %1828 = vbcast.lane.b32.xlu0 %v1802, %s1827
          %v1829 = vpop.permute.xlu0 %1828
          %s1831 = sor.u32 256, 56
          %1832 = vbcast.lane.b32.xlu0 %v1802, %s1831
          %v1833 = vpop.permute.xlu0 %1832
          %s1835 = sor.u32 256, 64
          %1836 = vbcast.lane.b32.xlu0 %v1802, %s1835
          %v1837 = vpop.permute.xlu0 %1836
          %s1839 = sor.u32 256, 72
          %1840 = vbcast.lane.b32.xlu0 %v1802, %s1839
          %v1841 = vpop.permute.xlu0 %1840
          %s1843 = sor.u32 256, 80
          %1844 = vbcast.lane.b32.xlu0 %v1802, %s1843
          %v1845 = vpop.permute.xlu0 %1844
          %s1847 = sor.u32 256, 88
          %1848 = vbcast.lane.b32.xlu0 %v1802, %s1847
          %v1849 = vpop.permute.xlu0 %1848
          %s1851 = sor.u32 256, 96
          %1852 = vbcast.lane.b32.xlu0 %v1802, %s1851
          %v1853 = vpop.permute.xlu0 %1852
          %s1855 = sor.u32 256, 104
          %1856 = vbcast.lane.b32.xlu0 %v1802, %s1855
          %v1857 = vpop.permute.xlu0 %1856
          %s1859 = sor.u32 256, 112
          %1860 = vbcast.lane.b32.xlu0 %v1802, %s1859
          %v1861 = vpop.permute.xlu0 %1860
          %s1863 = sor.u32 256, 120
          %1864 = vbcast.lane.b32.xlu0 %v1802, %s1863
          %v1865 = vpop.permute.xlu0 %1864
          %v1866 = vlaneseq
          %v1867 = vshrl.u32 %v1866, 7
          %v1868 = vsub.s32 3, %v1867
          %v1869 = vrot.slane %v570, %v1868
          %1871 = vbcast.lane.b32.xlu0 %v1869, 256
          %v1872 = vpop.permute.xlu0 %1871
          %s1874 = sor.u32 256, 8
          %1875 = vbcast.lane.b32.xlu0 %v1869, %s1874
          %v1876 = vpop.permute.xlu0 %1875
          %s1878 = sor.u32 256, 16
          %1879 = vbcast.lane.b32.xlu0 %v1869, %s1878
          %v1880 = vpop.permute.xlu0 %1879
          %s1882 = sor.u32 256, 24
          %1883 = vbcast.lane.b32.xlu0 %v1869, %s1882
          %v1884 = vpop.permute.xlu0 %1883
          %s1886 = sor.u32 256, 32
          %1887 = vbcast.lane.b32.xlu0 %v1869, %s1886
          %v1888 = vpop.permute.xlu0 %1887
          %s1890 = sor.u32 256, 40
          %1891 = vbcast.lane.b32.xlu0 %v1869, %s1890
          %v1892 = vpop.permute.xlu0 %1891
          %s1894 = sor.u32 256, 48
          %1895 = vbcast.lane.b32.xlu0 %v1869, %s1894
          %v1896 = vpop.permute.xlu0 %1895
          %s1898 = sor.u32 256, 56
          %1899 = vbcast.lane.b32.xlu0 %v1869, %s1898
          %v1900 = vpop.permute.xlu0 %1899
          %s1902 = sor.u32 256, 64
          %1903 = vbcast.lane.b32.xlu0 %v1869, %s1902
          %v1904 = vpop.permute.xlu0 %1903
          %s1906 = sor.u32 256, 72
          %1907 = vbcast.lane.b32.xlu0 %v1869, %s1906
          %v1908 = vpop.permute.xlu0 %1907
          %s1910 = sor.u32 256, 80
          %1911 = vbcast.lane.b32.xlu0 %v1869, %s1910
          %v1912 = vpop.permute.xlu0 %1911
          %s1914 = sor.u32 256, 88
          %1915 = vbcast.lane.b32.xlu0 %v1869, %s1914
          %v1916 = vpop.permute.xlu0 %1915
          %s1918 = sor.u32 256, 96
          %1919 = vbcast.lane.b32.xlu0 %v1869, %s1918
          %v1920 = vpop.permute.xlu0 %1919
          %s1922 = sor.u32 256, 104
          %1923 = vbcast.lane.b32.xlu0 %v1869, %s1922
          %v1924 = vpop.permute.xlu0 %1923
          %s1926 = sor.u32 256, 112
          %1927 = vbcast.lane.b32.xlu0 %v1869, %s1926
          %v1928 = vpop.permute.xlu0 %1927
          %s1930 = sor.u32 256, 120
          %1931 = vbcast.lane.b32.xlu0 %v1869, %s1930
          %v1932 = vpop.permute.xlu0 %1931
          %v1933 = vlaneseq
          %v1934 = vshrl.u32 %v1933, 7
          %v1935 = vsub.s32 4, %v1934
          %v1936 = vrot.slane %v570, %v1935
          %1938 = vbcast.lane.b32.xlu0 %v1936, 256
          %v1939 = vpop.permute.xlu0 %1938
          %s1941 = sor.u32 256, 8
          %1942 = vbcast.lane.b32.xlu0 %v1936, %s1941
          %v1943 = vpop.permute.xlu0 %1942
          %s1945 = sor.u32 256, 16
          %1946 = vbcast.lane.b32.xlu0 %v1936, %s1945
          %v1947 = vpop.permute.xlu0 %1946
          %s1949 = sor.u32 256, 24
          %1950 = vbcast.lane.b32.xlu0 %v1936, %s1949
          %v1951 = vpop.permute.xlu0 %1950
          %s1953 = sor.u32 256, 32
          %1954 = vbcast.lane.b32.xlu0 %v1936, %s1953
          %v1955 = vpop.permute.xlu0 %1954
          %s1957 = sor.u32 256, 40
          %1958 = vbcast.lane.b32.xlu0 %v1936, %s1957
          %v1959 = vpop.permute.xlu0 %1958
          %s1961 = sor.u32 256, 48
          %1962 = vbcast.lane.b32.xlu0 %v1936, %s1961
          %v1963 = vpop.permute.xlu0 %1962
          %s1965 = sor.u32 256, 56
          %1966 = vbcast.lane.b32.xlu0 %v1936, %s1965
          %v1967 = vpop.permute.xlu0 %1966
          %s1969 = sor.u32 256, 64
          %1970 = vbcast.lane.b32.xlu0 %v1936, %s1969
          %v1971 = vpop.permute.xlu0 %1970
          %s1973 = sor.u32 256, 72
          %1974 = vbcast.lane.b32.xlu0 %v1936, %s1973
          %v1975 = vpop.permute.xlu0 %1974
          %s1977 = sor.u32 256, 80
          %1978 = vbcast.lane.b32.xlu0 %v1936, %s1977
          %v1979 = vpop.permute.xlu0 %1978
          %s1981 = sor.u32 256, 88
          %1982 = vbcast.lane.b32.xlu0 %v1936, %s1981
          %v1983 = vpop.permute.xlu0 %1982
          %s1985 = sor.u32 256, 96
          %1986 = vbcast.lane.b32.xlu0 %v1936, %s1985
          %v1987 = vpop.permute.xlu0 %1986
          %s1989 = sor.u32 256, 104
          %1990 = vbcast.lane.b32.xlu0 %v1936, %s1989
          %v1991 = vpop.permute.xlu0 %1990
          %s1993 = sor.u32 256, 112
          %1994 = vbcast.lane.b32.xlu0 %v1936, %s1993
          %v1995 = vpop.permute.xlu0 %1994
          %s1997 = sor.u32 256, 120
          %1998 = vbcast.lane.b32.xlu0 %v1936, %s1997
          %v1999 = vpop.permute.xlu0 %1998
          %v2000 = vlaneseq
          %v2001 = vshrl.u32 %v2000, 7
          %v2002 = vsub.s32 5, %v2001
          %v2003 = vrot.slane %v570, %v2002
          %2005 = vbcast.lane.b32.xlu0 %v2003, 256
          %v2006 = vpop.permute.xlu0 %2005
          %s2008 = sor.u32 256, 8
          %2009 = vbcast.lane.b32.xlu0 %v2003, %s2008
          %v2010 = vpop.permute.xlu0 %2009
          %s2012 = sor.u32 256, 16
          %2013 = vbcast.lane.b32.xlu0 %v2003, %s2012
          %v2014 = vpop.permute.xlu0 %2013
          %s2016 = sor.u32 256, 24
          %2017 = vbcast.lane.b32.xlu0 %v2003, %s2016
          %v2018 = vpop.permute.xlu0 %2017
          %s2020 = sor.u32 256, 32
          %2021 = vbcast.lane.b32.xlu0 %v2003, %s2020
          %v2022 = vpop.permute.xlu0 %2021
          %s2024 = sor.u32 256, 40
          %2025 = vbcast.lane.b32.xlu0 %v2003, %s2024
          %v2026 = vpop.permute.xlu0 %2025
          %s2028 = sor.u32 256, 48
          %2029 = vbcast.lane.b32.xlu0 %v2003, %s2028
          %v2030 = vpop.permute.xlu0 %2029
          %s2032 = sor.u32 256, 56
          %2033 = vbcast.lane.b32.xlu0 %v2003, %s2032
          %v2034 = vpop.permute.xlu0 %2033
          %s2036 = sor.u32 256, 64
          %2037 = vbcast.lane.b32.xlu0 %v2003, %s2036
          %v2038 = vpop.permute.xlu0 %2037
          %s2040 = sor.u32 256, 72
          %2041 = vbcast.lane.b32.xlu0 %v2003, %s2040
          %v2042 = vpop.permute.xlu0 %2041
          %s2044 = sor.u32 256, 80
          %2045 = vbcast.lane.b32.xlu0 %v2003, %s2044
          %v2046 = vpop.permute.xlu0 %2045
          %s2048 = sor.u32 256, 88
          %2049 = vbcast.lane.b32.xlu0 %v2003, %s2048
          %v2050 = vpop.permute.xlu0 %2049
          %s2052 = sor.u32 256, 96
          %2053 = vbcast.lane.b32.xlu0 %v2003, %s2052
          %v2054 = vpop.permute.xlu0 %2053
          %s2056 = sor.u32 256, 104
          %2057 = vbcast.lane.b32.xlu0 %v2003, %s2056
          %v2058 = vpop.permute.xlu0 %2057
          %s2060 = sor.u32 256, 112
          %2061 = vbcast.lane.b32.xlu0 %v2003, %s2060
          %v2062 = vpop.permute.xlu0 %2061
          %s2064 = sor.u32 256, 120
          %2065 = vbcast.lane.b32.xlu0 %v2003, %s2064
          %v2066 = vpop.permute.xlu0 %2065
          %v2067 = vlaneseq
          %v2068 = vshrl.u32 %v2067, 7
          %v2069 = vsub.s32 6, %v2068
          %v2070 = vrot.slane %v570, %v2069
          %2072 = vbcast.lane.b32.xlu0 %v2070, 256
          %v2073 = vpop.permute.xlu0 %2072
          %s2075 = sor.u32 256, 8
          %2076 = vbcast.lane.b32.xlu0 %v2070, %s2075
          %v2077 = vpop.permute.xlu0 %2076
          %s2079 = sor.u32 256, 16
          %2080 = vbcast.lane.b32.xlu0 %v2070, %s2079
          %v2081 = vpop.permute.xlu0 %2080
          %s2083 = sor.u32 256, 24
          %2084 = vbcast.lane.b32.xlu0 %v2070, %s2083
          %v2085 = vpop.permute.xlu0 %2084
          %s2087 = sor.u32 256, 32
          %2088 = vbcast.lane.b32.xlu0 %v2070, %s2087
          %v2089 = vpop.permute.xlu0 %2088
          %s2091 = sor.u32 256, 40
          %2092 = vbcast.lane.b32.xlu0 %v2070, %s2091
          %v2093 = vpop.permute.xlu0 %2092
          %s2095 = sor.u32 256, 48
          %2096 = vbcast.lane.b32.xlu0 %v2070, %s2095
          %v2097 = vpop.permute.xlu0 %2096
          %s2099 = sor.u32 256, 56
          %2100 = vbcast.lane.b32.xlu0 %v2070, %s2099
          %v2101 = vpop.permute.xlu0 %2100
          %s2103 = sor.u32 256, 64
          %2104 = vbcast.lane.b32.xlu0 %v2070, %s2103
          %v2105 = vpop.permute.xlu0 %2104
          %s2107 = sor.u32 256, 72
          %2108 = vbcast.lane.b32.xlu0 %v2070, %s2107
          %v2109 = vpop.permute.xlu0 %2108
          %s2111 = sor.u32 256, 80
          %2112 = vbcast.lane.b32.xlu0 %v2070, %s2111
          %v2113 = vpop.permute.xlu0 %2112
          %s2115 = sor.u32 256, 88
          %2116 = vbcast.lane.b32.xlu0 %v2070, %s2115
          %v2117 = vpop.permute.xlu0 %2116
          %s2119 = sor.u32 256, 96
          %2120 = vbcast.lane.b32.xlu0 %v2070, %s2119
          %v2121 = vpop.permute.xlu0 %2120
          %s2123 = sor.u32 256, 104
          %2124 = vbcast.lane.b32.xlu0 %v2070, %s2123
          %v2125 = vpop.permute.xlu0 %2124
          %s2127 = sor.u32 256, 112
          %2128 = vbcast.lane.b32.xlu0 %v2070, %s2127
          %v2129 = vpop.permute.xlu0 %2128
          %s2131 = sor.u32 256, 120
          %2132 = vbcast.lane.b32.xlu0 %v2070, %s2131
          %v2133 = vpop.permute.xlu0 %2132
          %v2134 = vlaneseq
          %v2135 = vshrl.u32 %v2134, 7
          %v2136 = vsub.s32 7, %v2135
          %v2137 = vrot.slane %v570, %v2136
          %2139 = vbcast.lane.b32.xlu0 %v2137, 256
          %v2140 = vpop.permute.xlu0 %2139
          %s2142 = sor.u32 256, 8
          %2143 = vbcast.lane.b32.xlu0 %v2137, %s2142
          %v2144 = vpop.permute.xlu0 %2143
          %s2146 = sor.u32 256, 16
          %2147 = vbcast.lane.b32.xlu0 %v2137, %s2146
          %v2148 = vpop.permute.xlu0 %2147
          %s2150 = sor.u32 256, 24
          %2151 = vbcast.lane.b32.xlu0 %v2137, %s2150
          %v2152 = vpop.permute.xlu0 %2151
          %s2154 = sor.u32 256, 32
          %2155 = vbcast.lane.b32.xlu0 %v2137, %s2154
          %v2156 = vpop.permute.xlu0 %2155
          %s2158 = sor.u32 256, 40
          %2159 = vbcast.lane.b32.xlu0 %v2137, %s2158
          %v2160 = vpop.permute.xlu0 %2159
          %s2162 = sor.u32 256, 48
          %2163 = vbcast.lane.b32.xlu0 %v2137, %s2162
          %v2164 = vpop.permute.xlu0 %2163
          %s2166 = sor.u32 256, 56
          %2167 = vbcast.lane.b32.xlu0 %v2137, %s2166
          %v2168 = vpop.permute.xlu0 %2167
          %s2170 = sor.u32 256, 64
          %2171 = vbcast.lane.b32.xlu0 %v2137, %s2170
          %v2172 = vpop.permute.xlu0 %2171
          %s2174 = sor.u32 256, 72
          %2175 = vbcast.lane.b32.xlu0 %v2137, %s2174
          %v2176 = vpop.permute.xlu0 %2175
          %s2178 = sor.u32 256, 80
          %2179 = vbcast.lane.b32.xlu0 %v2137, %s2178
          %v2180 = vpop.permute.xlu0 %2179
          %s2182 = sor.u32 256, 88
          %2183 = vbcast.lane.b32.xlu0 %v2137, %s2182
          %v2184 = vpop.permute.xlu0 %2183
          %s2186 = sor.u32 256, 96
          %2187 = vbcast.lane.b32.xlu0 %v2137, %s2186
          %v2188 = vpop.permute.xlu0 %2187
          %s2190 = sor.u32 256, 104
          %2191 = vbcast.lane.b32.xlu0 %v2137, %s2190
          %v2192 = vpop.permute.xlu0 %2191
          %s2194 = sor.u32 256, 112
          %2195 = vbcast.lane.b32.xlu0 %v2137, %s2194
          %v2196 = vpop.permute.xlu0 %2195
          %s2198 = sor.u32 256, 120
          %2199 = vbcast.lane.b32.xlu0 %v2137, %s2198
          %v2200 = vpop.permute.xlu0 %2199
          %v2201 = vlaneseq
          %v2202 = vshrl.u32 %v2201, 7
          %v2203 = vsub.s32 0, %v2202
          %v2204 = vrot.slane %v571, %v2203
          %2206 = vbcast.lane.b32.xlu0 %v2204, 256
          %v2207 = vpop.permute.xlu0 %2206
          %s2209 = sor.u32 256, 8
          %2210 = vbcast.lane.b32.xlu0 %v2204, %s2209
          %v2211 = vpop.permute.xlu0 %2210
          %s2213 = sor.u32 256, 16
          %2214 = vbcast.lane.b32.xlu0 %v2204, %s2213
          %v2215 = vpop.permute.xlu0 %2214
          %s2217 = sor.u32 256, 24
          %2218 = vbcast.lane.b32.xlu0 %v2204, %s2217
          %v2219 = vpop.permute.xlu0 %2218
          %s2221 = sor.u32 256, 32
          %2222 = vbcast.lane.b32.xlu0 %v2204, %s2221
          %v2223 = vpop.permute.xlu0 %2222
          %s2225 = sor.u32 256, 40
          %2226 = vbcast.lane.b32.xlu0 %v2204, %s2225
          %v2227 = vpop.permute.xlu0 %2226
          %s2229 = sor.u32 256, 48
          %2230 = vbcast.lane.b32.xlu0 %v2204, %s2229
          %v2231 = vpop.permute.xlu0 %2230
          %s2233 = sor.u32 256, 56
          %2234 = vbcast.lane.b32.xlu0 %v2204, %s2233
          %v2235 = vpop.permute.xlu0 %2234
          %s2237 = sor.u32 256, 64
          %2238 = vbcast.lane.b32.xlu0 %v2204, %s2237
          %v2239 = vpop.permute.xlu0 %2238
          %s2241 = sor.u32 256, 72
          %2242 = vbcast.lane.b32.xlu0 %v2204, %s2241
          %v2243 = vpop.permute.xlu0 %2242
          %s2245 = sor.u32 256, 80
          %2246 = vbcast.lane.b32.xlu0 %v2204, %s2245
          %v2247 = vpop.permute.xlu0 %2246
          %s2249 = sor.u32 256, 88
          %2250 = vbcast.lane.b32.xlu0 %v2204, %s2249
          %v2251 = vpop.permute.xlu0 %2250
          %s2253 = sor.u32 256, 96
          %2254 = vbcast.lane.b32.xlu0 %v2204, %s2253
          %v2255 = vpop.permute.xlu0 %2254
          %s2257 = sor.u32 256, 104
          %2258 = vbcast.lane.b32.xlu0 %v2204, %s2257
          %v2259 = vpop.permute.xlu0 %2258
          %s2261 = sor.u32 256, 112
          %2262 = vbcast.lane.b32.xlu0 %v2204, %s2261
          %v2263 = vpop.permute.xlu0 %2262
          %s2265 = sor.u32 256, 120
          %2266 = vbcast.lane.b32.xlu0 %v2204, %s2265
          %v2267 = vpop.permute.xlu0 %2266
          %v2268 = vlaneseq
          %v2269 = vshrl.u32 %v2268, 7
          %v2270 = vsub.s32 1, %v2269
          %v2271 = vrot.slane %v571, %v2270
          %2273 = vbcast.lane.b32.xlu0 %v2271, 256
          %v2274 = vpop.permute.xlu0 %2273
          %s2276 = sor.u32 256, 8
          %2277 = vbcast.lane.b32.xlu0 %v2271, %s2276
          %v2278 = vpop.permute.xlu0 %2277
          %s2280 = sor.u32 256, 16
          %2281 = vbcast.lane.b32.xlu0 %v2271, %s2280
          %v2282 = vpop.permute.xlu0 %2281
          %s2284 = sor.u32 256, 24
          %2285 = vbcast.lane.b32.xlu0 %v2271, %s2284
          %v2286 = vpop.permute.xlu0 %2285
          %s2288 = sor.u32 256, 32
          %2289 = vbcast.lane.b32.xlu0 %v2271, %s2288
          %v2290 = vpop.permute.xlu0 %2289
          %s2292 = sor.u32 256, 40
          %2293 = vbcast.lane.b32.xlu0 %v2271, %s2292
          %v2294 = vpop.permute.xlu0 %2293
          %s2296 = sor.u32 256, 48
          %2297 = vbcast.lane.b32.xlu0 %v2271, %s2296
          %v2298 = vpop.permute.xlu0 %2297
          %s2300 = sor.u32 256, 56
          %2301 = vbcast.lane.b32.xlu0 %v2271, %s2300
          %v2302 = vpop.permute.xlu0 %2301
          %s2304 = sor.u32 256, 64
          %2305 = vbcast.lane.b32.xlu0 %v2271, %s2304
          %v2306 = vpop.permute.xlu0 %2305
          %s2308 = sor.u32 256, 72
          %2309 = vbcast.lane.b32.xlu0 %v2271, %s2308
          %v2310 = vpop.permute.xlu0 %2309
          %s2312 = sor.u32 256, 80
          %2313 = vbcast.lane.b32.xlu0 %v2271, %s2312
          %v2314 = vpop.permute.xlu0 %2313
          %s2316 = sor.u32 256, 88
          %2317 = vbcast.lane.b32.xlu0 %v2271, %s2316
          %v2318 = vpop.permute.xlu0 %2317
          %s2320 = sor.u32 256, 96
          %2321 = vbcast.lane.b32.xlu0 %v2271, %s2320
          %v2322 = vpop.permute.xlu0 %2321
          %s2324 = sor.u32 256, 104
          %2325 = vbcast.lane.b32.xlu0 %v2271, %s2324
          %v2326 = vpop.permute.xlu0 %2325
          %s2328 = sor.u32 256, 112
          %2329 = vbcast.lane.b32.xlu0 %v2271, %s2328
          %v2330 = vpop.permute.xlu0 %2329
          %s2332 = sor.u32 256, 120
          %2333 = vbcast.lane.b32.xlu0 %v2271, %s2332
          %v2334 = vpop.permute.xlu0 %2333
          %v2335 = vlaneseq
          %v2336 = vshrl.u32 %v2335, 7
          %v2337 = vsub.s32 2, %v2336
          %v2338 = vrot.slane %v571, %v2337
          %2340 = vbcast.lane.b32.xlu0 %v2338, 256
          %v2341 = vpop.permute.xlu0 %2340
          %s2343 = sor.u32 256, 8
          %2344 = vbcast.lane.b32.xlu0 %v2338, %s2343
          %v2345 = vpop.permute.xlu0 %2344
          %s2347 = sor.u32 256, 16
          %2348 = vbcast.lane.b32.xlu0 %v2338, %s2347
          %v2349 = vpop.permute.xlu0 %2348
          %s2351 = sor.u32 256, 24
          %2352 = vbcast.lane.b32.xlu0 %v2338, %s2351
          %v2353 = vpop.permute.xlu0 %2352
          %s2355 = sor.u32 256, 32
          %2356 = vbcast.lane.b32.xlu0 %v2338, %s2355
          %v2357 = vpop.permute.xlu0 %2356
          %s2359 = sor.u32 256, 40
          %2360 = vbcast.lane.b32.xlu0 %v2338, %s2359
          %v2361 = vpop.permute.xlu0 %2360
          %s2363 = sor.u32 256, 48
          %2364 = vbcast.lane.b32.xlu0 %v2338, %s2363
          %v2365 = vpop.permute.xlu0 %2364
          %s2367 = sor.u32 256, 56
          %2368 = vbcast.lane.b32.xlu0 %v2338, %s2367
          %v2369 = vpop.permute.xlu0 %2368
          %s2371 = sor.u32 256, 64
          %2372 = vbcast.lane.b32.xlu0 %v2338, %s2371
          %v2373 = vpop.permute.xlu0 %2372
          %s2375 = sor.u32 256, 72
          %2376 = vbcast.lane.b32.xlu0 %v2338, %s2375
          %v2377 = vpop.permute.xlu0 %2376
          %s2379 = sor.u32 256, 80
          %2380 = vbcast.lane.b32.xlu0 %v2338, %s2379
          %v2381 = vpop.permute.xlu0 %2380
          %s2383 = sor.u32 256, 88
          %2384 = vbcast.lane.b32.xlu0 %v2338, %s2383
          %v2385 = vpop.permute.xlu0 %2384
          %s2387 = sor.u32 256, 96
          %2388 = vbcast.lane.b32.xlu0 %v2338, %s2387
          %v2389 = vpop.permute.xlu0 %2388
          %s2391 = sor.u32 256, 104
          %2392 = vbcast.lane.b32.xlu0 %v2338, %s2391
          %v2393 = vpop.permute.xlu0 %2392
          %s2395 = sor.u32 256, 112
          %2396 = vbcast.lane.b32.xlu0 %v2338, %s2395
          %v2397 = vpop.permute.xlu0 %2396
          %s2399 = sor.u32 256, 120
          %2400 = vbcast.lane.b32.xlu0 %v2338, %s2399
          %v2401 = vpop.permute.xlu0 %2400
          %v2402 = vlaneseq
          %v2403 = vshrl.u32 %v2402, 7
          %v2404 = vsub.s32 3, %v2403
          %v2405 = vrot.slane %v571, %v2404
          %2407 = vbcast.lane.b32.xlu0 %v2405, 256
          %v2408 = vpop.permute.xlu0 %2407
          %s2410 = sor.u32 256, 8
          %2411 = vbcast.lane.b32.xlu0 %v2405, %s2410
          %v2412 = vpop.permute.xlu0 %2411
          %s2414 = sor.u32 256, 16
          %2415 = vbcast.lane.b32.xlu0 %v2405, %s2414
          %v2416 = vpop.permute.xlu0 %2415
          %s2418 = sor.u32 256, 24
          %2419 = vbcast.lane.b32.xlu0 %v2405, %s2418
          %v2420 = vpop.permute.xlu0 %2419
          %s2422 = sor.u32 256, 32
          %2423 = vbcast.lane.b32.xlu0 %v2405, %s2422
          %v2424 = vpop.permute.xlu0 %2423
          %s2426 = sor.u32 256, 40
          %2427 = vbcast.lane.b32.xlu0 %v2405, %s2426
          %v2428 = vpop.permute.xlu0 %2427
          %s2430 = sor.u32 256, 48
          %2431 = vbcast.lane.b32.xlu0 %v2405, %s2430
          %v2432 = vpop.permute.xlu0 %2431
          %s2434 = sor.u32 256, 56
          %2435 = vbcast.lane.b32.xlu0 %v2405, %s2434
          %v2436 = vpop.permute.xlu0 %2435
          %s2438 = sor.u32 256, 64
          %2439 = vbcast.lane.b32.xlu0 %v2405, %s2438
          %v2440 = vpop.permute.xlu0 %2439
          %s2442 = sor.u32 256, 72
          %2443 = vbcast.lane.b32.xlu0 %v2405, %s2442
          %v2444 = vpop.permute.xlu0 %2443
          %s2446 = sor.u32 256, 80
          %2447 = vbcast.lane.b32.xlu0 %v2405, %s2446
          %v2448 = vpop.permute.xlu0 %2447
          %s2450 = sor.u32 256, 88
          %2451 = vbcast.lane.b32.xlu0 %v2405, %s2450
          %v2452 = vpop.permute.xlu0 %2451
          %s2454 = sor.u32 256, 96
          %2455 = vbcast.lane.b32.xlu0 %v2405, %s2454
          %v2456 = vpop.permute.xlu0 %2455
          %s2458 = sor.u32 256, 104
          %2459 = vbcast.lane.b32.xlu0 %v2405, %s2458
          %v2460 = vpop.permute.xlu0 %2459
          %s2462 = sor.u32 256, 112
          %2463 = vbcast.lane.b32.xlu0 %v2405, %s2462
          %v2464 = vpop.permute.xlu0 %2463
          %s2466 = sor.u32 256, 120
          %2467 = vbcast.lane.b32.xlu0 %v2405, %s2466
          %v2468 = vpop.permute.xlu0 %2467
          %v2469 = vlaneseq
          %v2470 = vshrl.u32 %v2469, 7
          %v2471 = vsub.s32 4, %v2470
          %v2472 = vrot.slane %v571, %v2471
          %2474 = vbcast.lane.b32.xlu0 %v2472, 256
          %v2475 = vpop.permute.xlu0 %2474
          %s2477 = sor.u32 256, 8
          %2478 = vbcast.lane.b32.xlu0 %v2472, %s2477
          %v2479 = vpop.permute.xlu0 %2478
          %s2481 = sor.u32 256, 16
          %2482 = vbcast.lane.b32.xlu0 %v2472, %s2481
          %v2483 = vpop.permute.xlu0 %2482
          %s2485 = sor.u32 256, 24
          %2486 = vbcast.lane.b32.xlu0 %v2472, %s2485
          %v2487 = vpop.permute.xlu0 %2486
          %s2489 = sor.u32 256, 32
          %2490 = vbcast.lane.b32.xlu0 %v2472, %s2489
          %v2491 = vpop.permute.xlu0 %2490
          %s2493 = sor.u32 256, 40
          %2494 = vbcast.lane.b32.xlu0 %v2472, %s2493
          %v2495 = vpop.permute.xlu0 %2494
          %s2497 = sor.u32 256, 48
          %2498 = vbcast.lane.b32.xlu0 %v2472, %s2497
          %v2499 = vpop.permute.xlu0 %2498
          %s2501 = sor.u32 256, 56
          %2502 = vbcast.lane.b32.xlu0 %v2472, %s2501
          %v2503 = vpop.permute.xlu0 %2502
          %s2505 = sor.u32 256, 64
          %2506 = vbcast.lane.b32.xlu0 %v2472, %s2505
          %v2507 = vpop.permute.xlu0 %2506
          %s2509 = sor.u32 256, 72
          %2510 = vbcast.lane.b32.xlu0 %v2472, %s2509
          %v2511 = vpop.permute.xlu0 %2510
          %s2513 = sor.u32 256, 80
          %2514 = vbcast.lane.b32.xlu0 %v2472, %s2513
          %v2515 = vpop.permute.xlu0 %2514
          %s2517 = sor.u32 256, 88
          %2518 = vbcast.lane.b32.xlu0 %v2472, %s2517
          %v2519 = vpop.permute.xlu0 %2518
          %s2521 = sor.u32 256, 96
          %2522 = vbcast.lane.b32.xlu0 %v2472, %s2521
          %v2523 = vpop.permute.xlu0 %2522
          %s2525 = sor.u32 256, 104
          %2526 = vbcast.lane.b32.xlu0 %v2472, %s2525
          %v2527 = vpop.permute.xlu0 %2526
          %s2529 = sor.u32 256, 112
          %2530 = vbcast.lane.b32.xlu0 %v2472, %s2529
          %v2531 = vpop.permute.xlu0 %2530
          %s2533 = sor.u32 256, 120
          %2534 = vbcast.lane.b32.xlu0 %v2472, %s2533
          %v2535 = vpop.permute.xlu0 %2534
          %v2536 = vlaneseq
          %v2537 = vshrl.u32 %v2536, 7
          %v2538 = vsub.s32 5, %v2537
          %v2539 = vrot.slane %v571, %v2538
          %2541 = vbcast.lane.b32.xlu0 %v2539, 256
          %v2542 = vpop.permute.xlu0 %2541
          %s2544 = sor.u32 256, 8
          %2545 = vbcast.lane.b32.xlu0 %v2539, %s2544
          %v2546 = vpop.permute.xlu0 %2545
          %s2548 = sor.u32 256, 16
          %2549 = vbcast.lane.b32.xlu0 %v2539, %s2548
          %v2550 = vpop.permute.xlu0 %2549
          %s2552 = sor.u32 256, 24
          %2553 = vbcast.lane.b32.xlu0 %v2539, %s2552
          %v2554 = vpop.permute.xlu0 %2553
          %s2556 = sor.u32 256, 32
          %2557 = vbcast.lane.b32.xlu0 %v2539, %s2556
          %v2558 = vpop.permute.xlu0 %2557
          %s2560 = sor.u32 256, 40
          %2561 = vbcast.lane.b32.xlu0 %v2539, %s2560
          %v2562 = vpop.permute.xlu0 %2561
          %s2564 = sor.u32 256, 48
          %2565 = vbcast.lane.b32.xlu0 %v2539, %s2564
          %v2566 = vpop.permute.xlu0 %2565
          %s2568 = sor.u32 256, 56
          %2569 = vbcast.lane.b32.xlu0 %v2539, %s2568
          %v2570 = vpop.permute.xlu0 %2569
          %s2572 = sor.u32 256, 64
          %2573 = vbcast.lane.b32.xlu0 %v2539, %s2572
          %v2574 = vpop.permute.xlu0 %2573
          %s2576 = sor.u32 256, 72
          %2577 = vbcast.lane.b32.xlu0 %v2539, %s2576
          %v2578 = vpop.permute.xlu0 %2577
          %s2580 = sor.u32 256, 80
          %2581 = vbcast.lane.b32.xlu0 %v2539, %s2580
          %v2582 = vpop.permute.xlu0 %2581
          %s2584 = sor.u32 256, 88
          %2585 = vbcast.lane.b32.xlu0 %v2539, %s2584
          %v2586 = vpop.permute.xlu0 %2585
          %s2588 = sor.u32 256, 96
          %2589 = vbcast.lane.b32.xlu0 %v2539, %s2588
          %v2590 = vpop.permute.xlu0 %2589
          %s2592 = sor.u32 256, 104
          %2593 = vbcast.lane.b32.xlu0 %v2539, %s2592
          %v2594 = vpop.permute.xlu0 %2593
          %s2596 = sor.u32 256, 112
          %2597 = vbcast.lane.b32.xlu0 %v2539, %s2596
          %v2598 = vpop.permute.xlu0 %2597
          %s2600 = sor.u32 256, 120
          %2601 = vbcast.lane.b32.xlu0 %v2539, %s2600
          %v2602 = vpop.permute.xlu0 %2601
          %v2603 = vlaneseq
          %v2604 = vshrl.u32 %v2603, 7
          %v2605 = vsub.s32 6, %v2604
          %v2606 = vrot.slane %v571, %v2605
          %2608 = vbcast.lane.b32.xlu0 %v2606, 256
          %v2609 = vpop.permute.xlu0 %2608
          %s2611 = sor.u32 256, 8
          %2612 = vbcast.lane.b32.xlu0 %v2606, %s2611
          %v2613 = vpop.permute.xlu0 %2612
          %s2615 = sor.u32 256, 16
          %2616 = vbcast.lane.b32.xlu0 %v2606, %s2615
          %v2617 = vpop.permute.xlu0 %2616
          %s2619 = sor.u32 256, 24
          %2620 = vbcast.lane.b32.xlu0 %v2606, %s2619
          %v2621 = vpop.permute.xlu0 %2620
          %s2623 = sor.u32 256, 32
          %2624 = vbcast.lane.b32.xlu0 %v2606, %s2623
          %v2625 = vpop.permute.xlu0 %2624
          %s2627 = sor.u32 256, 40
          %2628 = vbcast.lane.b32.xlu0 %v2606, %s2627
          %v2629 = vpop.permute.xlu0 %2628
          %s2631 = sor.u32 256, 48
          %2632 = vbcast.lane.b32.xlu0 %v2606, %s2631
          %v2633 = vpop.permute.xlu0 %2632
          %s2635 = sor.u32 256, 56
          %2636 = vbcast.lane.b32.xlu0 %v2606, %s2635
          %v2637 = vpop.permute.xlu0 %2636
          %s2639 = sor.u32 256, 64
          %2640 = vbcast.lane.b32.xlu0 %v2606, %s2639
          %v2641 = vpop.permute.xlu0 %2640
          %s2643 = sor.u32 256, 72
          %2644 = vbcast.lane.b32.xlu0 %v2606, %s2643
          %v2645 = vpop.permute.xlu0 %2644
          %s2647 = sor.u32 256, 80
          %2648 = vbcast.lane.b32.xlu0 %v2606, %s2647
          %v2649 = vpop.permute.xlu0 %2648
          %s2651 = sor.u32 256, 88
          %2652 = vbcast.lane.b32.xlu0 %v2606, %s2651
          %v2653 = vpop.permute.xlu0 %2652
          %s2655 = sor.u32 256, 96
          %2656 = vbcast.lane.b32.xlu0 %v2606, %s2655
          %v2657 = vpop.permute.xlu0 %2656
          %s2659 = sor.u32 256, 104
          %2660 = vbcast.lane.b32.xlu0 %v2606, %s2659
          %v2661 = vpop.permute.xlu0 %2660
          %s2663 = sor.u32 256, 112
          %2664 = vbcast.lane.b32.xlu0 %v2606, %s2663
          %v2665 = vpop.permute.xlu0 %2664
          %s2667 = sor.u32 256, 120
          %2668 = vbcast.lane.b32.xlu0 %v2606, %s2667
          %v2669 = vpop.permute.xlu0 %2668
          %v2670 = vlaneseq
          %v2671 = vshrl.u32 %v2670, 7
          %v2672 = vsub.s32 7, %v2671
          %v2673 = vrot.slane %v571, %v2672
          %2675 = vbcast.lane.b32.xlu0 %v2673, 256
          %v2676 = vpop.permute.xlu0 %2675
          %s2678 = sor.u32 256, 8
          %2679 = vbcast.lane.b32.xlu0 %v2673, %s2678
          %v2680 = vpop.permute.xlu0 %2679
          %s2682 = sor.u32 256, 16
          %2683 = vbcast.lane.b32.xlu0 %v2673, %s2682
          %v2684 = vpop.permute.xlu0 %2683
          %s2686 = sor.u32 256, 24
          %2687 = vbcast.lane.b32.xlu0 %v2673, %s2686
          %v2688 = vpop.permute.xlu0 %2687
          %s2690 = sor.u32 256, 32
          %2691 = vbcast.lane.b32.xlu0 %v2673, %s2690
          %v2692 = vpop.permute.xlu0 %2691
          %s2694 = sor.u32 256, 40
          %2695 = vbcast.lane.b32.xlu0 %v2673, %s2694
          %v2696 = vpop.permute.xlu0 %2695
          %s2698 = sor.u32 256, 48
          %2699 = vbcast.lane.b32.xlu0 %v2673, %s2698
          %v2700 = vpop.permute.xlu0 %2699
          %s2702 = sor.u32 256, 56
          %2703 = vbcast.lane.b32.xlu0 %v2673, %s2702
          %v2704 = vpop.permute.xlu0 %2703
          %s2706 = sor.u32 256, 64
          %2707 = vbcast.lane.b32.xlu0 %v2673, %s2706
          %v2708 = vpop.permute.xlu0 %2707
          %s2710 = sor.u32 256, 72
          %2711 = vbcast.lane.b32.xlu0 %v2673, %s2710
          %v2712 = vpop.permute.xlu0 %2711
          %s2714 = sor.u32 256, 80
          %2715 = vbcast.lane.b32.xlu0 %v2673, %s2714
          %v2716 = vpop.permute.xlu0 %2715
          %s2718 = sor.u32 256, 88
          %2719 = vbcast.lane.b32.xlu0 %v2673, %s2718
          %v2720 = vpop.permute.xlu0 %2719
          %s2722 = sor.u32 256, 96
          %2723 = vbcast.lane.b32.xlu0 %v2673, %s2722
          %v2724 = vpop.permute.xlu0 %2723
          %s2726 = sor.u32 256, 104
          %2727 = vbcast.lane.b32.xlu0 %v2673, %s2726
          %v2728 = vpop.permute.xlu0 %2727
          %s2730 = sor.u32 256, 112
          %2731 = vbcast.lane.b32.xlu0 %v2673, %s2730
          %v2732 = vpop.permute.xlu0 %2731
          %s2734 = sor.u32 256, 120
          %2735 = vbcast.lane.b32.xlu0 %v2673, %s2734
          %v2736 = vpop.permute.xlu0 %2735
          %v2737 = vlaneseq
          %v2738 = vshrl.u32 %v2737, 7
          %v2739 = vsub.s32 0, %v2738
          %v2740 = vrot.slane %v572, %v2739
          %2742 = vbcast.lane.b32.xlu0 %v2740, 256
          %v2743 = vpop.permute.xlu0 %2742
          %s2745 = sor.u32 256, 8
          %2746 = vbcast.lane.b32.xlu0 %v2740, %s2745
          %v2747 = vpop.permute.xlu0 %2746
          %s2749 = sor.u32 256, 16
          %2750 = vbcast.lane.b32.xlu0 %v2740, %s2749
          %v2751 = vpop.permute.xlu0 %2750
          %s2753 = sor.u32 256, 24
          %2754 = vbcast.lane.b32.xlu0 %v2740, %s2753
          %v2755 = vpop.permute.xlu0 %2754
          %s2757 = sor.u32 256, 32
          %2758 = vbcast.lane.b32.xlu0 %v2740, %s2757
          %v2759 = vpop.permute.xlu0 %2758
          %s2761 = sor.u32 256, 40
          %2762 = vbcast.lane.b32.xlu0 %v2740, %s2761
          %v2763 = vpop.permute.xlu0 %2762
          %s2765 = sor.u32 256, 48
          %2766 = vbcast.lane.b32.xlu0 %v2740, %s2765
          %v2767 = vpop.permute.xlu0 %2766
          %s2769 = sor.u32 256, 56
          %2770 = vbcast.lane.b32.xlu0 %v2740, %s2769
          %v2771 = vpop.permute.xlu0 %2770
          %s2773 = sor.u32 256, 64
          %2774 = vbcast.lane.b32.xlu0 %v2740, %s2773
          %v2775 = vpop.permute.xlu0 %2774
          %s2777 = sor.u32 256, 72
          %2778 = vbcast.lane.b32.xlu0 %v2740, %s2777
          %v2779 = vpop.permute.xlu0 %2778
          %s2781 = sor.u32 256, 80
          %2782 = vbcast.lane.b32.xlu0 %v2740, %s2781
          %v2783 = vpop.permute.xlu0 %2782
          %s2785 = sor.u32 256, 88
          %2786 = vbcast.lane.b32.xlu0 %v2740, %s2785
          %v2787 = vpop.permute.xlu0 %2786
          %s2789 = sor.u32 256, 96
          %2790 = vbcast.lane.b32.xlu0 %v2740, %s2789
          %v2791 = vpop.permute.xlu0 %2790
          %s2793 = sor.u32 256, 104
          %2794 = vbcast.lane.b32.xlu0 %v2740, %s2793
          %v2795 = vpop.permute.xlu0 %2794
          %s2797 = sor.u32 256, 112
          %2798 = vbcast.lane.b32.xlu0 %v2740, %s2797
          %v2799 = vpop.permute.xlu0 %2798
          %s2801 = sor.u32 256, 120
          %2802 = vbcast.lane.b32.xlu0 %v2740, %s2801
          %v2803 = vpop.permute.xlu0 %2802
          %v2804 = vlaneseq
          %v2805 = vshrl.u32 %v2804, 7
          %v2806 = vsub.s32 1, %v2805
          %v2807 = vrot.slane %v572, %v2806
          %2809 = vbcast.lane.b32.xlu0 %v2807, 256
          %v2810 = vpop.permute.xlu0 %2809
          %s2812 = sor.u32 256, 8
          %2813 = vbcast.lane.b32.xlu0 %v2807, %s2812
          %v2814 = vpop.permute.xlu0 %2813
          %s2816 = sor.u32 256, 16
          %2817 = vbcast.lane.b32.xlu0 %v2807, %s2816
          %v2818 = vpop.permute.xlu0 %2817
          %s2820 = sor.u32 256, 24
          %2821 = vbcast.lane.b32.xlu0 %v2807, %s2820
          %v2822 = vpop.permute.xlu0 %2821
          %s2824 = sor.u32 256, 32
          %2825 = vbcast.lane.b32.xlu0 %v2807, %s2824
          %v2826 = vpop.permute.xlu0 %2825
          %s2828 = sor.u32 256, 40
          %2829 = vbcast.lane.b32.xlu0 %v2807, %s2828
          %v2830 = vpop.permute.xlu0 %2829
          %s2832 = sor.u32 256, 48
          %2833 = vbcast.lane.b32.xlu0 %v2807, %s2832
          %v2834 = vpop.permute.xlu0 %2833
          %s2836 = sor.u32 256, 56
          %2837 = vbcast.lane.b32.xlu0 %v2807, %s2836
          %v2838 = vpop.permute.xlu0 %2837
          %s2840 = sor.u32 256, 64
          %2841 = vbcast.lane.b32.xlu0 %v2807, %s2840
          %v2842 = vpop.permute.xlu0 %2841
          %s2844 = sor.u32 256, 72
          %2845 = vbcast.lane.b32.xlu0 %v2807, %s2844
          %v2846 = vpop.permute.xlu0 %2845
          %s2848 = sor.u32 256, 80
          %2849 = vbcast.lane.b32.xlu0 %v2807, %s2848
          %v2850 = vpop.permute.xlu0 %2849
          %s2852 = sor.u32 256, 88
          %2853 = vbcast.lane.b32.xlu0 %v2807, %s2852
          %v2854 = vpop.permute.xlu0 %2853
          %s2856 = sor.u32 256, 96
          %2857 = vbcast.lane.b32.xlu0 %v2807, %s2856
          %v2858 = vpop.permute.xlu0 %2857
          %s2860 = sor.u32 256, 104
          %2861 = vbcast.lane.b32.xlu0 %v2807, %s2860
          %v2862 = vpop.permute.xlu0 %2861
          %s2864 = sor.u32 256, 112
          %2865 = vbcast.lane.b32.xlu0 %v2807, %s2864
          %v2866 = vpop.permute.xlu0 %2865
          %s2868 = sor.u32 256, 120
          %2869 = vbcast.lane.b32.xlu0 %v2807, %s2868
          %v2870 = vpop.permute.xlu0 %2869
          %v2871 = vlaneseq
          %v2872 = vshrl.u32 %v2871, 7
          %v2873 = vsub.s32 2, %v2872
          %v2874 = vrot.slane %v572, %v2873
          %2876 = vbcast.lane.b32.xlu0 %v2874, 256
          %v2877 = vpop.permute.xlu0 %2876
          %s2879 = sor.u32 256, 8
          %2880 = vbcast.lane.b32.xlu0 %v2874, %s2879
          %v2881 = vpop.permute.xlu0 %2880
          %s2883 = sor.u32 256, 16
          %2884 = vbcast.lane.b32.xlu0 %v2874, %s2883
          %v2885 = vpop.permute.xlu0 %2884
          %s2887 = sor.u32 256, 24
          %2888 = vbcast.lane.b32.xlu0 %v2874, %s2887
          %v2889 = vpop.permute.xlu0 %2888
          %s2891 = sor.u32 256, 32
          %2892 = vbcast.lane.b32.xlu0 %v2874, %s2891
          %v2893 = vpop.permute.xlu0 %2892
          %s2895 = sor.u32 256, 40
          %2896 = vbcast.lane.b32.xlu0 %v2874, %s2895
          %v2897 = vpop.permute.xlu0 %2896
          %s2899 = sor.u32 256, 48
          %2900 = vbcast.lane.b32.xlu0 %v2874, %s2899
          %v2901 = vpop.permute.xlu0 %2900
          %s2903 = sor.u32 256, 56
          %2904 = vbcast.lane.b32.xlu0 %v2874, %s2903
          %v2905 = vpop.permute.xlu0 %2904
          %s2907 = sor.u32 256, 64
          %2908 = vbcast.lane.b32.xlu0 %v2874, %s2907
          %v2909 = vpop.permute.xlu0 %2908
          %s2911 = sor.u32 256, 72
          %2912 = vbcast.lane.b32.xlu0 %v2874, %s2911
          %v2913 = vpop.permute.xlu0 %2912
          %s2915 = sor.u32 256, 80
          %2916 = vbcast.lane.b32.xlu0 %v2874, %s2915
          %v2917 = vpop.permute.xlu0 %2916
          %s2919 = sor.u32 256, 88
          %2920 = vbcast.lane.b32.xlu0 %v2874, %s2919
          %v2921 = vpop.permute.xlu0 %2920
          %s2923 = sor.u32 256, 96
          %2924 = vbcast.lane.b32.xlu0 %v2874, %s2923
          %v2925 = vpop.permute.xlu0 %2924
          %s2927 = sor.u32 256, 104
          %2928 = vbcast.lane.b32.xlu0 %v2874, %s2927
          %v2929 = vpop.permute.xlu0 %2928
          %s2931 = sor.u32 256, 112
          %2932 = vbcast.lane.b32.xlu0 %v2874, %s2931
          %v2933 = vpop.permute.xlu0 %2932
          %s2935 = sor.u32 256, 120
          %2936 = vbcast.lane.b32.xlu0 %v2874, %s2935
          %v2937 = vpop.permute.xlu0 %2936
          %v2938 = vlaneseq
          %v2939 = vshrl.u32 %v2938, 7
          %v2940 = vsub.s32 3, %v2939
          %v2941 = vrot.slane %v572, %v2940
          %2943 = vbcast.lane.b32.xlu0 %v2941, 256
          %v2944 = vpop.permute.xlu0 %2943
          %s2946 = sor.u32 256, 8
          %2947 = vbcast.lane.b32.xlu0 %v2941, %s2946
          %v2948 = vpop.permute.xlu0 %2947
          %s2950 = sor.u32 256, 16
          %2951 = vbcast.lane.b32.xlu0 %v2941, %s2950
          %v2952 = vpop.permute.xlu0 %2951
          %s2954 = sor.u32 256, 24
          %2955 = vbcast.lane.b32.xlu0 %v2941, %s2954
          %v2956 = vpop.permute.xlu0 %2955
          %s2958 = sor.u32 256, 32
          %2959 = vbcast.lane.b32.xlu0 %v2941, %s2958
          %v2960 = vpop.permute.xlu0 %2959
          %s2962 = sor.u32 256, 40
          %2963 = vbcast.lane.b32.xlu0 %v2941, %s2962
          %v2964 = vpop.permute.xlu0 %2963
          %s2966 = sor.u32 256, 48
          %2967 = vbcast.lane.b32.xlu0 %v2941, %s2966
          %v2968 = vpop.permute.xlu0 %2967
          %s2970 = sor.u32 256, 56
          %2971 = vbcast.lane.b32.xlu0 %v2941, %s2970
          %v2972 = vpop.permute.xlu0 %2971
          %s2974 = sor.u32 256, 64
          %2975 = vbcast.lane.b32.xlu0 %v2941, %s2974
          %v2976 = vpop.permute.xlu0 %2975
          %s2978 = sor.u32 256, 72
          %2979 = vbcast.lane.b32.xlu0 %v2941, %s2978
          %v2980 = vpop.permute.xlu0 %2979
          %s2982 = sor.u32 256, 80
          %2983 = vbcast.lane.b32.xlu0 %v2941, %s2982
          %v2984 = vpop.permute.xlu0 %2983
          %s2986 = sor.u32 256, 88
          %2987 = vbcast.lane.b32.xlu0 %v2941, %s2986
          %v2988 = vpop.permute.xlu0 %2987
          %s2990 = sor.u32 256, 96
          %2991 = vbcast.lane.b32.xlu0 %v2941, %s2990
          %v2992 = vpop.permute.xlu0 %2991
          %s2994 = sor.u32 256, 104
          %2995 = vbcast.lane.b32.xlu0 %v2941, %s2994
          %v2996 = vpop.permute.xlu0 %2995
          %s2998 = sor.u32 256, 112
          %2999 = vbcast.lane.b32.xlu0 %v2941, %s2998
          %v3000 = vpop.permute.xlu0 %2999
          %s3002 = sor.u32 256, 120
          %3003 = vbcast.lane.b32.xlu0 %v2941, %s3002
          %v3004 = vpop.permute.xlu0 %3003
          %v3005 = vlaneseq
          %v3006 = vshrl.u32 %v3005, 7
          %v3007 = vsub.s32 4, %v3006
          %v3008 = vrot.slane %v572, %v3007
          %3010 = vbcast.lane.b32.xlu0 %v3008, 256
          %v3011 = vpop.permute.xlu0 %3010
          %s3013 = sor.u32 256, 8
          %3014 = vbcast.lane.b32.xlu0 %v3008, %s3013
          %v3015 = vpop.permute.xlu0 %3014
          %s3017 = sor.u32 256, 16
          %3018 = vbcast.lane.b32.xlu0 %v3008, %s3017
          %v3019 = vpop.permute.xlu0 %3018
          %s3021 = sor.u32 256, 24
          %3022 = vbcast.lane.b32.xlu0 %v3008, %s3021
          %v3023 = vpop.permute.xlu0 %3022
          %s3025 = sor.u32 256, 32
          %3026 = vbcast.lane.b32.xlu0 %v3008, %s3025
          %v3027 = vpop.permute.xlu0 %3026
          %s3029 = sor.u32 256, 40
          %3030 = vbcast.lane.b32.xlu0 %v3008, %s3029
          %v3031 = vpop.permute.xlu0 %3030
          %s3033 = sor.u32 256, 48
          %3034 = vbcast.lane.b32.xlu0 %v3008, %s3033
          %v3035 = vpop.permute.xlu0 %3034
          %s3037 = sor.u32 256, 56
          %3038 = vbcast.lane.b32.xlu0 %v3008, %s3037
          %v3039 = vpop.permute.xlu0 %3038
          %s3041 = sor.u32 256, 64
          %3042 = vbcast.lane.b32.xlu0 %v3008, %s3041
          %v3043 = vpop.permute.xlu0 %3042
          %s3045 = sor.u32 256, 72
          %3046 = vbcast.lane.b32.xlu0 %v3008, %s3045
          %v3047 = vpop.permute.xlu0 %3046
          %s3049 = sor.u32 256, 80
          %3050 = vbcast.lane.b32.xlu0 %v3008, %s3049
          %v3051 = vpop.permute.xlu0 %3050
          %s3053 = sor.u32 256, 88
          %3054 = vbcast.lane.b32.xlu0 %v3008, %s3053
          %v3055 = vpop.permute.xlu0 %3054
          %s3057 = sor.u32 256, 96
          %3058 = vbcast.lane.b32.xlu0 %v3008, %s3057
          %v3059 = vpop.permute.xlu0 %3058
          %s3061 = sor.u32 256, 104
          %3062 = vbcast.lane.b32.xlu0 %v3008, %s3061
          %v3063 = vpop.permute.xlu0 %3062
          %s3065 = sor.u32 256, 112
          %3066 = vbcast.lane.b32.xlu0 %v3008, %s3065
          %v3067 = vpop.permute.xlu0 %3066
          %s3069 = sor.u32 256, 120
          %3070 = vbcast.lane.b32.xlu0 %v3008, %s3069
          %v3071 = vpop.permute.xlu0 %3070
          %v3072 = vlaneseq
          %v3073 = vshrl.u32 %v3072, 7
          %v3074 = vsub.s32 5, %v3073
          %v3075 = vrot.slane %v572, %v3074
          %3077 = vbcast.lane.b32.xlu0 %v3075, 256
          %v3078 = vpop.permute.xlu0 %3077
          %s3080 = sor.u32 256, 8
          %3081 = vbcast.lane.b32.xlu0 %v3075, %s3080
          %v3082 = vpop.permute.xlu0 %3081
          %s3084 = sor.u32 256, 16
          %3085 = vbcast.lane.b32.xlu0 %v3075, %s3084
          %v3086 = vpop.permute.xlu0 %3085
          %s3088 = sor.u32 256, 24
          %3089 = vbcast.lane.b32.xlu0 %v3075, %s3088
          %v3090 = vpop.permute.xlu0 %3089
          %s3092 = sor.u32 256, 32
          %3093 = vbcast.lane.b32.xlu0 %v3075, %s3092
          %v3094 = vpop.permute.xlu0 %3093
          %s3096 = sor.u32 256, 40
          %3097 = vbcast.lane.b32.xlu0 %v3075, %s3096
          %v3098 = vpop.permute.xlu0 %3097
          %s3100 = sor.u32 256, 48
          %3101 = vbcast.lane.b32.xlu0 %v3075, %s3100
          %v3102 = vpop.permute.xlu0 %3101
          %s3104 = sor.u32 256, 56
          %3105 = vbcast.lane.b32.xlu0 %v3075, %s3104
          %v3106 = vpop.permute.xlu0 %3105
          %s3108 = sor.u32 256, 64
          %3109 = vbcast.lane.b32.xlu0 %v3075, %s3108
          %v3110 = vpop.permute.xlu0 %3109
          %s3112 = sor.u32 256, 72
          %3113 = vbcast.lane.b32.xlu0 %v3075, %s3112
          %v3114 = vpop.permute.xlu0 %3113
          %s3116 = sor.u32 256, 80
          %3117 = vbcast.lane.b32.xlu0 %v3075, %s3116
          %v3118 = vpop.permute.xlu0 %3117
          %s3120 = sor.u32 256, 88
          %3121 = vbcast.lane.b32.xlu0 %v3075, %s3120
          %v3122 = vpop.permute.xlu0 %3121
          %s3124 = sor.u32 256, 96
          %3125 = vbcast.lane.b32.xlu0 %v3075, %s3124
          %v3126 = vpop.permute.xlu0 %3125
          %s3128 = sor.u32 256, 104
          %3129 = vbcast.lane.b32.xlu0 %v3075, %s3128
          %v3130 = vpop.permute.xlu0 %3129
          %s3132 = sor.u32 256, 112
          %3133 = vbcast.lane.b32.xlu0 %v3075, %s3132
          %v3134 = vpop.permute.xlu0 %3133
          %s3136 = sor.u32 256, 120
          %3137 = vbcast.lane.b32.xlu0 %v3075, %s3136
          %v3138 = vpop.permute.xlu0 %3137
          %v3139 = vlaneseq
          %v3140 = vshrl.u32 %v3139, 7
          %v3141 = vsub.s32 6, %v3140
          %v3142 = vrot.slane %v572, %v3141
          %3144 = vbcast.lane.b32.xlu0 %v3142, 256
          %v3145 = vpop.permute.xlu0 %3144
          %s3147 = sor.u32 256, 8
          %3148 = vbcast.lane.b32.xlu0 %v3142, %s3147
          %v3149 = vpop.permute.xlu0 %3148
          %s3151 = sor.u32 256, 16
          %3152 = vbcast.lane.b32.xlu0 %v3142, %s3151
          %v3153 = vpop.permute.xlu0 %3152
          %s3155 = sor.u32 256, 24
          %3156 = vbcast.lane.b32.xlu0 %v3142, %s3155
          %v3157 = vpop.permute.xlu0 %3156
          %s3159 = sor.u32 256, 32
          %3160 = vbcast.lane.b32.xlu0 %v3142, %s3159
          %v3161 = vpop.permute.xlu0 %3160
          %s3163 = sor.u32 256, 40
          %3164 = vbcast.lane.b32.xlu0 %v3142, %s3163
          %v3165 = vpop.permute.xlu0 %3164
          %s3167 = sor.u32 256, 48
          %3168 = vbcast.lane.b32.xlu0 %v3142, %s3167
          %v3169 = vpop.permute.xlu0 %3168
          %s3171 = sor.u32 256, 56
          %3172 = vbcast.lane.b32.xlu0 %v3142, %s3171
          %v3173 = vpop.permute.xlu0 %3172
          %s3175 = sor.u32 256, 64
          %3176 = vbcast.lane.b32.xlu0 %v3142, %s3175
          %v3177 = vpop.permute.xlu0 %3176
          %s3179 = sor.u32 256, 72
          %3180 = vbcast.lane.b32.xlu0 %v3142, %s3179
          %v3181 = vpop.permute.xlu0 %3180
          %s3183 = sor.u32 256, 80
          %3184 = vbcast.lane.b32.xlu0 %v3142, %s3183
          %v3185 = vpop.permute.xlu0 %3184
          %s3187 = sor.u32 256, 88
          %3188 = vbcast.lane.b32.xlu0 %v3142, %s3187
          %v3189 = vpop.permute.xlu0 %3188
          %s3191 = sor.u32 256, 96
          %3192 = vbcast.lane.b32.xlu0 %v3142, %s3191
          %v3193 = vpop.permute.xlu0 %3192
          %s3195 = sor.u32 256, 104
          %3196 = vbcast.lane.b32.xlu0 %v3142, %s3195
          %v3197 = vpop.permute.xlu0 %3196
          %s3199 = sor.u32 256, 112
          %3200 = vbcast.lane.b32.xlu0 %v3142, %s3199
          %v3201 = vpop.permute.xlu0 %3200
          %s3203 = sor.u32 256, 120
          %3204 = vbcast.lane.b32.xlu0 %v3142, %s3203
          %v3205 = vpop.permute.xlu0 %3204
          %v3206 = vlaneseq
          %v3207 = vshrl.u32 %v3206, 7
          %v3208 = vsub.s32 7, %v3207
          %v3209 = vrot.slane %v572, %v3208
          %3211 = vbcast.lane.b32.xlu0 %v3209, 256
          %v3212 = vpop.permute.xlu0 %3211
          %s3214 = sor.u32 256, 8
          %3215 = vbcast.lane.b32.xlu0 %v3209, %s3214
          %v3216 = vpop.permute.xlu0 %3215
          %s3218 = sor.u32 256, 16
          %3219 = vbcast.lane.b32.xlu0 %v3209, %s3218
          %v3220 = vpop.permute.xlu0 %3219
          %s3222 = sor.u32 256, 24
          %3223 = vbcast.lane.b32.xlu0 %v3209, %s3222
          %v3224 = vpop.permute.xlu0 %3223
          %s3226 = sor.u32 256, 32
          %3227 = vbcast.lane.b32.xlu0 %v3209, %s3226
          %v3228 = vpop.permute.xlu0 %3227
          %s3230 = sor.u32 256, 40
          %3231 = vbcast.lane.b32.xlu0 %v3209, %s3230
          %v3232 = vpop.permute.xlu0 %3231
          %s3234 = sor.u32 256, 48
          %3235 = vbcast.lane.b32.xlu0 %v3209, %s3234
          %v3236 = vpop.permute.xlu0 %3235
          %s3238 = sor.u32 256, 56
          %3239 = vbcast.lane.b32.xlu0 %v3209, %s3238
          %v3240 = vpop.permute.xlu0 %3239
          %s3242 = sor.u32 256, 64
          %3243 = vbcast.lane.b32.xlu0 %v3209, %s3242
          %v3244 = vpop.permute.xlu0 %3243
          %s3246 = sor.u32 256, 72
          %3247 = vbcast.lane.b32.xlu0 %v3209, %s3246
          %v3248 = vpop.permute.xlu0 %3247
          %s3250 = sor.u32 256, 80
          %3251 = vbcast.lane.b32.xlu0 %v3209, %s3250
          %v3252 = vpop.permute.xlu0 %3251
          %s3254 = sor.u32 256, 88
          %3255 = vbcast.lane.b32.xlu0 %v3209, %s3254
          %v3256 = vpop.permute.xlu0 %3255
          %s3258 = sor.u32 256, 96
          %3259 = vbcast.lane.b32.xlu0 %v3209, %s3258
          %v3260 = vpop.permute.xlu0 %3259
          %s3262 = sor.u32 256, 104
          %3263 = vbcast.lane.b32.xlu0 %v3209, %s3262
          %v3264 = vpop.permute.xlu0 %3263
          %s3266 = sor.u32 256, 112
          %3267 = vbcast.lane.b32.xlu0 %v3209, %s3266
          %v3268 = vpop.permute.xlu0 %3267
          %s3270 = sor.u32 256, 120
          %3271 = vbcast.lane.b32.xlu0 %v3209, %s3270
          %v3272 = vpop.permute.xlu0 %3271
          %v3273 = vlaneseq
          %v3274 = vshrl.u32 %v3273, 7
          %v3275 = vsub.s32 0, %v3274
          %v3276 = vrot.slane %v573, %v3275
          %3278 = vbcast.lane.b32.xlu0 %v3276, 256
          %v3279 = vpop.permute.xlu0 %3278
          %s3281 = sor.u32 256, 8
          %3282 = vbcast.lane.b32.xlu0 %v3276, %s3281
          %v3283 = vpop.permute.xlu0 %3282
          %s3285 = sor.u32 256, 16
          %3286 = vbcast.lane.b32.xlu0 %v3276, %s3285
          %v3287 = vpop.permute.xlu0 %3286
          %s3289 = sor.u32 256, 24
          %3290 = vbcast.lane.b32.xlu0 %v3276, %s3289
          %v3291 = vpop.permute.xlu0 %3290
          %s3293 = sor.u32 256, 32
          %3294 = vbcast.lane.b32.xlu0 %v3276, %s3293
          %v3295 = vpop.permute.xlu0 %3294
          %s3297 = sor.u32 256, 40
          %3298 = vbcast.lane.b32.xlu0 %v3276, %s3297
          %v3299 = vpop.permute.xlu0 %3298
          %s3301 = sor.u32 256, 48
          %3302 = vbcast.lane.b32.xlu0 %v3276, %s3301
          %v3303 = vpop.permute.xlu0 %3302
          %s3305 = sor.u32 256, 56
          %3306 = vbcast.lane.b32.xlu0 %v3276, %s3305
          %v3307 = vpop.permute.xlu0 %3306
          %s3309 = sor.u32 256, 64
          %3310 = vbcast.lane.b32.xlu0 %v3276, %s3309
          %v3311 = vpop.permute.xlu0 %3310
          %s3313 = sor.u32 256, 72
          %3314 = vbcast.lane.b32.xlu0 %v3276, %s3313
          %v3315 = vpop.permute.xlu0 %3314
          %s3317 = sor.u32 256, 80
          %3318 = vbcast.lane.b32.xlu0 %v3276, %s3317
          %v3319 = vpop.permute.xlu0 %3318
          %s3321 = sor.u32 256, 88
          %3322 = vbcast.lane.b32.xlu0 %v3276, %s3321
          %v3323 = vpop.permute.xlu0 %3322
          %s3325 = sor.u32 256, 96
          %3326 = vbcast.lane.b32.xlu0 %v3276, %s3325
          %v3327 = vpop.permute.xlu0 %3326
          %s3329 = sor.u32 256, 104
          %3330 = vbcast.lane.b32.xlu0 %v3276, %s3329
          %v3331 = vpop.permute.xlu0 %3330
          %s3333 = sor.u32 256, 112
          %3334 = vbcast.lane.b32.xlu0 %v3276, %s3333
          %v3335 = vpop.permute.xlu0 %3334
          %s3337 = sor.u32 256, 120
          %3338 = vbcast.lane.b32.xlu0 %v3276, %s3337
          %v3339 = vpop.permute.xlu0 %3338
          %v3340 = vlaneseq
          %v3341 = vshrl.u32 %v3340, 7
          %v3342 = vsub.s32 1, %v3341
          %v3343 = vrot.slane %v573, %v3342
          %3345 = vbcast.lane.b32.xlu0 %v3343, 256
          %v3346 = vpop.permute.xlu0 %3345
          %s3348 = sor.u32 256, 8
          %3349 = vbcast.lane.b32.xlu0 %v3343, %s3348
          %v3350 = vpop.permute.xlu0 %3349
          %s3352 = sor.u32 256, 16
          %3353 = vbcast.lane.b32.xlu0 %v3343, %s3352
          %v3354 = vpop.permute.xlu0 %3353
          %s3356 = sor.u32 256, 24
          %3357 = vbcast.lane.b32.xlu0 %v3343, %s3356
          %v3358 = vpop.permute.xlu0 %3357
          %s3360 = sor.u32 256, 32
          %3361 = vbcast.lane.b32.xlu0 %v3343, %s3360
          %v3362 = vpop.permute.xlu0 %3361
          %s3364 = sor.u32 256, 40
          %3365 = vbcast.lane.b32.xlu0 %v3343, %s3364
          %v3366 = vpop.permute.xlu0 %3365
          %s3368 = sor.u32 256, 48
          %3369 = vbcast.lane.b32.xlu0 %v3343, %s3368
          %v3370 = vpop.permute.xlu0 %3369
          %s3372 = sor.u32 256, 56
          %3373 = vbcast.lane.b32.xlu0 %v3343, %s3372
          %v3374 = vpop.permute.xlu0 %3373
          %s3376 = sor.u32 256, 64
          %3377 = vbcast.lane.b32.xlu0 %v3343, %s3376
          %v3378 = vpop.permute.xlu0 %3377
          %s3380 = sor.u32 256, 72
          %3381 = vbcast.lane.b32.xlu0 %v3343, %s3380
          %v3382 = vpop.permute.xlu0 %3381
          %s3384 = sor.u32 256, 80
          %3385 = vbcast.lane.b32.xlu0 %v3343, %s3384
          %v3386 = vpop.permute.xlu0 %3385
          %s3388 = sor.u32 256, 88
          %3389 = vbcast.lane.b32.xlu0 %v3343, %s3388
          %v3390 = vpop.permute.xlu0 %3389
          %s3392 = sor.u32 256, 96
          %3393 = vbcast.lane.b32.xlu0 %v3343, %s3392
          %v3394 = vpop.permute.xlu0 %3393
          %s3396 = sor.u32 256, 104
          %3397 = vbcast.lane.b32.xlu0 %v3343, %s3396
          %v3398 = vpop.permute.xlu0 %3397
          %s3400 = sor.u32 256, 112
          %3401 = vbcast.lane.b32.xlu0 %v3343, %s3400
          %v3402 = vpop.permute.xlu0 %3401
          %s3404 = sor.u32 256, 120
          %3405 = vbcast.lane.b32.xlu0 %v3343, %s3404
          %v3406 = vpop.permute.xlu0 %3405
          %v3407 = vlaneseq
          %v3408 = vshrl.u32 %v3407, 7
          %v3409 = vsub.s32 2, %v3408
          %v3410 = vrot.slane %v573, %v3409
          %3412 = vbcast.lane.b32.xlu0 %v3410, 256
          %v3413 = vpop.permute.xlu0 %3412
          %s3415 = sor.u32 256, 8
          %3416 = vbcast.lane.b32.xlu0 %v3410, %s3415
          %v3417 = vpop.permute.xlu0 %3416
          %s3419 = sor.u32 256, 16
          %3420 = vbcast.lane.b32.xlu0 %v3410, %s3419
          %v3421 = vpop.permute.xlu0 %3420
          %s3423 = sor.u32 256, 24
          %3424 = vbcast.lane.b32.xlu0 %v3410, %s3423
          %v3425 = vpop.permute.xlu0 %3424
          %s3427 = sor.u32 256, 32
          %3428 = vbcast.lane.b32.xlu0 %v3410, %s3427
          %v3429 = vpop.permute.xlu0 %3428
          %s3431 = sor.u32 256, 40
          %3432 = vbcast.lane.b32.xlu0 %v3410, %s3431
          %v3433 = vpop.permute.xlu0 %3432
          %s3435 = sor.u32 256, 48
          %3436 = vbcast.lane.b32.xlu0 %v3410, %s3435
          %v3437 = vpop.permute.xlu0 %3436
          %s3439 = sor.u32 256, 56
          %3440 = vbcast.lane.b32.xlu0 %v3410, %s3439
          %v3441 = vpop.permute.xlu0 %3440
          %s3443 = sor.u32 256, 64
          %3444 = vbcast.lane.b32.xlu0 %v3410, %s3443
          %v3445 = vpop.permute.xlu0 %3444
          %s3447 = sor.u32 256, 72
          %3448 = vbcast.lane.b32.xlu0 %v3410, %s3447
          %v3449 = vpop.permute.xlu0 %3448
          %s3451 = sor.u32 256, 80
          %3452 = vbcast.lane.b32.xlu0 %v3410, %s3451
          %v3453 = vpop.permute.xlu0 %3452
          %s3455 = sor.u32 256, 88
          %3456 = vbcast.lane.b32.xlu0 %v3410, %s3455
          %v3457 = vpop.permute.xlu0 %3456
          %s3459 = sor.u32 256, 96
          %3460 = vbcast.lane.b32.xlu0 %v3410, %s3459
          %v3461 = vpop.permute.xlu0 %3460
          %s3463 = sor.u32 256, 104
          %3464 = vbcast.lane.b32.xlu0 %v3410, %s3463
          %v3465 = vpop.permute.xlu0 %3464
          %s3467 = sor.u32 256, 112
          %3468 = vbcast.lane.b32.xlu0 %v3410, %s3467
          %v3469 = vpop.permute.xlu0 %3468
          %s3471 = sor.u32 256, 120
          %3472 = vbcast.lane.b32.xlu0 %v3410, %s3471
          %v3473 = vpop.permute.xlu0 %3472
          %v3474 = vlaneseq
          %v3475 = vshrl.u32 %v3474, 7
          %v3476 = vsub.s32 3, %v3475
          %v3477 = vrot.slane %v573, %v3476
          %3479 = vbcast.lane.b32.xlu0 %v3477, 256
          %v3480 = vpop.permute.xlu0 %3479
          %s3482 = sor.u32 256, 8
          %3483 = vbcast.lane.b32.xlu0 %v3477, %s3482
          %v3484 = vpop.permute.xlu0 %3483
          %s3486 = sor.u32 256, 16
          %3487 = vbcast.lane.b32.xlu0 %v3477, %s3486
          %v3488 = vpop.permute.xlu0 %3487
          %s3490 = sor.u32 256, 24
          %3491 = vbcast.lane.b32.xlu0 %v3477, %s3490
          %v3492 = vpop.permute.xlu0 %3491
          %s3494 = sor.u32 256, 32
          %3495 = vbcast.lane.b32.xlu0 %v3477, %s3494
          %v3496 = vpop.permute.xlu0 %3495
          %s3498 = sor.u32 256, 40
          %3499 = vbcast.lane.b32.xlu0 %v3477, %s3498
          %v3500 = vpop.permute.xlu0 %3499
          %s3502 = sor.u32 256, 48
          %3503 = vbcast.lane.b32.xlu0 %v3477, %s3502
          %v3504 = vpop.permute.xlu0 %3503
          %s3506 = sor.u32 256, 56
          %3507 = vbcast.lane.b32.xlu0 %v3477, %s3506
          %v3508 = vpop.permute.xlu0 %3507
          %s3510 = sor.u32 256, 64
          %3511 = vbcast.lane.b32.xlu0 %v3477, %s3510
          %v3512 = vpop.permute.xlu0 %3511
          %s3514 = sor.u32 256, 72
          %3515 = vbcast.lane.b32.xlu0 %v3477, %s3514
          %v3516 = vpop.permute.xlu0 %3515
          %s3518 = sor.u32 256, 80
          %3519 = vbcast.lane.b32.xlu0 %v3477, %s3518
          %v3520 = vpop.permute.xlu0 %3519
          %s3522 = sor.u32 256, 88
          %3523 = vbcast.lane.b32.xlu0 %v3477, %s3522
          %v3524 = vpop.permute.xlu0 %3523
          %s3526 = sor.u32 256, 96
          %3527 = vbcast.lane.b32.xlu0 %v3477, %s3526
          %v3528 = vpop.permute.xlu0 %3527
          %s3530 = sor.u32 256, 104
          %3531 = vbcast.lane.b32.xlu0 %v3477, %s3530
          %v3532 = vpop.permute.xlu0 %3531
          %s3534 = sor.u32 256, 112
          %3535 = vbcast.lane.b32.xlu0 %v3477, %s3534
          %v3536 = vpop.permute.xlu0 %3535
          %s3538 = sor.u32 256, 120
          %3539 = vbcast.lane.b32.xlu0 %v3477, %s3538
          %v3540 = vpop.permute.xlu0 %3539
          %v3541 = vlaneseq
          %v3542 = vshrl.u32 %v3541, 7
          %v3543 = vsub.s32 4, %v3542
          %v3544 = vrot.slane %v573, %v3543
          %3546 = vbcast.lane.b32.xlu0 %v3544, 256
          %v3547 = vpop.permute.xlu0 %3546
          %s3549 = sor.u32 256, 8
          %3550 = vbcast.lane.b32.xlu0 %v3544, %s3549
          %v3551 = vpop.permute.xlu0 %3550
          %s3553 = sor.u32 256, 16
          %3554 = vbcast.lane.b32.xlu0 %v3544, %s3553
          %v3555 = vpop.permute.xlu0 %3554
          %s3557 = sor.u32 256, 24
          %3558 = vbcast.lane.b32.xlu0 %v3544, %s3557
          %v3559 = vpop.permute.xlu0 %3558
          %s3561 = sor.u32 256, 32
          %3562 = vbcast.lane.b32.xlu0 %v3544, %s3561
          %v3563 = vpop.permute.xlu0 %3562
          %s3565 = sor.u32 256, 40
          %3566 = vbcast.lane.b32.xlu0 %v3544, %s3565
          %v3567 = vpop.permute.xlu0 %3566
          %s3569 = sor.u32 256, 48
          %3570 = vbcast.lane.b32.xlu0 %v3544, %s3569
          %v3571 = vpop.permute.xlu0 %3570
          %s3573 = sor.u32 256, 56
          %3574 = vbcast.lane.b32.xlu0 %v3544, %s3573
          %v3575 = vpop.permute.xlu0 %3574
          %s3577 = sor.u32 256, 64
          %3578 = vbcast.lane.b32.xlu0 %v3544, %s3577
          %v3579 = vpop.permute.xlu0 %3578
          %s3581 = sor.u32 256, 72
          %3582 = vbcast.lane.b32.xlu0 %v3544, %s3581
          %v3583 = vpop.permute.xlu0 %3582
          %s3585 = sor.u32 256, 80
          %3586 = vbcast.lane.b32.xlu0 %v3544, %s3585
          %v3587 = vpop.permute.xlu0 %3586
          %s3589 = sor.u32 256, 88
          %3590 = vbcast.lane.b32.xlu0 %v3544, %s3589
          %v3591 = vpop.permute.xlu0 %3590
          %s3593 = sor.u32 256, 96
          %3594 = vbcast.lane.b32.xlu0 %v3544, %s3593
          %v3595 = vpop.permute.xlu0 %3594
          %s3597 = sor.u32 256, 104
          %3598 = vbcast.lane.b32.xlu0 %v3544, %s3597
          %v3599 = vpop.permute.xlu0 %3598
          %s3601 = sor.u32 256, 112
          %3602 = vbcast.lane.b32.xlu0 %v3544, %s3601
          %v3603 = vpop.permute.xlu0 %3602
          %s3605 = sor.u32 256, 120
          %3606 = vbcast.lane.b32.xlu0 %v3544, %s3605
          %v3607 = vpop.permute.xlu0 %3606
          %v3608 = vlaneseq
          %v3609 = vshrl.u32 %v3608, 7
          %v3610 = vsub.s32 5, %v3609
          %v3611 = vrot.slane %v573, %v3610
          %3613 = vbcast.lane.b32.xlu0 %v3611, 256
          %v3614 = vpop.permute.xlu0 %3613
          %s3616 = sor.u32 256, 8
          %3617 = vbcast.lane.b32.xlu0 %v3611, %s3616
          %v3618 = vpop.permute.xlu0 %3617
          %s3620 = sor.u32 256, 16
          %3621 = vbcast.lane.b32.xlu0 %v3611, %s3620
          %v3622 = vpop.permute.xlu0 %3621
          %s3624 = sor.u32 256, 24
          %3625 = vbcast.lane.b32.xlu0 %v3611, %s3624
          %v3626 = vpop.permute.xlu0 %3625
          %s3628 = sor.u32 256, 32
          %3629 = vbcast.lane.b32.xlu0 %v3611, %s3628
          %v3630 = vpop.permute.xlu0 %3629
          %s3632 = sor.u32 256, 40
          %3633 = vbcast.lane.b32.xlu0 %v3611, %s3632
          %v3634 = vpop.permute.xlu0 %3633
          %s3636 = sor.u32 256, 48
          %3637 = vbcast.lane.b32.xlu0 %v3611, %s3636
          %v3638 = vpop.permute.xlu0 %3637
          %s3640 = sor.u32 256, 56
          %3641 = vbcast.lane.b32.xlu0 %v3611, %s3640
          %v3642 = vpop.permute.xlu0 %3641
          %s3644 = sor.u32 256, 64
          %3645 = vbcast.lane.b32.xlu0 %v3611, %s3644
          %v3646 = vpop.permute.xlu0 %3645
          %s3648 = sor.u32 256, 72
          %3649 = vbcast.lane.b32.xlu0 %v3611, %s3648
          %v3650 = vpop.permute.xlu0 %3649
          %s3652 = sor.u32 256, 80
          %3653 = vbcast.lane.b32.xlu0 %v3611, %s3652
          %v3654 = vpop.permute.xlu0 %3653
          %s3656 = sor.u32 256, 88
          %3657 = vbcast.lane.b32.xlu0 %v3611, %s3656
          %v3658 = vpop.permute.xlu0 %3657
          %s3660 = sor.u32 256, 96
          %3661 = vbcast.lane.b32.xlu0 %v3611, %s3660
          %v3662 = vpop.permute.xlu0 %3661
          %s3664 = sor.u32 256, 104
          %3665 = vbcast.lane.b32.xlu0 %v3611, %s3664
          %v3666 = vpop.permute.xlu0 %3665
          %s3668 = sor.u32 256, 112
          %3669 = vbcast.lane.b32.xlu0 %v3611, %s3668
          %v3670 = vpop.permute.xlu0 %3669
          %s3672 = sor.u32 256, 120
          %3673 = vbcast.lane.b32.xlu0 %v3611, %s3672
          %v3674 = vpop.permute.xlu0 %3673
          %v3675 = vlaneseq
          %v3676 = vshrl.u32 %v3675, 7
          %v3677 = vsub.s32 6, %v3676
          %v3678 = vrot.slane %v573, %v3677
          %3680 = vbcast.lane.b32.xlu0 %v3678, 256
          %v3681 = vpop.permute.xlu0 %3680
          %s3683 = sor.u32 256, 8
          %3684 = vbcast.lane.b32.xlu0 %v3678, %s3683
          %v3685 = vpop.permute.xlu0 %3684
          %s3687 = sor.u32 256, 16
          %3688 = vbcast.lane.b32.xlu0 %v3678, %s3687
          %v3689 = vpop.permute.xlu0 %3688
          %s3691 = sor.u32 256, 24
          %3692 = vbcast.lane.b32.xlu0 %v3678, %s3691
          %v3693 = vpop.permute.xlu0 %3692
          %s3695 = sor.u32 256, 32
          %3696 = vbcast.lane.b32.xlu0 %v3678, %s3695
          %v3697 = vpop.permute.xlu0 %3696
          %s3699 = sor.u32 256, 40
          %3700 = vbcast.lane.b32.xlu0 %v3678, %s3699
          %v3701 = vpop.permute.xlu0 %3700
          %s3703 = sor.u32 256, 48
          %3704 = vbcast.lane.b32.xlu0 %v3678, %s3703
          %v3705 = vpop.permute.xlu0 %3704
          %s3707 = sor.u32 256, 56
          %3708 = vbcast.lane.b32.xlu0 %v3678, %s3707
          %v3709 = vpop.permute.xlu0 %3708
          %s3711 = sor.u32 256, 64
          %3712 = vbcast.lane.b32.xlu0 %v3678, %s3711
          %v3713 = vpop.permute.xlu0 %3712
          %s3715 = sor.u32 256, 72
          %3716 = vbcast.lane.b32.xlu0 %v3678, %s3715
          %v3717 = vpop.permute.xlu0 %3716
          %s3719 = sor.u32 256, 80
          %3720 = vbcast.lane.b32.xlu0 %v3678, %s3719
          %v3721 = vpop.permute.xlu0 %3720
          %s3723 = sor.u32 256, 88
          %3724 = vbcast.lane.b32.xlu0 %v3678, %s3723
          %v3725 = vpop.permute.xlu0 %3724
          %s3727 = sor.u32 256, 96
          %3728 = vbcast.lane.b32.xlu0 %v3678, %s3727
          %v3729 = vpop.permute.xlu0 %3728
          %s3731 = sor.u32 256, 104
          %3732 = vbcast.lane.b32.xlu0 %v3678, %s3731
          %v3733 = vpop.permute.xlu0 %3732
          %s3735 = sor.u32 256, 112
          %3736 = vbcast.lane.b32.xlu0 %v3678, %s3735
          %v3737 = vpop.permute.xlu0 %3736
          %s3739 = sor.u32 256, 120
          %3740 = vbcast.lane.b32.xlu0 %v3678, %s3739
          %v3741 = vpop.permute.xlu0 %3740
          %v3742 = vlaneseq
          %v3743 = vshrl.u32 %v3742, 7
          %v3744 = vsub.s32 7, %v3743
          %v3745 = vrot.slane %v573, %v3744
          %3747 = vbcast.lane.b32.xlu0 %v3745, 256
          %v3748 = vpop.permute.xlu0 %3747
          %s3750 = sor.u32 256, 8
          %3751 = vbcast.lane.b32.xlu0 %v3745, %s3750
          %v3752 = vpop.permute.xlu0 %3751
          %s3754 = sor.u32 256, 16
          %3755 = vbcast.lane.b32.xlu0 %v3745, %s3754
          %v3756 = vpop.permute.xlu0 %3755
          %s3758 = sor.u32 256, 24
          %3759 = vbcast.lane.b32.xlu0 %v3745, %s3758
          %v3760 = vpop.permute.xlu0 %3759
          %s3762 = sor.u32 256, 32
          %3763 = vbcast.lane.b32.xlu0 %v3745, %s3762
          %v3764 = vpop.permute.xlu0 %3763
          %s3766 = sor.u32 256, 40
          %3767 = vbcast.lane.b32.xlu0 %v3745, %s3766
          %v3768 = vpop.permute.xlu0 %3767
          %s3770 = sor.u32 256, 48
          %3771 = vbcast.lane.b32.xlu0 %v3745, %s3770
          %v3772 = vpop.permute.xlu0 %3771
          %s3774 = sor.u32 256, 56
          %3775 = vbcast.lane.b32.xlu0 %v3745, %s3774
          %v3776 = vpop.permute.xlu0 %3775
          %s3778 = sor.u32 256, 64
          %3779 = vbcast.lane.b32.xlu0 %v3745, %s3778
          %v3780 = vpop.permute.xlu0 %3779
          %s3782 = sor.u32 256, 72
          %3783 = vbcast.lane.b32.xlu0 %v3745, %s3782
          %v3784 = vpop.permute.xlu0 %3783
          %s3786 = sor.u32 256, 80
          %3787 = vbcast.lane.b32.xlu0 %v3745, %s3786
          %v3788 = vpop.permute.xlu0 %3787
          %s3790 = sor.u32 256, 88
          %3791 = vbcast.lane.b32.xlu0 %v3745, %s3790
          %v3792 = vpop.permute.xlu0 %3791
          %s3794 = sor.u32 256, 96
          %3795 = vbcast.lane.b32.xlu0 %v3745, %s3794
          %v3796 = vpop.permute.xlu0 %3795
          %s3798 = sor.u32 256, 104
          %3799 = vbcast.lane.b32.xlu0 %v3745, %s3798
          %v3800 = vpop.permute.xlu0 %3799
          %s3802 = sor.u32 256, 112
          %3803 = vbcast.lane.b32.xlu0 %v3745, %s3802
          %v3804 = vpop.permute.xlu0 %3803
          %s3806 = sor.u32 256, 120
          %3807 = vbcast.lane.b32.xlu0 %v3745, %s3806
          %v3808 = vpop.permute.xlu0 %3807
          %v3809 = vlaneseq
          %v3810 = vshrl.u32 %v3809, 7
          %v3811 = vsub.s32 0, %v3810
          %v3812 = vrot.slane %v574, %v3811
          %3814 = vbcast.lane.b32.xlu0 %v3812, 256
          %v3815 = vpop.permute.xlu0 %3814
          %s3817 = sor.u32 256, 8
          %3818 = vbcast.lane.b32.xlu0 %v3812, %s3817
          %v3819 = vpop.permute.xlu0 %3818
          %s3821 = sor.u32 256, 16
          %3822 = vbcast.lane.b32.xlu0 %v3812, %s3821
          %v3823 = vpop.permute.xlu0 %3822
          %s3825 = sor.u32 256, 24
          %3826 = vbcast.lane.b32.xlu0 %v3812, %s3825
          %v3827 = vpop.permute.xlu0 %3826
          %s3829 = sor.u32 256, 32
          %3830 = vbcast.lane.b32.xlu0 %v3812, %s3829
          %v3831 = vpop.permute.xlu0 %3830
          %s3833 = sor.u32 256, 40
          %3834 = vbcast.lane.b32.xlu0 %v3812, %s3833
          %v3835 = vpop.permute.xlu0 %3834
          %s3837 = sor.u32 256, 48
          %3838 = vbcast.lane.b32.xlu0 %v3812, %s3837
          %v3839 = vpop.permute.xlu0 %3838
          %s3841 = sor.u32 256, 56
          %3842 = vbcast.lane.b32.xlu0 %v3812, %s3841
          %v3843 = vpop.permute.xlu0 %3842
          %s3845 = sor.u32 256, 64
          %3846 = vbcast.lane.b32.xlu0 %v3812, %s3845
          %v3847 = vpop.permute.xlu0 %3846
          %s3849 = sor.u32 256, 72
          %3850 = vbcast.lane.b32.xlu0 %v3812, %s3849
          %v3851 = vpop.permute.xlu0 %3850
          %s3853 = sor.u32 256, 80
          %3854 = vbcast.lane.b32.xlu0 %v3812, %s3853
          %v3855 = vpop.permute.xlu0 %3854
          %s3857 = sor.u32 256, 88
          %3858 = vbcast.lane.b32.xlu0 %v3812, %s3857
          %v3859 = vpop.permute.xlu0 %3858
          %s3861 = sor.u32 256, 96
          %3862 = vbcast.lane.b32.xlu0 %v3812, %s3861
          %v3863 = vpop.permute.xlu0 %3862
          %s3865 = sor.u32 256, 104
          %3866 = vbcast.lane.b32.xlu0 %v3812, %s3865
          %v3867 = vpop.permute.xlu0 %3866
          %s3869 = sor.u32 256, 112
          %3870 = vbcast.lane.b32.xlu0 %v3812, %s3869
          %v3871 = vpop.permute.xlu0 %3870
          %s3873 = sor.u32 256, 120
          %3874 = vbcast.lane.b32.xlu0 %v3812, %s3873
          %v3875 = vpop.permute.xlu0 %3874
          %v3876 = vlaneseq
          %v3877 = vshrl.u32 %v3876, 7
          %v3878 = vsub.s32 1, %v3877
          %v3879 = vrot.slane %v574, %v3878
          %3881 = vbcast.lane.b32.xlu0 %v3879, 256
          %v3882 = vpop.permute.xlu0 %3881
          %s3884 = sor.u32 256, 8
          %3885 = vbcast.lane.b32.xlu0 %v3879, %s3884
          %v3886 = vpop.permute.xlu0 %3885
          %s3888 = sor.u32 256, 16
          %3889 = vbcast.lane.b32.xlu0 %v3879, %s3888
          %v3890 = vpop.permute.xlu0 %3889
          %s3892 = sor.u32 256, 24
          %3893 = vbcast.lane.b32.xlu0 %v3879, %s3892
          %v3894 = vpop.permute.xlu0 %3893
          %s3896 = sor.u32 256, 32
          %3897 = vbcast.lane.b32.xlu0 %v3879, %s3896
          %v3898 = vpop.permute.xlu0 %3897
          %s3900 = sor.u32 256, 40
          %3901 = vbcast.lane.b32.xlu0 %v3879, %s3900
          %v3902 = vpop.permute.xlu0 %3901
          %s3904 = sor.u32 256, 48
          %3905 = vbcast.lane.b32.xlu0 %v3879, %s3904
          %v3906 = vpop.permute.xlu0 %3905
          %s3908 = sor.u32 256, 56
          %3909 = vbcast.lane.b32.xlu0 %v3879, %s3908
          %v3910 = vpop.permute.xlu0 %3909
          %s3912 = sor.u32 256, 64
          %3913 = vbcast.lane.b32.xlu0 %v3879, %s3912
          %v3914 = vpop.permute.xlu0 %3913
          %s3916 = sor.u32 256, 72
          %3917 = vbcast.lane.b32.xlu0 %v3879, %s3916
          %v3918 = vpop.permute.xlu0 %3917
          %s3920 = sor.u32 256, 80
          %3921 = vbcast.lane.b32.xlu0 %v3879, %s3920
          %v3922 = vpop.permute.xlu0 %3921
          %s3924 = sor.u32 256, 88
          %3925 = vbcast.lane.b32.xlu0 %v3879, %s3924
          %v3926 = vpop.permute.xlu0 %3925
          %s3928 = sor.u32 256, 96
          %3929 = vbcast.lane.b32.xlu0 %v3879, %s3928
          %v3930 = vpop.permute.xlu0 %3929
          %s3932 = sor.u32 256, 104
          %3933 = vbcast.lane.b32.xlu0 %v3879, %s3932
          %v3934 = vpop.permute.xlu0 %3933
          %s3936 = sor.u32 256, 112
          %3937 = vbcast.lane.b32.xlu0 %v3879, %s3936
          %v3938 = vpop.permute.xlu0 %3937
          %s3940 = sor.u32 256, 120
          %3941 = vbcast.lane.b32.xlu0 %v3879, %s3940
          %v3942 = vpop.permute.xlu0 %3941
          %v3943 = vlaneseq
          %v3944 = vshrl.u32 %v3943, 7
          %v3945 = vsub.s32 2, %v3944
          %v3946 = vrot.slane %v574, %v3945
          %3948 = vbcast.lane.b32.xlu0 %v3946, 256
          %v3949 = vpop.permute.xlu0 %3948
          %s3951 = sor.u32 256, 8
          %3952 = vbcast.lane.b32.xlu0 %v3946, %s3951
          %v3953 = vpop.permute.xlu0 %3952
          %s3955 = sor.u32 256, 16
          %3956 = vbcast.lane.b32.xlu0 %v3946, %s3955
          %v3957 = vpop.permute.xlu0 %3956
          %s3959 = sor.u32 256, 24
          %3960 = vbcast.lane.b32.xlu0 %v3946, %s3959
          %v3961 = vpop.permute.xlu0 %3960
          %s3963 = sor.u32 256, 32
          %3964 = vbcast.lane.b32.xlu0 %v3946, %s3963
          %v3965 = vpop.permute.xlu0 %3964
          %s3967 = sor.u32 256, 40
          %3968 = vbcast.lane.b32.xlu0 %v3946, %s3967
          %v3969 = vpop.permute.xlu0 %3968
          %s3971 = sor.u32 256, 48
          %3972 = vbcast.lane.b32.xlu0 %v3946, %s3971
          %v3973 = vpop.permute.xlu0 %3972
          %s3975 = sor.u32 256, 56
          %3976 = vbcast.lane.b32.xlu0 %v3946, %s3975
          %v3977 = vpop.permute.xlu0 %3976
          %s3979 = sor.u32 256, 64
          %3980 = vbcast.lane.b32.xlu0 %v3946, %s3979
          %v3981 = vpop.permute.xlu0 %3980
          %s3983 = sor.u32 256, 72
          %3984 = vbcast.lane.b32.xlu0 %v3946, %s3983
          %v3985 = vpop.permute.xlu0 %3984
          %s3987 = sor.u32 256, 80
          %3988 = vbcast.lane.b32.xlu0 %v3946, %s3987
          %v3989 = vpop.permute.xlu0 %3988
          %s3991 = sor.u32 256, 88
          %3992 = vbcast.lane.b32.xlu0 %v3946, %s3991
          %v3993 = vpop.permute.xlu0 %3992
          %s3995 = sor.u32 256, 96
          %3996 = vbcast.lane.b32.xlu0 %v3946, %s3995
          %v3997 = vpop.permute.xlu0 %3996
          %s3999 = sor.u32 256, 104
          %4000 = vbcast.lane.b32.xlu0 %v3946, %s3999
          %v4001 = vpop.permute.xlu0 %4000
          %s4003 = sor.u32 256, 112
          %4004 = vbcast.lane.b32.xlu0 %v3946, %s4003
          %v4005 = vpop.permute.xlu0 %4004
          %s4007 = sor.u32 256, 120
          %4008 = vbcast.lane.b32.xlu0 %v3946, %s4007
          %v4009 = vpop.permute.xlu0 %4008
          %v4010 = vlaneseq
          %v4011 = vshrl.u32 %v4010, 7
          %v4012 = vsub.s32 3, %v4011
          %v4013 = vrot.slane %v574, %v4012
          %4015 = vbcast.lane.b32.xlu0 %v4013, 256
          %v4016 = vpop.permute.xlu0 %4015
          %s4018 = sor.u32 256, 8
          %4019 = vbcast.lane.b32.xlu0 %v4013, %s4018
          %v4020 = vpop.permute.xlu0 %4019
          %s4022 = sor.u32 256, 16
          %4023 = vbcast.lane.b32.xlu0 %v4013, %s4022
          %v4024 = vpop.permute.xlu0 %4023
          %s4026 = sor.u32 256, 24
          %4027 = vbcast.lane.b32.xlu0 %v4013, %s4026
          %v4028 = vpop.permute.xlu0 %4027
          %s4030 = sor.u32 256, 32
          %4031 = vbcast.lane.b32.xlu0 %v4013, %s4030
          %v4032 = vpop.permute.xlu0 %4031
          %s4034 = sor.u32 256, 40
          %4035 = vbcast.lane.b32.xlu0 %v4013, %s4034
          %v4036 = vpop.permute.xlu0 %4035
          %s4038 = sor.u32 256, 48
          %4039 = vbcast.lane.b32.xlu0 %v4013, %s4038
          %v4040 = vpop.permute.xlu0 %4039
          %s4042 = sor.u32 256, 56
          %4043 = vbcast.lane.b32.xlu0 %v4013, %s4042
          %v4044 = vpop.permute.xlu0 %4043
          %s4046 = sor.u32 256, 64
          %4047 = vbcast.lane.b32.xlu0 %v4013, %s4046
          %v4048 = vpop.permute.xlu0 %4047
          %s4050 = sor.u32 256, 72
          %4051 = vbcast.lane.b32.xlu0 %v4013, %s4050
          %v4052 = vpop.permute.xlu0 %4051
          %s4054 = sor.u32 256, 80
          %4055 = vbcast.lane.b32.xlu0 %v4013, %s4054
          %v4056 = vpop.permute.xlu0 %4055
          %s4058 = sor.u32 256, 88
          %4059 = vbcast.lane.b32.xlu0 %v4013, %s4058
          %v4060 = vpop.permute.xlu0 %4059
          %s4062 = sor.u32 256, 96
          %4063 = vbcast.lane.b32.xlu0 %v4013, %s4062
          %v4064 = vpop.permute.xlu0 %4063
          %s4066 = sor.u32 256, 104
          %4067 = vbcast.lane.b32.xlu0 %v4013, %s4066
          %v4068 = vpop.permute.xlu0 %4067
          %s4070 = sor.u32 256, 112
          %4071 = vbcast.lane.b32.xlu0 %v4013, %s4070
          %v4072 = vpop.permute.xlu0 %4071
          %s4074 = sor.u32 256, 120
          %4075 = vbcast.lane.b32.xlu0 %v4013, %s4074
          %v4076 = vpop.permute.xlu0 %4075
          %v4077 = vlaneseq
          %v4078 = vshrl.u32 %v4077, 7
          %v4079 = vsub.s32 4, %v4078
          %v4080 = vrot.slane %v574, %v4079
          %4082 = vbcast.lane.b32.xlu0 %v4080, 256
          %v4083 = vpop.permute.xlu0 %4082
          %s4085 = sor.u32 256, 8
          %4086 = vbcast.lane.b32.xlu0 %v4080, %s4085
          %v4087 = vpop.permute.xlu0 %4086
          %s4089 = sor.u32 256, 16
          %4090 = vbcast.lane.b32.xlu0 %v4080, %s4089
          %v4091 = vpop.permute.xlu0 %4090
          %s4093 = sor.u32 256, 24
          %4094 = vbcast.lane.b32.xlu0 %v4080, %s4093
          %v4095 = vpop.permute.xlu0 %4094
          %s4097 = sor.u32 256, 32
          %4098 = vbcast.lane.b32.xlu0 %v4080, %s4097
          %v4099 = vpop.permute.xlu0 %4098
          %s4101 = sor.u32 256, 40
          %4102 = vbcast.lane.b32.xlu0 %v4080, %s4101
          %v4103 = vpop.permute.xlu0 %4102
          %s4105 = sor.u32 256, 48
          %4106 = vbcast.lane.b32.xlu0 %v4080, %s4105
          %v4107 = vpop.permute.xlu0 %4106
          %s4109 = sor.u32 256, 56
          %4110 = vbcast.lane.b32.xlu0 %v4080, %s4109
          %v4111 = vpop.permute.xlu0 %4110
          %s4113 = sor.u32 256, 64
          %4114 = vbcast.lane.b32.xlu0 %v4080, %s4113
          %v4115 = vpop.permute.xlu0 %4114
          %s4117 = sor.u32 256, 72
          %4118 = vbcast.lane.b32.xlu0 %v4080, %s4117
          %v4119 = vpop.permute.xlu0 %4118
          %s4121 = sor.u32 256, 80
          %4122 = vbcast.lane.b32.xlu0 %v4080, %s4121
          %v4123 = vpop.permute.xlu0 %4122
          %s4125 = sor.u32 256, 88
          %4126 = vbcast.lane.b32.xlu0 %v4080, %s4125
          %v4127 = vpop.permute.xlu0 %4126
          %s4129 = sor.u32 256, 96
          %4130 = vbcast.lane.b32.xlu0 %v4080, %s4129
          %v4131 = vpop.permute.xlu0 %4130
          %s4133 = sor.u32 256, 104
          %4134 = vbcast.lane.b32.xlu0 %v4080, %s4133
          %v4135 = vpop.permute.xlu0 %4134
          %s4137 = sor.u32 256, 112
          %4138 = vbcast.lane.b32.xlu0 %v4080, %s4137
          %v4139 = vpop.permute.xlu0 %4138
          %s4141 = sor.u32 256, 120
          %4142 = vbcast.lane.b32.xlu0 %v4080, %s4141
          %v4143 = vpop.permute.xlu0 %4142
          %v4144 = vlaneseq
          %v4145 = vshrl.u32 %v4144, 7
          %v4146 = vsub.s32 5, %v4145
          %v4147 = vrot.slane %v574, %v4146
          %4149 = vbcast.lane.b32.xlu0 %v4147, 256
          %v4150 = vpop.permute.xlu0 %4149
          %s4152 = sor.u32 256, 8
          %4153 = vbcast.lane.b32.xlu0 %v4147, %s4152
          %v4154 = vpop.permute.xlu0 %4153
          %s4156 = sor.u32 256, 16
          %4157 = vbcast.lane.b32.xlu0 %v4147, %s4156
          %v4158 = vpop.permute.xlu0 %4157
          %s4160 = sor.u32 256, 24
          %4161 = vbcast.lane.b32.xlu0 %v4147, %s4160
          %v4162 = vpop.permute.xlu0 %4161
          %s4164 = sor.u32 256, 32
          %4165 = vbcast.lane.b32.xlu0 %v4147, %s4164
          %v4166 = vpop.permute.xlu0 %4165
          %s4168 = sor.u32 256, 40
          %4169 = vbcast.lane.b32.xlu0 %v4147, %s4168
          %v4170 = vpop.permute.xlu0 %4169
          %s4172 = sor.u32 256, 48
          %4173 = vbcast.lane.b32.xlu0 %v4147, %s4172
          %v4174 = vpop.permute.xlu0 %4173
          %s4176 = sor.u32 256, 56
          %4177 = vbcast.lane.b32.xlu0 %v4147, %s4176
          %v4178 = vpop.permute.xlu0 %4177
          %s4180 = sor.u32 256, 64
          %4181 = vbcast.lane.b32.xlu0 %v4147, %s4180
          %v4182 = vpop.permute.xlu0 %4181
          %s4184 = sor.u32 256, 72
          %4185 = vbcast.lane.b32.xlu0 %v4147, %s4184
          %v4186 = vpop.permute.xlu0 %4185
          %s4188 = sor.u32 256, 80
          %4189 = vbcast.lane.b32.xlu0 %v4147, %s4188
          %v4190 = vpop.permute.xlu0 %4189
          %s4192 = sor.u32 256, 88
          %4193 = vbcast.lane.b32.xlu0 %v4147, %s4192
          %v4194 = vpop.permute.xlu0 %4193
          %s4196 = sor.u32 256, 96
          %4197 = vbcast.lane.b32.xlu0 %v4147, %s4196
          %v4198 = vpop.permute.xlu0 %4197
          %s4200 = sor.u32 256, 104
          %4201 = vbcast.lane.b32.xlu0 %v4147, %s4200
          %v4202 = vpop.permute.xlu0 %4201
          %s4204 = sor.u32 256, 112
          %4205 = vbcast.lane.b32.xlu0 %v4147, %s4204
          %v4206 = vpop.permute.xlu0 %4205
          %s4208 = sor.u32 256, 120
          %4209 = vbcast.lane.b32.xlu0 %v4147, %s4208
          %v4210 = vpop.permute.xlu0 %4209
          %v4211 = vlaneseq
          %v4212 = vshrl.u32 %v4211, 7
          %v4213 = vsub.s32 6, %v4212
          %v4214 = vrot.slane %v574, %v4213
          %4216 = vbcast.lane.b32.xlu0 %v4214, 256
          %v4217 = vpop.permute.xlu0 %4216
          %s4219 = sor.u32 256, 8
          %4220 = vbcast.lane.b32.xlu0 %v4214, %s4219
          %v4221 = vpop.permute.xlu0 %4220
          %s4223 = sor.u32 256, 16
          %4224 = vbcast.lane.b32.xlu0 %v4214, %s4223
          %v4225 = vpop.permute.xlu0 %4224
          %s4227 = sor.u32 256, 24
          %4228 = vbcast.lane.b32.xlu0 %v4214, %s4227
          %v4229 = vpop.permute.xlu0 %4228
          %s4231 = sor.u32 256, 32
          %4232 = vbcast.lane.b32.xlu0 %v4214, %s4231
          %v4233 = vpop.permute.xlu0 %4232
          %s4235 = sor.u32 256, 40
          %4236 = vbcast.lane.b32.xlu0 %v4214, %s4235
          %v4237 = vpop.permute.xlu0 %4236
          %s4239 = sor.u32 256, 48
          %4240 = vbcast.lane.b32.xlu0 %v4214, %s4239
          %v4241 = vpop.permute.xlu0 %4240
          %s4243 = sor.u32 256, 56
          %4244 = vbcast.lane.b32.xlu0 %v4214, %s4243
          %v4245 = vpop.permute.xlu0 %4244
          %s4247 = sor.u32 256, 64
          %4248 = vbcast.lane.b32.xlu0 %v4214, %s4247
          %v4249 = vpop.permute.xlu0 %4248
          %s4251 = sor.u32 256, 72
          %4252 = vbcast.lane.b32.xlu0 %v4214, %s4251
          %v4253 = vpop.permute.xlu0 %4252
          %s4255 = sor.u32 256, 80
          %4256 = vbcast.lane.b32.xlu0 %v4214, %s4255
          %v4257 = vpop.permute.xlu0 %4256
          %s4259 = sor.u32 256, 88
          %4260 = vbcast.lane.b32.xlu0 %v4214, %s4259
          %v4261 = vpop.permute.xlu0 %4260
          %s4263 = sor.u32 256, 96
          %4264 = vbcast.lane.b32.xlu0 %v4214, %s4263
          %v4265 = vpop.permute.xlu0 %4264
          %s4267 = sor.u32 256, 104
          %4268 = vbcast.lane.b32.xlu0 %v4214, %s4267
          %v4269 = vpop.permute.xlu0 %4268
          %s4271 = sor.u32 256, 112
          %4272 = vbcast.lane.b32.xlu0 %v4214, %s4271
          %v4273 = vpop.permute.xlu0 %4272
          %s4275 = sor.u32 256, 120
          %4276 = vbcast.lane.b32.xlu0 %v4214, %s4275
          %v4277 = vpop.permute.xlu0 %4276
          %v4278 = vlaneseq
          %v4279 = vshrl.u32 %v4278, 7
          %v4280 = vsub.s32 7, %v4279
          %v4281 = vrot.slane %v574, %v4280
          %4283 = vbcast.lane.b32.xlu0 %v4281, 256
          %v4284 = vpop.permute.xlu0 %4283
          %s4286 = sor.u32 256, 8
          %4287 = vbcast.lane.b32.xlu0 %v4281, %s4286
          %v4288 = vpop.permute.xlu0 %4287
          %s4290 = sor.u32 256, 16
          %4291 = vbcast.lane.b32.xlu0 %v4281, %s4290
          %v4292 = vpop.permute.xlu0 %4291
          %s4294 = sor.u32 256, 24
          %4295 = vbcast.lane.b32.xlu0 %v4281, %s4294
          %v4296 = vpop.permute.xlu0 %4295
          %s4298 = sor.u32 256, 32
          %4299 = vbcast.lane.b32.xlu0 %v4281, %s4298
          %v4300 = vpop.permute.xlu0 %4299
          %s4302 = sor.u32 256, 40
          %4303 = vbcast.lane.b32.xlu0 %v4281, %s4302
          %v4304 = vpop.permute.xlu0 %4303
          %s4306 = sor.u32 256, 48
          %4307 = vbcast.lane.b32.xlu0 %v4281, %s4306
          %v4308 = vpop.permute.xlu0 %4307
          %s4310 = sor.u32 256, 56
          %4311 = vbcast.lane.b32.xlu0 %v4281, %s4310
          %v4312 = vpop.permute.xlu0 %4311
          %s4314 = sor.u32 256, 64
          %4315 = vbcast.lane.b32.xlu0 %v4281, %s4314
          %v4316 = vpop.permute.xlu0 %4315
          %s4318 = sor.u32 256, 72
          %4319 = vbcast.lane.b32.xlu0 %v4281, %s4318
          %v4320 = vpop.permute.xlu0 %4319
          %s4322 = sor.u32 256, 80
          %4323 = vbcast.lane.b32.xlu0 %v4281, %s4322
          %v4324 = vpop.permute.xlu0 %4323
          %s4326 = sor.u32 256, 88
          %4327 = vbcast.lane.b32.xlu0 %v4281, %s4326
          %v4328 = vpop.permute.xlu0 %4327
          %s4330 = sor.u32 256, 96
          %4331 = vbcast.lane.b32.xlu0 %v4281, %s4330
          %v4332 = vpop.permute.xlu0 %4331
          %s4334 = sor.u32 256, 104
          %4335 = vbcast.lane.b32.xlu0 %v4281, %s4334
          %v4336 = vpop.permute.xlu0 %4335
          %s4338 = sor.u32 256, 112
          %4339 = vbcast.lane.b32.xlu0 %v4281, %s4338
          %v4340 = vpop.permute.xlu0 %4339
          %s4342 = sor.u32 256, 120
          %4343 = vbcast.lane.b32.xlu0 %v4281, %s4342
          %v4344 = vpop.permute.xlu0 %4343
          %v4345 = vlaneseq
          %v4346 = vshrl.u32 %v4345, 7
          %v4347 = vsub.s32 0, %v4346
          %v4348 = vrot.slane %v575, %v4347
          %4350 = vbcast.lane.b32.xlu0 %v4348, 256
          %v4351 = vpop.permute.xlu0 %4350
          %s4353 = sor.u32 256, 8
          %4354 = vbcast.lane.b32.xlu0 %v4348, %s4353
          %v4355 = vpop.permute.xlu0 %4354
          %s4357 = sor.u32 256, 16
          %4358 = vbcast.lane.b32.xlu0 %v4348, %s4357
          %v4359 = vpop.permute.xlu0 %4358
          %s4361 = sor.u32 256, 24
          %4362 = vbcast.lane.b32.xlu0 %v4348, %s4361
          %v4363 = vpop.permute.xlu0 %4362
          %s4365 = sor.u32 256, 32
          %4366 = vbcast.lane.b32.xlu0 %v4348, %s4365
          %v4367 = vpop.permute.xlu0 %4366
          %s4369 = sor.u32 256, 40
          %4370 = vbcast.lane.b32.xlu0 %v4348, %s4369
          %v4371 = vpop.permute.xlu0 %4370
          %s4373 = sor.u32 256, 48
          %4374 = vbcast.lane.b32.xlu0 %v4348, %s4373
          %v4375 = vpop.permute.xlu0 %4374
          %s4377 = sor.u32 256, 56
          %4378 = vbcast.lane.b32.xlu0 %v4348, %s4377
          %v4379 = vpop.permute.xlu0 %4378
          %s4381 = sor.u32 256, 64
          %4382 = vbcast.lane.b32.xlu0 %v4348, %s4381
          %v4383 = vpop.permute.xlu0 %4382
          %s4385 = sor.u32 256, 72
          %4386 = vbcast.lane.b32.xlu0 %v4348, %s4385
          %v4387 = vpop.permute.xlu0 %4386
          %s4389 = sor.u32 256, 80
          %4390 = vbcast.lane.b32.xlu0 %v4348, %s4389
          %v4391 = vpop.permute.xlu0 %4390
          %s4393 = sor.u32 256, 88
          %4394 = vbcast.lane.b32.xlu0 %v4348, %s4393
          %v4395 = vpop.permute.xlu0 %4394
          %s4397 = sor.u32 256, 96
          %4398 = vbcast.lane.b32.xlu0 %v4348, %s4397
          %v4399 = vpop.permute.xlu0 %4398
          %s4401 = sor.u32 256, 104
          %4402 = vbcast.lane.b32.xlu0 %v4348, %s4401
          %v4403 = vpop.permute.xlu0 %4402
          %s4405 = sor.u32 256, 112
          %4406 = vbcast.lane.b32.xlu0 %v4348, %s4405
          %v4407 = vpop.permute.xlu0 %4406
          %s4409 = sor.u32 256, 120
          %4410 = vbcast.lane.b32.xlu0 %v4348, %s4409
          %v4411 = vpop.permute.xlu0 %4410
          %v4412 = vlaneseq
          %v4413 = vshrl.u32 %v4412, 7
          %v4414 = vsub.s32 1, %v4413
          %v4415 = vrot.slane %v575, %v4414
          %4417 = vbcast.lane.b32.xlu0 %v4415, 256
          %v4418 = vpop.permute.xlu0 %4417
          %s4420 = sor.u32 256, 8
          %4421 = vbcast.lane.b32.xlu0 %v4415, %s4420
          %v4422 = vpop.permute.xlu0 %4421
          %s4424 = sor.u32 256, 16
          %4425 = vbcast.lane.b32.xlu0 %v4415, %s4424
          %v4426 = vpop.permute.xlu0 %4425
          %s4428 = sor.u32 256, 24
          %4429 = vbcast.lane.b32.xlu0 %v4415, %s4428
          %v4430 = vpop.permute.xlu0 %4429
          %s4432 = sor.u32 256, 32
          %4433 = vbcast.lane.b32.xlu0 %v4415, %s4432
          %v4434 = vpop.permute.xlu0 %4433
          %s4436 = sor.u32 256, 40
          %4437 = vbcast.lane.b32.xlu0 %v4415, %s4436
          %v4438 = vpop.permute.xlu0 %4437
          %s4440 = sor.u32 256, 48
          %4441 = vbcast.lane.b32.xlu0 %v4415, %s4440
          %v4442 = vpop.permute.xlu0 %4441
          %s4444 = sor.u32 256, 56
          %4445 = vbcast.lane.b32.xlu0 %v4415, %s4444
          %v4446 = vpop.permute.xlu0 %4445
          %s4448 = sor.u32 256, 64
          %4449 = vbcast.lane.b32.xlu0 %v4415, %s4448
          %v4450 = vpop.permute.xlu0 %4449
          %s4452 = sor.u32 256, 72
          %4453 = vbcast.lane.b32.xlu0 %v4415, %s4452
          %v4454 = vpop.permute.xlu0 %4453
          %s4456 = sor.u32 256, 80
          %4457 = vbcast.lane.b32.xlu0 %v4415, %s4456
          %v4458 = vpop.permute.xlu0 %4457
          %s4460 = sor.u32 256, 88
          %4461 = vbcast.lane.b32.xlu0 %v4415, %s4460
          %v4462 = vpop.permute.xlu0 %4461
          %s4464 = sor.u32 256, 96
          %4465 = vbcast.lane.b32.xlu0 %v4415, %s4464
          %v4466 = vpop.permute.xlu0 %4465
          %s4468 = sor.u32 256, 104
          %4469 = vbcast.lane.b32.xlu0 %v4415, %s4468
          %v4470 = vpop.permute.xlu0 %4469
          %s4472 = sor.u32 256, 112
          %4473 = vbcast.lane.b32.xlu0 %v4415, %s4472
          %v4474 = vpop.permute.xlu0 %4473
          %s4476 = sor.u32 256, 120
          %4477 = vbcast.lane.b32.xlu0 %v4415, %s4476
          %v4478 = vpop.permute.xlu0 %4477
          %v4479 = vlaneseq
          %v4480 = vshrl.u32 %v4479, 7
          %v4481 = vsub.s32 2, %v4480
          %v4482 = vrot.slane %v575, %v4481
          %4484 = vbcast.lane.b32.xlu0 %v4482, 256
          %v4485 = vpop.permute.xlu0 %4484
          %s4487 = sor.u32 256, 8
          %4488 = vbcast.lane.b32.xlu0 %v4482, %s4487
          %v4489 = vpop.permute.xlu0 %4488
          %s4491 = sor.u32 256, 16
          %4492 = vbcast.lane.b32.xlu0 %v4482, %s4491
          %v4493 = vpop.permute.xlu0 %4492
          %s4495 = sor.u32 256, 24
          %4496 = vbcast.lane.b32.xlu0 %v4482, %s4495
          %v4497 = vpop.permute.xlu0 %4496
          %s4499 = sor.u32 256, 32
          %4500 = vbcast.lane.b32.xlu0 %v4482, %s4499
          %v4501 = vpop.permute.xlu0 %4500
          %s4503 = sor.u32 256, 40
          %4504 = vbcast.lane.b32.xlu0 %v4482, %s4503
          %v4505 = vpop.permute.xlu0 %4504
          %s4507 = sor.u32 256, 48
          %4508 = vbcast.lane.b32.xlu0 %v4482, %s4507
          %v4509 = vpop.permute.xlu0 %4508
          %s4511 = sor.u32 256, 56
          %4512 = vbcast.lane.b32.xlu0 %v4482, %s4511
          %v4513 = vpop.permute.xlu0 %4512
          %s4515 = sor.u32 256, 64
          %4516 = vbcast.lane.b32.xlu0 %v4482, %s4515
          %v4517 = vpop.permute.xlu0 %4516
          %s4519 = sor.u32 256, 72
          %4520 = vbcast.lane.b32.xlu0 %v4482, %s4519
          %v4521 = vpop.permute.xlu0 %4520
          %s4523 = sor.u32 256, 80
          %4524 = vbcast.lane.b32.xlu0 %v4482, %s4523
          %v4525 = vpop.permute.xlu0 %4524
          %s4527 = sor.u32 256, 88
          %4528 = vbcast.lane.b32.xlu0 %v4482, %s4527
          %v4529 = vpop.permute.xlu0 %4528
          %s4531 = sor.u32 256, 96
          %4532 = vbcast.lane.b32.xlu0 %v4482, %s4531
          %v4533 = vpop.permute.xlu0 %4532
          %s4535 = sor.u32 256, 104
          %4536 = vbcast.lane.b32.xlu0 %v4482, %s4535
          %v4537 = vpop.permute.xlu0 %4536
          %s4539 = sor.u32 256, 112
          %4540 = vbcast.lane.b32.xlu0 %v4482, %s4539
          %v4541 = vpop.permute.xlu0 %4540
          %s4543 = sor.u32 256, 120
          %4544 = vbcast.lane.b32.xlu0 %v4482, %s4543
          %v4545 = vpop.permute.xlu0 %4544
          %v4546 = vlaneseq
          %v4547 = vshrl.u32 %v4546, 7
          %v4548 = vsub.s32 3, %v4547
          %v4549 = vrot.slane %v575, %v4548
          %4551 = vbcast.lane.b32.xlu0 %v4549, 256
          %v4552 = vpop.permute.xlu0 %4551
          %s4554 = sor.u32 256, 8
          %4555 = vbcast.lane.b32.xlu0 %v4549, %s4554
          %v4556 = vpop.permute.xlu0 %4555
          %s4558 = sor.u32 256, 16
          %4559 = vbcast.lane.b32.xlu0 %v4549, %s4558
          %v4560 = vpop.permute.xlu0 %4559
          %s4562 = sor.u32 256, 24
          %4563 = vbcast.lane.b32.xlu0 %v4549, %s4562
          %v4564 = vpop.permute.xlu0 %4563
          %s4566 = sor.u32 256, 32
          %4567 = vbcast.lane.b32.xlu0 %v4549, %s4566
          %v4568 = vpop.permute.xlu0 %4567
          %s4570 = sor.u32 256, 40
          %4571 = vbcast.lane.b32.xlu0 %v4549, %s4570
          %v4572 = vpop.permute.xlu0 %4571
          %s4574 = sor.u32 256, 48
          %4575 = vbcast.lane.b32.xlu0 %v4549, %s4574
          %v4576 = vpop.permute.xlu0 %4575
          %s4578 = sor.u32 256, 56
          %4579 = vbcast.lane.b32.xlu0 %v4549, %s4578
          %v4580 = vpop.permute.xlu0 %4579
          %s4582 = sor.u32 256, 64
          %4583 = vbcast.lane.b32.xlu0 %v4549, %s4582
          %v4584 = vpop.permute.xlu0 %4583
          %s4586 = sor.u32 256, 72
          %4587 = vbcast.lane.b32.xlu0 %v4549, %s4586
          %v4588 = vpop.permute.xlu0 %4587
          %s4590 = sor.u32 256, 80
          %4591 = vbcast.lane.b32.xlu0 %v4549, %s4590
          %v4592 = vpop.permute.xlu0 %4591
          %s4594 = sor.u32 256, 88
          %4595 = vbcast.lane.b32.xlu0 %v4549, %s4594
          %v4596 = vpop.permute.xlu0 %4595
          %s4598 = sor.u32 256, 96
          %4599 = vbcast.lane.b32.xlu0 %v4549, %s4598
          %v4600 = vpop.permute.xlu0 %4599
          %s4602 = sor.u32 256, 104
          %4603 = vbcast.lane.b32.xlu0 %v4549, %s4602
          %v4604 = vpop.permute.xlu0 %4603
          %s4606 = sor.u32 256, 112
          %4607 = vbcast.lane.b32.xlu0 %v4549, %s4606
          %v4608 = vpop.permute.xlu0 %4607
          %s4610 = sor.u32 256, 120
          %4611 = vbcast.lane.b32.xlu0 %v4549, %s4610
          %v4612 = vpop.permute.xlu0 %4611
          %v4613 = vlaneseq
          %v4614 = vshrl.u32 %v4613, 7
          %v4615 = vsub.s32 4, %v4614
          %v4616 = vrot.slane %v575, %v4615
          %4618 = vbcast.lane.b32.xlu0 %v4616, 256
          %v4619 = vpop.permute.xlu0 %4618
          %s4621 = sor.u32 256, 8
          %4622 = vbcast.lane.b32.xlu0 %v4616, %s4621
          %v4623 = vpop.permute.xlu0 %4622
          %s4625 = sor.u32 256, 16
          %4626 = vbcast.lane.b32.xlu0 %v4616, %s4625
          %v4627 = vpop.permute.xlu0 %4626
          %s4629 = sor.u32 256, 24
          %4630 = vbcast.lane.b32.xlu0 %v4616, %s4629
          %v4631 = vpop.permute.xlu0 %4630
          %s4633 = sor.u32 256, 32
          %4634 = vbcast.lane.b32.xlu0 %v4616, %s4633
          %v4635 = vpop.permute.xlu0 %4634
          %s4637 = sor.u32 256, 40
          %4638 = vbcast.lane.b32.xlu0 %v4616, %s4637
          %v4639 = vpop.permute.xlu0 %4638
          %s4641 = sor.u32 256, 48
          %4642 = vbcast.lane.b32.xlu0 %v4616, %s4641
          %v4643 = vpop.permute.xlu0 %4642
          %s4645 = sor.u32 256, 56
          %4646 = vbcast.lane.b32.xlu0 %v4616, %s4645
          %v4647 = vpop.permute.xlu0 %4646
          %s4649 = sor.u32 256, 64
          %4650 = vbcast.lane.b32.xlu0 %v4616, %s4649
          %v4651 = vpop.permute.xlu0 %4650
          %s4653 = sor.u32 256, 72
          %4654 = vbcast.lane.b32.xlu0 %v4616, %s4653
          %v4655 = vpop.permute.xlu0 %4654
          %s4657 = sor.u32 256, 80
          %4658 = vbcast.lane.b32.xlu0 %v4616, %s4657
          %v4659 = vpop.permute.xlu0 %4658
          %s4661 = sor.u32 256, 88
          %4662 = vbcast.lane.b32.xlu0 %v4616, %s4661
          %v4663 = vpop.permute.xlu0 %4662
          %s4665 = sor.u32 256, 96
          %4666 = vbcast.lane.b32.xlu0 %v4616, %s4665
          %v4667 = vpop.permute.xlu0 %4666
          %s4669 = sor.u32 256, 104
          %4670 = vbcast.lane.b32.xlu0 %v4616, %s4669
          %v4671 = vpop.permute.xlu0 %4670
          %s4673 = sor.u32 256, 112
          %4674 = vbcast.lane.b32.xlu0 %v4616, %s4673
          %v4675 = vpop.permute.xlu0 %4674
          %s4677 = sor.u32 256, 120
          %4678 = vbcast.lane.b32.xlu0 %v4616, %s4677
          %v4679 = vpop.permute.xlu0 %4678
          %v4680 = vlaneseq
          %v4681 = vshrl.u32 %v4680, 7
          %v4682 = vsub.s32 5, %v4681
          %v4683 = vrot.slane %v575, %v4682
          %4685 = vbcast.lane.b32.xlu0 %v4683, 256
          %v4686 = vpop.permute.xlu0 %4685
          %s4688 = sor.u32 256, 8
          %4689 = vbcast.lane.b32.xlu0 %v4683, %s4688
          %v4690 = vpop.permute.xlu0 %4689
          %s4692 = sor.u32 256, 16
          %4693 = vbcast.lane.b32.xlu0 %v4683, %s4692
          %v4694 = vpop.permute.xlu0 %4693
          %s4696 = sor.u32 256, 24
          %4697 = vbcast.lane.b32.xlu0 %v4683, %s4696
          %v4698 = vpop.permute.xlu0 %4697
          %s4700 = sor.u32 256, 32
          %4701 = vbcast.lane.b32.xlu0 %v4683, %s4700
          %v4702 = vpop.permute.xlu0 %4701
          %s4704 = sor.u32 256, 40
          %4705 = vbcast.lane.b32.xlu0 %v4683, %s4704
          %v4706 = vpop.permute.xlu0 %4705
          %s4708 = sor.u32 256, 48
          %4709 = vbcast.lane.b32.xlu0 %v4683, %s4708
          %v4710 = vpop.permute.xlu0 %4709
          %s4712 = sor.u32 256, 56
          %4713 = vbcast.lane.b32.xlu0 %v4683, %s4712
          %v4714 = vpop.permute.xlu0 %4713
          %s4716 = sor.u32 256, 64
          %4717 = vbcast.lane.b32.xlu0 %v4683, %s4716
          %v4718 = vpop.permute.xlu0 %4717
          %s4720 = sor.u32 256, 72
          %4721 = vbcast.lane.b32.xlu0 %v4683, %s4720
          %v4722 = vpop.permute.xlu0 %4721
          %s4724 = sor.u32 256, 80
          %4725 = vbcast.lane.b32.xlu0 %v4683, %s4724
          %v4726 = vpop.permute.xlu0 %4725
          %s4728 = sor.u32 256, 88
          %4729 = vbcast.lane.b32.xlu0 %v4683, %s4728
          %v4730 = vpop.permute.xlu0 %4729
          %s4732 = sor.u32 256, 96
          %4733 = vbcast.lane.b32.xlu0 %v4683, %s4732
          %v4734 = vpop.permute.xlu0 %4733
          %s4736 = sor.u32 256, 104
          %4737 = vbcast.lane.b32.xlu0 %v4683, %s4736
          %v4738 = vpop.permute.xlu0 %4737
          %s4740 = sor.u32 256, 112
          %4741 = vbcast.lane.b32.xlu0 %v4683, %s4740
          %v4742 = vpop.permute.xlu0 %4741
          %s4744 = sor.u32 256, 120
          %4745 = vbcast.lane.b32.xlu0 %v4683, %s4744
          %v4746 = vpop.permute.xlu0 %4745
          %v4747 = vlaneseq
          %v4748 = vshrl.u32 %v4747, 7
          %v4749 = vsub.s32 6, %v4748
          %v4750 = vrot.slane %v575, %v4749
          %4752 = vbcast.lane.b32.xlu0 %v4750, 256
          %v4753 = vpop.permute.xlu0 %4752
          %s4755 = sor.u32 256, 8
          %4756 = vbcast.lane.b32.xlu0 %v4750, %s4755
          %v4757 = vpop.permute.xlu0 %4756
          %s4759 = sor.u32 256, 16
          %4760 = vbcast.lane.b32.xlu0 %v4750, %s4759
          %v4761 = vpop.permute.xlu0 %4760
          %s4763 = sor.u32 256, 24
          %4764 = vbcast.lane.b32.xlu0 %v4750, %s4763
          %v4765 = vpop.permute.xlu0 %4764
          %s4767 = sor.u32 256, 32
          %4768 = vbcast.lane.b32.xlu0 %v4750, %s4767
          %v4769 = vpop.permute.xlu0 %4768
          %s4771 = sor.u32 256, 40
          %4772 = vbcast.lane.b32.xlu0 %v4750, %s4771
          %v4773 = vpop.permute.xlu0 %4772
          %s4775 = sor.u32 256, 48
          %4776 = vbcast.lane.b32.xlu0 %v4750, %s4775
          %v4777 = vpop.permute.xlu0 %4776
          %s4779 = sor.u32 256, 56
          %4780 = vbcast.lane.b32.xlu0 %v4750, %s4779
          %v4781 = vpop.permute.xlu0 %4780
          %s4783 = sor.u32 256, 64
          %4784 = vbcast.lane.b32.xlu0 %v4750, %s4783
          %v4785 = vpop.permute.xlu0 %4784
          %s4787 = sor.u32 256, 72
          %4788 = vbcast.lane.b32.xlu0 %v4750, %s4787
          %v4789 = vpop.permute.xlu0 %4788
          %s4791 = sor.u32 256, 80
          %4792 = vbcast.lane.b32.xlu0 %v4750, %s4791
          %v4793 = vpop.permute.xlu0 %4792
          %s4795 = sor.u32 256, 88
          %4796 = vbcast.lane.b32.xlu0 %v4750, %s4795
          %v4797 = vpop.permute.xlu0 %4796
          %s4799 = sor.u32 256, 96
          %4800 = vbcast.lane.b32.xlu0 %v4750, %s4799
          %v4801 = vpop.permute.xlu0 %4800
          %s4803 = sor.u32 256, 104
          %4804 = vbcast.lane.b32.xlu0 %v4750, %s4803
          %v4805 = vpop.permute.xlu0 %4804
          %s4807 = sor.u32 256, 112
          %4808 = vbcast.lane.b32.xlu0 %v4750, %s4807
          %v4809 = vpop.permute.xlu0 %4808
          %s4811 = sor.u32 256, 120
          %4812 = vbcast.lane.b32.xlu0 %v4750, %s4811
          %v4813 = vpop.permute.xlu0 %4812
          %v4814 = vlaneseq
          %v4815 = vshrl.u32 %v4814, 7
          %v4816 = vsub.s32 7, %v4815
          %v4817 = vrot.slane %v575, %v4816
          %4819 = vbcast.lane.b32.xlu0 %v4817, 256
          %v4820 = vpop.permute.xlu0 %4819
          %s4822 = sor.u32 256, 8
          %4823 = vbcast.lane.b32.xlu0 %v4817, %s4822
          %v4824 = vpop.permute.xlu0 %4823
          %s4826 = sor.u32 256, 16
          %4827 = vbcast.lane.b32.xlu0 %v4817, %s4826
          %v4828 = vpop.permute.xlu0 %4827
          %s4830 = sor.u32 256, 24
          %4831 = vbcast.lane.b32.xlu0 %v4817, %s4830
          %v4832 = vpop.permute.xlu0 %4831
          %s4834 = sor.u32 256, 32
          %4835 = vbcast.lane.b32.xlu0 %v4817, %s4834
          %v4836 = vpop.permute.xlu0 %4835
          %s4838 = sor.u32 256, 40
          %4839 = vbcast.lane.b32.xlu0 %v4817, %s4838
          %v4840 = vpop.permute.xlu0 %4839
          %s4842 = sor.u32 256, 48
          %4843 = vbcast.lane.b32.xlu0 %v4817, %s4842
          %v4844 = vpop.permute.xlu0 %4843
          %s4846 = sor.u32 256, 56
          %4847 = vbcast.lane.b32.xlu0 %v4817, %s4846
          %v4848 = vpop.permute.xlu0 %4847
          %s4850 = sor.u32 256, 64
          %4851 = vbcast.lane.b32.xlu0 %v4817, %s4850
          %v4852 = vpop.permute.xlu0 %4851
          %s4854 = sor.u32 256, 72
          %4855 = vbcast.lane.b32.xlu0 %v4817, %s4854
          %v4856 = vpop.permute.xlu0 %4855
          %s4858 = sor.u32 256, 80
          %4859 = vbcast.lane.b32.xlu0 %v4817, %s4858
          %v4860 = vpop.permute.xlu0 %4859
          %s4862 = sor.u32 256, 88
          %4863 = vbcast.lane.b32.xlu0 %v4817, %s4862
          %v4864 = vpop.permute.xlu0 %4863
          %s4866 = sor.u32 256, 96
          %4867 = vbcast.lane.b32.xlu0 %v4817, %s4866
          %v4868 = vpop.permute.xlu0 %4867
          %s4870 = sor.u32 256, 104
          %4871 = vbcast.lane.b32.xlu0 %v4817, %s4870
          %v4872 = vpop.permute.xlu0 %4871
          %s4874 = sor.u32 256, 112
          %4875 = vbcast.lane.b32.xlu0 %v4817, %s4874
          %v4876 = vpop.permute.xlu0 %4875
          %s4878 = sor.u32 256, 120
          %4879 = vbcast.lane.b32.xlu0 %v4817, %s4878
          %v4880 = vpop.permute.xlu0 %4879
          %vm4881 = vcmp.gt.s32.totalorder %v599, 0
          %vm4882 = vcmp.gt.s32.totalorder %v603, 0
          %vm4883 = vcmp.gt.s32.totalorder %v607, 0
          %vm4884 = vcmp.gt.s32.totalorder %v611, 0
          %vm4885 = vcmp.gt.s32.totalorder %v615, 0
          %vm4886 = vcmp.gt.s32.totalorder %v619, 0
          %vm4887 = vcmp.gt.s32.totalorder %v623, 0
          %vm4888 = vcmp.gt.s32.totalorder %v627, 0
          %vm4889 = vcmp.gt.s32.totalorder %v631, 0
          %vm4890 = vcmp.gt.s32.totalorder %v635, 0
          %vm4891 = vcmp.gt.s32.totalorder %v639, 0
          %vm4892 = vcmp.gt.s32.totalorder %v643, 0
          %vm4893 = vcmp.gt.s32.totalorder %v647, 0
          %vm4894 = vcmp.gt.s32.totalorder %v651, 0
          %vm4895 = vcmp.gt.s32.totalorder %v655, 0
          %vm4896 = vcmp.gt.s32.totalorder %v659, 0
          %vm4897 = vcmp.gt.s32.totalorder %v666, 0
          %vm4898 = vcmp.gt.s32.totalorder %v670, 0
          %vm4899 = vcmp.gt.s32.totalorder %v674, 0
          %vm4900 = vcmp.gt.s32.totalorder %v678, 0
          %vm4901 = vcmp.gt.s32.totalorder %v682, 0
          %vm4902 = vcmp.gt.s32.totalorder %v686, 0
          %vm4903 = vcmp.gt.s32.totalorder %v690, 0
          %vm4904 = vcmp.gt.s32.totalorder %v694, 0
          %vm4905 = vcmp.gt.s32.totalorder %v698, 0
          %vm4906 = vcmp.gt.s32.totalorder %v702, 0
          %vm4907 = vcmp.gt.s32.totalorder %v706, 0
          %vm4908 = vcmp.gt.s32.totalorder %v710, 0
          %vm4909 = vcmp.gt.s32.totalorder %v714, 0
          %vm4910 = vcmp.gt.s32.totalorder %v718, 0
          %vm4911 = vcmp.gt.s32.totalorder %v722, 0
          %vm4912 = vcmp.gt.s32.totalorder %v726, 0
          %vm4913 = vcmp.gt.s32.totalorder %v733, 0
          %vm4914 = vcmp.gt.s32.totalorder %v737, 0
          %vm4915 = vcmp.gt.s32.totalorder %v741, 0
          %vm4916 = vcmp.gt.s32.totalorder %v745, 0
          %vm4917 = vcmp.gt.s32.totalorder %v749, 0
          %vm4918 = vcmp.gt.s32.totalorder %v753, 0
          %vm4919 = vcmp.gt.s32.totalorder %v757, 0
          %vm4920 = vcmp.gt.s32.totalorder %v761, 0
          %vm4921 = vcmp.gt.s32.totalorder %v765, 0
          %vm4922 = vcmp.gt.s32.totalorder %v769, 0
          %vm4923 = vcmp.gt.s32.totalorder %v773, 0
          %vm4924 = vcmp.gt.s32.totalorder %v777, 0
          %vm4925 = vcmp.gt.s32.totalorder %v781, 0
          %vm4926 = vcmp.gt.s32.totalorder %v785, 0
          %vm4927 = vcmp.gt.s32.totalorder %v789, 0
          %vm4928 = vcmp.gt.s32.totalorder %v793, 0
          %vm4929 = vcmp.gt.s32.totalorder %v800, 0
          %vm4930 = vcmp.gt.s32.totalorder %v804, 0
          %vm4931 = vcmp.gt.s32.totalorder %v808, 0
          %vm4932 = vcmp.gt.s32.totalorder %v812, 0
          %vm4933 = vcmp.gt.s32.totalorder %v816, 0
          %vm4934 = vcmp.gt.s32.totalorder %v820, 0
          %vm4935 = vcmp.gt.s32.totalorder %v824, 0
          %vm4936 = vcmp.gt.s32.totalorder %v828, 0
          %vm4937 = vcmp.gt.s32.totalorder %v832, 0
          %vm4938 = vcmp.gt.s32.totalorder %v836, 0
          %vm4939 = vcmp.gt.s32.totalorder %v840, 0
          %vm4940 = vcmp.gt.s32.totalorder %v844, 0
          %vm4941 = vcmp.gt.s32.totalorder %v848, 0
          %vm4942 = vcmp.gt.s32.totalorder %v852, 0
          %vm4943 = vcmp.gt.s32.totalorder %v856, 0
          %vm4944 = vcmp.gt.s32.totalorder %v860, 0
          %vm4945 = vcmp.gt.s32.totalorder %v867, 0
          %vm4946 = vcmp.gt.s32.totalorder %v871, 0
          %vm4947 = vcmp.gt.s32.totalorder %v875, 0
          %vm4948 = vcmp.gt.s32.totalorder %v879, 0
          %vm4949 = vcmp.gt.s32.totalorder %v883, 0
          %vm4950 = vcmp.gt.s32.totalorder %v887, 0
          %vm4951 = vcmp.gt.s32.totalorder %v891, 0
          %vm4952 = vcmp.gt.s32.totalorder %v895, 0
          %vm4953 = vcmp.gt.s32.totalorder %v899, 0
          %vm4954 = vcmp.gt.s32.totalorder %v903, 0
          %vm4955 = vcmp.gt.s32.totalorder %v907, 0
          %vm4956 = vcmp.gt.s32.totalorder %v911, 0
          %vm4957 = vcmp.gt.s32.totalorder %v915, 0
          %vm4958 = vcmp.gt.s32.totalorder %v919, 0
          %vm4959 = vcmp.gt.s32.totalorder %v923, 0
          %vm4960 = vcmp.gt.s32.totalorder %v927, 0
          %vm4961 = vcmp.gt.s32.totalorder %v934, 0
          %vm4962 = vcmp.gt.s32.totalorder %v938, 0
          %vm4963 = vcmp.gt.s32.totalorder %v942, 0
          %vm4964 = vcmp.gt.s32.totalorder %v946, 0
          %vm4965 = vcmp.gt.s32.totalorder %v950, 0
          %vm4966 = vcmp.gt.s32.totalorder %v954, 0
          %vm4967 = vcmp.gt.s32.totalorder %v958, 0
          %vm4968 = vcmp.gt.s32.totalorder %v962, 0
          %vm4969 = vcmp.gt.s32.totalorder %v966, 0
          %vm4970 = vcmp.gt.s32.totalorder %v970, 0
          %vm4971 = vcmp.gt.s32.totalorder %v974, 0
          %vm4972 = vcmp.gt.s32.totalorder %v978, 0
          %vm4973 = vcmp.gt.s32.totalorder %v982, 0
          %vm4974 = vcmp.gt.s32.totalorder %v986, 0
          %vm4975 = vcmp.gt.s32.totalorder %v990, 0
          %vm4976 = vcmp.gt.s32.totalorder %v994, 0
          %vm4977 = vcmp.gt.s32.totalorder %v1001, 0
          %vm4978 = vcmp.gt.s32.totalorder %v1005, 0
          %vm4979 = vcmp.gt.s32.totalorder %v1009, 0
          %vm4980 = vcmp.gt.s32.totalorder %v1013, 0
          %vm4981 = vcmp.gt.s32.totalorder %v1017, 0
          %vm4982 = vcmp.gt.s32.totalorder %v1021, 0
          %vm4983 = vcmp.gt.s32.totalorder %v1025, 0
          %vm4984 = vcmp.gt.s32.totalorder %v1029, 0
          %vm4985 = vcmp.gt.s32.totalorder %v1033, 0
          %vm4986 = vcmp.gt.s32.totalorder %v1037, 0
          %vm4987 = vcmp.gt.s32.totalorder %v1041, 0
          %vm4988 = vcmp.gt.s32.totalorder %v1045, 0
          %vm4989 = vcmp.gt.s32.totalorder %v1049, 0
          %vm4990 = vcmp.gt.s32.totalorder %v1053, 0
          %vm4991 = vcmp.gt.s32.totalorder %v1057, 0
          %vm4992 = vcmp.gt.s32.totalorder %v1061, 0
          %vm4993 = vcmp.gt.s32.totalorder %v1068, 0
          %vm4994 = vcmp.gt.s32.totalorder %v1072, 0
          %vm4995 = vcmp.gt.s32.totalorder %v1076, 0
          %vm4996 = vcmp.gt.s32.totalorder %v1080, 0
          %vm4997 = vcmp.gt.s32.totalorder %v1084, 0
          %vm4998 = vcmp.gt.s32.totalorder %v1088, 0
          %vm4999 = vcmp.gt.s32.totalorder %v1092, 0
          %vm5000 = vcmp.gt.s32.totalorder %v1096, 0
          %vm5001 = vcmp.gt.s32.totalorder %v1100, 0
          %vm5002 = vcmp.gt.s32.totalorder %v1104, 0
          %vm5003 = vcmp.gt.s32.totalorder %v1108, 0
          %vm5004 = vcmp.gt.s32.totalorder %v1112, 0
          %vm5005 = vcmp.gt.s32.totalorder %v1116, 0
          %vm5006 = vcmp.gt.s32.totalorder %v1120, 0
          %vm5007 = vcmp.gt.s32.totalorder %v1124, 0
          %vm5008 = vcmp.gt.s32.totalorder %v1128, 0
          %vm5009 = vcmp.gt.s32.totalorder %v1135, 0
          %vm5010 = vcmp.gt.s32.totalorder %v1139, 0
          %vm5011 = vcmp.gt.s32.totalorder %v1143, 0
          %vm5012 = vcmp.gt.s32.totalorder %v1147, 0
          %vm5013 = vcmp.gt.s32.totalorder %v1151, 0
          %vm5014 = vcmp.gt.s32.totalorder %v1155, 0
          %vm5015 = vcmp.gt.s32.totalorder %v1159, 0
          %vm5016 = vcmp.gt.s32.totalorder %v1163, 0
          %vm5017 = vcmp.gt.s32.totalorder %v1167, 0
          %vm5018 = vcmp.gt.s32.totalorder %v1171, 0
          %vm5019 = vcmp.gt.s32.totalorder %v1175, 0
          %vm5020 = vcmp.gt.s32.totalorder %v1179, 0
          %vm5021 = vcmp.gt.s32.totalorder %v1183, 0
          %vm5022 = vcmp.gt.s32.totalorder %v1187, 0
          %vm5023 = vcmp.gt.s32.totalorder %v1191, 0
          %vm5024 = vcmp.gt.s32.totalorder %v1195, 0
          %vm5025 = vcmp.gt.s32.totalorder %v1202, 0
          %vm5026 = vcmp.gt.s32.totalorder %v1206, 0
          %vm5027 = vcmp.gt.s32.totalorder %v1210, 0
          %vm5028 = vcmp.gt.s32.totalorder %v1214, 0
          %vm5029 = vcmp.gt.s32.totalorder %v1218, 0
          %vm5030 = vcmp.gt.s32.totalorder %v1222, 0
          %vm5031 = vcmp.gt.s32.totalorder %v1226, 0
          %vm5032 = vcmp.gt.s32.totalorder %v1230, 0
          %vm5033 = vcmp.gt.s32.totalorder %v1234, 0
          %vm5034 = vcmp.gt.s32.totalorder %v1238, 0
          %vm5035 = vcmp.gt.s32.totalorder %v1242, 0
          %vm5036 = vcmp.gt.s32.totalorder %v1246, 0
          %vm5037 = vcmp.gt.s32.totalorder %v1250, 0
          %vm5038 = vcmp.gt.s32.totalorder %v1254, 0
          %vm5039 = vcmp.gt.s32.totalorder %v1258, 0
          %vm5040 = vcmp.gt.s32.totalorder %v1262, 0
          %vm5041 = vcmp.gt.s32.totalorder %v1269, 0
          %vm5042 = vcmp.gt.s32.totalorder %v1273, 0
          %vm5043 = vcmp.gt.s32.totalorder %v1277, 0
          %vm5044 = vcmp.gt.s32.totalorder %v1281, 0
          %vm5045 = vcmp.gt.s32.totalorder %v1285, 0
          %vm5046 = vcmp.gt.s32.totalorder %v1289, 0
          %vm5047 = vcmp.gt.s32.totalorder %v1293, 0
          %vm5048 = vcmp.gt.s32.totalorder %v1297, 0
          %vm5049 = vcmp.gt.s32.totalorder %v1301, 0
          %vm5050 = vcmp.gt.s32.totalorder %v1305, 0
          %vm5051 = vcmp.gt.s32.totalorder %v1309, 0
          %vm5052 = vcmp.gt.s32.totalorder %v1313, 0
          %vm5053 = vcmp.gt.s32.totalorder %v1317, 0
          %vm5054 = vcmp.gt.s32.totalorder %v1321, 0
          %vm5055 = vcmp.gt.s32.totalorder %v1325, 0
          %vm5056 = vcmp.gt.s32.totalorder %v1329, 0
          %vm5057 = vcmp.gt.s32.totalorder %v1336, 0
          %vm5058 = vcmp.gt.s32.totalorder %v1340, 0
          %vm5059 = vcmp.gt.s32.totalorder %v1344, 0
          %vm5060 = vcmp.gt.s32.totalorder %v1348, 0
          %vm5061 = vcmp.gt.s32.totalorder %v1352, 0
          %vm5062 = vcmp.gt.s32.totalorder %v1356, 0
          %vm5063 = vcmp.gt.s32.totalorder %v1360, 0
          %vm5064 = vcmp.gt.s32.totalorder %v1364, 0
          %vm5065 = vcmp.gt.s32.totalorder %v1368, 0
          %vm5066 = vcmp.gt.s32.totalorder %v1372, 0
          %vm5067 = vcmp.gt.s32.totalorder %v1376, 0
          %vm5068 = vcmp.gt.s32.totalorder %v1380, 0
          %vm5069 = vcmp.gt.s32.totalorder %v1384, 0
          %vm5070 = vcmp.gt.s32.totalorder %v1388, 0
          %vm5071 = vcmp.gt.s32.totalorder %v1392, 0
          %vm5072 = vcmp.gt.s32.totalorder %v1396, 0
          %vm5073 = vcmp.gt.s32.totalorder %v1403, 0
          %vm5074 = vcmp.gt.s32.totalorder %v1407, 0
          %vm5075 = vcmp.gt.s32.totalorder %v1411, 0
          %vm5076 = vcmp.gt.s32.totalorder %v1415, 0
          %vm5077 = vcmp.gt.s32.totalorder %v1419, 0
          %vm5078 = vcmp.gt.s32.totalorder %v1423, 0
          %vm5079 = vcmp.gt.s32.totalorder %v1427, 0
          %vm5080 = vcmp.gt.s32.totalorder %v1431, 0
          %vm5081 = vcmp.gt.s32.totalorder %v1435, 0
          %vm5082 = vcmp.gt.s32.totalorder %v1439, 0
          %vm5083 = vcmp.gt.s32.totalorder %v1443, 0
          %vm5084 = vcmp.gt.s32.totalorder %v1447, 0
          %vm5085 = vcmp.gt.s32.totalorder %v1451, 0
          %vm5086 = vcmp.gt.s32.totalorder %v1455, 0
          %vm5087 = vcmp.gt.s32.totalorder %v1459, 0
          %vm5088 = vcmp.gt.s32.totalorder %v1463, 0
          %vm5089 = vcmp.gt.s32.totalorder %v1470, 0
          %vm5090 = vcmp.gt.s32.totalorder %v1474, 0
          %vm5091 = vcmp.gt.s32.totalorder %v1478, 0
          %vm5092 = vcmp.gt.s32.totalorder %v1482, 0
          %vm5093 = vcmp.gt.s32.totalorder %v1486, 0
          %vm5094 = vcmp.gt.s32.totalorder %v1490, 0
          %vm5095 = vcmp.gt.s32.totalorder %v1494, 0
          %vm5096 = vcmp.gt.s32.totalorder %v1498, 0
          %vm5097 = vcmp.gt.s32.totalorder %v1502, 0
          %vm5098 = vcmp.gt.s32.totalorder %v1506, 0
          %vm5099 = vcmp.gt.s32.totalorder %v1510, 0
          %vm5100 = vcmp.gt.s32.totalorder %v1514, 0
          %vm5101 = vcmp.gt.s32.totalorder %v1518, 0
          %vm5102 = vcmp.gt.s32.totalorder %v1522, 0
          %vm5103 = vcmp.gt.s32.totalorder %v1526, 0
          %vm5104 = vcmp.gt.s32.totalorder %v1530, 0
          %vm5105 = vcmp.gt.s32.totalorder %v1537, 0
          %vm5106 = vcmp.gt.s32.totalorder %v1541, 0
          %vm5107 = vcmp.gt.s32.totalorder %v1545, 0
          %vm5108 = vcmp.gt.s32.totalorder %v1549, 0
          %vm5109 = vcmp.gt.s32.totalorder %v1553, 0
          %vm5110 = vcmp.gt.s32.totalorder %v1557, 0
          %vm5111 = vcmp.gt.s32.totalorder %v1561, 0
          %vm5112 = vcmp.gt.s32.totalorder %v1565, 0
          %vm5113 = vcmp.gt.s32.totalorder %v1569, 0
          %vm5114 = vcmp.gt.s32.totalorder %v1573, 0
          %vm5115 = vcmp.gt.s32.totalorder %v1577, 0
          %vm5116 = vcmp.gt.s32.totalorder %v1581, 0
          %vm5117 = vcmp.gt.s32.totalorder %v1585, 0
          %vm5118 = vcmp.gt.s32.totalorder %v1589, 0
          %vm5119 = vcmp.gt.s32.totalorder %v1593, 0
          %vm5120 = vcmp.gt.s32.totalorder %v1597, 0
          %vm5121 = vcmp.gt.s32.totalorder %v1604, 0
          %vm5122 = vcmp.gt.s32.totalorder %v1608, 0
          %vm5123 = vcmp.gt.s32.totalorder %v1612, 0
          %vm5124 = vcmp.gt.s32.totalorder %v1616, 0
          %vm5125 = vcmp.gt.s32.totalorder %v1620, 0
          %vm5126 = vcmp.gt.s32.totalorder %v1624, 0
          %vm5127 = vcmp.gt.s32.totalorder %v1628, 0
          %vm5128 = vcmp.gt.s32.totalorder %v1632, 0
          %vm5129 = vcmp.gt.s32.totalorder %v1636, 0
          %vm5130 = vcmp.gt.s32.totalorder %v1640, 0
          %vm5131 = vcmp.gt.s32.totalorder %v1644, 0
          %vm5132 = vcmp.gt.s32.totalorder %v1648, 0
          %vm5133 = vcmp.gt.s32.totalorder %v1652, 0
          %vm5134 = vcmp.gt.s32.totalorder %v1656, 0
          %vm5135 = vcmp.gt.s32.totalorder %v1660, 0
          %vm5136 = vcmp.gt.s32.totalorder %v1664, 0
          %vm5137 = vcmp.gt.s32.totalorder %v1671, 0
          %vm5138 = vcmp.gt.s32.totalorder %v1675, 0
          %vm5139 = vcmp.gt.s32.totalorder %v1679, 0
          %vm5140 = vcmp.gt.s32.totalorder %v1683, 0
          %vm5141 = vcmp.gt.s32.totalorder %v1687, 0
          %vm5142 = vcmp.gt.s32.totalorder %v1691, 0
          %vm5143 = vcmp.gt.s32.totalorder %v1695, 0
          %vm5144 = vcmp.gt.s32.totalorder %v1699, 0
          %vm5145 = vcmp.gt.s32.totalorder %v1703, 0
          %vm5146 = vcmp.gt.s32.totalorder %v1707, 0
          %vm5147 = vcmp.gt.s32.totalorder %v1711, 0
          %vm5148 = vcmp.gt.s32.totalorder %v1715, 0
          %vm5149 = vcmp.gt.s32.totalorder %v1719, 0
          %vm5150 = vcmp.gt.s32.totalorder %v1723, 0
          %vm5151 = vcmp.gt.s32.totalorder %v1727, 0
          %vm5152 = vcmp.gt.s32.totalorder %v1731, 0
          %vm5153 = vcmp.gt.s32.totalorder %v1738, 0
          %vm5154 = vcmp.gt.s32.totalorder %v1742, 0
          %vm5155 = vcmp.gt.s32.totalorder %v1746, 0
          %vm5156 = vcmp.gt.s32.totalorder %v1750, 0
          %vm5157 = vcmp.gt.s32.totalorder %v1754, 0
          %vm5158 = vcmp.gt.s32.totalorder %v1758, 0
          %vm5159 = vcmp.gt.s32.totalorder %v1762, 0
          %vm5160 = vcmp.gt.s32.totalorder %v1766, 0
          %vm5161 = vcmp.gt.s32.totalorder %v1770, 0
          %vm5162 = vcmp.gt.s32.totalorder %v1774, 0
          %vm5163 = vcmp.gt.s32.totalorder %v1778, 0
          %vm5164 = vcmp.gt.s32.totalorder %v1782, 0
          %vm5165 = vcmp.gt.s32.totalorder %v1786, 0
          %vm5166 = vcmp.gt.s32.totalorder %v1790, 0
          %vm5167 = vcmp.gt.s32.totalorder %v1794, 0
          %vm5168 = vcmp.gt.s32.totalorder %v1798, 0
          %vm5169 = vcmp.gt.s32.totalorder %v1805, 0
          %vm5170 = vcmp.gt.s32.totalorder %v1809, 0
          %vm5171 = vcmp.gt.s32.totalorder %v1813, 0
          %vm5172 = vcmp.gt.s32.totalorder %v1817, 0
          %vm5173 = vcmp.gt.s32.totalorder %v1821, 0
          %vm5174 = vcmp.gt.s32.totalorder %v1825, 0
          %vm5175 = vcmp.gt.s32.totalorder %v1829, 0
          %vm5176 = vcmp.gt.s32.totalorder %v1833, 0
          %vm5177 = vcmp.gt.s32.totalorder %v1837, 0
          %vm5178 = vcmp.gt.s32.totalorder %v1841, 0
          %vm5179 = vcmp.gt.s32.totalorder %v1845, 0
          %vm5180 = vcmp.gt.s32.totalorder %v1849, 0
          %vm5181 = vcmp.gt.s32.totalorder %v1853, 0
          %vm5182 = vcmp.gt.s32.totalorder %v1857, 0
          %vm5183 = vcmp.gt.s32.totalorder %v1861, 0
          %vm5184 = vcmp.gt.s32.totalorder %v1865, 0
          %vm5185 = vcmp.gt.s32.totalorder %v1872, 0
          %vm5186 = vcmp.gt.s32.totalorder %v1876, 0
          %vm5187 = vcmp.gt.s32.totalorder %v1880, 0
          %vm5188 = vcmp.gt.s32.totalorder %v1884, 0
          %vm5189 = vcmp.gt.s32.totalorder %v1888, 0
          %vm5190 = vcmp.gt.s32.totalorder %v1892, 0
          %vm5191 = vcmp.gt.s32.totalorder %v1896, 0
          %vm5192 = vcmp.gt.s32.totalorder %v1900, 0
          %vm5193 = vcmp.gt.s32.totalorder %v1904, 0
          %vm5194 = vcmp.gt.s32.totalorder %v1908, 0
          %vm5195 = vcmp.gt.s32.totalorder %v1912, 0
          %vm5196 = vcmp.gt.s32.totalorder %v1916, 0
          %vm5197 = vcmp.gt.s32.totalorder %v1920, 0
          %vm5198 = vcmp.gt.s32.totalorder %v1924, 0
          %vm5199 = vcmp.gt.s32.totalorder %v1928, 0
          %vm5200 = vcmp.gt.s32.totalorder %v1932, 0
          %vm5201 = vcmp.gt.s32.totalorder %v1939, 0
          %vm5202 = vcmp.gt.s32.totalorder %v1943, 0
          %vm5203 = vcmp.gt.s32.totalorder %v1947, 0
          %vm5204 = vcmp.gt.s32.totalorder %v1951, 0
          %vm5205 = vcmp.gt.s32.totalorder %v1955, 0
          %vm5206 = vcmp.gt.s32.totalorder %v1959, 0
          %vm5207 = vcmp.gt.s32.totalorder %v1963, 0
          %vm5208 = vcmp.gt.s32.totalorder %v1967, 0
          %vm5209 = vcmp.gt.s32.totalorder %v1971, 0
          %vm5210 = vcmp.gt.s32.totalorder %v1975, 0
          %vm5211 = vcmp.gt.s32.totalorder %v1979, 0
          %vm5212 = vcmp.gt.s32.totalorder %v1983, 0
          %vm5213 = vcmp.gt.s32.totalorder %v1987, 0
          %vm5214 = vcmp.gt.s32.totalorder %v1991, 0
          %vm5215 = vcmp.gt.s32.totalorder %v1995, 0
          %vm5216 = vcmp.gt.s32.totalorder %v1999, 0
          %vm5217 = vcmp.gt.s32.totalorder %v2006, 0
          %vm5218 = vcmp.gt.s32.totalorder %v2010, 0
          %vm5219 = vcmp.gt.s32.totalorder %v2014, 0
          %vm5220 = vcmp.gt.s32.totalorder %v2018, 0
          %vm5221 = vcmp.gt.s32.totalorder %v2022, 0
          %vm5222 = vcmp.gt.s32.totalorder %v2026, 0
          %vm5223 = vcmp.gt.s32.totalorder %v2030, 0
          %vm5224 = vcmp.gt.s32.totalorder %v2034, 0
          %vm5225 = vcmp.gt.s32.totalorder %v2038, 0
          %vm5226 = vcmp.gt.s32.totalorder %v2042, 0
          %vm5227 = vcmp.gt.s32.totalorder %v2046, 0
          %vm5228 = vcmp.gt.s32.totalorder %v2050, 0
          %vm5229 = vcmp.gt.s32.totalorder %v2054, 0
          %vm5230 = vcmp.gt.s32.totalorder %v2058, 0
          %vm5231 = vcmp.gt.s32.totalorder %v2062, 0
          %vm5232 = vcmp.gt.s32.totalorder %v2066, 0
          %vm5233 = vcmp.gt.s32.totalorder %v2073, 0
          %vm5234 = vcmp.gt.s32.totalorder %v2077, 0
          %vm5235 = vcmp.gt.s32.totalorder %v2081, 0
          %vm5236 = vcmp.gt.s32.totalorder %v2085, 0
          %vm5237 = vcmp.gt.s32.totalorder %v2089, 0
          %vm5238 = vcmp.gt.s32.totalorder %v2093, 0
          %vm5239 = vcmp.gt.s32.totalorder %v2097, 0
          %vm5240 = vcmp.gt.s32.totalorder %v2101, 0
          %vm5241 = vcmp.gt.s32.totalorder %v2105, 0
          %vm5242 = vcmp.gt.s32.totalorder %v2109, 0
          %vm5243 = vcmp.gt.s32.totalorder %v2113, 0
          %vm5244 = vcmp.gt.s32.totalorder %v2117, 0
          %vm5245 = vcmp.gt.s32.totalorder %v2121, 0
          %vm5246 = vcmp.gt.s32.totalorder %v2125, 0
          %vm5247 = vcmp.gt.s32.totalorder %v2129, 0
          %vm5248 = vcmp.gt.s32.totalorder %v2133, 0
          %vm5249 = vcmp.gt.s32.totalorder %v2140, 0
          %vm5250 = vcmp.gt.s32.totalorder %v2144, 0
          %vm5251 = vcmp.gt.s32.totalorder %v2148, 0
          %vm5252 = vcmp.gt.s32.totalorder %v2152, 0
          %vm5253 = vcmp.gt.s32.totalorder %v2156, 0
          %vm5254 = vcmp.gt.s32.totalorder %v2160, 0
          %vm5255 = vcmp.gt.s32.totalorder %v2164, 0
          %vm5256 = vcmp.gt.s32.totalorder %v2168, 0
          %vm5257 = vcmp.gt.s32.totalorder %v2172, 0
          %vm5258 = vcmp.gt.s32.totalorder %v2176, 0
          %vm5259 = vcmp.gt.s32.totalorder %v2180, 0
          %vm5260 = vcmp.gt.s32.totalorder %v2184, 0
          %vm5261 = vcmp.gt.s32.totalorder %v2188, 0
          %vm5262 = vcmp.gt.s32.totalorder %v2192, 0
          %vm5263 = vcmp.gt.s32.totalorder %v2196, 0
          %vm5264 = vcmp.gt.s32.totalorder %v2200, 0
          %vm5265 = vcmp.gt.s32.totalorder %v2207, 0
          %vm5266 = vcmp.gt.s32.totalorder %v2211, 0
          %vm5267 = vcmp.gt.s32.totalorder %v2215, 0
          %vm5268 = vcmp.gt.s32.totalorder %v2219, 0
          %vm5269 = vcmp.gt.s32.totalorder %v2223, 0
          %vm5270 = vcmp.gt.s32.totalorder %v2227, 0
          %vm5271 = vcmp.gt.s32.totalorder %v2231, 0
          %vm5272 = vcmp.gt.s32.totalorder %v2235, 0
          %vm5273 = vcmp.gt.s32.totalorder %v2239, 0
          %vm5274 = vcmp.gt.s32.totalorder %v2243, 0
          %vm5275 = vcmp.gt.s32.totalorder %v2247, 0
          %vm5276 = vcmp.gt.s32.totalorder %v2251, 0
          %vm5277 = vcmp.gt.s32.totalorder %v2255, 0
          %vm5278 = vcmp.gt.s32.totalorder %v2259, 0
          %vm5279 = vcmp.gt.s32.totalorder %v2263, 0
          %vm5280 = vcmp.gt.s32.totalorder %v2267, 0
          %vm5281 = vcmp.gt.s32.totalorder %v2274, 0
          %vm5282 = vcmp.gt.s32.totalorder %v2278, 0
          %vm5283 = vcmp.gt.s32.totalorder %v2282, 0
          %vm5284 = vcmp.gt.s32.totalorder %v2286, 0
          %vm5285 = vcmp.gt.s32.totalorder %v2290, 0
          %vm5286 = vcmp.gt.s32.totalorder %v2294, 0
          %vm5287 = vcmp.gt.s32.totalorder %v2298, 0
          %vm5288 = vcmp.gt.s32.totalorder %v2302, 0
          %vm5289 = vcmp.gt.s32.totalorder %v2306, 0
          %vm5290 = vcmp.gt.s32.totalorder %v2310, 0
          %vm5291 = vcmp.gt.s32.totalorder %v2314, 0
          %vm5292 = vcmp.gt.s32.totalorder %v2318, 0
          %vm5293 = vcmp.gt.s32.totalorder %v2322, 0
          %vm5294 = vcmp.gt.s32.totalorder %v2326, 0
          %vm5295 = vcmp.gt.s32.totalorder %v2330, 0
          %vm5296 = vcmp.gt.s32.totalorder %v2334, 0
          %vm5297 = vcmp.gt.s32.totalorder %v2341, 0
          %vm5298 = vcmp.gt.s32.totalorder %v2345, 0
          %vm5299 = vcmp.gt.s32.totalorder %v2349, 0
          %vm5300 = vcmp.gt.s32.totalorder %v2353, 0
          %vm5301 = vcmp.gt.s32.totalorder %v2357, 0
          %vm5302 = vcmp.gt.s32.totalorder %v2361, 0
          %vm5303 = vcmp.gt.s32.totalorder %v2365, 0
          %vm5304 = vcmp.gt.s32.totalorder %v2369, 0
          %vm5305 = vcmp.gt.s32.totalorder %v2373, 0
          %vm5306 = vcmp.gt.s32.totalorder %v2377, 0
          %vm5307 = vcmp.gt.s32.totalorder %v2381, 0
          %vm5308 = vcmp.gt.s32.totalorder %v2385, 0
          %vm5309 = vcmp.gt.s32.totalorder %v2389, 0
          %vm5310 = vcmp.gt.s32.totalorder %v2393, 0
          %vm5311 = vcmp.gt.s32.totalorder %v2397, 0
          %vm5312 = vcmp.gt.s32.totalorder %v2401, 0
          %vm5313 = vcmp.gt.s32.totalorder %v2408, 0
          %vm5314 = vcmp.gt.s32.totalorder %v2412, 0
          %vm5315 = vcmp.gt.s32.totalorder %v2416, 0
          %vm5316 = vcmp.gt.s32.totalorder %v2420, 0
          %vm5317 = vcmp.gt.s32.totalorder %v2424, 0
          %vm5318 = vcmp.gt.s32.totalorder %v2428, 0
          %vm5319 = vcmp.gt.s32.totalorder %v2432, 0
          %vm5320 = vcmp.gt.s32.totalorder %v2436, 0
          %vm5321 = vcmp.gt.s32.totalorder %v2440, 0
          %vm5322 = vcmp.gt.s32.totalorder %v2444, 0
          %vm5323 = vcmp.gt.s32.totalorder %v2448, 0
          %vm5324 = vcmp.gt.s32.totalorder %v2452, 0
          %vm5325 = vcmp.gt.s32.totalorder %v2456, 0
          %vm5326 = vcmp.gt.s32.totalorder %v2460, 0
          %vm5327 = vcmp.gt.s32.totalorder %v2464, 0
          %vm5328 = vcmp.gt.s32.totalorder %v2468, 0
          %vm5329 = vcmp.gt.s32.totalorder %v2475, 0
          %vm5330 = vcmp.gt.s32.totalorder %v2479, 0
          %vm5331 = vcmp.gt.s32.totalorder %v2483, 0
          %vm5332 = vcmp.gt.s32.totalorder %v2487, 0
          %vm5333 = vcmp.gt.s32.totalorder %v2491, 0
          %vm5334 = vcmp.gt.s32.totalorder %v2495, 0
          %vm5335 = vcmp.gt.s32.totalorder %v2499, 0
          %vm5336 = vcmp.gt.s32.totalorder %v2503, 0
          %vm5337 = vcmp.gt.s32.totalorder %v2507, 0
          %vm5338 = vcmp.gt.s32.totalorder %v2511, 0
          %vm5339 = vcmp.gt.s32.totalorder %v2515, 0
          %vm5340 = vcmp.gt.s32.totalorder %v2519, 0
          %vm5341 = vcmp.gt.s32.totalorder %v2523, 0
          %vm5342 = vcmp.gt.s32.totalorder %v2527, 0
          %vm5343 = vcmp.gt.s32.totalorder %v2531, 0
          %vm5344 = vcmp.gt.s32.totalorder %v2535, 0
          %vm5345 = vcmp.gt.s32.totalorder %v2542, 0
          %vm5346 = vcmp.gt.s32.totalorder %v2546, 0
          %vm5347 = vcmp.gt.s32.totalorder %v2550, 0
          %vm5348 = vcmp.gt.s32.totalorder %v2554, 0
          %vm5349 = vcmp.gt.s32.totalorder %v2558, 0
          %vm5350 = vcmp.gt.s32.totalorder %v2562, 0
          %vm5351 = vcmp.gt.s32.totalorder %v2566, 0
          %vm5352 = vcmp.gt.s32.totalorder %v2570, 0
          %vm5353 = vcmp.gt.s32.totalorder %v2574, 0
          %vm5354 = vcmp.gt.s32.totalorder %v2578, 0
          %vm5355 = vcmp.gt.s32.totalorder %v2582, 0
          %vm5356 = vcmp.gt.s32.totalorder %v2586, 0
          %vm5357 = vcmp.gt.s32.totalorder %v2590, 0
          %vm5358 = vcmp.gt.s32.totalorder %v2594, 0
          %vm5359 = vcmp.gt.s32.totalorder %v2598, 0
          %vm5360 = vcmp.gt.s32.totalorder %v2602, 0
          %vm5361 = vcmp.gt.s32.totalorder %v2609, 0
          %vm5362 = vcmp.gt.s32.totalorder %v2613, 0
          %vm5363 = vcmp.gt.s32.totalorder %v2617, 0
          %vm5364 = vcmp.gt.s32.totalorder %v2621, 0
          %vm5365 = vcmp.gt.s32.totalorder %v2625, 0
          %vm5366 = vcmp.gt.s32.totalorder %v2629, 0
          %vm5367 = vcmp.gt.s32.totalorder %v2633, 0
          %vm5368 = vcmp.gt.s32.totalorder %v2637, 0
          %vm5369 = vcmp.gt.s32.totalorder %v2641, 0
          %vm5370 = vcmp.gt.s32.totalorder %v2645, 0
          %vm5371 = vcmp.gt.s32.totalorder %v2649, 0
          %vm5372 = vcmp.gt.s32.totalorder %v2653, 0
          %vm5373 = vcmp.gt.s32.totalorder %v2657, 0
          %vm5374 = vcmp.gt.s32.totalorder %v2661, 0
          %vm5375 = vcmp.gt.s32.totalorder %v2665, 0
          %vm5376 = vcmp.gt.s32.totalorder %v2669, 0
          %vm5377 = vcmp.gt.s32.totalorder %v2676, 0
          %vm5378 = vcmp.gt.s32.totalorder %v2680, 0
          %vm5379 = vcmp.gt.s32.totalorder %v2684, 0
          %vm5380 = vcmp.gt.s32.totalorder %v2688, 0
          %vm5381 = vcmp.gt.s32.totalorder %v2692, 0
          %vm5382 = vcmp.gt.s32.totalorder %v2696, 0
          %vm5383 = vcmp.gt.s32.totalorder %v2700, 0
          %vm5384 = vcmp.gt.s32.totalorder %v2704, 0
          %vm5385 = vcmp.gt.s32.totalorder %v2708, 0
          %vm5386 = vcmp.gt.s32.totalorder %v2712, 0
          %vm5387 = vcmp.gt.s32.totalorder %v2716, 0
          %vm5388 = vcmp.gt.s32.totalorder %v2720, 0
          %vm5389 = vcmp.gt.s32.totalorder %v2724, 0
          %vm5390 = vcmp.gt.s32.totalorder %v2728, 0
          %vm5391 = vcmp.gt.s32.totalorder %v2732, 0
          %vm5392 = vcmp.gt.s32.totalorder %v2736, 0
          %vm5393 = vcmp.gt.s32.totalorder %v2743, 0
          %vm5394 = vcmp.gt.s32.totalorder %v2747, 0
          %vm5395 = vcmp.gt.s32.totalorder %v2751, 0
          %vm5396 = vcmp.gt.s32.totalorder %v2755, 0
          %vm5397 = vcmp.gt.s32.totalorder %v2759, 0
          %vm5398 = vcmp.gt.s32.totalorder %v2763, 0
          %vm5399 = vcmp.gt.s32.totalorder %v2767, 0
          %vm5400 = vcmp.gt.s32.totalorder %v2771, 0
          %vm5401 = vcmp.gt.s32.totalorder %v2775, 0
          %vm5402 = vcmp.gt.s32.totalorder %v2779, 0
          %vm5403 = vcmp.gt.s32.totalorder %v2783, 0
          %vm5404 = vcmp.gt.s32.totalorder %v2787, 0
          %vm5405 = vcmp.gt.s32.totalorder %v2791, 0
          %vm5406 = vcmp.gt.s32.totalorder %v2795, 0
          %vm5407 = vcmp.gt.s32.totalorder %v2799, 0
          %vm5408 = vcmp.gt.s32.totalorder %v2803, 0
          %vm5409 = vcmp.gt.s32.totalorder %v2810, 0
          %vm5410 = vcmp.gt.s32.totalorder %v2814, 0
          %vm5411 = vcmp.gt.s32.totalorder %v2818, 0
          %vm5412 = vcmp.gt.s32.totalorder %v2822, 0
          %vm5413 = vcmp.gt.s32.totalorder %v2826, 0
          %vm5414 = vcmp.gt.s32.totalorder %v2830, 0
          %vm5415 = vcmp.gt.s32.totalorder %v2834, 0
          %vm5416 = vcmp.gt.s32.totalorder %v2838, 0
          %vm5417 = vcmp.gt.s32.totalorder %v2842, 0
          %vm5418 = vcmp.gt.s32.totalorder %v2846, 0
          %vm5419 = vcmp.gt.s32.totalorder %v2850, 0
          %vm5420 = vcmp.gt.s32.totalorder %v2854, 0
          %vm5421 = vcmp.gt.s32.totalorder %v2858, 0
          %vm5422 = vcmp.gt.s32.totalorder %v2862, 0
          %vm5423 = vcmp.gt.s32.totalorder %v2866, 0
          %vm5424 = vcmp.gt.s32.totalorder %v2870, 0
          %vm5425 = vcmp.gt.s32.totalorder %v2877, 0
          %vm5426 = vcmp.gt.s32.totalorder %v2881, 0
          %vm5427 = vcmp.gt.s32.totalorder %v2885, 0
          %vm5428 = vcmp.gt.s32.totalorder %v2889, 0
          %vm5429 = vcmp.gt.s32.totalorder %v2893, 0
          %vm5430 = vcmp.gt.s32.totalorder %v2897, 0
          %vm5431 = vcmp.gt.s32.totalorder %v2901, 0
          %vm5432 = vcmp.gt.s32.totalorder %v2905, 0
          %vm5433 = vcmp.gt.s32.totalorder %v2909, 0
          %vm5434 = vcmp.gt.s32.totalorder %v2913, 0
          %vm5435 = vcmp.gt.s32.totalorder %v2917, 0
          %vm5436 = vcmp.gt.s32.totalorder %v2921, 0
          %vm5437 = vcmp.gt.s32.totalorder %v2925, 0
          %vm5438 = vcmp.gt.s32.totalorder %v2929, 0
          %vm5439 = vcmp.gt.s32.totalorder %v2933, 0
          %vm5440 = vcmp.gt.s32.totalorder %v2937, 0
          %vm5441 = vcmp.gt.s32.totalorder %v2944, 0
          %vm5442 = vcmp.gt.s32.totalorder %v2948, 0
          %vm5443 = vcmp.gt.s32.totalorder %v2952, 0
          %vm5444 = vcmp.gt.s32.totalorder %v2956, 0
          %vm5445 = vcmp.gt.s32.totalorder %v2960, 0
          %vm5446 = vcmp.gt.s32.totalorder %v2964, 0
          %vm5447 = vcmp.gt.s32.totalorder %v2968, 0
          %vm5448 = vcmp.gt.s32.totalorder %v2972, 0
          %vm5449 = vcmp.gt.s32.totalorder %v2976, 0
          %vm5450 = vcmp.gt.s32.totalorder %v2980, 0
          %vm5451 = vcmp.gt.s32.totalorder %v2984, 0
          %vm5452 = vcmp.gt.s32.totalorder %v2988, 0
          %vm5453 = vcmp.gt.s32.totalorder %v2992, 0
          %vm5454 = vcmp.gt.s32.totalorder %v2996, 0
          %vm5455 = vcmp.gt.s32.totalorder %v3000, 0
          %vm5456 = vcmp.gt.s32.totalorder %v3004, 0
          %vm5457 = vcmp.gt.s32.totalorder %v3011, 0
          %vm5458 = vcmp.gt.s32.totalorder %v3015, 0
          %vm5459 = vcmp.gt.s32.totalorder %v3019, 0
          %vm5460 = vcmp.gt.s32.totalorder %v3023, 0
          %vm5461 = vcmp.gt.s32.totalorder %v3027, 0
          %vm5462 = vcmp.gt.s32.totalorder %v3031, 0
          %vm5463 = vcmp.gt.s32.totalorder %v3035, 0
          %vm5464 = vcmp.gt.s32.totalorder %v3039, 0
          %vm5465 = vcmp.gt.s32.totalorder %v3043, 0
          %vm5466 = vcmp.gt.s32.totalorder %v3047, 0
          %vm5467 = vcmp.gt.s32.totalorder %v3051, 0
          %vm5468 = vcmp.gt.s32.totalorder %v3055, 0
          %vm5469 = vcmp.gt.s32.totalorder %v3059, 0
          %vm5470 = vcmp.gt.s32.totalorder %v3063, 0
          %vm5471 = vcmp.gt.s32.totalorder %v3067, 0
          %vm5472 = vcmp.gt.s32.totalorder %v3071, 0
          %vm5473 = vcmp.gt.s32.totalorder %v3078, 0
          %vm5474 = vcmp.gt.s32.totalorder %v3082, 0
          %vm5475 = vcmp.gt.s32.totalorder %v3086, 0
          %vm5476 = vcmp.gt.s32.totalorder %v3090, 0
          %vm5477 = vcmp.gt.s32.totalorder %v3094, 0
          %vm5478 = vcmp.gt.s32.totalorder %v3098, 0
          %vm5479 = vcmp.gt.s32.totalorder %v3102, 0
          %vm5480 = vcmp.gt.s32.totalorder %v3106, 0
          %vm5481 = vcmp.gt.s32.totalorder %v3110, 0
          %vm5482 = vcmp.gt.s32.totalorder %v3114, 0
          %vm5483 = vcmp.gt.s32.totalorder %v3118, 0
          %vm5484 = vcmp.gt.s32.totalorder %v3122, 0
          %vm5485 = vcmp.gt.s32.totalorder %v3126, 0
          %vm5486 = vcmp.gt.s32.totalorder %v3130, 0
          %vm5487 = vcmp.gt.s32.totalorder %v3134, 0
          %vm5488 = vcmp.gt.s32.totalorder %v3138, 0
          %vm5489 = vcmp.gt.s32.totalorder %v3145, 0
          %vm5490 = vcmp.gt.s32.totalorder %v3149, 0
          %vm5491 = vcmp.gt.s32.totalorder %v3153, 0
          %vm5492 = vcmp.gt.s32.totalorder %v3157, 0
          %vm5493 = vcmp.gt.s32.totalorder %v3161, 0
          %vm5494 = vcmp.gt.s32.totalorder %v3165, 0
          %vm5495 = vcmp.gt.s32.totalorder %v3169, 0
          %vm5496 = vcmp.gt.s32.totalorder %v3173, 0
          %vm5497 = vcmp.gt.s32.totalorder %v3177, 0
          %vm5498 = vcmp.gt.s32.totalorder %v3181, 0
          %vm5499 = vcmp.gt.s32.totalorder %v3185, 0
          %vm5500 = vcmp.gt.s32.totalorder %v3189, 0
          %vm5501 = vcmp.gt.s32.totalorder %v3193, 0
          %vm5502 = vcmp.gt.s32.totalorder %v3197, 0
          %vm5503 = vcmp.gt.s32.totalorder %v3201, 0
          %vm5504 = vcmp.gt.s32.totalorder %v3205, 0
          %vm5505 = vcmp.gt.s32.totalorder %v3212, 0
          %vm5506 = vcmp.gt.s32.totalorder %v3216, 0
          %vm5507 = vcmp.gt.s32.totalorder %v3220, 0
          %vm5508 = vcmp.gt.s32.totalorder %v3224, 0
          %vm5509 = vcmp.gt.s32.totalorder %v3228, 0
          %vm5510 = vcmp.gt.s32.totalorder %v3232, 0
          %vm5511 = vcmp.gt.s32.totalorder %v3236, 0
          %vm5512 = vcmp.gt.s32.totalorder %v3240, 0
          %vm5513 = vcmp.gt.s32.totalorder %v3244, 0
          %vm5514 = vcmp.gt.s32.totalorder %v3248, 0
          %vm5515 = vcmp.gt.s32.totalorder %v3252, 0
          %vm5516 = vcmp.gt.s32.totalorder %v3256, 0
          %vm5517 = vcmp.gt.s32.totalorder %v3260, 0
          %vm5518 = vcmp.gt.s32.totalorder %v3264, 0
          %vm5519 = vcmp.gt.s32.totalorder %v3268, 0
          %vm5520 = vcmp.gt.s32.totalorder %v3272, 0
          %vm5521 = vcmp.gt.s32.totalorder %v3279, 0
          %vm5522 = vcmp.gt.s32.totalorder %v3283, 0
          %vm5523 = vcmp.gt.s32.totalorder %v3287, 0
          %vm5524 = vcmp.gt.s32.totalorder %v3291, 0
          %vm5525 = vcmp.gt.s32.totalorder %v3295, 0
          %vm5526 = vcmp.gt.s32.totalorder %v3299, 0
          %vm5527 = vcmp.gt.s32.totalorder %v3303, 0
          %vm5528 = vcmp.gt.s32.totalorder %v3307, 0
          %vm5529 = vcmp.gt.s32.totalorder %v3311, 0
          %vm5530 = vcmp.gt.s32.totalorder %v3315, 0
          %vm5531 = vcmp.gt.s32.totalorder %v3319, 0
          %vm5532 = vcmp.gt.s32.totalorder %v3323, 0
          %vm5533 = vcmp.gt.s32.totalorder %v3327, 0
          %vm5534 = vcmp.gt.s32.totalorder %v3331, 0
          %vm5535 = vcmp.gt.s32.totalorder %v3335, 0
          %vm5536 = vcmp.gt.s32.totalorder %v3339, 0
          %vm5537 = vcmp.gt.s32.totalorder %v3346, 0
          %vm5538 = vcmp.gt.s32.totalorder %v3350, 0
          %vm5539 = vcmp.gt.s32.totalorder %v3354, 0
          %vm5540 = vcmp.gt.s32.totalorder %v3358, 0
          %vm5541 = vcmp.gt.s32.totalorder %v3362, 0
          %vm5542 = vcmp.gt.s32.totalorder %v3366, 0
          %vm5543 = vcmp.gt.s32.totalorder %v3370, 0
          %vm5544 = vcmp.gt.s32.totalorder %v3374, 0
          %vm5545 = vcmp.gt.s32.totalorder %v3378, 0
          %vm5546 = vcmp.gt.s32.totalorder %v3382, 0
          %vm5547 = vcmp.gt.s32.totalorder %v3386, 0
          %vm5548 = vcmp.gt.s32.totalorder %v3390, 0
          %vm5549 = vcmp.gt.s32.totalorder %v3394, 0
          %vm5550 = vcmp.gt.s32.totalorder %v3398, 0
          %vm5551 = vcmp.gt.s32.totalorder %v3402, 0
          %vm5552 = vcmp.gt.s32.totalorder %v3406, 0
          %vm5553 = vcmp.gt.s32.totalorder %v3413, 0
          %vm5554 = vcmp.gt.s32.totalorder %v3417, 0
          %vm5555 = vcmp.gt.s32.totalorder %v3421, 0
          %vm5556 = vcmp.gt.s32.totalorder %v3425, 0
          %vm5557 = vcmp.gt.s32.totalorder %v3429, 0
          %vm5558 = vcmp.gt.s32.totalorder %v3433, 0
          %vm5559 = vcmp.gt.s32.totalorder %v3437, 0
          %vm5560 = vcmp.gt.s32.totalorder %v3441, 0
          %vm5561 = vcmp.gt.s32.totalorder %v3445, 0
          %vm5562 = vcmp.gt.s32.totalorder %v3449, 0
          %vm5563 = vcmp.gt.s32.totalorder %v3453, 0
          %vm5564 = vcmp.gt.s32.totalorder %v3457, 0
          %vm5565 = vcmp.gt.s32.totalorder %v3461, 0
          %vm5566 = vcmp.gt.s32.totalorder %v3465, 0
          %vm5567 = vcmp.gt.s32.totalorder %v3469, 0
          %vm5568 = vcmp.gt.s32.totalorder %v3473, 0
          %vm5569 = vcmp.gt.s32.totalorder %v3480, 0
          %vm5570 = vcmp.gt.s32.totalorder %v3484, 0
          %vm5571 = vcmp.gt.s32.totalorder %v3488, 0
          %vm5572 = vcmp.gt.s32.totalorder %v3492, 0
          %vm5573 = vcmp.gt.s32.totalorder %v3496, 0
          %vm5574 = vcmp.gt.s32.totalorder %v3500, 0
          %vm5575 = vcmp.gt.s32.totalorder %v3504, 0
          %vm5576 = vcmp.gt.s32.totalorder %v3508, 0
          %vm5577 = vcmp.gt.s32.totalorder %v3512, 0
          %vm5578 = vcmp.gt.s32.totalorder %v3516, 0
          %vm5579 = vcmp.gt.s32.totalorder %v3520, 0
          %vm5580 = vcmp.gt.s32.totalorder %v3524, 0
          %vm5581 = vcmp.gt.s32.totalorder %v3528, 0
          %vm5582 = vcmp.gt.s32.totalorder %v3532, 0
          %vm5583 = vcmp.gt.s32.totalorder %v3536, 0
          %vm5584 = vcmp.gt.s32.totalorder %v3540, 0
          %vm5585 = vcmp.gt.s32.totalorder %v3547, 0
          %vm5586 = vcmp.gt.s32.totalorder %v3551, 0
          %vm5587 = vcmp.gt.s32.totalorder %v3555, 0
          %vm5588 = vcmp.gt.s32.totalorder %v3559, 0
          %vm5589 = vcmp.gt.s32.totalorder %v3563, 0
          %vm5590 = vcmp.gt.s32.totalorder %v3567, 0
          %vm5591 = vcmp.gt.s32.totalorder %v3571, 0
          %vm5592 = vcmp.gt.s32.totalorder %v3575, 0
          %vm5593 = vcmp.gt.s32.totalorder %v3579, 0
          %vm5594 = vcmp.gt.s32.totalorder %v3583, 0
          %vm5595 = vcmp.gt.s32.totalorder %v3587, 0
          %vm5596 = vcmp.gt.s32.totalorder %v3591, 0
          %vm5597 = vcmp.gt.s32.totalorder %v3595, 0
          %vm5598 = vcmp.gt.s32.totalorder %v3599, 0
          %vm5599 = vcmp.gt.s32.totalorder %v3603, 0
          %vm5600 = vcmp.gt.s32.totalorder %v3607, 0
          %vm5601 = vcmp.gt.s32.totalorder %v3614, 0
          %vm5602 = vcmp.gt.s32.totalorder %v3618, 0
          %vm5603 = vcmp.gt.s32.totalorder %v3622, 0
          %vm5604 = vcmp.gt.s32.totalorder %v3626, 0
          %vm5605 = vcmp.gt.s32.totalorder %v3630, 0
          %vm5606 = vcmp.gt.s32.totalorder %v3634, 0
          %vm5607 = vcmp.gt.s32.totalorder %v3638, 0
          %vm5608 = vcmp.gt.s32.totalorder %v3642, 0
          %vm5609 = vcmp.gt.s32.totalorder %v3646, 0
          %vm5610 = vcmp.gt.s32.totalorder %v3650, 0
          %vm5611 = vcmp.gt.s32.totalorder %v3654, 0
          %vm5612 = vcmp.gt.s32.totalorder %v3658, 0
          %vm5613 = vcmp.gt.s32.totalorder %v3662, 0
          %vm5614 = vcmp.gt.s32.totalorder %v3666, 0
          %vm5615 = vcmp.gt.s32.totalorder %v3670, 0
          %vm5616 = vcmp.gt.s32.totalorder %v3674, 0
          %vm5617 = vcmp.gt.s32.totalorder %v3681, 0
          %vm5618 = vcmp.gt.s32.totalorder %v3685, 0
          %vm5619 = vcmp.gt.s32.totalorder %v3689, 0
          %vm5620 = vcmp.gt.s32.totalorder %v3693, 0
          %vm5621 = vcmp.gt.s32.totalorder %v3697, 0
          %vm5622 = vcmp.gt.s32.totalorder %v3701, 0
          %vm5623 = vcmp.gt.s32.totalorder %v3705, 0
          %vm5624 = vcmp.gt.s32.totalorder %v3709, 0
          %vm5625 = vcmp.gt.s32.totalorder %v3713, 0
          %vm5626 = vcmp.gt.s32.totalorder %v3717, 0
          %vm5627 = vcmp.gt.s32.totalorder %v3721, 0
          %vm5628 = vcmp.gt.s32.totalorder %v3725, 0
          %vm5629 = vcmp.gt.s32.totalorder %v3729, 0
          %vm5630 = vcmp.gt.s32.totalorder %v3733, 0
          %vm5631 = vcmp.gt.s32.totalorder %v3737, 0
          %vm5632 = vcmp.gt.s32.totalorder %v3741, 0
          %vm5633 = vcmp.gt.s32.totalorder %v3748, 0
          %vm5634 = vcmp.gt.s32.totalorder %v3752, 0
          %vm5635 = vcmp.gt.s32.totalorder %v3756, 0
          %vm5636 = vcmp.gt.s32.totalorder %v3760, 0
          %vm5637 = vcmp.gt.s32.totalorder %v3764, 0
          %vm5638 = vcmp.gt.s32.totalorder %v3768, 0
          %vm5639 = vcmp.gt.s32.totalorder %v3772, 0
          %vm5640 = vcmp.gt.s32.totalorder %v3776, 0
          %vm5641 = vcmp.gt.s32.totalorder %v3780, 0
          %vm5642 = vcmp.gt.s32.totalorder %v3784, 0
          %vm5643 = vcmp.gt.s32.totalorder %v3788, 0
          %vm5644 = vcmp.gt.s32.totalorder %v3792, 0
          %vm5645 = vcmp.gt.s32.totalorder %v3796, 0
          %vm5646 = vcmp.gt.s32.totalorder %v3800, 0
          %vm5647 = vcmp.gt.s32.totalorder %v3804, 0
          %vm5648 = vcmp.gt.s32.totalorder %v3808, 0
          %vm5649 = vcmp.gt.s32.totalorder %v3815, 0
          %vm5650 = vcmp.gt.s32.totalorder %v3819, 0
          %vm5651 = vcmp.gt.s32.totalorder %v3823, 0
          %vm5652 = vcmp.gt.s32.totalorder %v3827, 0
          %vm5653 = vcmp.gt.s32.totalorder %v3831, 0
          %vm5654 = vcmp.gt.s32.totalorder %v3835, 0
          %vm5655 = vcmp.gt.s32.totalorder %v3839, 0
          %vm5656 = vcmp.gt.s32.totalorder %v3843, 0
          %vm5657 = vcmp.gt.s32.totalorder %v3847, 0
          %vm5658 = vcmp.gt.s32.totalorder %v3851, 0
          %vm5659 = vcmp.gt.s32.totalorder %v3855, 0
          %vm5660 = vcmp.gt.s32.totalorder %v3859, 0
          %vm5661 = vcmp.gt.s32.totalorder %v3863, 0
          %vm5662 = vcmp.gt.s32.totalorder %v3867, 0
          %vm5663 = vcmp.gt.s32.totalorder %v3871, 0
          %vm5664 = vcmp.gt.s32.totalorder %v3875, 0
          %vm5665 = vcmp.gt.s32.totalorder %v3882, 0
          %vm5666 = vcmp.gt.s32.totalorder %v3886, 0
          %vm5667 = vcmp.gt.s32.totalorder %v3890, 0
          %vm5668 = vcmp.gt.s32.totalorder %v3894, 0
          %vm5669 = vcmp.gt.s32.totalorder %v3898, 0
          %vm5670 = vcmp.gt.s32.totalorder %v3902, 0
          %vm5671 = vcmp.gt.s32.totalorder %v3906, 0
          %vm5672 = vcmp.gt.s32.totalorder %v3910, 0
          %vm5673 = vcmp.gt.s32.totalorder %v3914, 0
          %vm5674 = vcmp.gt.s32.totalorder %v3918, 0
          %vm5675 = vcmp.gt.s32.totalorder %v3922, 0
          %vm5676 = vcmp.gt.s32.totalorder %v3926, 0
          %vm5677 = vcmp.gt.s32.totalorder %v3930, 0
          %vm5678 = vcmp.gt.s32.totalorder %v3934, 0
          %vm5679 = vcmp.gt.s32.totalorder %v3938, 0
          %vm5680 = vcmp.gt.s32.totalorder %v3942, 0
          %vm5681 = vcmp.gt.s32.totalorder %v3949, 0
          %vm5682 = vcmp.gt.s32.totalorder %v3953, 0
          %vm5683 = vcmp.gt.s32.totalorder %v3957, 0
          %vm5684 = vcmp.gt.s32.totalorder %v3961, 0
          %vm5685 = vcmp.gt.s32.totalorder %v3965, 0
          %vm5686 = vcmp.gt.s32.totalorder %v3969, 0
          %vm5687 = vcmp.gt.s32.totalorder %v3973, 0
          %vm5688 = vcmp.gt.s32.totalorder %v3977, 0
          %vm5689 = vcmp.gt.s32.totalorder %v3981, 0
          %vm5690 = vcmp.gt.s32.totalorder %v3985, 0
          %vm5691 = vcmp.gt.s32.totalorder %v3989, 0
          %vm5692 = vcmp.gt.s32.totalorder %v3993, 0
          %vm5693 = vcmp.gt.s32.totalorder %v3997, 0
          %vm5694 = vcmp.gt.s32.totalorder %v4001, 0
          %vm5695 = vcmp.gt.s32.totalorder %v4005, 0
          %vm5696 = vcmp.gt.s32.totalorder %v4009, 0
          %vm5697 = vcmp.gt.s32.totalorder %v4016, 0
          %vm5698 = vcmp.gt.s32.totalorder %v4020, 0
          %vm5699 = vcmp.gt.s32.totalorder %v4024, 0
          %vm5700 = vcmp.gt.s32.totalorder %v4028, 0
          %vm5701 = vcmp.gt.s32.totalorder %v4032, 0
          %vm5702 = vcmp.gt.s32.totalorder %v4036, 0
          %vm5703 = vcmp.gt.s32.totalorder %v4040, 0
          %vm5704 = vcmp.gt.s32.totalorder %v4044, 0
          %vm5705 = vcmp.gt.s32.totalorder %v4048, 0
          %vm5706 = vcmp.gt.s32.totalorder %v4052, 0
          %vm5707 = vcmp.gt.s32.totalorder %v4056, 0
          %vm5708 = vcmp.gt.s32.totalorder %v4060, 0
          %vm5709 = vcmp.gt.s32.totalorder %v4064, 0
          %vm5710 = vcmp.gt.s32.totalorder %v4068, 0
          %vm5711 = vcmp.gt.s32.totalorder %v4072, 0
          %vm5712 = vcmp.gt.s32.totalorder %v4076, 0
          %vm5713 = vcmp.gt.s32.totalorder %v4083, 0
          %vm5714 = vcmp.gt.s32.totalorder %v4087, 0
          %vm5715 = vcmp.gt.s32.totalorder %v4091, 0
          %vm5716 = vcmp.gt.s32.totalorder %v4095, 0
          %vm5717 = vcmp.gt.s32.totalorder %v4099, 0
          %vm5718 = vcmp.gt.s32.totalorder %v4103, 0
          %vm5719 = vcmp.gt.s32.totalorder %v4107, 0
          %vm5720 = vcmp.gt.s32.totalorder %v4111, 0
          %vm5721 = vcmp.gt.s32.totalorder %v4115, 0
          %vm5722 = vcmp.gt.s32.totalorder %v4119, 0
          %vm5723 = vcmp.gt.s32.totalorder %v4123, 0
          %vm5724 = vcmp.gt.s32.totalorder %v4127, 0
          %vm5725 = vcmp.gt.s32.totalorder %v4131, 0
          %vm5726 = vcmp.gt.s32.totalorder %v4135, 0
          %vm5727 = vcmp.gt.s32.totalorder %v4139, 0
          %vm5728 = vcmp.gt.s32.totalorder %v4143, 0
          %vm5729 = vcmp.gt.s32.totalorder %v4150, 0
          %vm5730 = vcmp.gt.s32.totalorder %v4154, 0
          %vm5731 = vcmp.gt.s32.totalorder %v4158, 0
          %vm5732 = vcmp.gt.s32.totalorder %v4162, 0
          %vm5733 = vcmp.gt.s32.totalorder %v4166, 0
          %vm5734 = vcmp.gt.s32.totalorder %v4170, 0
          %vm5735 = vcmp.gt.s32.totalorder %v4174, 0
          %vm5736 = vcmp.gt.s32.totalorder %v4178, 0
          %vm5737 = vcmp.gt.s32.totalorder %v4182, 0
          %vm5738 = vcmp.gt.s32.totalorder %v4186, 0
          %vm5739 = vcmp.gt.s32.totalorder %v4190, 0
          %vm5740 = vcmp.gt.s32.totalorder %v4194, 0
          %vm5741 = vcmp.gt.s32.totalorder %v4198, 0
          %vm5742 = vcmp.gt.s32.totalorder %v4202, 0
          %vm5743 = vcmp.gt.s32.totalorder %v4206, 0
          %vm5744 = vcmp.gt.s32.totalorder %v4210, 0
          %vm5745 = vcmp.gt.s32.totalorder %v4217, 0
          %vm5746 = vcmp.gt.s32.totalorder %v4221, 0
          %vm5747 = vcmp.gt.s32.totalorder %v4225, 0
          %vm5748 = vcmp.gt.s32.totalorder %v4229, 0
          %vm5749 = vcmp.gt.s32.totalorder %v4233, 0
          %vm5750 = vcmp.gt.s32.totalorder %v4237, 0
          %vm5751 = vcmp.gt.s32.totalorder %v4241, 0
          %vm5752 = vcmp.gt.s32.totalorder %v4245, 0
          %vm5753 = vcmp.gt.s32.totalorder %v4249, 0
          %vm5754 = vcmp.gt.s32.totalorder %v4253, 0
          %vm5755 = vcmp.gt.s32.totalorder %v4257, 0
          %vm5756 = vcmp.gt.s32.totalorder %v4261, 0
          %vm5757 = vcmp.gt.s32.totalorder %v4265, 0
          %vm5758 = vcmp.gt.s32.totalorder %v4269, 0
          %vm5759 = vcmp.gt.s32.totalorder %v4273, 0
          %vm5760 = vcmp.gt.s32.totalorder %v4277, 0
          %vm5761 = vcmp.gt.s32.totalorder %v4284, 0
          %vm5762 = vcmp.gt.s32.totalorder %v4288, 0
          %vm5763 = vcmp.gt.s32.totalorder %v4292, 0
          %vm5764 = vcmp.gt.s32.totalorder %v4296, 0
          %vm5765 = vcmp.gt.s32.totalorder %v4300, 0
          %vm5766 = vcmp.gt.s32.totalorder %v4304, 0
          %vm5767 = vcmp.gt.s32.totalorder %v4308, 0
          %vm5768 = vcmp.gt.s32.totalorder %v4312, 0
          %vm5769 = vcmp.gt.s32.totalorder %v4316, 0
          %vm5770 = vcmp.gt.s32.totalorder %v4320, 0
          %vm5771 = vcmp.gt.s32.totalorder %v4324, 0
          %vm5772 = vcmp.gt.s32.totalorder %v4328, 0
          %vm5773 = vcmp.gt.s32.totalorder %v4332, 0
          %vm5774 = vcmp.gt.s32.totalorder %v4336, 0
          %vm5775 = vcmp.gt.s32.totalorder %v4340, 0
          %vm5776 = vcmp.gt.s32.totalorder %v4344, 0
          %vm5777 = vcmp.gt.s32.totalorder %v4351, 0
          %vm5778 = vcmp.gt.s32.totalorder %v4355, 0
          %vm5779 = vcmp.gt.s32.totalorder %v4359, 0
          %vm5780 = vcmp.gt.s32.totalorder %v4363, 0
          %vm5781 = vcmp.gt.s32.totalorder %v4367, 0
          %vm5782 = vcmp.gt.s32.totalorder %v4371, 0
          %vm5783 = vcmp.gt.s32.totalorder %v4375, 0
          %vm5784 = vcmp.gt.s32.totalorder %v4379, 0
          %vm5785 = vcmp.gt.s32.totalorder %v4383, 0
          %vm5786 = vcmp.gt.s32.totalorder %v4387, 0
          %vm5787 = vcmp.gt.s32.totalorder %v4391, 0
          %vm5788 = vcmp.gt.s32.totalorder %v4395, 0
          %vm5789 = vcmp.gt.s32.totalorder %v4399, 0
          %vm5790 = vcmp.gt.s32.totalorder %v4403, 0
          %vm5791 = vcmp.gt.s32.totalorder %v4407, 0
          %vm5792 = vcmp.gt.s32.totalorder %v4411, 0
          %vm5793 = vcmp.gt.s32.totalorder %v4418, 0
          %vm5794 = vcmp.gt.s32.totalorder %v4422, 0
          %vm5795 = vcmp.gt.s32.totalorder %v4426, 0
          %vm5796 = vcmp.gt.s32.totalorder %v4430, 0
          %vm5797 = vcmp.gt.s32.totalorder %v4434, 0
          %vm5798 = vcmp.gt.s32.totalorder %v4438, 0
          %vm5799 = vcmp.gt.s32.totalorder %v4442, 0
          %vm5800 = vcmp.gt.s32.totalorder %v4446, 0
          %vm5801 = vcmp.gt.s32.totalorder %v4450, 0
          %vm5802 = vcmp.gt.s32.totalorder %v4454, 0
          %vm5803 = vcmp.gt.s32.totalorder %v4458, 0
          %vm5804 = vcmp.gt.s32.totalorder %v4462, 0
          %vm5805 = vcmp.gt.s32.totalorder %v4466, 0
          %vm5806 = vcmp.gt.s32.totalorder %v4470, 0
          %vm5807 = vcmp.gt.s32.totalorder %v4474, 0
          %vm5808 = vcmp.gt.s32.totalorder %v4478, 0
          %vm5809 = vcmp.gt.s32.totalorder %v4485, 0
          %vm5810 = vcmp.gt.s32.totalorder %v4489, 0
          %vm5811 = vcmp.gt.s32.totalorder %v4493, 0
          %vm5812 = vcmp.gt.s32.totalorder %v4497, 0
          %vm5813 = vcmp.gt.s32.totalorder %v4501, 0
          %vm5814 = vcmp.gt.s32.totalorder %v4505, 0
          %vm5815 = vcmp.gt.s32.totalorder %v4509, 0
          %vm5816 = vcmp.gt.s32.totalorder %v4513, 0
          %vm5817 = vcmp.gt.s32.totalorder %v4517, 0
          %vm5818 = vcmp.gt.s32.totalorder %v4521, 0
          %vm5819 = vcmp.gt.s32.totalorder %v4525, 0
          %vm5820 = vcmp.gt.s32.totalorder %v4529, 0
          %vm5821 = vcmp.gt.s32.totalorder %v4533, 0
          %vm5822 = vcmp.gt.s32.totalorder %v4537, 0
          %vm5823 = vcmp.gt.s32.totalorder %v4541, 0
          %vm5824 = vcmp.gt.s32.totalorder %v4545, 0
          %vm5825 = vcmp.gt.s32.totalorder %v4552, 0
          %vm5826 = vcmp.gt.s32.totalorder %v4556, 0
          %vm5827 = vcmp.gt.s32.totalorder %v4560, 0
          %vm5828 = vcmp.gt.s32.totalorder %v4564, 0
          %vm5829 = vcmp.gt.s32.totalorder %v4568, 0
          %vm5830 = vcmp.gt.s32.totalorder %v4572, 0
          %vm5831 = vcmp.gt.s32.totalorder %v4576, 0
          %vm5832 = vcmp.gt.s32.totalorder %v4580, 0
          %vm5833 = vcmp.gt.s32.totalorder %v4584, 0
          %vm5834 = vcmp.gt.s32.totalorder %v4588, 0
          %vm5835 = vcmp.gt.s32.totalorder %v4592, 0
          %vm5836 = vcmp.gt.s32.totalorder %v4596, 0
          %vm5837 = vcmp.gt.s32.totalorder %v4600, 0
          %vm5838 = vcmp.gt.s32.totalorder %v4604, 0
          %vm5839 = vcmp.gt.s32.totalorder %v4608, 0
          %vm5840 = vcmp.gt.s32.totalorder %v4612, 0
          %vm5841 = vcmp.gt.s32.totalorder %v4619, 0
          %vm5842 = vcmp.gt.s32.totalorder %v4623, 0
          %vm5843 = vcmp.gt.s32.totalorder %v4627, 0
          %vm5844 = vcmp.gt.s32.totalorder %v4631, 0
          %vm5845 = vcmp.gt.s32.totalorder %v4635, 0
          %vm5846 = vcmp.gt.s32.totalorder %v4639, 0
          %vm5847 = vcmp.gt.s32.totalorder %v4643, 0
          %vm5848 = vcmp.gt.s32.totalorder %v4647, 0
          %vm5849 = vcmp.gt.s32.totalorder %v4651, 0
          %vm5850 = vcmp.gt.s32.totalorder %v4655, 0
          %vm5851 = vcmp.gt.s32.totalorder %v4659, 0
          %vm5852 = vcmp.gt.s32.totalorder %v4663, 0
          %vm5853 = vcmp.gt.s32.totalorder %v4667, 0
          %vm5854 = vcmp.gt.s32.totalorder %v4671, 0
          %vm5855 = vcmp.gt.s32.totalorder %v4675, 0
          %vm5856 = vcmp.gt.s32.totalorder %v4679, 0
          %vm5857 = vcmp.gt.s32.totalorder %v4686, 0
          %vm5858 = vcmp.gt.s32.totalorder %v4690, 0
          %vm5859 = vcmp.gt.s32.totalorder %v4694, 0
          %vm5860 = vcmp.gt.s32.totalorder %v4698, 0
          %vm5861 = vcmp.gt.s32.totalorder %v4702, 0
          %vm5862 = vcmp.gt.s32.totalorder %v4706, 0
          %vm5863 = vcmp.gt.s32.totalorder %v4710, 0
          %vm5864 = vcmp.gt.s32.totalorder %v4714, 0
          %vm5865 = vcmp.gt.s32.totalorder %v4718, 0
          %vm5866 = vcmp.gt.s32.totalorder %v4722, 0
          %vm5867 = vcmp.gt.s32.totalorder %v4726, 0
          %vm5868 = vcmp.gt.s32.totalorder %v4730, 0
          %vm5869 = vcmp.gt.s32.totalorder %v4734, 0
          %vm5870 = vcmp.gt.s32.totalorder %v4738, 0
          %vm5871 = vcmp.gt.s32.totalorder %v4742, 0
          %vm5872 = vcmp.gt.s32.totalorder %v4746, 0
          %vm5873 = vcmp.gt.s32.totalorder %v4753, 0
          %vm5874 = vcmp.gt.s32.totalorder %v4757, 0
          %vm5875 = vcmp.gt.s32.totalorder %v4761, 0
          %vm5876 = vcmp.gt.s32.totalorder %v4765, 0
          %vm5877 = vcmp.gt.s32.totalorder %v4769, 0
          %vm5878 = vcmp.gt.s32.totalorder %v4773, 0
          %vm5879 = vcmp.gt.s32.totalorder %v4777, 0
          %vm5880 = vcmp.gt.s32.totalorder %v4781, 0
          %vm5881 = vcmp.gt.s32.totalorder %v4785, 0
          %vm5882 = vcmp.gt.s32.totalorder %v4789, 0
          %vm5883 = vcmp.gt.s32.totalorder %v4793, 0
          %vm5884 = vcmp.gt.s32.totalorder %v4797, 0
          %vm5885 = vcmp.gt.s32.totalorder %v4801, 0
          %vm5886 = vcmp.gt.s32.totalorder %v4805, 0
          %vm5887 = vcmp.gt.s32.totalorder %v4809, 0
          %vm5888 = vcmp.gt.s32.totalorder %v4813, 0
          %vm5889 = vcmp.gt.s32.totalorder %v4820, 0
          %vm5890 = vcmp.gt.s32.totalorder %v4824, 0
          %vm5891 = vcmp.gt.s32.totalorder %v4828, 0
          %vm5892 = vcmp.gt.s32.totalorder %v4832, 0
          %vm5893 = vcmp.gt.s32.totalorder %v4836, 0
          %vm5894 = vcmp.gt.s32.totalorder %v4840, 0
          %vm5895 = vcmp.gt.s32.totalorder %v4844, 0
          %vm5896 = vcmp.gt.s32.totalorder %v4848, 0
          %vm5897 = vcmp.gt.s32.totalorder %v4852, 0
          %vm5898 = vcmp.gt.s32.totalorder %v4856, 0
          %vm5899 = vcmp.gt.s32.totalorder %v4860, 0
          %vm5900 = vcmp.gt.s32.totalorder %v4864, 0
          %vm5901 = vcmp.gt.s32.totalorder %v4868, 0
          %vm5902 = vcmp.gt.s32.totalorder %v4872, 0
          %vm5903 = vcmp.gt.s32.totalorder %v4876, 0
          %vm5904 = vcmp.gt.s32.totalorder %v4880, 0
          %v5905 = vsel %vm4881, 1, 0
          %v5906 = vsel %vm4882, 1, 0
          %v5907 = vsel %vm4883, 1, 0
          %v5908 = vsel %vm4884, 1, 0
          %v5909 = vsel %vm4885, 1, 0
          %v5910 = vsel %vm4886, 1, 0
          %v5911 = vsel %vm4887, 1, 0
          %v5912 = vsel %vm4888, 1, 0
          %v5913 = vsel %vm4889, 1, 0
          %v5914 = vsel %vm4890, 1, 0
          %v5915 = vsel %vm4891, 1, 0
          %v5916 = vsel %vm4892, 1, 0
          %v5917 = vsel %vm4893, 1, 0
          %v5918 = vsel %vm4894, 1, 0
          %v5919 = vsel %vm4895, 1, 0
          %v5920 = vsel %vm4896, 1, 0
          %v5921 = vsel %vm4897, 1, 0
          %v5922 = vsel %vm4898, 1, 0
          %v5923 = vsel %vm4899, 1, 0
          %v5924 = vsel %vm4900, 1, 0
          %v5925 = vsel %vm4901, 1, 0
          %v5926 = vsel %vm4902, 1, 0
          %v5927 = vsel %vm4903, 1, 0
          %v5928 = vsel %vm4904, 1, 0
          %v5929 = vsel %vm4905, 1, 0
          %v5930 = vsel %vm4906, 1, 0
          %v5931 = vsel %vm4907, 1, 0
          %v5932 = vsel %vm4908, 1, 0
          %v5933 = vsel %vm4909, 1, 0
          %v5934 = vsel %vm4910, 1, 0
          %v5935 = vsel %vm4911, 1, 0
          %v5936 = vsel %vm4912, 1, 0
          %v5937 = vsel %vm4913, 1, 0
          %v5938 = vsel %vm4914, 1, 0
          %v5939 = vsel %vm4915, 1, 0
          %v5940 = vsel %vm4916, 1, 0
          %v5941 = vsel %vm4917, 1, 0
          %v5942 = vsel %vm4918, 1, 0
          %v5943 = vsel %vm4919, 1, 0
          %v5944 = vsel %vm4920, 1, 0
          %v5945 = vsel %vm4921, 1, 0
          %v5946 = vsel %vm4922, 1, 0
          %v5947 = vsel %vm4923, 1, 0
          %v5948 = vsel %vm4924, 1, 0
          %v5949 = vsel %vm4925, 1, 0
          %v5950 = vsel %vm4926, 1, 0
          %v5951 = vsel %vm4927, 1, 0
          %v5952 = vsel %vm4928, 1, 0
          %v5953 = vsel %vm4929, 1, 0
          %v5954 = vsel %vm4930, 1, 0
          %v5955 = vsel %vm4931, 1, 0
          %v5956 = vsel %vm4932, 1, 0
          %v5957 = vsel %vm4933, 1, 0
          %v5958 = vsel %vm4934, 1, 0
          %v5959 = vsel %vm4935, 1, 0
          %v5960 = vsel %vm4936, 1, 0
          %v5961 = vsel %vm4937, 1, 0
          %v5962 = vsel %vm4938, 1, 0
          %v5963 = vsel %vm4939, 1, 0
          %v5964 = vsel %vm4940, 1, 0
          %v5965 = vsel %vm4941, 1, 0
          %v5966 = vsel %vm4942, 1, 0
          %v5967 = vsel %vm4943, 1, 0
          %v5968 = vsel %vm4944, 1, 0
          %v5969 = vsel %vm4945, 1, 0
          %v5970 = vsel %vm4946, 1, 0
          %v5971 = vsel %vm4947, 1, 0
          %v5972 = vsel %vm4948, 1, 0
          %v5973 = vsel %vm4949, 1, 0
          %v5974 = vsel %vm4950, 1, 0
          %v5975 = vsel %vm4951, 1, 0
          %v5976 = vsel %vm4952, 1, 0
          %v5977 = vsel %vm4953, 1, 0
          %v5978 = vsel %vm4954, 1, 0
          %v5979 = vsel %vm4955, 1, 0
          %v5980 = vsel %vm4956, 1, 0
          %v5981 = vsel %vm4957, 1, 0
          %v5982 = vsel %vm4958, 1, 0
          %v5983 = vsel %vm4959, 1, 0
          %v5984 = vsel %vm4960, 1, 0
          %v5985 = vsel %vm4961, 1, 0
          %v5986 = vsel %vm4962, 1, 0
          %v5987 = vsel %vm4963, 1, 0
          %v5988 = vsel %vm4964, 1, 0
          %v5989 = vsel %vm4965, 1, 0
          %v5990 = vsel %vm4966, 1, 0
          %v5991 = vsel %vm4967, 1, 0
          %v5992 = vsel %vm4968, 1, 0
          %v5993 = vsel %vm4969, 1, 0
          %v5994 = vsel %vm4970, 1, 0
          %v5995 = vsel %vm4971, 1, 0
          %v5996 = vsel %vm4972, 1, 0
          %v5997 = vsel %vm4973, 1, 0
          %v5998 = vsel %vm4974, 1, 0
          %v5999 = vsel %vm4975, 1, 0
          %v6000 = vsel %vm4976, 1, 0
          %v6001 = vsel %vm4977, 1, 0
          %v6002 = vsel %vm4978, 1, 0
          %v6003 = vsel %vm4979, 1, 0
          %v6004 = vsel %vm4980, 1, 0
          %v6005 = vsel %vm4981, 1, 0
          %v6006 = vsel %vm4982, 1, 0
          %v6007 = vsel %vm4983, 1, 0
          %v6008 = vsel %vm4984, 1, 0
          %v6009 = vsel %vm4985, 1, 0
          %v6010 = vsel %vm4986, 1, 0
          %v6011 = vsel %vm4987, 1, 0
          %v6012 = vsel %vm4988, 1, 0
          %v6013 = vsel %vm4989, 1, 0
          %v6014 = vsel %vm4990, 1, 0
          %v6015 = vsel %vm4991, 1, 0
          %v6016 = vsel %vm4992, 1, 0
          %v6017 = vsel %vm4993, 1, 0
          %v6018 = vsel %vm4994, 1, 0
          %v6019 = vsel %vm4995, 1, 0
          %v6020 = vsel %vm4996, 1, 0
          %v6021 = vsel %vm4997, 1, 0
          %v6022 = vsel %vm4998, 1, 0
          %v6023 = vsel %vm4999, 1, 0
          %v6024 = vsel %vm5000, 1, 0
          %v6025 = vsel %vm5001, 1, 0
          %v6026 = vsel %vm5002, 1, 0
          %v6027 = vsel %vm5003, 1, 0
          %v6028 = vsel %vm5004, 1, 0
          %v6029 = vsel %vm5005, 1, 0
          %v6030 = vsel %vm5006, 1, 0
          %v6031 = vsel %vm5007, 1, 0
          %v6032 = vsel %vm5008, 1, 0
          %v6033 = vsel %vm5009, 1, 0
          %v6034 = vsel %vm5010, 1, 0
          %v6035 = vsel %vm5011, 1, 0
          %v6036 = vsel %vm5012, 1, 0
          %v6037 = vsel %vm5013, 1, 0
          %v6038 = vsel %vm5014, 1, 0
          %v6039 = vsel %vm5015, 1, 0
          %v6040 = vsel %vm5016, 1, 0
          %v6041 = vsel %vm5017, 1, 0
          %v6042 = vsel %vm5018, 1, 0
          %v6043 = vsel %vm5019, 1, 0
          %v6044 = vsel %vm5020, 1, 0
          %v6045 = vsel %vm5021, 1, 0
          %v6046 = vsel %vm5022, 1, 0
          %v6047 = vsel %vm5023, 1, 0
          %v6048 = vsel %vm5024, 1, 0
          %v6049 = vsel %vm5025, 1, 0
          %v6050 = vsel %vm5026, 1, 0
          %v6051 = vsel %vm5027, 1, 0
          %v6052 = vsel %vm5028, 1, 0
          %v6053 = vsel %vm5029, 1, 0
          %v6054 = vsel %vm5030, 1, 0
          %v6055 = vsel %vm5031, 1, 0
          %v6056 = vsel %vm5032, 1, 0
          %v6057 = vsel %vm5033, 1, 0
          %v6058 = vsel %vm5034, 1, 0
          %v6059 = vsel %vm5035, 1, 0
          %v6060 = vsel %vm5036, 1, 0
          %v6061 = vsel %vm5037, 1, 0
          %v6062 = vsel %vm5038, 1, 0
          %v6063 = vsel %vm5039, 1, 0
          %v6064 = vsel %vm5040, 1, 0
          %v6065 = vsel %vm5041, 1, 0
          %v6066 = vsel %vm5042, 1, 0
          %v6067 = vsel %vm5043, 1, 0
          %v6068 = vsel %vm5044, 1, 0
          %v6069 = vsel %vm5045, 1, 0
          %v6070 = vsel %vm5046, 1, 0
          %v6071 = vsel %vm5047, 1, 0
          %v6072 = vsel %vm5048, 1, 0
          %v6073 = vsel %vm5049, 1, 0
          %v6074 = vsel %vm5050, 1, 0
          %v6075 = vsel %vm5051, 1, 0
          %v6076 = vsel %vm5052, 1, 0
          %v6077 = vsel %vm5053, 1, 0
          %v6078 = vsel %vm5054, 1, 0
          %v6079 = vsel %vm5055, 1, 0
          %v6080 = vsel %vm5056, 1, 0
          %v6081 = vsel %vm5057, 1, 0
          %v6082 = vsel %vm5058, 1, 0
          %v6083 = vsel %vm5059, 1, 0
          %v6084 = vsel %vm5060, 1, 0
          %v6085 = vsel %vm5061, 1, 0
          %v6086 = vsel %vm5062, 1, 0
          %v6087 = vsel %vm5063, 1, 0
          %v6088 = vsel %vm5064, 1, 0
          %v6089 = vsel %vm5065, 1, 0
          %v6090 = vsel %vm5066, 1, 0
          %v6091 = vsel %vm5067, 1, 0
          %v6092 = vsel %vm5068, 1, 0
          %v6093 = vsel %vm5069, 1, 0
          %v6094 = vsel %vm5070, 1, 0
          %v6095 = vsel %vm5071, 1, 0
          %v6096 = vsel %vm5072, 1, 0
          %v6097 = vsel %vm5073, 1, 0
          %v6098 = vsel %vm5074, 1, 0
          %v6099 = vsel %vm5075, 1, 0
          %v6100 = vsel %vm5076, 1, 0
          %v6101 = vsel %vm5077, 1, 0
          %v6102 = vsel %vm5078, 1, 0
          %v6103 = vsel %vm5079, 1, 0
          %v6104 = vsel %vm5080, 1, 0
          %v6105 = vsel %vm5081, 1, 0
          %v6106 = vsel %vm5082, 1, 0
          %v6107 = vsel %vm5083, 1, 0
          %v6108 = vsel %vm5084, 1, 0
          %v6109 = vsel %vm5085, 1, 0
          %v6110 = vsel %vm5086, 1, 0
          %v6111 = vsel %vm5087, 1, 0
          %v6112 = vsel %vm5088, 1, 0
          %v6113 = vsel %vm5089, 1, 0
          %v6114 = vsel %vm5090, 1, 0
          %v6115 = vsel %vm5091, 1, 0
          %v6116 = vsel %vm5092, 1, 0
          %v6117 = vsel %vm5093, 1, 0
          %v6118 = vsel %vm5094, 1, 0
          %v6119 = vsel %vm5095, 1, 0
          %v6120 = vsel %vm5096, 1, 0
          %v6121 = vsel %vm5097, 1, 0
          %v6122 = vsel %vm5098, 1, 0
          %v6123 = vsel %vm5099, 1, 0
          %v6124 = vsel %vm5100, 1, 0
          %v6125 = vsel %vm5101, 1, 0
          %v6126 = vsel %vm5102, 1, 0
          %v6127 = vsel %vm5103, 1, 0
          %v6128 = vsel %vm5104, 1, 0
          %v6129 = vsel %vm5105, 1, 0
          %v6130 = vsel %vm5106, 1, 0
          %v6131 = vsel %vm5107, 1, 0
          %v6132 = vsel %vm5108, 1, 0
          %v6133 = vsel %vm5109, 1, 0
          %v6134 = vsel %vm5110, 1, 0
          %v6135 = vsel %vm5111, 1, 0
          %v6136 = vsel %vm5112, 1, 0
          %v6137 = vsel %vm5113, 1, 0
          %v6138 = vsel %vm5114, 1, 0
          %v6139 = vsel %vm5115, 1, 0
          %v6140 = vsel %vm5116, 1, 0
          %v6141 = vsel %vm5117, 1, 0
          %v6142 = vsel %vm5118, 1, 0
          %v6143 = vsel %vm5119, 1, 0
          %v6144 = vsel %vm5120, 1, 0
          %v6145 = vsel %vm5121, 1, 0
          %v6146 = vsel %vm5122, 1, 0
          %v6147 = vsel %vm5123, 1, 0
          %v6148 = vsel %vm5124, 1, 0
          %v6149 = vsel %vm5125, 1, 0
          %v6150 = vsel %vm5126, 1, 0
          %v6151 = vsel %vm5127, 1, 0
          %v6152 = vsel %vm5128, 1, 0
          %v6153 = vsel %vm5129, 1, 0
          %v6154 = vsel %vm5130, 1, 0
          %v6155 = vsel %vm5131, 1, 0
          %v6156 = vsel %vm5132, 1, 0
          %v6157 = vsel %vm5133, 1, 0
          %v6158 = vsel %vm5134, 1, 0
          %v6159 = vsel %vm5135, 1, 0
          %v6160 = vsel %vm5136, 1, 0
          %v6161 = vsel %vm5137, 1, 0
          %v6162 = vsel %vm5138, 1, 0
          %v6163 = vsel %vm5139, 1, 0
          %v6164 = vsel %vm5140, 1, 0
          %v6165 = vsel %vm5141, 1, 0
          %v6166 = vsel %vm5142, 1, 0
          %v6167 = vsel %vm5143, 1, 0
          %v6168 = vsel %vm5144, 1, 0
          %v6169 = vsel %vm5145, 1, 0
          %v6170 = vsel %vm5146, 1, 0
          %v6171 = vsel %vm5147, 1, 0
          %v6172 = vsel %vm5148, 1, 0
          %v6173 = vsel %vm5149, 1, 0
          %v6174 = vsel %vm5150, 1, 0
          %v6175 = vsel %vm5151, 1, 0
          %v6176 = vsel %vm5152, 1, 0
          %v6177 = vsel %vm5153, 1, 0
          %v6178 = vsel %vm5154, 1, 0
          %v6179 = vsel %vm5155, 1, 0
          %v6180 = vsel %vm5156, 1, 0
          %v6181 = vsel %vm5157, 1, 0
          %v6182 = vsel %vm5158, 1, 0
          %v6183 = vsel %vm5159, 1, 0
          %v6184 = vsel %vm5160, 1, 0
          %v6185 = vsel %vm5161, 1, 0
          %v6186 = vsel %vm5162, 1, 0
          %v6187 = vsel %vm5163, 1, 0
          %v6188 = vsel %vm5164, 1, 0
          %v6189 = vsel %vm5165, 1, 0
          %v6190 = vsel %vm5166, 1, 0
          %v6191 = vsel %vm5167, 1, 0
          %v6192 = vsel %vm5168, 1, 0
          %v6193 = vsel %vm5169, 1, 0
          %v6194 = vsel %vm5170, 1, 0
          %v6195 = vsel %vm5171, 1, 0
          %v6196 = vsel %vm5172, 1, 0
          %v6197 = vsel %vm5173, 1, 0
          %v6198 = vsel %vm5174, 1, 0
          %v6199 = vsel %vm5175, 1, 0
          %v6200 = vsel %vm5176, 1, 0
          %v6201 = vsel %vm5177, 1, 0
          %v6202 = vsel %vm5178, 1, 0
          %v6203 = vsel %vm5179, 1, 0
          %v6204 = vsel %vm5180, 1, 0
          %v6205 = vsel %vm5181, 1, 0
          %v6206 = vsel %vm5182, 1, 0
          %v6207 = vsel %vm5183, 1, 0
          %v6208 = vsel %vm5184, 1, 0
          %v6209 = vsel %vm5185, 1, 0
          %v6210 = vsel %vm5186, 1, 0
          %v6211 = vsel %vm5187, 1, 0
          %v6212 = vsel %vm5188, 1, 0
          %v6213 = vsel %vm5189, 1, 0
          %v6214 = vsel %vm5190, 1, 0
          %v6215 = vsel %vm5191, 1, 0
          %v6216 = vsel %vm5192, 1, 0
          %v6217 = vsel %vm5193, 1, 0
          %v6218 = vsel %vm5194, 1, 0
          %v6219 = vsel %vm5195, 1, 0
          %v6220 = vsel %vm5196, 1, 0
          %v6221 = vsel %vm5197, 1, 0
          %v6222 = vsel %vm5198, 1, 0
          %v6223 = vsel %vm5199, 1, 0
          %v6224 = vsel %vm5200, 1, 0
          %v6225 = vsel %vm5201, 1, 0
          %v6226 = vsel %vm5202, 1, 0
          %v6227 = vsel %vm5203, 1, 0
          %v6228 = vsel %vm5204, 1, 0
          %v6229 = vsel %vm5205, 1, 0
          %v6230 = vsel %vm5206, 1, 0
          %v6231 = vsel %vm5207, 1, 0
          %v6232 = vsel %vm5208, 1, 0
          %v6233 = vsel %vm5209, 1, 0
          %v6234 = vsel %vm5210, 1, 0
          %v6235 = vsel %vm5211, 1, 0
          %v6236 = vsel %vm5212, 1, 0
          %v6237 = vsel %vm5213, 1, 0
          %v6238 = vsel %vm5214, 1, 0
          %v6239 = vsel %vm5215, 1, 0
          %v6240 = vsel %vm5216, 1, 0
          %v6241 = vsel %vm5217, 1, 0
          %v6242 = vsel %vm5218, 1, 0
          %v6243 = vsel %vm5219, 1, 0
          %v6244 = vsel %vm5220, 1, 0
          %v6245 = vsel %vm5221, 1, 0
          %v6246 = vsel %vm5222, 1, 0
          %v6247 = vsel %vm5223, 1, 0
          %v6248 = vsel %vm5224, 1, 0
          %v6249 = vsel %vm5225, 1, 0
          %v6250 = vsel %vm5226, 1, 0
          %v6251 = vsel %vm5227, 1, 0
          %v6252 = vsel %vm5228, 1, 0
          %v6253 = vsel %vm5229, 1, 0
          %v6254 = vsel %vm5230, 1, 0
          %v6255 = vsel %vm5231, 1, 0
          %v6256 = vsel %vm5232, 1, 0
          %v6257 = vsel %vm5233, 1, 0
          %v6258 = vsel %vm5234, 1, 0
          %v6259 = vsel %vm5235, 1, 0
          %v6260 = vsel %vm5236, 1, 0
          %v6261 = vsel %vm5237, 1, 0
          %v6262 = vsel %vm5238, 1, 0
          %v6263 = vsel %vm5239, 1, 0
          %v6264 = vsel %vm5240, 1, 0
          %v6265 = vsel %vm5241, 1, 0
          %v6266 = vsel %vm5242, 1, 0
          %v6267 = vsel %vm5243, 1, 0
          %v6268 = vsel %vm5244, 1, 0
          %v6269 = vsel %vm5245, 1, 0
          %v6270 = vsel %vm5246, 1, 0
          %v6271 = vsel %vm5247, 1, 0
          %v6272 = vsel %vm5248, 1, 0
          %v6273 = vsel %vm5249, 1, 0
          %v6274 = vsel %vm5250, 1, 0
          %v6275 = vsel %vm5251, 1, 0
          %v6276 = vsel %vm5252, 1, 0
          %v6277 = vsel %vm5253, 1, 0
          %v6278 = vsel %vm5254, 1, 0
          %v6279 = vsel %vm5255, 1, 0
          %v6280 = vsel %vm5256, 1, 0
          %v6281 = vsel %vm5257, 1, 0
          %v6282 = vsel %vm5258, 1, 0
          %v6283 = vsel %vm5259, 1, 0
          %v6284 = vsel %vm5260, 1, 0
          %v6285 = vsel %vm5261, 1, 0
          %v6286 = vsel %vm5262, 1, 0
          %v6287 = vsel %vm5263, 1, 0
          %v6288 = vsel %vm5264, 1, 0
          %v6289 = vsel %vm5265, 1, 0
          %v6290 = vsel %vm5266, 1, 0
          %v6291 = vsel %vm5267, 1, 0
          %v6292 = vsel %vm5268, 1, 0
          %v6293 = vsel %vm5269, 1, 0
          %v6294 = vsel %vm5270, 1, 0
          %v6295 = vsel %vm5271, 1, 0
          %v6296 = vsel %vm5272, 1, 0
          %v6297 = vsel %vm5273, 1, 0
          %v6298 = vsel %vm5274, 1, 0
          %v6299 = vsel %vm5275, 1, 0
          %v6300 = vsel %vm5276, 1, 0
          %v6301 = vsel %vm5277, 1, 0
          %v6302 = vsel %vm5278, 1, 0
          %v6303 = vsel %vm5279, 1, 0
          %v6304 = vsel %vm5280, 1, 0
          %v6305 = vsel %vm5281, 1, 0
          %v6306 = vsel %vm5282, 1, 0
          %v6307 = vsel %vm5283, 1, 0
          %v6308 = vsel %vm5284, 1, 0
          %v6309 = vsel %vm5285, 1, 0
          %v6310 = vsel %vm5286, 1, 0
          %v6311 = vsel %vm5287, 1, 0
          %v6312 = vsel %vm5288, 1, 0
          %v6313 = vsel %vm5289, 1, 0
          %v6314 = vsel %vm5290, 1, 0
          %v6315 = vsel %vm5291, 1, 0
          %v6316 = vsel %vm5292, 1, 0
          %v6317 = vsel %vm5293, 1, 0
          %v6318 = vsel %vm5294, 1, 0
          %v6319 = vsel %vm5295, 1, 0
          %v6320 = vsel %vm5296, 1, 0
          %v6321 = vsel %vm5297, 1, 0
          %v6322 = vsel %vm5298, 1, 0
          %v6323 = vsel %vm5299, 1, 0
          %v6324 = vsel %vm5300, 1, 0
          %v6325 = vsel %vm5301, 1, 0
          %v6326 = vsel %vm5302, 1, 0
          %v6327 = vsel %vm5303, 1, 0
          %v6328 = vsel %vm5304, 1, 0
          %v6329 = vsel %vm5305, 1, 0
          %v6330 = vsel %vm5306, 1, 0
          %v6331 = vsel %vm5307, 1, 0
          %v6332 = vsel %vm5308, 1, 0
          %v6333 = vsel %vm5309, 1, 0
          %v6334 = vsel %vm5310, 1, 0
          %v6335 = vsel %vm5311, 1, 0
          %v6336 = vsel %vm5312, 1, 0
          %v6337 = vsel %vm5313, 1, 0
          %v6338 = vsel %vm5314, 1, 0
          %v6339 = vsel %vm5315, 1, 0
          %v6340 = vsel %vm5316, 1, 0
          %v6341 = vsel %vm5317, 1, 0
          %v6342 = vsel %vm5318, 1, 0
          %v6343 = vsel %vm5319, 1, 0
          %v6344 = vsel %vm5320, 1, 0
          %v6345 = vsel %vm5321, 1, 0
          %v6346 = vsel %vm5322, 1, 0
          %v6347 = vsel %vm5323, 1, 0
          %v6348 = vsel %vm5324, 1, 0
          %v6349 = vsel %vm5325, 1, 0
          %v6350 = vsel %vm5326, 1, 0
          %v6351 = vsel %vm5327, 1, 0
          %v6352 = vsel %vm5328, 1, 0
          %v6353 = vsel %vm5329, 1, 0
          %v6354 = vsel %vm5330, 1, 0
          %v6355 = vsel %vm5331, 1, 0
          %v6356 = vsel %vm5332, 1, 0
          %v6357 = vsel %vm5333, 1, 0
          %v6358 = vsel %vm5334, 1, 0
          %v6359 = vsel %vm5335, 1, 0
          %v6360 = vsel %vm5336, 1, 0
          %v6361 = vsel %vm5337, 1, 0
          %v6362 = vsel %vm5338, 1, 0
          %v6363 = vsel %vm5339, 1, 0
          %v6364 = vsel %vm5340, 1, 0
          %v6365 = vsel %vm5341, 1, 0
          %v6366 = vsel %vm5342, 1, 0
          %v6367 = vsel %vm5343, 1, 0
          %v6368 = vsel %vm5344, 1, 0
          %v6369 = vsel %vm5345, 1, 0
          %v6370 = vsel %vm5346, 1, 0
          %v6371 = vsel %vm5347, 1, 0
          %v6372 = vsel %vm5348, 1, 0
          %v6373 = vsel %vm5349, 1, 0
          %v6374 = vsel %vm5350, 1, 0
          %v6375 = vsel %vm5351, 1, 0
          %v6376 = vsel %vm5352, 1, 0
          %v6377 = vsel %vm5353, 1, 0
          %v6378 = vsel %vm5354, 1, 0
          %v6379 = vsel %vm5355, 1, 0
          %v6380 = vsel %vm5356, 1, 0
          %v6381 = vsel %vm5357, 1, 0
          %v6382 = vsel %vm5358, 1, 0
          %v6383 = vsel %vm5359, 1, 0
          %v6384 = vsel %vm5360, 1, 0
          %v6385 = vsel %vm5361, 1, 0
          %v6386 = vsel %vm5362, 1, 0
          %v6387 = vsel %vm5363, 1, 0
          %v6388 = vsel %vm5364, 1, 0
          %v6389 = vsel %vm5365, 1, 0
          %v6390 = vsel %vm5366, 1, 0
          %v6391 = vsel %vm5367, 1, 0
          %v6392 = vsel %vm5368, 1, 0
          %v6393 = vsel %vm5369, 1, 0
          %v6394 = vsel %vm5370, 1, 0
          %v6395 = vsel %vm5371, 1, 0
          %v6396 = vsel %vm5372, 1, 0
          %v6397 = vsel %vm5373, 1, 0
          %v6398 = vsel %vm5374, 1, 0
          %v6399 = vsel %vm5375, 1, 0
          %v6400 = vsel %vm5376, 1, 0
          %v6401 = vsel %vm5377, 1, 0
          %v6402 = vsel %vm5378, 1, 0
          %v6403 = vsel %vm5379, 1, 0
          %v6404 = vsel %vm5380, 1, 0
          %v6405 = vsel %vm5381, 1, 0
          %v6406 = vsel %vm5382, 1, 0
          %v6407 = vsel %vm5383, 1, 0
          %v6408 = vsel %vm5384, 1, 0
          %v6409 = vsel %vm5385, 1, 0
          %v6410 = vsel %vm5386, 1, 0
          %v6411 = vsel %vm5387, 1, 0
          %v6412 = vsel %vm5388, 1, 0
          %v6413 = vsel %vm5389, 1, 0
          %v6414 = vsel %vm5390, 1, 0
          %v6415 = vsel %vm5391, 1, 0
          %v6416 = vsel %vm5392, 1, 0
          %v6417 = vsel %vm5393, 1, 0
          %v6418 = vsel %vm5394, 1, 0
          %v6419 = vsel %vm5395, 1, 0
          %v6420 = vsel %vm5396, 1, 0
          %v6421 = vsel %vm5397, 1, 0
          %v6422 = vsel %vm5398, 1, 0
          %v6423 = vsel %vm5399, 1, 0
          %v6424 = vsel %vm5400, 1, 0
          %v6425 = vsel %vm5401, 1, 0
          %v6426 = vsel %vm5402, 1, 0
          %v6427 = vsel %vm5403, 1, 0
          %v6428 = vsel %vm5404, 1, 0
          %v6429 = vsel %vm5405, 1, 0
          %v6430 = vsel %vm5406, 1, 0
          %v6431 = vsel %vm5407, 1, 0
          %v6432 = vsel %vm5408, 1, 0
          %v6433 = vsel %vm5409, 1, 0
          %v6434 = vsel %vm5410, 1, 0
          %v6435 = vsel %vm5411, 1, 0
          %v6436 = vsel %vm5412, 1, 0
          %v6437 = vsel %vm5413, 1, 0
          %v6438 = vsel %vm5414, 1, 0
          %v6439 = vsel %vm5415, 1, 0
          %v6440 = vsel %vm5416, 1, 0
          %v6441 = vsel %vm5417, 1, 0
          %v6442 = vsel %vm5418, 1, 0
          %v6443 = vsel %vm5419, 1, 0
          %v6444 = vsel %vm5420, 1, 0
          %v6445 = vsel %vm5421, 1, 0
          %v6446 = vsel %vm5422, 1, 0
          %v6447 = vsel %vm5423, 1, 0
          %v6448 = vsel %vm5424, 1, 0
          %v6449 = vsel %vm5425, 1, 0
          %v6450 = vsel %vm5426, 1, 0
          %v6451 = vsel %vm5427, 1, 0
          %v6452 = vsel %vm5428, 1, 0
          %v6453 = vsel %vm5429, 1, 0
          %v6454 = vsel %vm5430, 1, 0
          %v6455 = vsel %vm5431, 1, 0
          %v6456 = vsel %vm5432, 1, 0
          %v6457 = vsel %vm5433, 1, 0
          %v6458 = vsel %vm5434, 1, 0
          %v6459 = vsel %vm5435, 1, 0
          %v6460 = vsel %vm5436, 1, 0
          %v6461 = vsel %vm5437, 1, 0
          %v6462 = vsel %vm5438, 1, 0
          %v6463 = vsel %vm5439, 1, 0
          %v6464 = vsel %vm5440, 1, 0
          %v6465 = vsel %vm5441, 1, 0
          %v6466 = vsel %vm5442, 1, 0
          %v6467 = vsel %vm5443, 1, 0
          %v6468 = vsel %vm5444, 1, 0
          %v6469 = vsel %vm5445, 1, 0
          %v6470 = vsel %vm5446, 1, 0
          %v6471 = vsel %vm5447, 1, 0
          %v6472 = vsel %vm5448, 1, 0
          %v6473 = vsel %vm5449, 1, 0
          %v6474 = vsel %vm5450, 1, 0
          %v6475 = vsel %vm5451, 1, 0
          %v6476 = vsel %vm5452, 1, 0
          %v6477 = vsel %vm5453, 1, 0
          %v6478 = vsel %vm5454, 1, 0
          %v6479 = vsel %vm5455, 1, 0
          %v6480 = vsel %vm5456, 1, 0
          %v6481 = vsel %vm5457, 1, 0
          %v6482 = vsel %vm5458, 1, 0
          %v6483 = vsel %vm5459, 1, 0
          %v6484 = vsel %vm5460, 1, 0
          %v6485 = vsel %vm5461, 1, 0
          %v6486 = vsel %vm5462, 1, 0
          %v6487 = vsel %vm5463, 1, 0
          %v6488 = vsel %vm5464, 1, 0
          %v6489 = vsel %vm5465, 1, 0
          %v6490 = vsel %vm5466, 1, 0
          %v6491 = vsel %vm5467, 1, 0
          %v6492 = vsel %vm5468, 1, 0
          %v6493 = vsel %vm5469, 1, 0
          %v6494 = vsel %vm5470, 1, 0
          %v6495 = vsel %vm5471, 1, 0
          %v6496 = vsel %vm5472, 1, 0
          %v6497 = vsel %vm5473, 1, 0
          %v6498 = vsel %vm5474, 1, 0
          %v6499 = vsel %vm5475, 1, 0
          %v6500 = vsel %vm5476, 1, 0
          %v6501 = vsel %vm5477, 1, 0
          %v6502 = vsel %vm5478, 1, 0
          %v6503 = vsel %vm5479, 1, 0
          %v6504 = vsel %vm5480, 1, 0
          %v6505 = vsel %vm5481, 1, 0
          %v6506 = vsel %vm5482, 1, 0
          %v6507 = vsel %vm5483, 1, 0
          %v6508 = vsel %vm5484, 1, 0
          %v6509 = vsel %vm5485, 1, 0
          %v6510 = vsel %vm5486, 1, 0
          %v6511 = vsel %vm5487, 1, 0
          %v6512 = vsel %vm5488, 1, 0
          %v6513 = vsel %vm5489, 1, 0
          %v6514 = vsel %vm5490, 1, 0
          %v6515 = vsel %vm5491, 1, 0
          %v6516 = vsel %vm5492, 1, 0
          %v6517 = vsel %vm5493, 1, 0
          %v6518 = vsel %vm5494, 1, 0
          %v6519 = vsel %vm5495, 1, 0
          %v6520 = vsel %vm5496, 1, 0
          %v6521 = vsel %vm5497, 1, 0
          %v6522 = vsel %vm5498, 1, 0
          %v6523 = vsel %vm5499, 1, 0
          %v6524 = vsel %vm5500, 1, 0
          %v6525 = vsel %vm5501, 1, 0
          %v6526 = vsel %vm5502, 1, 0
          %v6527 = vsel %vm5503, 1, 0
          %v6528 = vsel %vm5504, 1, 0
          %v6529 = vsel %vm5505, 1, 0
          %v6530 = vsel %vm5506, 1, 0
          %v6531 = vsel %vm5507, 1, 0
          %v6532 = vsel %vm5508, 1, 0
          %v6533 = vsel %vm5509, 1, 0
          %v6534 = vsel %vm5510, 1, 0
          %v6535 = vsel %vm5511, 1, 0
          %v6536 = vsel %vm5512, 1, 0
          %v6537 = vsel %vm5513, 1, 0
          %v6538 = vsel %vm5514, 1, 0
          %v6539 = vsel %vm5515, 1, 0
          %v6540 = vsel %vm5516, 1, 0
          %v6541 = vsel %vm5517, 1, 0
          %v6542 = vsel %vm5518, 1, 0
          %v6543 = vsel %vm5519, 1, 0
          %v6544 = vsel %vm5520, 1, 0
          %v6545 = vsel %vm5521, 1, 0
          %v6546 = vsel %vm5522, 1, 0
          %v6547 = vsel %vm5523, 1, 0
          %v6548 = vsel %vm5524, 1, 0
          %v6549 = vsel %vm5525, 1, 0
          %v6550 = vsel %vm5526, 1, 0
          %v6551 = vsel %vm5527, 1, 0
          %v6552 = vsel %vm5528, 1, 0
          %v6553 = vsel %vm5529, 1, 0
          %v6554 = vsel %vm5530, 1, 0
          %v6555 = vsel %vm5531, 1, 0
          %v6556 = vsel %vm5532, 1, 0
          %v6557 = vsel %vm5533, 1, 0
          %v6558 = vsel %vm5534, 1, 0
          %v6559 = vsel %vm5535, 1, 0
          %v6560 = vsel %vm5536, 1, 0
          %v6561 = vsel %vm5537, 1, 0
          %v6562 = vsel %vm5538, 1, 0
          %v6563 = vsel %vm5539, 1, 0
          %v6564 = vsel %vm5540, 1, 0
          %v6565 = vsel %vm5541, 1, 0
          %v6566 = vsel %vm5542, 1, 0
          %v6567 = vsel %vm5543, 1, 0
          %v6568 = vsel %vm5544, 1, 0
          %v6569 = vsel %vm5545, 1, 0
          %v6570 = vsel %vm5546, 1, 0
          %v6571 = vsel %vm5547, 1, 0
          %v6572 = vsel %vm5548, 1, 0
          %v6573 = vsel %vm5549, 1, 0
          %v6574 = vsel %vm5550, 1, 0
          %v6575 = vsel %vm5551, 1, 0
          %v6576 = vsel %vm5552, 1, 0
          %v6577 = vsel %vm5553, 1, 0
          %v6578 = vsel %vm5554, 1, 0
          %v6579 = vsel %vm5555, 1, 0
          %v6580 = vsel %vm5556, 1, 0
          %v6581 = vsel %vm5557, 1, 0
          %v6582 = vsel %vm5558, 1, 0
          %v6583 = vsel %vm5559, 1, 0
          %v6584 = vsel %vm5560, 1, 0
          %v6585 = vsel %vm5561, 1, 0
          %v6586 = vsel %vm5562, 1, 0
          %v6587 = vsel %vm5563, 1, 0
          %v6588 = vsel %vm5564, 1, 0
          %v6589 = vsel %vm5565, 1, 0
          %v6590 = vsel %vm5566, 1, 0
          %v6591 = vsel %vm5567, 1, 0
          %v6592 = vsel %vm5568, 1, 0
          %v6593 = vsel %vm5569, 1, 0
          %v6594 = vsel %vm5570, 1, 0
          %v6595 = vsel %vm5571, 1, 0
          %v6596 = vsel %vm5572, 1, 0
          %v6597 = vsel %vm5573, 1, 0
          %v6598 = vsel %vm5574, 1, 0
          %v6599 = vsel %vm5575, 1, 0
          %v6600 = vsel %vm5576, 1, 0
          %v6601 = vsel %vm5577, 1, 0
          %v6602 = vsel %vm5578, 1, 0
          %v6603 = vsel %vm5579, 1, 0
          %v6604 = vsel %vm5580, 1, 0
          %v6605 = vsel %vm5581, 1, 0
          %v6606 = vsel %vm5582, 1, 0
          %v6607 = vsel %vm5583, 1, 0
          %v6608 = vsel %vm5584, 1, 0
          %v6609 = vsel %vm5585, 1, 0
          %v6610 = vsel %vm5586, 1, 0
          %v6611 = vsel %vm5587, 1, 0
          %v6612 = vsel %vm5588, 1, 0
          %v6613 = vsel %vm5589, 1, 0
          %v6614 = vsel %vm5590, 1, 0
          %v6615 = vsel %vm5591, 1, 0
          %v6616 = vsel %vm5592, 1, 0
          %v6617 = vsel %vm5593, 1, 0
          %v6618 = vsel %vm5594, 1, 0
          %v6619 = vsel %vm5595, 1, 0
          %v6620 = vsel %vm5596, 1, 0
          %v6621 = vsel %vm5597, 1, 0
          %v6622 = vsel %vm5598, 1, 0
          %v6623 = vsel %vm5599, 1, 0
          %v6624 = vsel %vm5600, 1, 0
          %v6625 = vsel %vm5601, 1, 0
          %v6626 = vsel %vm5602, 1, 0
          %v6627 = vsel %vm5603, 1, 0
          %v6628 = vsel %vm5604, 1, 0
          %v6629 = vsel %vm5605, 1, 0
          %v6630 = vsel %vm5606, 1, 0
          %v6631 = vsel %vm5607, 1, 0
          %v6632 = vsel %vm5608, 1, 0
          %v6633 = vsel %vm5609, 1, 0
          %v6634 = vsel %vm5610, 1, 0
          %v6635 = vsel %vm5611, 1, 0
          %v6636 = vsel %vm5612, 1, 0
          %v6637 = vsel %vm5613, 1, 0
          %v6638 = vsel %vm5614, 1, 0
          %v6639 = vsel %vm5615, 1, 0
          %v6640 = vsel %vm5616, 1, 0
          %v6641 = vsel %vm5617, 1, 0
          %v6642 = vsel %vm5618, 1, 0
          %v6643 = vsel %vm5619, 1, 0
          %v6644 = vsel %vm5620, 1, 0
          %v6645 = vsel %vm5621, 1, 0
          %v6646 = vsel %vm5622, 1, 0
          %v6647 = vsel %vm5623, 1, 0
          %v6648 = vsel %vm5624, 1, 0
          %v6649 = vsel %vm5625, 1, 0
          %v6650 = vsel %vm5626, 1, 0
          %v6651 = vsel %vm5627, 1, 0
          %v6652 = vsel %vm5628, 1, 0
          %v6653 = vsel %vm5629, 1, 0
          %v6654 = vsel %vm5630, 1, 0
          %v6655 = vsel %vm5631, 1, 0
          %v6656 = vsel %vm5632, 1, 0
          %v6657 = vsel %vm5633, 1, 0
          %v6658 = vsel %vm5634, 1, 0
          %v6659 = vsel %vm5635, 1, 0
          %v6660 = vsel %vm5636, 1, 0
          %v6661 = vsel %vm5637, 1, 0
          %v6662 = vsel %vm5638, 1, 0
          %v6663 = vsel %vm5639, 1, 0
          %v6664 = vsel %vm5640, 1, 0
          %v6665 = vsel %vm5641, 1, 0
          %v6666 = vsel %vm5642, 1, 0
          %v6667 = vsel %vm5643, 1, 0
          %v6668 = vsel %vm5644, 1, 0
          %v6669 = vsel %vm5645, 1, 0
          %v6670 = vsel %vm5646, 1, 0
          %v6671 = vsel %vm5647, 1, 0
          %v6672 = vsel %vm5648, 1, 0
          %v6673 = vsel %vm5649, 1, 0
          %v6674 = vsel %vm5650, 1, 0
          %v6675 = vsel %vm5651, 1, 0
          %v6676 = vsel %vm5652, 1, 0
          %v6677 = vsel %vm5653, 1, 0
          %v6678 = vsel %vm5654, 1, 0
          %v6679 = vsel %vm5655, 1, 0
          %v6680 = vsel %vm5656, 1, 0
          %v6681 = vsel %vm5657, 1, 0
          %v6682 = vsel %vm5658, 1, 0
          %v6683 = vsel %vm5659, 1, 0
          %v6684 = vsel %vm5660, 1, 0
          %v6685 = vsel %vm5661, 1, 0
          %v6686 = vsel %vm5662, 1, 0
          %v6687 = vsel %vm5663, 1, 0
          %v6688 = vsel %vm5664, 1, 0
          %v6689 = vsel %vm5665, 1, 0
          %v6690 = vsel %vm5666, 1, 0
          %v6691 = vsel %vm5667, 1, 0
          %v6692 = vsel %vm5668, 1, 0
          %v6693 = vsel %vm5669, 1, 0
          %v6694 = vsel %vm5670, 1, 0
          %v6695 = vsel %vm5671, 1, 0
          %v6696 = vsel %vm5672, 1, 0
          %v6697 = vsel %vm5673, 1, 0
          %v6698 = vsel %vm5674, 1, 0
          %v6699 = vsel %vm5675, 1, 0
          %v6700 = vsel %vm5676, 1, 0
          %v6701 = vsel %vm5677, 1, 0
          %v6702 = vsel %vm5678, 1, 0
          %v6703 = vsel %vm5679, 1, 0
          %v6704 = vsel %vm5680, 1, 0
          %v6705 = vsel %vm5681, 1, 0
          %v6706 = vsel %vm5682, 1, 0
          %v6707 = vsel %vm5683, 1, 0
          %v6708 = vsel %vm5684, 1, 0
          %v6709 = vsel %vm5685, 1, 0
          %v6710 = vsel %vm5686, 1, 0
          %v6711 = vsel %vm5687, 1, 0
          %v6712 = vsel %vm5688, 1, 0
          %v6713 = vsel %vm5689, 1, 0
          %v6714 = vsel %vm5690, 1, 0
          %v6715 = vsel %vm5691, 1, 0
          %v6716 = vsel %vm5692, 1, 0
          %v6717 = vsel %vm5693, 1, 0
          %v6718 = vsel %vm5694, 1, 0
          %v6719 = vsel %vm5695, 1, 0
          %v6720 = vsel %vm5696, 1, 0
          %v6721 = vsel %vm5697, 1, 0
          %v6722 = vsel %vm5698, 1, 0
          %v6723 = vsel %vm5699, 1, 0
          %v6724 = vsel %vm5700, 1, 0
          %v6725 = vsel %vm5701, 1, 0
          %v6726 = vsel %vm5702, 1, 0
          %v6727 = vsel %vm5703, 1, 0
          %v6728 = vsel %vm5704, 1, 0
          %v6729 = vsel %vm5705, 1, 0
          %v6730 = vsel %vm5706, 1, 0
          %v6731 = vsel %vm5707, 1, 0
          %v6732 = vsel %vm5708, 1, 0
          %v6733 = vsel %vm5709, 1, 0
          %v6734 = vsel %vm5710, 1, 0
          %v6735 = vsel %vm5711, 1, 0
          %v6736 = vsel %vm5712, 1, 0
          %v6737 = vsel %vm5713, 1, 0
          %v6738 = vsel %vm5714, 1, 0
          %v6739 = vsel %vm5715, 1, 0
          %v6740 = vsel %vm5716, 1, 0
          %v6741 = vsel %vm5717, 1, 0
          %v6742 = vsel %vm5718, 1, 0
          %v6743 = vsel %vm5719, 1, 0
          %v6744 = vsel %vm5720, 1, 0
          %v6745 = vsel %vm5721, 1, 0
          %v6746 = vsel %vm5722, 1, 0
          %v6747 = vsel %vm5723, 1, 0
          %v6748 = vsel %vm5724, 1, 0
          %v6749 = vsel %vm5725, 1, 0
          %v6750 = vsel %vm5726, 1, 0
          %v6751 = vsel %vm5727, 1, 0
          %v6752 = vsel %vm5728, 1, 0
          %v6753 = vsel %vm5729, 1, 0
          %v6754 = vsel %vm5730, 1, 0
          %v6755 = vsel %vm5731, 1, 0
          %v6756 = vsel %vm5732, 1, 0
          %v6757 = vsel %vm5733, 1, 0
          %v6758 = vsel %vm5734, 1, 0
          %v6759 = vsel %vm5735, 1, 0
          %v6760 = vsel %vm5736, 1, 0
          %v6761 = vsel %vm5737, 1, 0
          %v6762 = vsel %vm5738, 1, 0
          %v6763 = vsel %vm5739, 1, 0
          %v6764 = vsel %vm5740, 1, 0
          %v6765 = vsel %vm5741, 1, 0
          %v6766 = vsel %vm5742, 1, 0
          %v6767 = vsel %vm5743, 1, 0
          %v6768 = vsel %vm5744, 1, 0
          %v6769 = vsel %vm5745, 1, 0
          %v6770 = vsel %vm5746, 1, 0
          %v6771 = vsel %vm5747, 1, 0
          %v6772 = vsel %vm5748, 1, 0
          %v6773 = vsel %vm5749, 1, 0
          %v6774 = vsel %vm5750, 1, 0
          %v6775 = vsel %vm5751, 1, 0
          %v6776 = vsel %vm5752, 1, 0
          %v6777 = vsel %vm5753, 1, 0
          %v6778 = vsel %vm5754, 1, 0
          %v6779 = vsel %vm5755, 1, 0
          %v6780 = vsel %vm5756, 1, 0
          %v6781 = vsel %vm5757, 1, 0
          %v6782 = vsel %vm5758, 1, 0
          %v6783 = vsel %vm5759, 1, 0
          %v6784 = vsel %vm5760, 1, 0
          %v6785 = vsel %vm5761, 1, 0
          %v6786 = vsel %vm5762, 1, 0
          %v6787 = vsel %vm5763, 1, 0
          %v6788 = vsel %vm5764, 1, 0
          %v6789 = vsel %vm5765, 1, 0
          %v6790 = vsel %vm5766, 1, 0
          %v6791 = vsel %vm5767, 1, 0
          %v6792 = vsel %vm5768, 1, 0
          %v6793 = vsel %vm5769, 1, 0
          %v6794 = vsel %vm5770, 1, 0
          %v6795 = vsel %vm5771, 1, 0
          %v6796 = vsel %vm5772, 1, 0
          %v6797 = vsel %vm5773, 1, 0
          %v6798 = vsel %vm5774, 1, 0
          %v6799 = vsel %vm5775, 1, 0
          %v6800 = vsel %vm5776, 1, 0
          %v6801 = vsel %vm5777, 1, 0
          %v6802 = vsel %vm5778, 1, 0
          %v6803 = vsel %vm5779, 1, 0
          %v6804 = vsel %vm5780, 1, 0
          %v6805 = vsel %vm5781, 1, 0
          %v6806 = vsel %vm5782, 1, 0
          %v6807 = vsel %vm5783, 1, 0
          %v6808 = vsel %vm5784, 1, 0
          %v6809 = vsel %vm5785, 1, 0
          %v6810 = vsel %vm5786, 1, 0
          %v6811 = vsel %vm5787, 1, 0
          %v6812 = vsel %vm5788, 1, 0
          %v6813 = vsel %vm5789, 1, 0
          %v6814 = vsel %vm5790, 1, 0
          %v6815 = vsel %vm5791, 1, 0
          %v6816 = vsel %vm5792, 1, 0
          %v6817 = vsel %vm5793, 1, 0
          %v6818 = vsel %vm5794, 1, 0
          %v6819 = vsel %vm5795, 1, 0
          %v6820 = vsel %vm5796, 1, 0
          %v6821 = vsel %vm5797, 1, 0
          %v6822 = vsel %vm5798, 1, 0
          %v6823 = vsel %vm5799, 1, 0
          %v6824 = vsel %vm5800, 1, 0
          %v6825 = vsel %vm5801, 1, 0
          %v6826 = vsel %vm5802, 1, 0
          %v6827 = vsel %vm5803, 1, 0
          %v6828 = vsel %vm5804, 1, 0
          %v6829 = vsel %vm5805, 1, 0
          %v6830 = vsel %vm5806, 1, 0
          %v6831 = vsel %vm5807, 1, 0
          %v6832 = vsel %vm5808, 1, 0
          %v6833 = vsel %vm5809, 1, 0
          %v6834 = vsel %vm5810, 1, 0
          %v6835 = vsel %vm5811, 1, 0
          %v6836 = vsel %vm5812, 1, 0
          %v6837 = vsel %vm5813, 1, 0
          %v6838 = vsel %vm5814, 1, 0
          %v6839 = vsel %vm5815, 1, 0
          %v6840 = vsel %vm5816, 1, 0
          %v6841 = vsel %vm5817, 1, 0
          %v6842 = vsel %vm5818, 1, 0
          %v6843 = vsel %vm5819, 1, 0
          %v6844 = vsel %vm5820, 1, 0
          %v6845 = vsel %vm5821, 1, 0
          %v6846 = vsel %vm5822, 1, 0
          %v6847 = vsel %vm5823, 1, 0
          %v6848 = vsel %vm5824, 1, 0
          %v6849 = vsel %vm5825, 1, 0
          %v6850 = vsel %vm5826, 1, 0
          %v6851 = vsel %vm5827, 1, 0
          %v6852 = vsel %vm5828, 1, 0
          %v6853 = vsel %vm5829, 1, 0
          %v6854 = vsel %vm5830, 1, 0
          %v6855 = vsel %vm5831, 1, 0
          %v6856 = vsel %vm5832, 1, 0
          %v6857 = vsel %vm5833, 1, 0
          %v6858 = vsel %vm5834, 1, 0
          %v6859 = vsel %vm5835, 1, 0
          %v6860 = vsel %vm5836, 1, 0
          %v6861 = vsel %vm5837, 1, 0
          %v6862 = vsel %vm5838, 1, 0
          %v6863 = vsel %vm5839, 1, 0
          %v6864 = vsel %vm5840, 1, 0
          %v6865 = vsel %vm5841, 1, 0
          %v6866 = vsel %vm5842, 1, 0
          %v6867 = vsel %vm5843, 1, 0
          %v6868 = vsel %vm5844, 1, 0
          %v6869 = vsel %vm5845, 1, 0
          %v6870 = vsel %vm5846, 1, 0
          %v6871 = vsel %vm5847, 1, 0
          %v6872 = vsel %vm5848, 1, 0
          %v6873 = vsel %vm5849, 1, 0
          %v6874 = vsel %vm5850, 1, 0
          %v6875 = vsel %vm5851, 1, 0
          %v6876 = vsel %vm5852, 1, 0
          %v6877 = vsel %vm5853, 1, 0
          %v6878 = vsel %vm5854, 1, 0
          %v6879 = vsel %vm5855, 1, 0
          %v6880 = vsel %vm5856, 1, 0
          %v6881 = vsel %vm5857, 1, 0
          %v6882 = vsel %vm5858, 1, 0
          %v6883 = vsel %vm5859, 1, 0
          %v6884 = vsel %vm5860, 1, 0
          %v6885 = vsel %vm5861, 1, 0
          %v6886 = vsel %vm5862, 1, 0
          %v6887 = vsel %vm5863, 1, 0
          %v6888 = vsel %vm5864, 1, 0
          %v6889 = vsel %vm5865, 1, 0
          %v6890 = vsel %vm5866, 1, 0
          %v6891 = vsel %vm5867, 1, 0
          %v6892 = vsel %vm5868, 1, 0
          %v6893 = vsel %vm5869, 1, 0
          %v6894 = vsel %vm5870, 1, 0
          %v6895 = vsel %vm5871, 1, 0
          %v6896 = vsel %vm5872, 1, 0
          %v6897 = vsel %vm5873, 1, 0
          %v6898 = vsel %vm5874, 1, 0
          %v6899 = vsel %vm5875, 1, 0
          %v6900 = vsel %vm5876, 1, 0
          %v6901 = vsel %vm5877, 1, 0
          %v6902 = vsel %vm5878, 1, 0
          %v6903 = vsel %vm5879, 1, 0
          %v6904 = vsel %vm5880, 1, 0
          %v6905 = vsel %vm5881, 1, 0
          %v6906 = vsel %vm5882, 1, 0
          %v6907 = vsel %vm5883, 1, 0
          %v6908 = vsel %vm5884, 1, 0
          %v6909 = vsel %vm5885, 1, 0
          %v6910 = vsel %vm5886, 1, 0
          %v6911 = vsel %vm5887, 1, 0
          %v6912 = vsel %vm5888, 1, 0
          %v6913 = vsel %vm5889, 1, 0
          %v6914 = vsel %vm5890, 1, 0
          %v6915 = vsel %vm5891, 1, 0
          %v6916 = vsel %vm5892, 1, 0
          %v6917 = vsel %vm5893, 1, 0
          %v6918 = vsel %vm5894, 1, 0
          %v6919 = vsel %vm5895, 1, 0
          %v6920 = vsel %vm5896, 1, 0
          %v6921 = vsel %vm5897, 1, 0
          %v6922 = vsel %vm5898, 1, 0
          %v6923 = vsel %vm5899, 1, 0
          %v6924 = vsel %vm5900, 1, 0
          %v6925 = vsel %vm5901, 1, 0
          %v6926 = vsel %vm5902, 1, 0
          %v6927 = vsel %vm5903, 1, 0
          %v6928 = vsel %vm5904, 1, 0
          %vm6929 = vcmp.eq.s32.totalorder %v5905, 1
          %vm6930 = vcmp.eq.s32.totalorder %v5906, 1
          %vm6931 = vcmp.eq.s32.totalorder %v5907, 1
          %vm6932 = vcmp.eq.s32.totalorder %v5908, 1
          %vm6933 = vcmp.eq.s32.totalorder %v5909, 1
          %vm6934 = vcmp.eq.s32.totalorder %v5910, 1
          %vm6935 = vcmp.eq.s32.totalorder %v5911, 1
          %vm6936 = vcmp.eq.s32.totalorder %v5912, 1
          %vm6937 = vcmp.eq.s32.totalorder %v5913, 1
          %vm6938 = vcmp.eq.s32.totalorder %v5914, 1
          %vm6939 = vcmp.eq.s32.totalorder %v5915, 1
          %vm6940 = vcmp.eq.s32.totalorder %v5916, 1
          %vm6941 = vcmp.eq.s32.totalorder %v5917, 1
          %vm6942 = vcmp.eq.s32.totalorder %v5918, 1
          %vm6943 = vcmp.eq.s32.totalorder %v5919, 1
          %vm6944 = vcmp.eq.s32.totalorder %v5920, 1
          %vm6945 = vcmp.eq.s32.totalorder %v5921, 1
          %vm6946 = vcmp.eq.s32.totalorder %v5922, 1
          %vm6947 = vcmp.eq.s32.totalorder %v5923, 1
          %vm6948 = vcmp.eq.s32.totalorder %v5924, 1
          %vm6949 = vcmp.eq.s32.totalorder %v5925, 1
          %vm6950 = vcmp.eq.s32.totalorder %v5926, 1
          %vm6951 = vcmp.eq.s32.totalorder %v5927, 1
          %vm6952 = vcmp.eq.s32.totalorder %v5928, 1
          %vm6953 = vcmp.eq.s32.totalorder %v5929, 1
          %vm6954 = vcmp.eq.s32.totalorder %v5930, 1
          %vm6955 = vcmp.eq.s32.totalorder %v5931, 1
          %vm6956 = vcmp.eq.s32.totalorder %v5932, 1
          %vm6957 = vcmp.eq.s32.totalorder %v5933, 1
          %vm6958 = vcmp.eq.s32.totalorder %v5934, 1
          %vm6959 = vcmp.eq.s32.totalorder %v5935, 1
          %vm6960 = vcmp.eq.s32.totalorder %v5936, 1
          %vm6961 = vcmp.eq.s32.totalorder %v5937, 1
          %vm6962 = vcmp.eq.s32.totalorder %v5938, 1
          %vm6963 = vcmp.eq.s32.totalorder %v5939, 1
          %vm6964 = vcmp.eq.s32.totalorder %v5940, 1
          %vm6965 = vcmp.eq.s32.totalorder %v5941, 1
          %vm6966 = vcmp.eq.s32.totalorder %v5942, 1
          %vm6967 = vcmp.eq.s32.totalorder %v5943, 1
          %vm6968 = vcmp.eq.s32.totalorder %v5944, 1
          %vm6969 = vcmp.eq.s32.totalorder %v5945, 1
          %vm6970 = vcmp.eq.s32.totalorder %v5946, 1
          %vm6971 = vcmp.eq.s32.totalorder %v5947, 1
          %vm6972 = vcmp.eq.s32.totalorder %v5948, 1
          %vm6973 = vcmp.eq.s32.totalorder %v5949, 1
          %vm6974 = vcmp.eq.s32.totalorder %v5950, 1
          %vm6975 = vcmp.eq.s32.totalorder %v5951, 1
          %vm6976 = vcmp.eq.s32.totalorder %v5952, 1
          %vm6977 = vcmp.eq.s32.totalorder %v5953, 1
          %vm6978 = vcmp.eq.s32.totalorder %v5954, 1
          %vm6979 = vcmp.eq.s32.totalorder %v5955, 1
          %vm6980 = vcmp.eq.s32.totalorder %v5956, 1
          %vm6981 = vcmp.eq.s32.totalorder %v5957, 1
          %vm6982 = vcmp.eq.s32.totalorder %v5958, 1
          %vm6983 = vcmp.eq.s32.totalorder %v5959, 1
          %vm6984 = vcmp.eq.s32.totalorder %v5960, 1
          %vm6985 = vcmp.eq.s32.totalorder %v5961, 1
          %vm6986 = vcmp.eq.s32.totalorder %v5962, 1
          %vm6987 = vcmp.eq.s32.totalorder %v5963, 1
          %vm6988 = vcmp.eq.s32.totalorder %v5964, 1
          %vm6989 = vcmp.eq.s32.totalorder %v5965, 1
          %vm6990 = vcmp.eq.s32.totalorder %v5966, 1
          %vm6991 = vcmp.eq.s32.totalorder %v5967, 1
          %vm6992 = vcmp.eq.s32.totalorder %v5968, 1
          %vm6993 = vcmp.eq.s32.totalorder %v5969, 1
          %vm6994 = vcmp.eq.s32.totalorder %v5970, 1
          %vm6995 = vcmp.eq.s32.totalorder %v5971, 1
          %vm6996 = vcmp.eq.s32.totalorder %v5972, 1
          %vm6997 = vcmp.eq.s32.totalorder %v5973, 1
          %vm6998 = vcmp.eq.s32.totalorder %v5974, 1
          %vm6999 = vcmp.eq.s32.totalorder %v5975, 1
          %vm7000 = vcmp.eq.s32.totalorder %v5976, 1
          %vm7001 = vcmp.eq.s32.totalorder %v5977, 1
          %vm7002 = vcmp.eq.s32.totalorder %v5978, 1
          %vm7003 = vcmp.eq.s32.totalorder %v5979, 1
          %vm7004 = vcmp.eq.s32.totalorder %v5980, 1
          %vm7005 = vcmp.eq.s32.totalorder %v5981, 1
          %vm7006 = vcmp.eq.s32.totalorder %v5982, 1
          %vm7007 = vcmp.eq.s32.totalorder %v5983, 1
          %vm7008 = vcmp.eq.s32.totalorder %v5984, 1
          %vm7009 = vcmp.eq.s32.totalorder %v5985, 1
          %vm7010 = vcmp.eq.s32.totalorder %v5986, 1
          %vm7011 = vcmp.eq.s32.totalorder %v5987, 1
          %vm7012 = vcmp.eq.s32.totalorder %v5988, 1
          %vm7013 = vcmp.eq.s32.totalorder %v5989, 1
          %vm7014 = vcmp.eq.s32.totalorder %v5990, 1
          %vm7015 = vcmp.eq.s32.totalorder %v5991, 1
          %vm7016 = vcmp.eq.s32.totalorder %v5992, 1
          %vm7017 = vcmp.eq.s32.totalorder %v5993, 1
          %vm7018 = vcmp.eq.s32.totalorder %v5994, 1
          %vm7019 = vcmp.eq.s32.totalorder %v5995, 1
          %vm7020 = vcmp.eq.s32.totalorder %v5996, 1
          %vm7021 = vcmp.eq.s32.totalorder %v5997, 1
          %vm7022 = vcmp.eq.s32.totalorder %v5998, 1
          %vm7023 = vcmp.eq.s32.totalorder %v5999, 1
          %vm7024 = vcmp.eq.s32.totalorder %v6000, 1
          %vm7025 = vcmp.eq.s32.totalorder %v6001, 1
          %vm7026 = vcmp.eq.s32.totalorder %v6002, 1
          %vm7027 = vcmp.eq.s32.totalorder %v6003, 1
          %vm7028 = vcmp.eq.s32.totalorder %v6004, 1
          %vm7029 = vcmp.eq.s32.totalorder %v6005, 1
          %vm7030 = vcmp.eq.s32.totalorder %v6006, 1
          %vm7031 = vcmp.eq.s32.totalorder %v6007, 1
          %vm7032 = vcmp.eq.s32.totalorder %v6008, 1
          %vm7033 = vcmp.eq.s32.totalorder %v6009, 1
          %vm7034 = vcmp.eq.s32.totalorder %v6010, 1
          %vm7035 = vcmp.eq.s32.totalorder %v6011, 1
          %vm7036 = vcmp.eq.s32.totalorder %v6012, 1
          %vm7037 = vcmp.eq.s32.totalorder %v6013, 1
          %vm7038 = vcmp.eq.s32.totalorder %v6014, 1
          %vm7039 = vcmp.eq.s32.totalorder %v6015, 1
          %vm7040 = vcmp.eq.s32.totalorder %v6016, 1
          %vm7041 = vcmp.eq.s32.totalorder %v6017, 1
          %vm7042 = vcmp.eq.s32.totalorder %v6018, 1
          %vm7043 = vcmp.eq.s32.totalorder %v6019, 1
          %vm7044 = vcmp.eq.s32.totalorder %v6020, 1
          %vm7045 = vcmp.eq.s32.totalorder %v6021, 1
          %vm7046 = vcmp.eq.s32.totalorder %v6022, 1
          %vm7047 = vcmp.eq.s32.totalorder %v6023, 1
          %vm7048 = vcmp.eq.s32.totalorder %v6024, 1
          %vm7049 = vcmp.eq.s32.totalorder %v6025, 1
          %vm7050 = vcmp.eq.s32.totalorder %v6026, 1
          %vm7051 = vcmp.eq.s32.totalorder %v6027, 1
          %vm7052 = vcmp.eq.s32.totalorder %v6028, 1
          %vm7053 = vcmp.eq.s32.totalorder %v6029, 1
          %vm7054 = vcmp.eq.s32.totalorder %v6030, 1
          %vm7055 = vcmp.eq.s32.totalorder %v6031, 1
          %vm7056 = vcmp.eq.s32.totalorder %v6032, 1
          %vm7057 = vcmp.eq.s32.totalorder %v6033, 1
          %vm7058 = vcmp.eq.s32.totalorder %v6034, 1
          %vm7059 = vcmp.eq.s32.totalorder %v6035, 1
          %vm7060 = vcmp.eq.s32.totalorder %v6036, 1
          %vm7061 = vcmp.eq.s32.totalorder %v6037, 1
          %vm7062 = vcmp.eq.s32.totalorder %v6038, 1
          %vm7063 = vcmp.eq.s32.totalorder %v6039, 1
          %vm7064 = vcmp.eq.s32.totalorder %v6040, 1
          %vm7065 = vcmp.eq.s32.totalorder %v6041, 1
          %vm7066 = vcmp.eq.s32.totalorder %v6042, 1
          %vm7067 = vcmp.eq.s32.totalorder %v6043, 1
          %vm7068 = vcmp.eq.s32.totalorder %v6044, 1
          %vm7069 = vcmp.eq.s32.totalorder %v6045, 1
          %vm7070 = vcmp.eq.s32.totalorder %v6046, 1
          %vm7071 = vcmp.eq.s32.totalorder %v6047, 1
          %vm7072 = vcmp.eq.s32.totalorder %v6048, 1
          %vm7073 = vcmp.eq.s32.totalorder %v6049, 1
          %vm7074 = vcmp.eq.s32.totalorder %v6050, 1
          %vm7075 = vcmp.eq.s32.totalorder %v6051, 1
          %vm7076 = vcmp.eq.s32.totalorder %v6052, 1
          %vm7077 = vcmp.eq.s32.totalorder %v6053, 1
          %vm7078 = vcmp.eq.s32.totalorder %v6054, 1
          %vm7079 = vcmp.eq.s32.totalorder %v6055, 1
          %vm7080 = vcmp.eq.s32.totalorder %v6056, 1
          %vm7081 = vcmp.eq.s32.totalorder %v6057, 1
          %vm7082 = vcmp.eq.s32.totalorder %v6058, 1
          %vm7083 = vcmp.eq.s32.totalorder %v6059, 1
          %vm7084 = vcmp.eq.s32.totalorder %v6060, 1
          %vm7085 = vcmp.eq.s32.totalorder %v6061, 1
          %vm7086 = vcmp.eq.s32.totalorder %v6062, 1
          %vm7087 = vcmp.eq.s32.totalorder %v6063, 1
          %vm7088 = vcmp.eq.s32.totalorder %v6064, 1
          %vm7089 = vcmp.eq.s32.totalorder %v6065, 1
          %vm7090 = vcmp.eq.s32.totalorder %v6066, 1
          %vm7091 = vcmp.eq.s32.totalorder %v6067, 1
          %vm7092 = vcmp.eq.s32.totalorder %v6068, 1
          %vm7093 = vcmp.eq.s32.totalorder %v6069, 1
          %vm7094 = vcmp.eq.s32.totalorder %v6070, 1
          %vm7095 = vcmp.eq.s32.totalorder %v6071, 1
          %vm7096 = vcmp.eq.s32.totalorder %v6072, 1
          %vm7097 = vcmp.eq.s32.totalorder %v6073, 1
          %vm7098 = vcmp.eq.s32.totalorder %v6074, 1
          %vm7099 = vcmp.eq.s32.totalorder %v6075, 1
          %vm7100 = vcmp.eq.s32.totalorder %v6076, 1
          %vm7101 = vcmp.eq.s32.totalorder %v6077, 1
          %vm7102 = vcmp.eq.s32.totalorder %v6078, 1
          %vm7103 = vcmp.eq.s32.totalorder %v6079, 1
          %vm7104 = vcmp.eq.s32.totalorder %v6080, 1
          %vm7105 = vcmp.eq.s32.totalorder %v6081, 1
          %vm7106 = vcmp.eq.s32.totalorder %v6082, 1
          %vm7107 = vcmp.eq.s32.totalorder %v6083, 1
          %vm7108 = vcmp.eq.s32.totalorder %v6084, 1
          %vm7109 = vcmp.eq.s32.totalorder %v6085, 1
          %vm7110 = vcmp.eq.s32.totalorder %v6086, 1
          %vm7111 = vcmp.eq.s32.totalorder %v6087, 1
          %vm7112 = vcmp.eq.s32.totalorder %v6088, 1
          %vm7113 = vcmp.eq.s32.totalorder %v6089, 1
          %vm7114 = vcmp.eq.s32.totalorder %v6090, 1
          %vm7115 = vcmp.eq.s32.totalorder %v6091, 1
          %vm7116 = vcmp.eq.s32.totalorder %v6092, 1
          %vm7117 = vcmp.eq.s32.totalorder %v6093, 1
          %vm7118 = vcmp.eq.s32.totalorder %v6094, 1
          %vm7119 = vcmp.eq.s32.totalorder %v6095, 1
          %vm7120 = vcmp.eq.s32.totalorder %v6096, 1
          %vm7121 = vcmp.eq.s32.totalorder %v6097, 1
          %vm7122 = vcmp.eq.s32.totalorder %v6098, 1
          %vm7123 = vcmp.eq.s32.totalorder %v6099, 1
          %vm7124 = vcmp.eq.s32.totalorder %v6100, 1
          %vm7125 = vcmp.eq.s32.totalorder %v6101, 1
          %vm7126 = vcmp.eq.s32.totalorder %v6102, 1
          %vm7127 = vcmp.eq.s32.totalorder %v6103, 1
          %vm7128 = vcmp.eq.s32.totalorder %v6104, 1
          %vm7129 = vcmp.eq.s32.totalorder %v6105, 1
          %vm7130 = vcmp.eq.s32.totalorder %v6106, 1
          %vm7131 = vcmp.eq.s32.totalorder %v6107, 1
          %vm7132 = vcmp.eq.s32.totalorder %v6108, 1
          %vm7133 = vcmp.eq.s32.totalorder %v6109, 1
          %vm7134 = vcmp.eq.s32.totalorder %v6110, 1
          %vm7135 = vcmp.eq.s32.totalorder %v6111, 1
          %vm7136 = vcmp.eq.s32.totalorder %v6112, 1
          %vm7137 = vcmp.eq.s32.totalorder %v6113, 1
          %vm7138 = vcmp.eq.s32.totalorder %v6114, 1
          %vm7139 = vcmp.eq.s32.totalorder %v6115, 1
          %vm7140 = vcmp.eq.s32.totalorder %v6116, 1
          %vm7141 = vcmp.eq.s32.totalorder %v6117, 1
          %vm7142 = vcmp.eq.s32.totalorder %v6118, 1
          %vm7143 = vcmp.eq.s32.totalorder %v6119, 1
          %vm7144 = vcmp.eq.s32.totalorder %v6120, 1
          %vm7145 = vcmp.eq.s32.totalorder %v6121, 1
          %vm7146 = vcmp.eq.s32.totalorder %v6122, 1
          %vm7147 = vcmp.eq.s32.totalorder %v6123, 1
          %vm7148 = vcmp.eq.s32.totalorder %v6124, 1
          %vm7149 = vcmp.eq.s32.totalorder %v6125, 1
          %vm7150 = vcmp.eq.s32.totalorder %v6126, 1
          %vm7151 = vcmp.eq.s32.totalorder %v6127, 1
          %vm7152 = vcmp.eq.s32.totalorder %v6128, 1
          %vm7153 = vcmp.eq.s32.totalorder %v6129, 1
          %vm7154 = vcmp.eq.s32.totalorder %v6130, 1
          %vm7155 = vcmp.eq.s32.totalorder %v6131, 1
          %vm7156 = vcmp.eq.s32.totalorder %v6132, 1
          %vm7157 = vcmp.eq.s32.totalorder %v6133, 1
          %vm7158 = vcmp.eq.s32.totalorder %v6134, 1
          %vm7159 = vcmp.eq.s32.totalorder %v6135, 1
          %vm7160 = vcmp.eq.s32.totalorder %v6136, 1
          %vm7161 = vcmp.eq.s32.totalorder %v6137, 1
          %vm7162 = vcmp.eq.s32.totalorder %v6138, 1
          %vm7163 = vcmp.eq.s32.totalorder %v6139, 1
          %vm7164 = vcmp.eq.s32.totalorder %v6140, 1
          %vm7165 = vcmp.eq.s32.totalorder %v6141, 1
          %vm7166 = vcmp.eq.s32.totalorder %v6142, 1
          %vm7167 = vcmp.eq.s32.totalorder %v6143, 1
          %vm7168 = vcmp.eq.s32.totalorder %v6144, 1
          %vm7169 = vcmp.eq.s32.totalorder %v6145, 1
          %vm7170 = vcmp.eq.s32.totalorder %v6146, 1
          %vm7171 = vcmp.eq.s32.totalorder %v6147, 1
          %vm7172 = vcmp.eq.s32.totalorder %v6148, 1
          %vm7173 = vcmp.eq.s32.totalorder %v6149, 1
          %vm7174 = vcmp.eq.s32.totalorder %v6150, 1
          %vm7175 = vcmp.eq.s32.totalorder %v6151, 1
          %vm7176 = vcmp.eq.s32.totalorder %v6152, 1
          %vm7177 = vcmp.eq.s32.totalorder %v6153, 1
          %vm7178 = vcmp.eq.s32.totalorder %v6154, 1
          %vm7179 = vcmp.eq.s32.totalorder %v6155, 1
          %vm7180 = vcmp.eq.s32.totalorder %v6156, 1
          %vm7181 = vcmp.eq.s32.totalorder %v6157, 1
          %vm7182 = vcmp.eq.s32.totalorder %v6158, 1
          %vm7183 = vcmp.eq.s32.totalorder %v6159, 1
          %vm7184 = vcmp.eq.s32.totalorder %v6160, 1
          %vm7185 = vcmp.eq.s32.totalorder %v6161, 1
          %vm7186 = vcmp.eq.s32.totalorder %v6162, 1
          %vm7187 = vcmp.eq.s32.totalorder %v6163, 1
          %vm7188 = vcmp.eq.s32.totalorder %v6164, 1
          %vm7189 = vcmp.eq.s32.totalorder %v6165, 1
          %vm7190 = vcmp.eq.s32.totalorder %v6166, 1
          %vm7191 = vcmp.eq.s32.totalorder %v6167, 1
          %vm7192 = vcmp.eq.s32.totalorder %v6168, 1
          %vm7193 = vcmp.eq.s32.totalorder %v6169, 1
          %vm7194 = vcmp.eq.s32.totalorder %v6170, 1
          %vm7195 = vcmp.eq.s32.totalorder %v6171, 1
          %vm7196 = vcmp.eq.s32.totalorder %v6172, 1
          %vm7197 = vcmp.eq.s32.totalorder %v6173, 1
          %vm7198 = vcmp.eq.s32.totalorder %v6174, 1
          %vm7199 = vcmp.eq.s32.totalorder %v6175, 1
          %vm7200 = vcmp.eq.s32.totalorder %v6176, 1
          %vm7201 = vcmp.eq.s32.totalorder %v6177, 1
          %vm7202 = vcmp.eq.s32.totalorder %v6178, 1
          %vm7203 = vcmp.eq.s32.totalorder %v6179, 1
          %vm7204 = vcmp.eq.s32.totalorder %v6180, 1
          %vm7205 = vcmp.eq.s32.totalorder %v6181, 1
          %vm7206 = vcmp.eq.s32.totalorder %v6182, 1
          %vm7207 = vcmp.eq.s32.totalorder %v6183, 1
          %vm7208 = vcmp.eq.s32.totalorder %v6184, 1
          %vm7209 = vcmp.eq.s32.totalorder %v6185, 1
          %vm7210 = vcmp.eq.s32.totalorder %v6186, 1
          %vm7211 = vcmp.eq.s32.totalorder %v6187, 1
          %vm7212 = vcmp.eq.s32.totalorder %v6188, 1
          %vm7213 = vcmp.eq.s32.totalorder %v6189, 1
          %vm7214 = vcmp.eq.s32.totalorder %v6190, 1
          %vm7215 = vcmp.eq.s32.totalorder %v6191, 1
          %vm7216 = vcmp.eq.s32.totalorder %v6192, 1
          %vm7217 = vcmp.eq.s32.totalorder %v6193, 1
          %vm7218 = vcmp.eq.s32.totalorder %v6194, 1
          %vm7219 = vcmp.eq.s32.totalorder %v6195, 1
          %vm7220 = vcmp.eq.s32.totalorder %v6196, 1
          %vm7221 = vcmp.eq.s32.totalorder %v6197, 1
          %vm7222 = vcmp.eq.s32.totalorder %v6198, 1
          %vm7223 = vcmp.eq.s32.totalorder %v6199, 1
          %vm7224 = vcmp.eq.s32.totalorder %v6200, 1
          %vm7225 = vcmp.eq.s32.totalorder %v6201, 1
          %vm7226 = vcmp.eq.s32.totalorder %v6202, 1
          %vm7227 = vcmp.eq.s32.totalorder %v6203, 1
          %vm7228 = vcmp.eq.s32.totalorder %v6204, 1
          %vm7229 = vcmp.eq.s32.totalorder %v6205, 1
          %vm7230 = vcmp.eq.s32.totalorder %v6206, 1
          %vm7231 = vcmp.eq.s32.totalorder %v6207, 1
          %vm7232 = vcmp.eq.s32.totalorder %v6208, 1
          %vm7233 = vcmp.eq.s32.totalorder %v6209, 1
          %vm7234 = vcmp.eq.s32.totalorder %v6210, 1
          %vm7235 = vcmp.eq.s32.totalorder %v6211, 1
          %vm7236 = vcmp.eq.s32.totalorder %v6212, 1
          %vm7237 = vcmp.eq.s32.totalorder %v6213, 1
          %vm7238 = vcmp.eq.s32.totalorder %v6214, 1
          %vm7239 = vcmp.eq.s32.totalorder %v6215, 1
          %vm7240 = vcmp.eq.s32.totalorder %v6216, 1
          %vm7241 = vcmp.eq.s32.totalorder %v6217, 1
          %vm7242 = vcmp.eq.s32.totalorder %v6218, 1
          %vm7243 = vcmp.eq.s32.totalorder %v6219, 1
          %vm7244 = vcmp.eq.s32.totalorder %v6220, 1
          %vm7245 = vcmp.eq.s32.totalorder %v6221, 1
          %vm7246 = vcmp.eq.s32.totalorder %v6222, 1
          %vm7247 = vcmp.eq.s32.totalorder %v6223, 1
          %vm7248 = vcmp.eq.s32.totalorder %v6224, 1
          %vm7249 = vcmp.eq.s32.totalorder %v6225, 1
          %vm7250 = vcmp.eq.s32.totalorder %v6226, 1
          %vm7251 = vcmp.eq.s32.totalorder %v6227, 1
          %vm7252 = vcmp.eq.s32.totalorder %v6228, 1
          %vm7253 = vcmp.eq.s32.totalorder %v6229, 1
          %vm7254 = vcmp.eq.s32.totalorder %v6230, 1
          %vm7255 = vcmp.eq.s32.totalorder %v6231, 1
          %vm7256 = vcmp.eq.s32.totalorder %v6232, 1
          %vm7257 = vcmp.eq.s32.totalorder %v6233, 1
          %vm7258 = vcmp.eq.s32.totalorder %v6234, 1
          %vm7259 = vcmp.eq.s32.totalorder %v6235, 1
          %vm7260 = vcmp.eq.s32.totalorder %v6236, 1
          %vm7261 = vcmp.eq.s32.totalorder %v6237, 1
          %vm7262 = vcmp.eq.s32.totalorder %v6238, 1
          %vm7263 = vcmp.eq.s32.totalorder %v6239, 1
          %vm7264 = vcmp.eq.s32.totalorder %v6240, 1
          %vm7265 = vcmp.eq.s32.totalorder %v6241, 1
          %vm7266 = vcmp.eq.s32.totalorder %v6242, 1
          %vm7267 = vcmp.eq.s32.totalorder %v6243, 1
          %vm7268 = vcmp.eq.s32.totalorder %v6244, 1
          %vm7269 = vcmp.eq.s32.totalorder %v6245, 1
          %vm7270 = vcmp.eq.s32.totalorder %v6246, 1
          %vm7271 = vcmp.eq.s32.totalorder %v6247, 1
          %vm7272 = vcmp.eq.s32.totalorder %v6248, 1
          %vm7273 = vcmp.eq.s32.totalorder %v6249, 1
          %vm7274 = vcmp.eq.s32.totalorder %v6250, 1
          %vm7275 = vcmp.eq.s32.totalorder %v6251, 1
          %vm7276 = vcmp.eq.s32.totalorder %v6252, 1
          %vm7277 = vcmp.eq.s32.totalorder %v6253, 1
          %vm7278 = vcmp.eq.s32.totalorder %v6254, 1
          %vm7279 = vcmp.eq.s32.totalorder %v6255, 1
          %vm7280 = vcmp.eq.s32.totalorder %v6256, 1
          %vm7281 = vcmp.eq.s32.totalorder %v6257, 1
          %vm7282 = vcmp.eq.s32.totalorder %v6258, 1
          %vm7283 = vcmp.eq.s32.totalorder %v6259, 1
          %vm7284 = vcmp.eq.s32.totalorder %v6260, 1
          %vm7285 = vcmp.eq.s32.totalorder %v6261, 1
          %vm7286 = vcmp.eq.s32.totalorder %v6262, 1
          %vm7287 = vcmp.eq.s32.totalorder %v6263, 1
          %vm7288 = vcmp.eq.s32.totalorder %v6264, 1
          %vm7289 = vcmp.eq.s32.totalorder %v6265, 1
          %vm7290 = vcmp.eq.s32.totalorder %v6266, 1
          %vm7291 = vcmp.eq.s32.totalorder %v6267, 1
          %vm7292 = vcmp.eq.s32.totalorder %v6268, 1
          %vm7293 = vcmp.eq.s32.totalorder %v6269, 1
          %vm7294 = vcmp.eq.s32.totalorder %v6270, 1
          %vm7295 = vcmp.eq.s32.totalorder %v6271, 1
          %vm7296 = vcmp.eq.s32.totalorder %v6272, 1
          %vm7297 = vcmp.eq.s32.totalorder %v6273, 1
          %vm7298 = vcmp.eq.s32.totalorder %v6274, 1
          %vm7299 = vcmp.eq.s32.totalorder %v6275, 1
          %vm7300 = vcmp.eq.s32.totalorder %v6276, 1
          %vm7301 = vcmp.eq.s32.totalorder %v6277, 1
          %vm7302 = vcmp.eq.s32.totalorder %v6278, 1
          %vm7303 = vcmp.eq.s32.totalorder %v6279, 1
          %vm7304 = vcmp.eq.s32.totalorder %v6280, 1
          %vm7305 = vcmp.eq.s32.totalorder %v6281, 1
          %vm7306 = vcmp.eq.s32.totalorder %v6282, 1
          %vm7307 = vcmp.eq.s32.totalorder %v6283, 1
          %vm7308 = vcmp.eq.s32.totalorder %v6284, 1
          %vm7309 = vcmp.eq.s32.totalorder %v6285, 1
          %vm7310 = vcmp.eq.s32.totalorder %v6286, 1
          %vm7311 = vcmp.eq.s32.totalorder %v6287, 1
          %vm7312 = vcmp.eq.s32.totalorder %v6288, 1
          %vm7313 = vcmp.eq.s32.totalorder %v6289, 1
          %vm7314 = vcmp.eq.s32.totalorder %v6290, 1
          %vm7315 = vcmp.eq.s32.totalorder %v6291, 1
          %vm7316 = vcmp.eq.s32.totalorder %v6292, 1
          %vm7317 = vcmp.eq.s32.totalorder %v6293, 1
          %vm7318 = vcmp.eq.s32.totalorder %v6294, 1
          %vm7319 = vcmp.eq.s32.totalorder %v6295, 1
          %vm7320 = vcmp.eq.s32.totalorder %v6296, 1
          %vm7321 = vcmp.eq.s32.totalorder %v6297, 1
          %vm7322 = vcmp.eq.s32.totalorder %v6298, 1
          %vm7323 = vcmp.eq.s32.totalorder %v6299, 1
          %vm7324 = vcmp.eq.s32.totalorder %v6300, 1
          %vm7325 = vcmp.eq.s32.totalorder %v6301, 1
          %vm7326 = vcmp.eq.s32.totalorder %v6302, 1
          %vm7327 = vcmp.eq.s32.totalorder %v6303, 1
          %vm7328 = vcmp.eq.s32.totalorder %v6304, 1
          %vm7329 = vcmp.eq.s32.totalorder %v6305, 1
          %vm7330 = vcmp.eq.s32.totalorder %v6306, 1
          %vm7331 = vcmp.eq.s32.totalorder %v6307, 1
          %vm7332 = vcmp.eq.s32.totalorder %v6308, 1
          %vm7333 = vcmp.eq.s32.totalorder %v6309, 1
          %vm7334 = vcmp.eq.s32.totalorder %v6310, 1
          %vm7335 = vcmp.eq.s32.totalorder %v6311, 1
          %vm7336 = vcmp.eq.s32.totalorder %v6312, 1
          %vm7337 = vcmp.eq.s32.totalorder %v6313, 1
          %vm7338 = vcmp.eq.s32.totalorder %v6314, 1
          %vm7339 = vcmp.eq.s32.totalorder %v6315, 1
          %vm7340 = vcmp.eq.s32.totalorder %v6316, 1
          %vm7341 = vcmp.eq.s32.totalorder %v6317, 1
          %vm7342 = vcmp.eq.s32.totalorder %v6318, 1
          %vm7343 = vcmp.eq.s32.totalorder %v6319, 1
          %vm7344 = vcmp.eq.s32.totalorder %v6320, 1
          %vm7345 = vcmp.eq.s32.totalorder %v6321, 1
          %vm7346 = vcmp.eq.s32.totalorder %v6322, 1
          %vm7347 = vcmp.eq.s32.totalorder %v6323, 1
          %vm7348 = vcmp.eq.s32.totalorder %v6324, 1
          %vm7349 = vcmp.eq.s32.totalorder %v6325, 1
          %vm7350 = vcmp.eq.s32.totalorder %v6326, 1
          %vm7351 = vcmp.eq.s32.totalorder %v6327, 1
          %vm7352 = vcmp.eq.s32.totalorder %v6328, 1
          %vm7353 = vcmp.eq.s32.totalorder %v6329, 1
          %vm7354 = vcmp.eq.s32.totalorder %v6330, 1
          %vm7355 = vcmp.eq.s32.totalorder %v6331, 1
          %vm7356 = vcmp.eq.s32.totalorder %v6332, 1
          %vm7357 = vcmp.eq.s32.totalorder %v6333, 1
          %vm7358 = vcmp.eq.s32.totalorder %v6334, 1
          %vm7359 = vcmp.eq.s32.totalorder %v6335, 1
          %vm7360 = vcmp.eq.s32.totalorder %v6336, 1
          %vm7361 = vcmp.eq.s32.totalorder %v6337, 1
          %vm7362 = vcmp.eq.s32.totalorder %v6338, 1
          %vm7363 = vcmp.eq.s32.totalorder %v6339, 1
          %vm7364 = vcmp.eq.s32.totalorder %v6340, 1
          %vm7365 = vcmp.eq.s32.totalorder %v6341, 1
          %vm7366 = vcmp.eq.s32.totalorder %v6342, 1
          %vm7367 = vcmp.eq.s32.totalorder %v6343, 1
          %vm7368 = vcmp.eq.s32.totalorder %v6344, 1
          %vm7369 = vcmp.eq.s32.totalorder %v6345, 1
          %vm7370 = vcmp.eq.s32.totalorder %v6346, 1
          %vm7371 = vcmp.eq.s32.totalorder %v6347, 1
          %vm7372 = vcmp.eq.s32.totalorder %v6348, 1
          %vm7373 = vcmp.eq.s32.totalorder %v6349, 1
          %vm7374 = vcmp.eq.s32.totalorder %v6350, 1
          %vm7375 = vcmp.eq.s32.totalorder %v6351, 1
          %vm7376 = vcmp.eq.s32.totalorder %v6352, 1
          %vm7377 = vcmp.eq.s32.totalorder %v6353, 1
          %vm7378 = vcmp.eq.s32.totalorder %v6354, 1
          %vm7379 = vcmp.eq.s32.totalorder %v6355, 1
          %vm7380 = vcmp.eq.s32.totalorder %v6356, 1
          %vm7381 = vcmp.eq.s32.totalorder %v6357, 1
          %vm7382 = vcmp.eq.s32.totalorder %v6358, 1
          %vm7383 = vcmp.eq.s32.totalorder %v6359, 1
          %vm7384 = vcmp.eq.s32.totalorder %v6360, 1
          %vm7385 = vcmp.eq.s32.totalorder %v6361, 1
          %vm7386 = vcmp.eq.s32.totalorder %v6362, 1
          %vm7387 = vcmp.eq.s32.totalorder %v6363, 1
          %vm7388 = vcmp.eq.s32.totalorder %v6364, 1
          %vm7389 = vcmp.eq.s32.totalorder %v6365, 1
          %vm7390 = vcmp.eq.s32.totalorder %v6366, 1
          %vm7391 = vcmp.eq.s32.totalorder %v6367, 1
          %vm7392 = vcmp.eq.s32.totalorder %v6368, 1
          %vm7393 = vcmp.eq.s32.totalorder %v6369, 1
          %vm7394 = vcmp.eq.s32.totalorder %v6370, 1
          %vm7395 = vcmp.eq.s32.totalorder %v6371, 1
          %vm7396 = vcmp.eq.s32.totalorder %v6372, 1
          %vm7397 = vcmp.eq.s32.totalorder %v6373, 1
          %vm7398 = vcmp.eq.s32.totalorder %v6374, 1
          %vm7399 = vcmp.eq.s32.totalorder %v6375, 1
          %vm7400 = vcmp.eq.s32.totalorder %v6376, 1
          %vm7401 = vcmp.eq.s32.totalorder %v6377, 1
          %vm7402 = vcmp.eq.s32.totalorder %v6378, 1
          %vm7403 = vcmp.eq.s32.totalorder %v6379, 1
          %vm7404 = vcmp.eq.s32.totalorder %v6380, 1
          %vm7405 = vcmp.eq.s32.totalorder %v6381, 1
          %vm7406 = vcmp.eq.s32.totalorder %v6382, 1
          %vm7407 = vcmp.eq.s32.totalorder %v6383, 1
          %vm7408 = vcmp.eq.s32.totalorder %v6384, 1
          %vm7409 = vcmp.eq.s32.totalorder %v6385, 1
          %vm7410 = vcmp.eq.s32.totalorder %v6386, 1
          %vm7411 = vcmp.eq.s32.totalorder %v6387, 1
          %vm7412 = vcmp.eq.s32.totalorder %v6388, 1
          %vm7413 = vcmp.eq.s32.totalorder %v6389, 1
          %vm7414 = vcmp.eq.s32.totalorder %v6390, 1
          %vm7415 = vcmp.eq.s32.totalorder %v6391, 1
          %vm7416 = vcmp.eq.s32.totalorder %v6392, 1
          %vm7417 = vcmp.eq.s32.totalorder %v6393, 1
          %vm7418 = vcmp.eq.s32.totalorder %v6394, 1
          %vm7419 = vcmp.eq.s32.totalorder %v6395, 1
          %vm7420 = vcmp.eq.s32.totalorder %v6396, 1
          %vm7421 = vcmp.eq.s32.totalorder %v6397, 1
          %vm7422 = vcmp.eq.s32.totalorder %v6398, 1
          %vm7423 = vcmp.eq.s32.totalorder %v6399, 1
          %vm7424 = vcmp.eq.s32.totalorder %v6400, 1
          %vm7425 = vcmp.eq.s32.totalorder %v6401, 1
          %vm7426 = vcmp.eq.s32.totalorder %v6402, 1
          %vm7427 = vcmp.eq.s32.totalorder %v6403, 1
          %vm7428 = vcmp.eq.s32.totalorder %v6404, 1
          %vm7429 = vcmp.eq.s32.totalorder %v6405, 1
          %vm7430 = vcmp.eq.s32.totalorder %v6406, 1
          %vm7431 = vcmp.eq.s32.totalorder %v6407, 1
          %vm7432 = vcmp.eq.s32.totalorder %v6408, 1
          %vm7433 = vcmp.eq.s32.totalorder %v6409, 1
          %vm7434 = vcmp.eq.s32.totalorder %v6410, 1
          %vm7435 = vcmp.eq.s32.totalorder %v6411, 1
          %vm7436 = vcmp.eq.s32.totalorder %v6412, 1
          %vm7437 = vcmp.eq.s32.totalorder %v6413, 1
          %vm7438 = vcmp.eq.s32.totalorder %v6414, 1
          %vm7439 = vcmp.eq.s32.totalorder %v6415, 1
          %vm7440 = vcmp.eq.s32.totalorder %v6416, 1
          %vm7441 = vcmp.eq.s32.totalorder %v6417, 1
          %vm7442 = vcmp.eq.s32.totalorder %v6418, 1
          %vm7443 = vcmp.eq.s32.totalorder %v6419, 1
          %vm7444 = vcmp.eq.s32.totalorder %v6420, 1
          %vm7445 = vcmp.eq.s32.totalorder %v6421, 1
          %vm7446 = vcmp.eq.s32.totalorder %v6422, 1
          %vm7447 = vcmp.eq.s32.totalorder %v6423, 1
          %vm7448 = vcmp.eq.s32.totalorder %v6424, 1
          %vm7449 = vcmp.eq.s32.totalorder %v6425, 1
          %vm7450 = vcmp.eq.s32.totalorder %v6426, 1
          %vm7451 = vcmp.eq.s32.totalorder %v6427, 1
          %vm7452 = vcmp.eq.s32.totalorder %v6428, 1
          %vm7453 = vcmp.eq.s32.totalorder %v6429, 1
          %vm7454 = vcmp.eq.s32.totalorder %v6430, 1
          %vm7455 = vcmp.eq.s32.totalorder %v6431, 1
          %vm7456 = vcmp.eq.s32.totalorder %v6432, 1
          %vm7457 = vcmp.eq.s32.totalorder %v6433, 1
          %vm7458 = vcmp.eq.s32.totalorder %v6434, 1
          %vm7459 = vcmp.eq.s32.totalorder %v6435, 1
          %vm7460 = vcmp.eq.s32.totalorder %v6436, 1
          %vm7461 = vcmp.eq.s32.totalorder %v6437, 1
          %vm7462 = vcmp.eq.s32.totalorder %v6438, 1
          %vm7463 = vcmp.eq.s32.totalorder %v6439, 1
          %vm7464 = vcmp.eq.s32.totalorder %v6440, 1
          %vm7465 = vcmp.eq.s32.totalorder %v6441, 1
          %vm7466 = vcmp.eq.s32.totalorder %v6442, 1
          %vm7467 = vcmp.eq.s32.totalorder %v6443, 1
          %vm7468 = vcmp.eq.s32.totalorder %v6444, 1
          %vm7469 = vcmp.eq.s32.totalorder %v6445, 1
          %vm7470 = vcmp.eq.s32.totalorder %v6446, 1
          %vm7471 = vcmp.eq.s32.totalorder %v6447, 1
          %vm7472 = vcmp.eq.s32.totalorder %v6448, 1
          %vm7473 = vcmp.eq.s32.totalorder %v6449, 1
          %vm7474 = vcmp.eq.s32.totalorder %v6450, 1
          %vm7475 = vcmp.eq.s32.totalorder %v6451, 1
          %vm7476 = vcmp.eq.s32.totalorder %v6452, 1
          %vm7477 = vcmp.eq.s32.totalorder %v6453, 1
          %vm7478 = vcmp.eq.s32.totalorder %v6454, 1
          %vm7479 = vcmp.eq.s32.totalorder %v6455, 1
          %vm7480 = vcmp.eq.s32.totalorder %v6456, 1
          %vm7481 = vcmp.eq.s32.totalorder %v6457, 1
          %vm7482 = vcmp.eq.s32.totalorder %v6458, 1
          %vm7483 = vcmp.eq.s32.totalorder %v6459, 1
          %vm7484 = vcmp.eq.s32.totalorder %v6460, 1
          %vm7485 = vcmp.eq.s32.totalorder %v6461, 1
          %vm7486 = vcmp.eq.s32.totalorder %v6462, 1
          %vm7487 = vcmp.eq.s32.totalorder %v6463, 1
          %vm7488 = vcmp.eq.s32.totalorder %v6464, 1
          %vm7489 = vcmp.eq.s32.totalorder %v6465, 1
          %vm7490 = vcmp.eq.s32.totalorder %v6466, 1
          %vm7491 = vcmp.eq.s32.totalorder %v6467, 1
          %vm7492 = vcmp.eq.s32.totalorder %v6468, 1
          %vm7493 = vcmp.eq.s32.totalorder %v6469, 1
          %vm7494 = vcmp.eq.s32.totalorder %v6470, 1
          %vm7495 = vcmp.eq.s32.totalorder %v6471, 1
          %vm7496 = vcmp.eq.s32.totalorder %v6472, 1
          %vm7497 = vcmp.eq.s32.totalorder %v6473, 1
          %vm7498 = vcmp.eq.s32.totalorder %v6474, 1
          %vm7499 = vcmp.eq.s32.totalorder %v6475, 1
          %vm7500 = vcmp.eq.s32.totalorder %v6476, 1
          %vm7501 = vcmp.eq.s32.totalorder %v6477, 1
          %vm7502 = vcmp.eq.s32.totalorder %v6478, 1
          %vm7503 = vcmp.eq.s32.totalorder %v6479, 1
          %vm7504 = vcmp.eq.s32.totalorder %v6480, 1
          %vm7505 = vcmp.eq.s32.totalorder %v6481, 1
          %vm7506 = vcmp.eq.s32.totalorder %v6482, 1
          %vm7507 = vcmp.eq.s32.totalorder %v6483, 1
          %vm7508 = vcmp.eq.s32.totalorder %v6484, 1
          %vm7509 = vcmp.eq.s32.totalorder %v6485, 1
          %vm7510 = vcmp.eq.s32.totalorder %v6486, 1
          %vm7511 = vcmp.eq.s32.totalorder %v6487, 1
          %vm7512 = vcmp.eq.s32.totalorder %v6488, 1
          %vm7513 = vcmp.eq.s32.totalorder %v6489, 1
          %vm7514 = vcmp.eq.s32.totalorder %v6490, 1
          %vm7515 = vcmp.eq.s32.totalorder %v6491, 1
          %vm7516 = vcmp.eq.s32.totalorder %v6492, 1
          %vm7517 = vcmp.eq.s32.totalorder %v6493, 1
          %vm7518 = vcmp.eq.s32.totalorder %v6494, 1
          %vm7519 = vcmp.eq.s32.totalorder %v6495, 1
          %vm7520 = vcmp.eq.s32.totalorder %v6496, 1
          %vm7521 = vcmp.eq.s32.totalorder %v6497, 1
          %vm7522 = vcmp.eq.s32.totalorder %v6498, 1
          %vm7523 = vcmp.eq.s32.totalorder %v6499, 1
          %vm7524 = vcmp.eq.s32.totalorder %v6500, 1
          %vm7525 = vcmp.eq.s32.totalorder %v6501, 1
          %vm7526 = vcmp.eq.s32.totalorder %v6502, 1
          %vm7527 = vcmp.eq.s32.totalorder %v6503, 1
          %vm7528 = vcmp.eq.s32.totalorder %v6504, 1
          %vm7529 = vcmp.eq.s32.totalorder %v6505, 1
          %vm7530 = vcmp.eq.s32.totalorder %v6506, 1
          %vm7531 = vcmp.eq.s32.totalorder %v6507, 1
          %vm7532 = vcmp.eq.s32.totalorder %v6508, 1
          %vm7533 = vcmp.eq.s32.totalorder %v6509, 1
          %vm7534 = vcmp.eq.s32.totalorder %v6510, 1
          %vm7535 = vcmp.eq.s32.totalorder %v6511, 1
          %vm7536 = vcmp.eq.s32.totalorder %v6512, 1
          %vm7537 = vcmp.eq.s32.totalorder %v6513, 1
          %vm7538 = vcmp.eq.s32.totalorder %v6514, 1
          %vm7539 = vcmp.eq.s32.totalorder %v6515, 1
          %vm7540 = vcmp.eq.s32.totalorder %v6516, 1
          %vm7541 = vcmp.eq.s32.totalorder %v6517, 1
          %vm7542 = vcmp.eq.s32.totalorder %v6518, 1
          %vm7543 = vcmp.eq.s32.totalorder %v6519, 1
          %vm7544 = vcmp.eq.s32.totalorder %v6520, 1
          %vm7545 = vcmp.eq.s32.totalorder %v6521, 1
          %vm7546 = vcmp.eq.s32.totalorder %v6522, 1
          %vm7547 = vcmp.eq.s32.totalorder %v6523, 1
          %vm7548 = vcmp.eq.s32.totalorder %v6524, 1
          %vm7549 = vcmp.eq.s32.totalorder %v6525, 1
          %vm7550 = vcmp.eq.s32.totalorder %v6526, 1
          %vm7551 = vcmp.eq.s32.totalorder %v6527, 1
          %vm7552 = vcmp.eq.s32.totalorder %v6528, 1
          %vm7553 = vcmp.eq.s32.totalorder %v6529, 1
          %vm7554 = vcmp.eq.s32.totalorder %v6530, 1
          %vm7555 = vcmp.eq.s32.totalorder %v6531, 1
          %vm7556 = vcmp.eq.s32.totalorder %v6532, 1
          %vm7557 = vcmp.eq.s32.totalorder %v6533, 1
          %vm7558 = vcmp.eq.s32.totalorder %v6534, 1
          %vm7559 = vcmp.eq.s32.totalorder %v6535, 1
          %vm7560 = vcmp.eq.s32.totalorder %v6536, 1
          %vm7561 = vcmp.eq.s32.totalorder %v6537, 1
          %vm7562 = vcmp.eq.s32.totalorder %v6538, 1
          %vm7563 = vcmp.eq.s32.totalorder %v6539, 1
          %vm7564 = vcmp.eq.s32.totalorder %v6540, 1
          %vm7565 = vcmp.eq.s32.totalorder %v6541, 1
          %vm7566 = vcmp.eq.s32.totalorder %v6542, 1
          %vm7567 = vcmp.eq.s32.totalorder %v6543, 1
          %vm7568 = vcmp.eq.s32.totalorder %v6544, 1
          %vm7569 = vcmp.eq.s32.totalorder %v6545, 1
          %vm7570 = vcmp.eq.s32.totalorder %v6546, 1
          %vm7571 = vcmp.eq.s32.totalorder %v6547, 1
          %vm7572 = vcmp.eq.s32.totalorder %v6548, 1
          %vm7573 = vcmp.eq.s32.totalorder %v6549, 1
          %vm7574 = vcmp.eq.s32.totalorder %v6550, 1
          %vm7575 = vcmp.eq.s32.totalorder %v6551, 1
          %vm7576 = vcmp.eq.s32.totalorder %v6552, 1
          %vm7577 = vcmp.eq.s32.totalorder %v6553, 1
          %vm7578 = vcmp.eq.s32.totalorder %v6554, 1
          %vm7579 = vcmp.eq.s32.totalorder %v6555, 1
          %vm7580 = vcmp.eq.s32.totalorder %v6556, 1
          %vm7581 = vcmp.eq.s32.totalorder %v6557, 1
          %vm7582 = vcmp.eq.s32.totalorder %v6558, 1
          %vm7583 = vcmp.eq.s32.totalorder %v6559, 1
          %vm7584 = vcmp.eq.s32.totalorder %v6560, 1
          %vm7585 = vcmp.eq.s32.totalorder %v6561, 1
          %vm7586 = vcmp.eq.s32.totalorder %v6562, 1
          %vm7587 = vcmp.eq.s32.totalorder %v6563, 1
          %vm7588 = vcmp.eq.s32.totalorder %v6564, 1
          %vm7589 = vcmp.eq.s32.totalorder %v6565, 1
          %vm7590 = vcmp.eq.s32.totalorder %v6566, 1
          %vm7591 = vcmp.eq.s32.totalorder %v6567, 1
          %vm7592 = vcmp.eq.s32.totalorder %v6568, 1
          %vm7593 = vcmp.eq.s32.totalorder %v6569, 1
          %vm7594 = vcmp.eq.s32.totalorder %v6570, 1
          %vm7595 = vcmp.eq.s32.totalorder %v6571, 1
          %vm7596 = vcmp.eq.s32.totalorder %v6572, 1
          %vm7597 = vcmp.eq.s32.totalorder %v6573, 1
          %vm7598 = vcmp.eq.s32.totalorder %v6574, 1
          %vm7599 = vcmp.eq.s32.totalorder %v6575, 1
          %vm7600 = vcmp.eq.s32.totalorder %v6576, 1
          %vm7601 = vcmp.eq.s32.totalorder %v6577, 1
          %vm7602 = vcmp.eq.s32.totalorder %v6578, 1
          %vm7603 = vcmp.eq.s32.totalorder %v6579, 1
          %vm7604 = vcmp.eq.s32.totalorder %v6580, 1
          %vm7605 = vcmp.eq.s32.totalorder %v6581, 1
          %vm7606 = vcmp.eq.s32.totalorder %v6582, 1
          %vm7607 = vcmp.eq.s32.totalorder %v6583, 1
          %vm7608 = vcmp.eq.s32.totalorder %v6584, 1
          %vm7609 = vcmp.eq.s32.totalorder %v6585, 1
          %vm7610 = vcmp.eq.s32.totalorder %v6586, 1
          %vm7611 = vcmp.eq.s32.totalorder %v6587, 1
          %vm7612 = vcmp.eq.s32.totalorder %v6588, 1
          %vm7613 = vcmp.eq.s32.totalorder %v6589, 1
          %vm7614 = vcmp.eq.s32.totalorder %v6590, 1
          %vm7615 = vcmp.eq.s32.totalorder %v6591, 1
          %vm7616 = vcmp.eq.s32.totalorder %v6592, 1
          %vm7617 = vcmp.eq.s32.totalorder %v6593, 1
          %vm7618 = vcmp.eq.s32.totalorder %v6594, 1
          %vm7619 = vcmp.eq.s32.totalorder %v6595, 1
          %vm7620 = vcmp.eq.s32.totalorder %v6596, 1
          %vm7621 = vcmp.eq.s32.totalorder %v6597, 1
          %vm7622 = vcmp.eq.s32.totalorder %v6598, 1
          %vm7623 = vcmp.eq.s32.totalorder %v6599, 1
          %vm7624 = vcmp.eq.s32.totalorder %v6600, 1
          %vm7625 = vcmp.eq.s32.totalorder %v6601, 1
          %vm7626 = vcmp.eq.s32.totalorder %v6602, 1
          %vm7627 = vcmp.eq.s32.totalorder %v6603, 1
          %vm7628 = vcmp.eq.s32.totalorder %v6604, 1
          %vm7629 = vcmp.eq.s32.totalorder %v6605, 1
          %vm7630 = vcmp.eq.s32.totalorder %v6606, 1
          %vm7631 = vcmp.eq.s32.totalorder %v6607, 1
          %vm7632 = vcmp.eq.s32.totalorder %v6608, 1
          %vm7633 = vcmp.eq.s32.totalorder %v6609, 1
          %vm7634 = vcmp.eq.s32.totalorder %v6610, 1
          %vm7635 = vcmp.eq.s32.totalorder %v6611, 1
          %vm7636 = vcmp.eq.s32.totalorder %v6612, 1
          %vm7637 = vcmp.eq.s32.totalorder %v6613, 1
          %vm7638 = vcmp.eq.s32.totalorder %v6614, 1
          %vm7639 = vcmp.eq.s32.totalorder %v6615, 1
          %vm7640 = vcmp.eq.s32.totalorder %v6616, 1
          %vm7641 = vcmp.eq.s32.totalorder %v6617, 1
          %vm7642 = vcmp.eq.s32.totalorder %v6618, 1
          %vm7643 = vcmp.eq.s32.totalorder %v6619, 1
          %vm7644 = vcmp.eq.s32.totalorder %v6620, 1
          %vm7645 = vcmp.eq.s32.totalorder %v6621, 1
          %vm7646 = vcmp.eq.s32.totalorder %v6622, 1
          %vm7647 = vcmp.eq.s32.totalorder %v6623, 1
          %vm7648 = vcmp.eq.s32.totalorder %v6624, 1
          %vm7649 = vcmp.eq.s32.totalorder %v6625, 1
          %vm7650 = vcmp.eq.s32.totalorder %v6626, 1
          %vm7651 = vcmp.eq.s32.totalorder %v6627, 1
          %vm7652 = vcmp.eq.s32.totalorder %v6628, 1
          %vm7653 = vcmp.eq.s32.totalorder %v6629, 1
          %vm7654 = vcmp.eq.s32.totalorder %v6630, 1
          %vm7655 = vcmp.eq.s32.totalorder %v6631, 1
          %vm7656 = vcmp.eq.s32.totalorder %v6632, 1
          %vm7657 = vcmp.eq.s32.totalorder %v6633, 1
          %vm7658 = vcmp.eq.s32.totalorder %v6634, 1
          %vm7659 = vcmp.eq.s32.totalorder %v6635, 1
          %vm7660 = vcmp.eq.s32.totalorder %v6636, 1
          %vm7661 = vcmp.eq.s32.totalorder %v6637, 1
          %vm7662 = vcmp.eq.s32.totalorder %v6638, 1
          %vm7663 = vcmp.eq.s32.totalorder %v6639, 1
          %vm7664 = vcmp.eq.s32.totalorder %v6640, 1
          %vm7665 = vcmp.eq.s32.totalorder %v6641, 1
          %vm7666 = vcmp.eq.s32.totalorder %v6642, 1
          %vm7667 = vcmp.eq.s32.totalorder %v6643, 1
          %vm7668 = vcmp.eq.s32.totalorder %v6644, 1
          %vm7669 = vcmp.eq.s32.totalorder %v6645, 1
          %vm7670 = vcmp.eq.s32.totalorder %v6646, 1
          %vm7671 = vcmp.eq.s32.totalorder %v6647, 1
          %vm7672 = vcmp.eq.s32.totalorder %v6648, 1
          %vm7673 = vcmp.eq.s32.totalorder %v6649, 1
          %vm7674 = vcmp.eq.s32.totalorder %v6650, 1
          %vm7675 = vcmp.eq.s32.totalorder %v6651, 1
          %vm7676 = vcmp.eq.s32.totalorder %v6652, 1
          %vm7677 = vcmp.eq.s32.totalorder %v6653, 1
          %vm7678 = vcmp.eq.s32.totalorder %v6654, 1
          %vm7679 = vcmp.eq.s32.totalorder %v6655, 1
          %vm7680 = vcmp.eq.s32.totalorder %v6656, 1
          %vm7681 = vcmp.eq.s32.totalorder %v6657, 1
          %vm7682 = vcmp.eq.s32.totalorder %v6658, 1
          %vm7683 = vcmp.eq.s32.totalorder %v6659, 1
          %vm7684 = vcmp.eq.s32.totalorder %v6660, 1
          %vm7685 = vcmp.eq.s32.totalorder %v6661, 1
          %vm7686 = vcmp.eq.s32.totalorder %v6662, 1
          %vm7687 = vcmp.eq.s32.totalorder %v6663, 1
          %vm7688 = vcmp.eq.s32.totalorder %v6664, 1
          %vm7689 = vcmp.eq.s32.totalorder %v6665, 1
          %vm7690 = vcmp.eq.s32.totalorder %v6666, 1
          %vm7691 = vcmp.eq.s32.totalorder %v6667, 1
          %vm7692 = vcmp.eq.s32.totalorder %v6668, 1
          %vm7693 = vcmp.eq.s32.totalorder %v6669, 1
          %vm7694 = vcmp.eq.s32.totalorder %v6670, 1
          %vm7695 = vcmp.eq.s32.totalorder %v6671, 1
          %vm7696 = vcmp.eq.s32.totalorder %v6672, 1
          %vm7697 = vcmp.eq.s32.totalorder %v6673, 1
          %vm7698 = vcmp.eq.s32.totalorder %v6674, 1
          %vm7699 = vcmp.eq.s32.totalorder %v6675, 1
          %vm7700 = vcmp.eq.s32.totalorder %v6676, 1
          %vm7701 = vcmp.eq.s32.totalorder %v6677, 1
          %vm7702 = vcmp.eq.s32.totalorder %v6678, 1
          %vm7703 = vcmp.eq.s32.totalorder %v6679, 1
          %vm7704 = vcmp.eq.s32.totalorder %v6680, 1
          %vm7705 = vcmp.eq.s32.totalorder %v6681, 1
          %vm7706 = vcmp.eq.s32.totalorder %v6682, 1
          %vm7707 = vcmp.eq.s32.totalorder %v6683, 1
          %vm7708 = vcmp.eq.s32.totalorder %v6684, 1
          %vm7709 = vcmp.eq.s32.totalorder %v6685, 1
          %vm7710 = vcmp.eq.s32.totalorder %v6686, 1
          %vm7711 = vcmp.eq.s32.totalorder %v6687, 1
          %vm7712 = vcmp.eq.s32.totalorder %v6688, 1
          %vm7713 = vcmp.eq.s32.totalorder %v6689, 1
          %vm7714 = vcmp.eq.s32.totalorder %v6690, 1
          %vm7715 = vcmp.eq.s32.totalorder %v6691, 1
          %vm7716 = vcmp.eq.s32.totalorder %v6692, 1
          %vm7717 = vcmp.eq.s32.totalorder %v6693, 1
          %vm7718 = vcmp.eq.s32.totalorder %v6694, 1
          %vm7719 = vcmp.eq.s32.totalorder %v6695, 1
          %vm7720 = vcmp.eq.s32.totalorder %v6696, 1
          %vm7721 = vcmp.eq.s32.totalorder %v6697, 1
          %vm7722 = vcmp.eq.s32.totalorder %v6698, 1
          %vm7723 = vcmp.eq.s32.totalorder %v6699, 1
          %vm7724 = vcmp.eq.s32.totalorder %v6700, 1
          %vm7725 = vcmp.eq.s32.totalorder %v6701, 1
          %vm7726 = vcmp.eq.s32.totalorder %v6702, 1
          %vm7727 = vcmp.eq.s32.totalorder %v6703, 1
          %vm7728 = vcmp.eq.s32.totalorder %v6704, 1
          %vm7729 = vcmp.eq.s32.totalorder %v6705, 1
          %vm7730 = vcmp.eq.s32.totalorder %v6706, 1
          %vm7731 = vcmp.eq.s32.totalorder %v6707, 1
          %vm7732 = vcmp.eq.s32.totalorder %v6708, 1
          %vm7733 = vcmp.eq.s32.totalorder %v6709, 1
          %vm7734 = vcmp.eq.s32.totalorder %v6710, 1
          %vm7735 = vcmp.eq.s32.totalorder %v6711, 1
          %vm7736 = vcmp.eq.s32.totalorder %v6712, 1
          %vm7737 = vcmp.eq.s32.totalorder %v6713, 1
          %vm7738 = vcmp.eq.s32.totalorder %v6714, 1
          %vm7739 = vcmp.eq.s32.totalorder %v6715, 1
          %vm7740 = vcmp.eq.s32.totalorder %v6716, 1
          %vm7741 = vcmp.eq.s32.totalorder %v6717, 1
          %vm7742 = vcmp.eq.s32.totalorder %v6718, 1
          %vm7743 = vcmp.eq.s32.totalorder %v6719, 1
          %vm7744 = vcmp.eq.s32.totalorder %v6720, 1
          %vm7745 = vcmp.eq.s32.totalorder %v6721, 1
          %vm7746 = vcmp.eq.s32.totalorder %v6722, 1
          %vm7747 = vcmp.eq.s32.totalorder %v6723, 1
          %vm7748 = vcmp.eq.s32.totalorder %v6724, 1
          %vm7749 = vcmp.eq.s32.totalorder %v6725, 1
          %vm7750 = vcmp.eq.s32.totalorder %v6726, 1
          %vm7751 = vcmp.eq.s32.totalorder %v6727, 1
          %vm7752 = vcmp.eq.s32.totalorder %v6728, 1
          %vm7753 = vcmp.eq.s32.totalorder %v6729, 1
          %vm7754 = vcmp.eq.s32.totalorder %v6730, 1
          %vm7755 = vcmp.eq.s32.totalorder %v6731, 1
          %vm7756 = vcmp.eq.s32.totalorder %v6732, 1
          %vm7757 = vcmp.eq.s32.totalorder %v6733, 1
          %vm7758 = vcmp.eq.s32.totalorder %v6734, 1
          %vm7759 = vcmp.eq.s32.totalorder %v6735, 1
          %vm7760 = vcmp.eq.s32.totalorder %v6736, 1
          %vm7761 = vcmp.eq.s32.totalorder %v6737, 1
          %vm7762 = vcmp.eq.s32.totalorder %v6738, 1
          %vm7763 = vcmp.eq.s32.totalorder %v6739, 1
          %vm7764 = vcmp.eq.s32.totalorder %v6740, 1
          %vm7765 = vcmp.eq.s32.totalorder %v6741, 1
          %vm7766 = vcmp.eq.s32.totalorder %v6742, 1
          %vm7767 = vcmp.eq.s32.totalorder %v6743, 1
          %vm7768 = vcmp.eq.s32.totalorder %v6744, 1
          %vm7769 = vcmp.eq.s32.totalorder %v6745, 1
          %vm7770 = vcmp.eq.s32.totalorder %v6746, 1
          %vm7771 = vcmp.eq.s32.totalorder %v6747, 1
          %vm7772 = vcmp.eq.s32.totalorder %v6748, 1
          %vm7773 = vcmp.eq.s32.totalorder %v6749, 1
          %vm7774 = vcmp.eq.s32.totalorder %v6750, 1
          %vm7775 = vcmp.eq.s32.totalorder %v6751, 1
          %vm7776 = vcmp.eq.s32.totalorder %v6752, 1
          %vm7777 = vcmp.eq.s32.totalorder %v6753, 1
          %vm7778 = vcmp.eq.s32.totalorder %v6754, 1
          %vm7779 = vcmp.eq.s32.totalorder %v6755, 1
          %vm7780 = vcmp.eq.s32.totalorder %v6756, 1
          %vm7781 = vcmp.eq.s32.totalorder %v6757, 1
          %vm7782 = vcmp.eq.s32.totalorder %v6758, 1
          %vm7783 = vcmp.eq.s32.totalorder %v6759, 1
          %vm7784 = vcmp.eq.s32.totalorder %v6760, 1
          %vm7785 = vcmp.eq.s32.totalorder %v6761, 1
          %vm7786 = vcmp.eq.s32.totalorder %v6762, 1
          %vm7787 = vcmp.eq.s32.totalorder %v6763, 1
          %vm7788 = vcmp.eq.s32.totalorder %v6764, 1
          %vm7789 = vcmp.eq.s32.totalorder %v6765, 1
          %vm7790 = vcmp.eq.s32.totalorder %v6766, 1
          %vm7791 = vcmp.eq.s32.totalorder %v6767, 1
          %vm7792 = vcmp.eq.s32.totalorder %v6768, 1
          %vm7793 = vcmp.eq.s32.totalorder %v6769, 1
          %vm7794 = vcmp.eq.s32.totalorder %v6770, 1
          %vm7795 = vcmp.eq.s32.totalorder %v6771, 1
          %vm7796 = vcmp.eq.s32.totalorder %v6772, 1
          %vm7797 = vcmp.eq.s32.totalorder %v6773, 1
          %vm7798 = vcmp.eq.s32.totalorder %v6774, 1
          %vm7799 = vcmp.eq.s32.totalorder %v6775, 1
          %vm7800 = vcmp.eq.s32.totalorder %v6776, 1
          %vm7801 = vcmp.eq.s32.totalorder %v6777, 1
          %vm7802 = vcmp.eq.s32.totalorder %v6778, 1
          %vm7803 = vcmp.eq.s32.totalorder %v6779, 1
          %vm7804 = vcmp.eq.s32.totalorder %v6780, 1
          %vm7805 = vcmp.eq.s32.totalorder %v6781, 1
          %vm7806 = vcmp.eq.s32.totalorder %v6782, 1
          %vm7807 = vcmp.eq.s32.totalorder %v6783, 1
          %vm7808 = vcmp.eq.s32.totalorder %v6784, 1
          %vm7809 = vcmp.eq.s32.totalorder %v6785, 1
          %vm7810 = vcmp.eq.s32.totalorder %v6786, 1
          %vm7811 = vcmp.eq.s32.totalorder %v6787, 1
          %vm7812 = vcmp.eq.s32.totalorder %v6788, 1
          %vm7813 = vcmp.eq.s32.totalorder %v6789, 1
          %vm7814 = vcmp.eq.s32.totalorder %v6790, 1
          %vm7815 = vcmp.eq.s32.totalorder %v6791, 1
          %vm7816 = vcmp.eq.s32.totalorder %v6792, 1
          %vm7817 = vcmp.eq.s32.totalorder %v6793, 1
          %vm7818 = vcmp.eq.s32.totalorder %v6794, 1
          %vm7819 = vcmp.eq.s32.totalorder %v6795, 1
          %vm7820 = vcmp.eq.s32.totalorder %v6796, 1
          %vm7821 = vcmp.eq.s32.totalorder %v6797, 1
          %vm7822 = vcmp.eq.s32.totalorder %v6798, 1
          %vm7823 = vcmp.eq.s32.totalorder %v6799, 1
          %vm7824 = vcmp.eq.s32.totalorder %v6800, 1
          %vm7825 = vcmp.eq.s32.totalorder %v6801, 1
          %vm7826 = vcmp.eq.s32.totalorder %v6802, 1
          %vm7827 = vcmp.eq.s32.totalorder %v6803, 1
          %vm7828 = vcmp.eq.s32.totalorder %v6804, 1
          %vm7829 = vcmp.eq.s32.totalorder %v6805, 1
          %vm7830 = vcmp.eq.s32.totalorder %v6806, 1
          %vm7831 = vcmp.eq.s32.totalorder %v6807, 1
          %vm7832 = vcmp.eq.s32.totalorder %v6808, 1
          %vm7833 = vcmp.eq.s32.totalorder %v6809, 1
          %vm7834 = vcmp.eq.s32.totalorder %v6810, 1
          %vm7835 = vcmp.eq.s32.totalorder %v6811, 1
          %vm7836 = vcmp.eq.s32.totalorder %v6812, 1
          %vm7837 = vcmp.eq.s32.totalorder %v6813, 1
          %vm7838 = vcmp.eq.s32.totalorder %v6814, 1
          %vm7839 = vcmp.eq.s32.totalorder %v6815, 1
          %vm7840 = vcmp.eq.s32.totalorder %v6816, 1
          %vm7841 = vcmp.eq.s32.totalorder %v6817, 1
          %vm7842 = vcmp.eq.s32.totalorder %v6818, 1
          %vm7843 = vcmp.eq.s32.totalorder %v6819, 1
          %vm7844 = vcmp.eq.s32.totalorder %v6820, 1
          %vm7845 = vcmp.eq.s32.totalorder %v6821, 1
          %vm7846 = vcmp.eq.s32.totalorder %v6822, 1
          %vm7847 = vcmp.eq.s32.totalorder %v6823, 1
          %vm7848 = vcmp.eq.s32.totalorder %v6824, 1
          %vm7849 = vcmp.eq.s32.totalorder %v6825, 1
          %vm7850 = vcmp.eq.s32.totalorder %v6826, 1
          %vm7851 = vcmp.eq.s32.totalorder %v6827, 1
          %vm7852 = vcmp.eq.s32.totalorder %v6828, 1
          %vm7853 = vcmp.eq.s32.totalorder %v6829, 1
          %vm7854 = vcmp.eq.s32.totalorder %v6830, 1
          %vm7855 = vcmp.eq.s32.totalorder %v6831, 1
          %vm7856 = vcmp.eq.s32.totalorder %v6832, 1
          %vm7857 = vcmp.eq.s32.totalorder %v6833, 1
          %vm7858 = vcmp.eq.s32.totalorder %v6834, 1
          %vm7859 = vcmp.eq.s32.totalorder %v6835, 1
          %vm7860 = vcmp.eq.s32.totalorder %v6836, 1
          %vm7861 = vcmp.eq.s32.totalorder %v6837, 1
          %vm7862 = vcmp.eq.s32.totalorder %v6838, 1
          %vm7863 = vcmp.eq.s32.totalorder %v6839, 1
          %vm7864 = vcmp.eq.s32.totalorder %v6840, 1
          %vm7865 = vcmp.eq.s32.totalorder %v6841, 1
          %vm7866 = vcmp.eq.s32.totalorder %v6842, 1
          %vm7867 = vcmp.eq.s32.totalorder %v6843, 1
          %vm7868 = vcmp.eq.s32.totalorder %v6844, 1
          %vm7869 = vcmp.eq.s32.totalorder %v6845, 1
          %vm7870 = vcmp.eq.s32.totalorder %v6846, 1
          %vm7871 = vcmp.eq.s32.totalorder %v6847, 1
          %vm7872 = vcmp.eq.s32.totalorder %v6848, 1
          %vm7873 = vcmp.eq.s32.totalorder %v6849, 1
          %vm7874 = vcmp.eq.s32.totalorder %v6850, 1
          %vm7875 = vcmp.eq.s32.totalorder %v6851, 1
          %vm7876 = vcmp.eq.s32.totalorder %v6852, 1
          %vm7877 = vcmp.eq.s32.totalorder %v6853, 1
          %vm7878 = vcmp.eq.s32.totalorder %v6854, 1
          %vm7879 = vcmp.eq.s32.totalorder %v6855, 1
          %vm7880 = vcmp.eq.s32.totalorder %v6856, 1
          %vm7881 = vcmp.eq.s32.totalorder %v6857, 1
          %vm7882 = vcmp.eq.s32.totalorder %v6858, 1
          %vm7883 = vcmp.eq.s32.totalorder %v6859, 1
          %vm7884 = vcmp.eq.s32.totalorder %v6860, 1
          %vm7885 = vcmp.eq.s32.totalorder %v6861, 1
          %vm7886 = vcmp.eq.s32.totalorder %v6862, 1
          %vm7887 = vcmp.eq.s32.totalorder %v6863, 1
          %vm7888 = vcmp.eq.s32.totalorder %v6864, 1
          %vm7889 = vcmp.eq.s32.totalorder %v6865, 1
          %vm7890 = vcmp.eq.s32.totalorder %v6866, 1
          %vm7891 = vcmp.eq.s32.totalorder %v6867, 1
          %vm7892 = vcmp.eq.s32.totalorder %v6868, 1
          %vm7893 = vcmp.eq.s32.totalorder %v6869, 1
          %vm7894 = vcmp.eq.s32.totalorder %v6870, 1
          %vm7895 = vcmp.eq.s32.totalorder %v6871, 1
          %vm7896 = vcmp.eq.s32.totalorder %v6872, 1
          %vm7897 = vcmp.eq.s32.totalorder %v6873, 1
          %vm7898 = vcmp.eq.s32.totalorder %v6874, 1
          %vm7899 = vcmp.eq.s32.totalorder %v6875, 1
          %vm7900 = vcmp.eq.s32.totalorder %v6876, 1
          %vm7901 = vcmp.eq.s32.totalorder %v6877, 1
          %vm7902 = vcmp.eq.s32.totalorder %v6878, 1
          %vm7903 = vcmp.eq.s32.totalorder %v6879, 1
          %vm7904 = vcmp.eq.s32.totalorder %v6880, 1
          %vm7905 = vcmp.eq.s32.totalorder %v6881, 1
          %vm7906 = vcmp.eq.s32.totalorder %v6882, 1
          %vm7907 = vcmp.eq.s32.totalorder %v6883, 1
          %vm7908 = vcmp.eq.s32.totalorder %v6884, 1
          %vm7909 = vcmp.eq.s32.totalorder %v6885, 1
          %vm7910 = vcmp.eq.s32.totalorder %v6886, 1
          %vm7911 = vcmp.eq.s32.totalorder %v6887, 1
          %vm7912 = vcmp.eq.s32.totalorder %v6888, 1
          %vm7913 = vcmp.eq.s32.totalorder %v6889, 1
          %vm7914 = vcmp.eq.s32.totalorder %v6890, 1
          %vm7915 = vcmp.eq.s32.totalorder %v6891, 1
          %vm7916 = vcmp.eq.s32.totalorder %v6892, 1
          %vm7917 = vcmp.eq.s32.totalorder %v6893, 1
          %vm7918 = vcmp.eq.s32.totalorder %v6894, 1
          %vm7919 = vcmp.eq.s32.totalorder %v6895, 1
          %vm7920 = vcmp.eq.s32.totalorder %v6896, 1
          %vm7921 = vcmp.eq.s32.totalorder %v6897, 1
          %vm7922 = vcmp.eq.s32.totalorder %v6898, 1
          %vm7923 = vcmp.eq.s32.totalorder %v6899, 1
          %vm7924 = vcmp.eq.s32.totalorder %v6900, 1
          %vm7925 = vcmp.eq.s32.totalorder %v6901, 1
          %vm7926 = vcmp.eq.s32.totalorder %v6902, 1
          %vm7927 = vcmp.eq.s32.totalorder %v6903, 1
          %vm7928 = vcmp.eq.s32.totalorder %v6904, 1
          %vm7929 = vcmp.eq.s32.totalorder %v6905, 1
          %vm7930 = vcmp.eq.s32.totalorder %v6906, 1
          %vm7931 = vcmp.eq.s32.totalorder %v6907, 1
          %vm7932 = vcmp.eq.s32.totalorder %v6908, 1
          %vm7933 = vcmp.eq.s32.totalorder %v6909, 1
          %vm7934 = vcmp.eq.s32.totalorder %v6910, 1
          %vm7935 = vcmp.eq.s32.totalorder %v6911, 1
          %vm7936 = vcmp.eq.s32.totalorder %v6912, 1
          %vm7937 = vcmp.eq.s32.totalorder %v6913, 1
          %vm7938 = vcmp.eq.s32.totalorder %v6914, 1
          %vm7939 = vcmp.eq.s32.totalorder %v6915, 1
          %vm7940 = vcmp.eq.s32.totalorder %v6916, 1
          %vm7941 = vcmp.eq.s32.totalorder %v6917, 1
          %vm7942 = vcmp.eq.s32.totalorder %v6918, 1
          %vm7943 = vcmp.eq.s32.totalorder %v6919, 1
          %vm7944 = vcmp.eq.s32.totalorder %v6920, 1
          %vm7945 = vcmp.eq.s32.totalorder %v6921, 1
          %vm7946 = vcmp.eq.s32.totalorder %v6922, 1
          %vm7947 = vcmp.eq.s32.totalorder %v6923, 1
          %vm7948 = vcmp.eq.s32.totalorder %v6924, 1
          %vm7949 = vcmp.eq.s32.totalorder %v6925, 1
          %vm7950 = vcmp.eq.s32.totalorder %v6926, 1
          %vm7951 = vcmp.eq.s32.totalorder %v6927, 1
          %vm7952 = vcmp.eq.s32.totalorder %v6928, 1
          %v7953 = vsel %vm6929, %v577, -inf
          %v7954 = vsel %vm6930, %v578, -inf
          %v7955 = vsel %vm6931, %v579, -inf
          %v7956 = vsel %vm6932, %v580, -inf
          %v7957 = vsel %vm6933, %v581, -inf
          %v7958 = vsel %vm6934, %v582, -inf
          %v7959 = vsel %vm6935, %v583, -inf
          %v7960 = vsel %vm6936, %v584, -inf
          %v7961 = vsel %vm6937, %v585, -inf
          %v7962 = vsel %vm6938, %v586, -inf
          %v7963 = vsel %vm6939, %v587, -inf
          %v7964 = vsel %vm6940, %v588, -inf
          %v7965 = vsel %vm6941, %v589, -inf
          %v7966 = vsel %vm6942, %v590, -inf
          %v7967 = vsel %vm6943, %v591, -inf
          %v7968 = vsel %vm6944, %v592, -inf
          %v7969 = vsel %vm6945, %v577, -inf
          %v7970 = vsel %vm6946, %v578, -inf
          %v7971 = vsel %vm6947, %v579, -inf
          %v7972 = vsel %vm6948, %v580, -inf
          %v7973 = vsel %vm6949, %v581, -inf
          %v7974 = vsel %vm6950, %v582, -inf
          %v7975 = vsel %vm6951, %v583, -inf
          %v7976 = vsel %vm6952, %v584, -inf
          %v7977 = vsel %vm6953, %v585, -inf
          %v7978 = vsel %vm6954, %v586, -inf
          %v7979 = vsel %vm6955, %v587, -inf
          %v7980 = vsel %vm6956, %v588, -inf
          %v7981 = vsel %vm6957, %v589, -inf
          %v7982 = vsel %vm6958, %v590, -inf
          %v7983 = vsel %vm6959, %v591, -inf
          %v7984 = vsel %vm6960, %v592, -inf
          %v7985 = vsel %vm6961, %v577, -inf
          %v7986 = vsel %vm6962, %v578, -inf
          %v7987 = vsel %vm6963, %v579, -inf
          %v7988 = vsel %vm6964, %v580, -inf
          %v7989 = vsel %vm6965, %v581, -inf
          %v7990 = vsel %vm6966, %v582, -inf
          %v7991 = vsel %vm6967, %v583, -inf
          %v7992 = vsel %vm6968, %v584, -inf
          %v7993 = vsel %vm6969, %v585, -inf
          %v7994 = vsel %vm6970, %v586, -inf
          %v7995 = vsel %vm6971, %v587, -inf
          %v7996 = vsel %vm6972, %v588, -inf
          %v7997 = vsel %vm6973, %v589, -inf
          %v7998 = vsel %vm6974, %v590, -inf
          %v7999 = vsel %vm6975, %v591, -inf
          %v8000 = vsel %vm6976, %v592, -inf
          %v8001 = vsel %vm6977, %v577, -inf
          %v8002 = vsel %vm6978, %v578, -inf
          %v8003 = vsel %vm6979, %v579, -inf
          %v8004 = vsel %vm6980, %v580, -inf
          %v8005 = vsel %vm6981, %v581, -inf
          %v8006 = vsel %vm6982, %v582, -inf
          %v8007 = vsel %vm6983, %v583, -inf
          %v8008 = vsel %vm6984, %v584, -inf
          %v8009 = vsel %vm6985, %v585, -inf
          %v8010 = vsel %vm6986, %v586, -inf
          %v8011 = vsel %vm6987, %v587, -inf
          %v8012 = vsel %vm6988, %v588, -inf
          %v8013 = vsel %vm6989, %v589, -inf
          %v8014 = vsel %vm6990, %v590, -inf
          %v8015 = vsel %vm6991, %v591, -inf
          %v8016 = vsel %vm6992, %v592, -inf
          %v8017 = vsel %vm6993, %v577, -inf
          %v8018 = vsel %vm6994, %v578, -inf
          %v8019 = vsel %vm6995, %v579, -inf
          %v8020 = vsel %vm6996, %v580, -inf
          %v8021 = vsel %vm6997, %v581, -inf
          %v8022 = vsel %vm6998, %v582, -inf
          %v8023 = vsel %vm6999, %v583, -inf
          %v8024 = vsel %vm7000, %v584, -inf
          %v8025 = vsel %vm7001, %v585, -inf
          %v8026 = vsel %vm7002, %v586, -inf
          %v8027 = vsel %vm7003, %v587, -inf
          %v8028 = vsel %vm7004, %v588, -inf
          %v8029 = vsel %vm7005, %v589, -inf
          %v8030 = vsel %vm7006, %v590, -inf
          %v8031 = vsel %vm7007, %v591, -inf
          %v8032 = vsel %vm7008, %v592, -inf
          %v8033 = vsel %vm7009, %v577, -inf
          %v8034 = vsel %vm7010, %v578, -inf
          %v8035 = vsel %vm7011, %v579, -inf
          %v8036 = vsel %vm7012, %v580, -inf
          %v8037 = vsel %vm7013, %v581, -inf
          %v8038 = vsel %vm7014, %v582, -inf
          %v8039 = vsel %vm7015, %v583, -inf
          %v8040 = vsel %vm7016, %v584, -inf
          %v8041 = vsel %vm7017, %v585, -inf
          %v8042 = vsel %vm7018, %v586, -inf
          %v8043 = vsel %vm7019, %v587, -inf
          %v8044 = vsel %vm7020, %v588, -inf
          %v8045 = vsel %vm7021, %v589, -inf
          %v8046 = vsel %vm7022, %v590, -inf
          %v8047 = vsel %vm7023, %v591, -inf
          %v8048 = vsel %vm7024, %v592, -inf
          %v8049 = vsel %vm7025, %v577, -inf
          %v8050 = vsel %vm7026, %v578, -inf
          %v8051 = vsel %vm7027, %v579, -inf
          %v8052 = vsel %vm7028, %v580, -inf
          %v8053 = vsel %vm7029, %v581, -inf
          %v8054 = vsel %vm7030, %v582, -inf
          %v8055 = vsel %vm7031, %v583, -inf
          %v8056 = vsel %vm7032, %v584, -inf
          %v8057 = vsel %vm7033, %v585, -inf
          %v8058 = vsel %vm7034, %v586, -inf
          %v8059 = vsel %vm7035, %v587, -inf
          %v8060 = vsel %vm7036, %v588, -inf
          %v8061 = vsel %vm7037, %v589, -inf
          %v8062 = vsel %vm7038, %v590, -inf
          %v8063 = vsel %vm7039, %v591, -inf
          %v8064 = vsel %vm7040, %v592, -inf
          %v8065 = vsel %vm7041, %v577, -inf
          %v8066 = vsel %vm7042, %v578, -inf
          %v8067 = vsel %vm7043, %v579, -inf
          %v8068 = vsel %vm7044, %v580, -inf
          %v8069 = vsel %vm7045, %v581, -inf
          %v8070 = vsel %vm7046, %v582, -inf
          %v8071 = vsel %vm7047, %v583, -inf
          %v8072 = vsel %vm7048, %v584, -inf
          %v8073 = vsel %vm7049, %v585, -inf
          %v8074 = vsel %vm7050, %v586, -inf
          %v8075 = vsel %vm7051, %v587, -inf
          %v8076 = vsel %vm7052, %v588, -inf
          %v8077 = vsel %vm7053, %v589, -inf
          %v8078 = vsel %vm7054, %v590, -inf
          %v8079 = vsel %vm7055, %v591, -inf
          %v8080 = vsel %vm7056, %v592, -inf
          %v8081 = vsel %vm7057, %v577, -inf
          %v8082 = vsel %vm7058, %v578, -inf
          %v8083 = vsel %vm7059, %v579, -inf
          %v8084 = vsel %vm7060, %v580, -inf
          %v8085 = vsel %vm7061, %v581, -inf
          %v8086 = vsel %vm7062, %v582, -inf
          %v8087 = vsel %vm7063, %v583, -inf
          %v8088 = vsel %vm7064, %v584, -inf
          %v8089 = vsel %vm7065, %v585, -inf
          %v8090 = vsel %vm7066, %v586, -inf
          %v8091 = vsel %vm7067, %v587, -inf
          %v8092 = vsel %vm7068, %v588, -inf
          %v8093 = vsel %vm7069, %v589, -inf
          %v8094 = vsel %vm7070, %v590, -inf
          %v8095 = vsel %vm7071, %v591, -inf
          %v8096 = vsel %vm7072, %v592, -inf
          %v8097 = vsel %vm7073, %v577, -inf
          %v8098 = vsel %vm7074, %v578, -inf
          %v8099 = vsel %vm7075, %v579, -inf
          %v8100 = vsel %vm7076, %v580, -inf
          %v8101 = vsel %vm7077, %v581, -inf
          %v8102 = vsel %vm7078, %v582, -inf
          %v8103 = vsel %vm7079, %v583, -inf
          %v8104 = vsel %vm7080, %v584, -inf
          %v8105 = vsel %vm7081, %v585, -inf
          %v8106 = vsel %vm7082, %v586, -inf
          %v8107 = vsel %vm7083, %v587, -inf
          %v8108 = vsel %vm7084, %v588, -inf
          %v8109 = vsel %vm7085, %v589, -inf
          %v8110 = vsel %vm7086, %v590, -inf
          %v8111 = vsel %vm7087, %v591, -inf
          %v8112 = vsel %vm7088, %v592, -inf
          %v8113 = vsel %vm7089, %v577, -inf
          %v8114 = vsel %vm7090, %v578, -inf
          %v8115 = vsel %vm7091, %v579, -inf
          %v8116 = vsel %vm7092, %v580, -inf
          %v8117 = vsel %vm7093, %v581, -inf
          %v8118 = vsel %vm7094, %v582, -inf
          %v8119 = vsel %vm7095, %v583, -inf
          %v8120 = vsel %vm7096, %v584, -inf
          %v8121 = vsel %vm7097, %v585, -inf
          %v8122 = vsel %vm7098, %v586, -inf
          %v8123 = vsel %vm7099, %v587, -inf
          %v8124 = vsel %vm7100, %v588, -inf
          %v8125 = vsel %vm7101, %v589, -inf
          %v8126 = vsel %vm7102, %v590, -inf
          %v8127 = vsel %vm7103, %v591, -inf
          %v8128 = vsel %vm7104, %v592, -inf
          %v8129 = vsel %vm7105, %v577, -inf
          %v8130 = vsel %vm7106, %v578, -inf
          %v8131 = vsel %vm7107, %v579, -inf
          %v8132 = vsel %vm7108, %v580, -inf
          %v8133 = vsel %vm7109, %v581, -inf
          %v8134 = vsel %vm7110, %v582, -inf
          %v8135 = vsel %vm7111, %v583, -inf
          %v8136 = vsel %vm7112, %v584, -inf
          %v8137 = vsel %vm7113, %v585, -inf
          %v8138 = vsel %vm7114, %v586, -inf
          %v8139 = vsel %vm7115, %v587, -inf
          %v8140 = vsel %vm7116, %v588, -inf
          %v8141 = vsel %vm7117, %v589, -inf
          %v8142 = vsel %vm7118, %v590, -inf
          %v8143 = vsel %vm7119, %v591, -inf
          %v8144 = vsel %vm7120, %v592, -inf
          %v8145 = vsel %vm7121, %v577, -inf
          %v8146 = vsel %vm7122, %v578, -inf
          %v8147 = vsel %vm7123, %v579, -inf
          %v8148 = vsel %vm7124, %v580, -inf
          %v8149 = vsel %vm7125, %v581, -inf
          %v8150 = vsel %vm7126, %v582, -inf
          %v8151 = vsel %vm7127, %v583, -inf
          %v8152 = vsel %vm7128, %v584, -inf
          %v8153 = vsel %vm7129, %v585, -inf
          %v8154 = vsel %vm7130, %v586, -inf
          %v8155 = vsel %vm7131, %v587, -inf
          %v8156 = vsel %vm7132, %v588, -inf
          %v8157 = vsel %vm7133, %v589, -inf
          %v8158 = vsel %vm7134, %v590, -inf
          %v8159 = vsel %vm7135, %v591, -inf
          %v8160 = vsel %vm7136, %v592, -inf
          %v8161 = vsel %vm7137, %v577, -inf
          %v8162 = vsel %vm7138, %v578, -inf
          %v8163 = vsel %vm7139, %v579, -inf
          %v8164 = vsel %vm7140, %v580, -inf
          %v8165 = vsel %vm7141, %v581, -inf
          %v8166 = vsel %vm7142, %v582, -inf
          %v8167 = vsel %vm7143, %v583, -inf
          %v8168 = vsel %vm7144, %v584, -inf
          %v8169 = vsel %vm7145, %v585, -inf
          %v8170 = vsel %vm7146, %v586, -inf
          %v8171 = vsel %vm7147, %v587, -inf
          %v8172 = vsel %vm7148, %v588, -inf
          %v8173 = vsel %vm7149, %v589, -inf
          %v8174 = vsel %vm7150, %v590, -inf
          %v8175 = vsel %vm7151, %v591, -inf
          %v8176 = vsel %vm7152, %v592, -inf
          %v8177 = vsel %vm7153, %v577, -inf
          %v8178 = vsel %vm7154, %v578, -inf
          %v8179 = vsel %vm7155, %v579, -inf
          %v8180 = vsel %vm7156, %v580, -inf
          %v8181 = vsel %vm7157, %v581, -inf
          %v8182 = vsel %vm7158, %v582, -inf
          %v8183 = vsel %vm7159, %v583, -inf
          %v8184 = vsel %vm7160, %v584, -inf
          %v8185 = vsel %vm7161, %v585, -inf
          %v8186 = vsel %vm7162, %v586, -inf
          %v8187 = vsel %vm7163, %v587, -inf
          %v8188 = vsel %vm7164, %v588, -inf
          %v8189 = vsel %vm7165, %v589, -inf
          %v8190 = vsel %vm7166, %v590, -inf
          %v8191 = vsel %vm7167, %v591, -inf
          %v8192 = vsel %vm7168, %v592, -inf
          %v8193 = vsel %vm7169, %v577, -inf
          %v8194 = vsel %vm7170, %v578, -inf
          %v8195 = vsel %vm7171, %v579, -inf
          %v8196 = vsel %vm7172, %v580, -inf
          %v8197 = vsel %vm7173, %v581, -inf
          %v8198 = vsel %vm7174, %v582, -inf
          %v8199 = vsel %vm7175, %v583, -inf
          %v8200 = vsel %vm7176, %v584, -inf
          %v8201 = vsel %vm7177, %v585, -inf
          %v8202 = vsel %vm7178, %v586, -inf
          %v8203 = vsel %vm7179, %v587, -inf
          %v8204 = vsel %vm7180, %v588, -inf
          %v8205 = vsel %vm7181, %v589, -inf
          %v8206 = vsel %vm7182, %v590, -inf
          %v8207 = vsel %vm7183, %v591, -inf
          %v8208 = vsel %vm7184, %v592, -inf
          %v8209 = vsel %vm7185, %v577, -inf
          %v8210 = vsel %vm7186, %v578, -inf
          %v8211 = vsel %vm7187, %v579, -inf
          %v8212 = vsel %vm7188, %v580, -inf
          %v8213 = vsel %vm7189, %v581, -inf
          %v8214 = vsel %vm7190, %v582, -inf
          %v8215 = vsel %vm7191, %v583, -inf
          %v8216 = vsel %vm7192, %v584, -inf
          %v8217 = vsel %vm7193, %v585, -inf
          %v8218 = vsel %vm7194, %v586, -inf
          %v8219 = vsel %vm7195, %v587, -inf
          %v8220 = vsel %vm7196, %v588, -inf
          %v8221 = vsel %vm7197, %v589, -inf
          %v8222 = vsel %vm7198, %v590, -inf
          %v8223 = vsel %vm7199, %v591, -inf
          %v8224 = vsel %vm7200, %v592, -inf
          %v8225 = vsel %vm7201, %v577, -inf
          %v8226 = vsel %vm7202, %v578, -inf
          %v8227 = vsel %vm7203, %v579, -inf
          %v8228 = vsel %vm7204, %v580, -inf
          %v8229 = vsel %vm7205, %v581, -inf
          %v8230 = vsel %vm7206, %v582, -inf
          %v8231 = vsel %vm7207, %v583, -inf
          %v8232 = vsel %vm7208, %v584, -inf
          %v8233 = vsel %vm7209, %v585, -inf
          %v8234 = vsel %vm7210, %v586, -inf
          %v8235 = vsel %vm7211, %v587, -inf
          %v8236 = vsel %vm7212, %v588, -inf
          %v8237 = vsel %vm7213, %v589, -inf
          %v8238 = vsel %vm7214, %v590, -inf
          %v8239 = vsel %vm7215, %v591, -inf
          %v8240 = vsel %vm7216, %v592, -inf
          %v8241 = vsel %vm7217, %v577, -inf
          %v8242 = vsel %vm7218, %v578, -inf
          %v8243 = vsel %vm7219, %v579, -inf
          %v8244 = vsel %vm7220, %v580, -inf
          %v8245 = vsel %vm7221, %v581, -inf
          %v8246 = vsel %vm7222, %v582, -inf
          %v8247 = vsel %vm7223, %v583, -inf
          %v8248 = vsel %vm7224, %v584, -inf
          %v8249 = vsel %vm7225, %v585, -inf
          %v8250 = vsel %vm7226, %v586, -inf
          %v8251 = vsel %vm7227, %v587, -inf
          %v8252 = vsel %vm7228, %v588, -inf
          %v8253 = vsel %vm7229, %v589, -inf
          %v8254 = vsel %vm7230, %v590, -inf
          %v8255 = vsel %vm7231, %v591, -inf
          %v8256 = vsel %vm7232, %v592, -inf
          %v8257 = vsel %vm7233, %v577, -inf
          %v8258 = vsel %vm7234, %v578, -inf
          %v8259 = vsel %vm7235, %v579, -inf
          %v8260 = vsel %vm7236, %v580, -inf
          %v8261 = vsel %vm7237, %v581, -inf
          %v8262 = vsel %vm7238, %v582, -inf
          %v8263 = vsel %vm7239, %v583, -inf
          %v8264 = vsel %vm7240, %v584, -inf
          %v8265 = vsel %vm7241, %v585, -inf
          %v8266 = vsel %vm7242, %v586, -inf
          %v8267 = vsel %vm7243, %v587, -inf
          %v8268 = vsel %vm7244, %v588, -inf
          %v8269 = vsel %vm7245, %v589, -inf
          %v8270 = vsel %vm7246, %v590, -inf
          %v8271 = vsel %vm7247, %v591, -inf
          %v8272 = vsel %vm7248, %v592, -inf
          %v8273 = vsel %vm7249, %v577, -inf
          %v8274 = vsel %vm7250, %v578, -inf
          %v8275 = vsel %vm7251, %v579, -inf
          %v8276 = vsel %vm7252, %v580, -inf
          %v8277 = vsel %vm7253, %v581, -inf
          %v8278 = vsel %vm7254, %v582, -inf
          %v8279 = vsel %vm7255, %v583, -inf
          %v8280 = vsel %vm7256, %v584, -inf
          %v8281 = vsel %vm7257, %v585, -inf
          %v8282 = vsel %vm7258, %v586, -inf
          %v8283 = vsel %vm7259, %v587, -inf
          %v8284 = vsel %vm7260, %v588, -inf
          %v8285 = vsel %vm7261, %v589, -inf
          %v8286 = vsel %vm7262, %v590, -inf
          %v8287 = vsel %vm7263, %v591, -inf
          %v8288 = vsel %vm7264, %v592, -inf
          %v8289 = vsel %vm7265, %v577, -inf
          %v8290 = vsel %vm7266, %v578, -inf
          %v8291 = vsel %vm7267, %v579, -inf
          %v8292 = vsel %vm7268, %v580, -inf
          %v8293 = vsel %vm7269, %v581, -inf
          %v8294 = vsel %vm7270, %v582, -inf
          %v8295 = vsel %vm7271, %v583, -inf
          %v8296 = vsel %vm7272, %v584, -inf
          %v8297 = vsel %vm7273, %v585, -inf
          %v8298 = vsel %vm7274, %v586, -inf
          %v8299 = vsel %vm7275, %v587, -inf
          %v8300 = vsel %vm7276, %v588, -inf
          %v8301 = vsel %vm7277, %v589, -inf
          %v8302 = vsel %vm7278, %v590, -inf
          %v8303 = vsel %vm7279, %v591, -inf
          %v8304 = vsel %vm7280, %v592, -inf
          %v8305 = vsel %vm7281, %v577, -inf
          %v8306 = vsel %vm7282, %v578, -inf
          %v8307 = vsel %vm7283, %v579, -inf
          %v8308 = vsel %vm7284, %v580, -inf
          %v8309 = vsel %vm7285, %v581, -inf
          %v8310 = vsel %vm7286, %v582, -inf
          %v8311 = vsel %vm7287, %v583, -inf
          %v8312 = vsel %vm7288, %v584, -inf
          %v8313 = vsel %vm7289, %v585, -inf
          %v8314 = vsel %vm7290, %v586, -inf
          %v8315 = vsel %vm7291, %v587, -inf
          %v8316 = vsel %vm7292, %v588, -inf
          %v8317 = vsel %vm7293, %v589, -inf
          %v8318 = vsel %vm7294, %v590, -inf
          %v8319 = vsel %vm7295, %v591, -inf
          %v8320 = vsel %vm7296, %v592, -inf
          %v8321 = vsel %vm7297, %v577, -inf
          %v8322 = vsel %vm7298, %v578, -inf
          %v8323 = vsel %vm7299, %v579, -inf
          %v8324 = vsel %vm7300, %v580, -inf
          %v8325 = vsel %vm7301, %v581, -inf
          %v8326 = vsel %vm7302, %v582, -inf
          %v8327 = vsel %vm7303, %v583, -inf
          %v8328 = vsel %vm7304, %v584, -inf
          %v8329 = vsel %vm7305, %v585, -inf
          %v8330 = vsel %vm7306, %v586, -inf
          %v8331 = vsel %vm7307, %v587, -inf
          %v8332 = vsel %vm7308, %v588, -inf
          %v8333 = vsel %vm7309, %v589, -inf
          %v8334 = vsel %vm7310, %v590, -inf
          %v8335 = vsel %vm7311, %v591, -inf
          %v8336 = vsel %vm7312, %v592, -inf
          %v8337 = vsel %vm7313, %v577, -inf
          %v8338 = vsel %vm7314, %v578, -inf
          %v8339 = vsel %vm7315, %v579, -inf
          %v8340 = vsel %vm7316, %v580, -inf
          %v8341 = vsel %vm7317, %v581, -inf
          %v8342 = vsel %vm7318, %v582, -inf
          %v8343 = vsel %vm7319, %v583, -inf
          %v8344 = vsel %vm7320, %v584, -inf
          %v8345 = vsel %vm7321, %v585, -inf
          %v8346 = vsel %vm7322, %v586, -inf
          %v8347 = vsel %vm7323, %v587, -inf
          %v8348 = vsel %vm7324, %v588, -inf
          %v8349 = vsel %vm7325, %v589, -inf
          %v8350 = vsel %vm7326, %v590, -inf
          %v8351 = vsel %vm7327, %v591, -inf
          %v8352 = vsel %vm7328, %v592, -inf
          %v8353 = vsel %vm7329, %v577, -inf
          %v8354 = vsel %vm7330, %v578, -inf
          %v8355 = vsel %vm7331, %v579, -inf
          %v8356 = vsel %vm7332, %v580, -inf
          %v8357 = vsel %vm7333, %v581, -inf
          %v8358 = vsel %vm7334, %v582, -inf
          %v8359 = vsel %vm7335, %v583, -inf
          %v8360 = vsel %vm7336, %v584, -inf
          %v8361 = vsel %vm7337, %v585, -inf
          %v8362 = vsel %vm7338, %v586, -inf
          %v8363 = vsel %vm7339, %v587, -inf
          %v8364 = vsel %vm7340, %v588, -inf
          %v8365 = vsel %vm7341, %v589, -inf
          %v8366 = vsel %vm7342, %v590, -inf
          %v8367 = vsel %vm7343, %v591, -inf
          %v8368 = vsel %vm7344, %v592, -inf
          %v8369 = vsel %vm7345, %v577, -inf
          %v8370 = vsel %vm7346, %v578, -inf
          %v8371 = vsel %vm7347, %v579, -inf
          %v8372 = vsel %vm7348, %v580, -inf
          %v8373 = vsel %vm7349, %v581, -inf
          %v8374 = vsel %vm7350, %v582, -inf
          %v8375 = vsel %vm7351, %v583, -inf
          %v8376 = vsel %vm7352, %v584, -inf
          %v8377 = vsel %vm7353, %v585, -inf
          %v8378 = vsel %vm7354, %v586, -inf
          %v8379 = vsel %vm7355, %v587, -inf
          %v8380 = vsel %vm7356, %v588, -inf
          %v8381 = vsel %vm7357, %v589, -inf
          %v8382 = vsel %vm7358, %v590, -inf
          %v8383 = vsel %vm7359, %v591, -inf
          %v8384 = vsel %vm7360, %v592, -inf
          %v8385 = vsel %vm7361, %v577, -inf
          %v8386 = vsel %vm7362, %v578, -inf
          %v8387 = vsel %vm7363, %v579, -inf
          %v8388 = vsel %vm7364, %v580, -inf
          %v8389 = vsel %vm7365, %v581, -inf
          %v8390 = vsel %vm7366, %v582, -inf
          %v8391 = vsel %vm7367, %v583, -inf
          %v8392 = vsel %vm7368, %v584, -inf
          %v8393 = vsel %vm7369, %v585, -inf
          %v8394 = vsel %vm7370, %v586, -inf
          %v8395 = vsel %vm7371, %v587, -inf
          %v8396 = vsel %vm7372, %v588, -inf
          %v8397 = vsel %vm7373, %v589, -inf
          %v8398 = vsel %vm7374, %v590, -inf
          %v8399 = vsel %vm7375, %v591, -inf
          %v8400 = vsel %vm7376, %v592, -inf
          %v8401 = vsel %vm7377, %v577, -inf
          %v8402 = vsel %vm7378, %v578, -inf
          %v8403 = vsel %vm7379, %v579, -inf
          %v8404 = vsel %vm7380, %v580, -inf
          %v8405 = vsel %vm7381, %v581, -inf
          %v8406 = vsel %vm7382, %v582, -inf
          %v8407 = vsel %vm7383, %v583, -inf
          %v8408 = vsel %vm7384, %v584, -inf
          %v8409 = vsel %vm7385, %v585, -inf
          %v8410 = vsel %vm7386, %v586, -inf
          %v8411 = vsel %vm7387, %v587, -inf
          %v8412 = vsel %vm7388, %v588, -inf
          %v8413 = vsel %vm7389, %v589, -inf
          %v8414 = vsel %vm7390, %v590, -inf
          %v8415 = vsel %vm7391, %v591, -inf
          %v8416 = vsel %vm7392, %v592, -inf
          %v8417 = vsel %vm7393, %v577, -inf
          %v8418 = vsel %vm7394, %v578, -inf
          %v8419 = vsel %vm7395, %v579, -inf
          %v8420 = vsel %vm7396, %v580, -inf
          %v8421 = vsel %vm7397, %v581, -inf
          %v8422 = vsel %vm7398, %v582, -inf
          %v8423 = vsel %vm7399, %v583, -inf
          %v8424 = vsel %vm7400, %v584, -inf
          %v8425 = vsel %vm7401, %v585, -inf
          %v8426 = vsel %vm7402, %v586, -inf
          %v8427 = vsel %vm7403, %v587, -inf
          %v8428 = vsel %vm7404, %v588, -inf
          %v8429 = vsel %vm7405, %v589, -inf
          %v8430 = vsel %vm7406, %v590, -inf
          %v8431 = vsel %vm7407, %v591, -inf
          %v8432 = vsel %vm7408, %v592, -inf
          %v8433 = vsel %vm7409, %v577, -inf
          %v8434 = vsel %vm7410, %v578, -inf
          %v8435 = vsel %vm7411, %v579, -inf
          %v8436 = vsel %vm7412, %v580, -inf
          %v8437 = vsel %vm7413, %v581, -inf
          %v8438 = vsel %vm7414, %v582, -inf
          %v8439 = vsel %vm7415, %v583, -inf
          %v8440 = vsel %vm7416, %v584, -inf
          %v8441 = vsel %vm7417, %v585, -inf
          %v8442 = vsel %vm7418, %v586, -inf
          %v8443 = vsel %vm7419, %v587, -inf
          %v8444 = vsel %vm7420, %v588, -inf
          %v8445 = vsel %vm7421, %v589, -inf
          %v8446 = vsel %vm7422, %v590, -inf
          %v8447 = vsel %vm7423, %v591, -inf
          %v8448 = vsel %vm7424, %v592, -inf
          %v8449 = vsel %vm7425, %v577, -inf
          %v8450 = vsel %vm7426, %v578, -inf
          %v8451 = vsel %vm7427, %v579, -inf
          %v8452 = vsel %vm7428, %v580, -inf
          %v8453 = vsel %vm7429, %v581, -inf
          %v8454 = vsel %vm7430, %v582, -inf
          %v8455 = vsel %vm7431, %v583, -inf
          %v8456 = vsel %vm7432, %v584, -inf
          %v8457 = vsel %vm7433, %v585, -inf
          %v8458 = vsel %vm7434, %v586, -inf
          %v8459 = vsel %vm7435, %v587, -inf
          %v8460 = vsel %vm7436, %v588, -inf
          %v8461 = vsel %vm7437, %v589, -inf
          %v8462 = vsel %vm7438, %v590, -inf
          %v8463 = vsel %vm7439, %v591, -inf
          %v8464 = vsel %vm7440, %v592, -inf
          %v8465 = vsel %vm7441, %v577, -inf
          %v8466 = vsel %vm7442, %v578, -inf
          %v8467 = vsel %vm7443, %v579, -inf
          %v8468 = vsel %vm7444, %v580, -inf
          %v8469 = vsel %vm7445, %v581, -inf
          %v8470 = vsel %vm7446, %v582, -inf
          %v8471 = vsel %vm7447, %v583, -inf
          %v8472 = vsel %vm7448, %v584, -inf
          %v8473 = vsel %vm7449, %v585, -inf
          %v8474 = vsel %vm7450, %v586, -inf
          %v8475 = vsel %vm7451, %v587, -inf
          %v8476 = vsel %vm7452, %v588, -inf
          %v8477 = vsel %vm7453, %v589, -inf
          %v8478 = vsel %vm7454, %v590, -inf
          %v8479 = vsel %vm7455, %v591, -inf
          %v8480 = vsel %vm7456, %v592, -inf
          %v8481 = vsel %vm7457, %v577, -inf
          %v8482 = vsel %vm7458, %v578, -inf
          %v8483 = vsel %vm7459, %v579, -inf
          %v8484 = vsel %vm7460, %v580, -inf
          %v8485 = vsel %vm7461, %v581, -inf
          %v8486 = vsel %vm7462, %v582, -inf
          %v8487 = vsel %vm7463, %v583, -inf
          %v8488 = vsel %vm7464, %v584, -inf
          %v8489 = vsel %vm7465, %v585, -inf
          %v8490 = vsel %vm7466, %v586, -inf
          %v8491 = vsel %vm7467, %v587, -inf
          %v8492 = vsel %vm7468, %v588, -inf
          %v8493 = vsel %vm7469, %v589, -inf
          %v8494 = vsel %vm7470, %v590, -inf
          %v8495 = vsel %vm7471, %v591, -inf
          %v8496 = vsel %vm7472, %v592, -inf
          %v8497 = vsel %vm7473, %v577, -inf
          %v8498 = vsel %vm7474, %v578, -inf
          %v8499 = vsel %vm7475, %v579, -inf
          %v8500 = vsel %vm7476, %v580, -inf
          %v8501 = vsel %vm7477, %v581, -inf
          %v8502 = vsel %vm7478, %v582, -inf
          %v8503 = vsel %vm7479, %v583, -inf
          %v8504 = vsel %vm7480, %v584, -inf
          %v8505 = vsel %vm7481, %v585, -inf
          %v8506 = vsel %vm7482, %v586, -inf
          %v8507 = vsel %vm7483, %v587, -inf
          %v8508 = vsel %vm7484, %v588, -inf
          %v8509 = vsel %vm7485, %v589, -inf
          %v8510 = vsel %vm7486, %v590, -inf
          %v8511 = vsel %vm7487, %v591, -inf
          %v8512 = vsel %vm7488, %v592, -inf
          %v8513 = vsel %vm7489, %v577, -inf
          %v8514 = vsel %vm7490, %v578, -inf
          %v8515 = vsel %vm7491, %v579, -inf
          %v8516 = vsel %vm7492, %v580, -inf
          %v8517 = vsel %vm7493, %v581, -inf
          %v8518 = vsel %vm7494, %v582, -inf
          %v8519 = vsel %vm7495, %v583, -inf
          %v8520 = vsel %vm7496, %v584, -inf
          %v8521 = vsel %vm7497, %v585, -inf
          %v8522 = vsel %vm7498, %v586, -inf
          %v8523 = vsel %vm7499, %v587, -inf
          %v8524 = vsel %vm7500, %v588, -inf
          %v8525 = vsel %vm7501, %v589, -inf
          %v8526 = vsel %vm7502, %v590, -inf
          %v8527 = vsel %vm7503, %v591, -inf
          %v8528 = vsel %vm7504, %v592, -inf
          %v8529 = vsel %vm7505, %v577, -inf
          %v8530 = vsel %vm7506, %v578, -inf
          %v8531 = vsel %vm7507, %v579, -inf
          %v8532 = vsel %vm7508, %v580, -inf
          %v8533 = vsel %vm7509, %v581, -inf
          %v8534 = vsel %vm7510, %v582, -inf
          %v8535 = vsel %vm7511, %v583, -inf
          %v8536 = vsel %vm7512, %v584, -inf
          %v8537 = vsel %vm7513, %v585, -inf
          %v8538 = vsel %vm7514, %v586, -inf
          %v8539 = vsel %vm7515, %v587, -inf
          %v8540 = vsel %vm7516, %v588, -inf
          %v8541 = vsel %vm7517, %v589, -inf
          %v8542 = vsel %vm7518, %v590, -inf
          %v8543 = vsel %vm7519, %v591, -inf
          %v8544 = vsel %vm7520, %v592, -inf
          %v8545 = vsel %vm7521, %v577, -inf
          %v8546 = vsel %vm7522, %v578, -inf
          %v8547 = vsel %vm7523, %v579, -inf
          %v8548 = vsel %vm7524, %v580, -inf
          %v8549 = vsel %vm7525, %v581, -inf
          %v8550 = vsel %vm7526, %v582, -inf
          %v8551 = vsel %vm7527, %v583, -inf
          %v8552 = vsel %vm7528, %v584, -inf
          %v8553 = vsel %vm7529, %v585, -inf
          %v8554 = vsel %vm7530, %v586, -inf
          %v8555 = vsel %vm7531, %v587, -inf
          %v8556 = vsel %vm7532, %v588, -inf
          %v8557 = vsel %vm7533, %v589, -inf
          %v8558 = vsel %vm7534, %v590, -inf
          %v8559 = vsel %vm7535, %v591, -inf
          %v8560 = vsel %vm7536, %v592, -inf
          %v8561 = vsel %vm7537, %v577, -inf
          %v8562 = vsel %vm7538, %v578, -inf
          %v8563 = vsel %vm7539, %v579, -inf
          %v8564 = vsel %vm7540, %v580, -inf
          %v8565 = vsel %vm7541, %v581, -inf
          %v8566 = vsel %vm7542, %v582, -inf
          %v8567 = vsel %vm7543, %v583, -inf
          %v8568 = vsel %vm7544, %v584, -inf
          %v8569 = vsel %vm7545, %v585, -inf
          %v8570 = vsel %vm7546, %v586, -inf
          %v8571 = vsel %vm7547, %v587, -inf
          %v8572 = vsel %vm7548, %v588, -inf
          %v8573 = vsel %vm7549, %v589, -inf
          %v8574 = vsel %vm7550, %v590, -inf
          %v8575 = vsel %vm7551, %v591, -inf
          %v8576 = vsel %vm7552, %v592, -inf
          %v8577 = vsel %vm7553, %v577, -inf
          %v8578 = vsel %vm7554, %v578, -inf
          %v8579 = vsel %vm7555, %v579, -inf
          %v8580 = vsel %vm7556, %v580, -inf
          %v8581 = vsel %vm7557, %v581, -inf
          %v8582 = vsel %vm7558, %v582, -inf
          %v8583 = vsel %vm7559, %v583, -inf
          %v8584 = vsel %vm7560, %v584, -inf
          %v8585 = vsel %vm7561, %v585, -inf
          %v8586 = vsel %vm7562, %v586, -inf
          %v8587 = vsel %vm7563, %v587, -inf
          %v8588 = vsel %vm7564, %v588, -inf
          %v8589 = vsel %vm7565, %v589, -inf
          %v8590 = vsel %vm7566, %v590, -inf
          %v8591 = vsel %vm7567, %v591, -inf
          %v8592 = vsel %vm7568, %v592, -inf
          %v8593 = vsel %vm7569, %v577, -inf
          %v8594 = vsel %vm7570, %v578, -inf
          %v8595 = vsel %vm7571, %v579, -inf
          %v8596 = vsel %vm7572, %v580, -inf
          %v8597 = vsel %vm7573, %v581, -inf
          %v8598 = vsel %vm7574, %v582, -inf
          %v8599 = vsel %vm7575, %v583, -inf
          %v8600 = vsel %vm7576, %v584, -inf
          %v8601 = vsel %vm7577, %v585, -inf
          %v8602 = vsel %vm7578, %v586, -inf
          %v8603 = vsel %vm7579, %v587, -inf
          %v8604 = vsel %vm7580, %v588, -inf
          %v8605 = vsel %vm7581, %v589, -inf
          %v8606 = vsel %vm7582, %v590, -inf
          %v8607 = vsel %vm7583, %v591, -inf
          %v8608 = vsel %vm7584, %v592, -inf
          %v8609 = vsel %vm7585, %v577, -inf
          %v8610 = vsel %vm7586, %v578, -inf
          %v8611 = vsel %vm7587, %v579, -inf
          %v8612 = vsel %vm7588, %v580, -inf
          %v8613 = vsel %vm7589, %v581, -inf
          %v8614 = vsel %vm7590, %v582, -inf
          %v8615 = vsel %vm7591, %v583, -inf
          %v8616 = vsel %vm7592, %v584, -inf
          %v8617 = vsel %vm7593, %v585, -inf
          %v8618 = vsel %vm7594, %v586, -inf
          %v8619 = vsel %vm7595, %v587, -inf
          %v8620 = vsel %vm7596, %v588, -inf
          %v8621 = vsel %vm7597, %v589, -inf
          %v8622 = vsel %vm7598, %v590, -inf
          %v8623 = vsel %vm7599, %v591, -inf
          %v8624 = vsel %vm7600, %v592, -inf
          %v8625 = vsel %vm7601, %v577, -inf
          %v8626 = vsel %vm7602, %v578, -inf
          %v8627 = vsel %vm7603, %v579, -inf
          %v8628 = vsel %vm7604, %v580, -inf
          %v8629 = vsel %vm7605, %v581, -inf
          %v8630 = vsel %vm7606, %v582, -inf
          %v8631 = vsel %vm7607, %v583, -inf
          %v8632 = vsel %vm7608, %v584, -inf
          %v8633 = vsel %vm7609, %v585, -inf
          %v8634 = vsel %vm7610, %v586, -inf
          %v8635 = vsel %vm7611, %v587, -inf
          %v8636 = vsel %vm7612, %v588, -inf
          %v8637 = vsel %vm7613, %v589, -inf
          %v8638 = vsel %vm7614, %v590, -inf
          %v8639 = vsel %vm7615, %v591, -inf
          %v8640 = vsel %vm7616, %v592, -inf
          %v8641 = vsel %vm7617, %v577, -inf
          %v8642 = vsel %vm7618, %v578, -inf
          %v8643 = vsel %vm7619, %v579, -inf
          %v8644 = vsel %vm7620, %v580, -inf
          %v8645 = vsel %vm7621, %v581, -inf
          %v8646 = vsel %vm7622, %v582, -inf
          %v8647 = vsel %vm7623, %v583, -inf
          %v8648 = vsel %vm7624, %v584, -inf
          %v8649 = vsel %vm7625, %v585, -inf
          %v8650 = vsel %vm7626, %v586, -inf
          %v8651 = vsel %vm7627, %v587, -inf
          %v8652 = vsel %vm7628, %v588, -inf
          %v8653 = vsel %vm7629, %v589, -inf
          %v8654 = vsel %vm7630, %v590, -inf
          %v8655 = vsel %vm7631, %v591, -inf
          %v8656 = vsel %vm7632, %v592, -inf
          %v8657 = vsel %vm7633, %v577, -inf
          %v8658 = vsel %vm7634, %v578, -inf
          %v8659 = vsel %vm7635, %v579, -inf
          %v8660 = vsel %vm7636, %v580, -inf
          %v8661 = vsel %vm7637, %v581, -inf
          %v8662 = vsel %vm7638, %v582, -inf
          %v8663 = vsel %vm7639, %v583, -inf
          %v8664 = vsel %vm7640, %v584, -inf
          %v8665 = vsel %vm7641, %v585, -inf
          %v8666 = vsel %vm7642, %v586, -inf
          %v8667 = vsel %vm7643, %v587, -inf
          %v8668 = vsel %vm7644, %v588, -inf
          %v8669 = vsel %vm7645, %v589, -inf
          %v8670 = vsel %vm7646, %v590, -inf
          %v8671 = vsel %vm7647, %v591, -inf
          %v8672 = vsel %vm7648, %v592, -inf
          %v8673 = vsel %vm7649, %v577, -inf
          %v8674 = vsel %vm7650, %v578, -inf
          %v8675 = vsel %vm7651, %v579, -inf
          %v8676 = vsel %vm7652, %v580, -inf
          %v8677 = vsel %vm7653, %v581, -inf
          %v8678 = vsel %vm7654, %v582, -inf
          %v8679 = vsel %vm7655, %v583, -inf
          %v8680 = vsel %vm7656, %v584, -inf
          %v8681 = vsel %vm7657, %v585, -inf
          %v8682 = vsel %vm7658, %v586, -inf
          %v8683 = vsel %vm7659, %v587, -inf
          %v8684 = vsel %vm7660, %v588, -inf
          %v8685 = vsel %vm7661, %v589, -inf
          %v8686 = vsel %vm7662, %v590, -inf
          %v8687 = vsel %vm7663, %v591, -inf
          %v8688 = vsel %vm7664, %v592, -inf
          %v8689 = vsel %vm7665, %v577, -inf
          %v8690 = vsel %vm7666, %v578, -inf
          %v8691 = vsel %vm7667, %v579, -inf
          %v8692 = vsel %vm7668, %v580, -inf
          %v8693 = vsel %vm7669, %v581, -inf
          %v8694 = vsel %vm7670, %v582, -inf
          %v8695 = vsel %vm7671, %v583, -inf
          %v8696 = vsel %vm7672, %v584, -inf
          %v8697 = vsel %vm7673, %v585, -inf
          %v8698 = vsel %vm7674, %v586, -inf
          %v8699 = vsel %vm7675, %v587, -inf
          %v8700 = vsel %vm7676, %v588, -inf
          %v8701 = vsel %vm7677, %v589, -inf
          %v8702 = vsel %vm7678, %v590, -inf
          %v8703 = vsel %vm7679, %v591, -inf
          %v8704 = vsel %vm7680, %v592, -inf
          %v8705 = vsel %vm7681, %v577, -inf
          %v8706 = vsel %vm7682, %v578, -inf
          %v8707 = vsel %vm7683, %v579, -inf
          %v8708 = vsel %vm7684, %v580, -inf
          %v8709 = vsel %vm7685, %v581, -inf
          %v8710 = vsel %vm7686, %v582, -inf
          %v8711 = vsel %vm7687, %v583, -inf
          %v8712 = vsel %vm7688, %v584, -inf
          %v8713 = vsel %vm7689, %v585, -inf
          %v8714 = vsel %vm7690, %v586, -inf
          %v8715 = vsel %vm7691, %v587, -inf
          %v8716 = vsel %vm7692, %v588, -inf
          %v8717 = vsel %vm7693, %v589, -inf
          %v8718 = vsel %vm7694, %v590, -inf
          %v8719 = vsel %vm7695, %v591, -inf
          %v8720 = vsel %vm7696, %v592, -inf
          %v8721 = vsel %vm7697, %v577, -inf
          %v8722 = vsel %vm7698, %v578, -inf
          %v8723 = vsel %vm7699, %v579, -inf
          %v8724 = vsel %vm7700, %v580, -inf
          %v8725 = vsel %vm7701, %v581, -inf
          %v8726 = vsel %vm7702, %v582, -inf
          %v8727 = vsel %vm7703, %v583, -inf
          %v8728 = vsel %vm7704, %v584, -inf
          %v8729 = vsel %vm7705, %v585, -inf
          %v8730 = vsel %vm7706, %v586, -inf
          %v8731 = vsel %vm7707, %v587, -inf
          %v8732 = vsel %vm7708, %v588, -inf
          %v8733 = vsel %vm7709, %v589, -inf
          %v8734 = vsel %vm7710, %v590, -inf
          %v8735 = vsel %vm7711, %v591, -inf
          %v8736 = vsel %vm7712, %v592, -inf
          %v8737 = vsel %vm7713, %v577, -inf
          %v8738 = vsel %vm7714, %v578, -inf
          %v8739 = vsel %vm7715, %v579, -inf
          %v8740 = vsel %vm7716, %v580, -inf
          %v8741 = vsel %vm7717, %v581, -inf
          %v8742 = vsel %vm7718, %v582, -inf
          %v8743 = vsel %vm7719, %v583, -inf
          %v8744 = vsel %vm7720, %v584, -inf
          %v8745 = vsel %vm7721, %v585, -inf
          %v8746 = vsel %vm7722, %v586, -inf
          %v8747 = vsel %vm7723, %v587, -inf
          %v8748 = vsel %vm7724, %v588, -inf
          %v8749 = vsel %vm7725, %v589, -inf
          %v8750 = vsel %vm7726, %v590, -inf
          %v8751 = vsel %vm7727, %v591, -inf
          %v8752 = vsel %vm7728, %v592, -inf
          %v8753 = vsel %vm7729, %v577, -inf
          %v8754 = vsel %vm7730, %v578, -inf
          %v8755 = vsel %vm7731, %v579, -inf
          %v8756 = vsel %vm7732, %v580, -inf
          %v8757 = vsel %vm7733, %v581, -inf
          %v8758 = vsel %vm7734, %v582, -inf
          %v8759 = vsel %vm7735, %v583, -inf
          %v8760 = vsel %vm7736, %v584, -inf
          %v8761 = vsel %vm7737, %v585, -inf
          %v8762 = vsel %vm7738, %v586, -inf
          %v8763 = vsel %vm7739, %v587, -inf
          %v8764 = vsel %vm7740, %v588, -inf
          %v8765 = vsel %vm7741, %v589, -inf
          %v8766 = vsel %vm7742, %v590, -inf
          %v8767 = vsel %vm7743, %v591, -inf
          %v8768 = vsel %vm7744, %v592, -inf
          %v8769 = vsel %vm7745, %v577, -inf
          %v8770 = vsel %vm7746, %v578, -inf
          %v8771 = vsel %vm7747, %v579, -inf
          %v8772 = vsel %vm7748, %v580, -inf
          %v8773 = vsel %vm7749, %v581, -inf
          %v8774 = vsel %vm7750, %v582, -inf
          %v8775 = vsel %vm7751, %v583, -inf
          %v8776 = vsel %vm7752, %v584, -inf
          %v8777 = vsel %vm7753, %v585, -inf
          %v8778 = vsel %vm7754, %v586, -inf
          %v8779 = vsel %vm7755, %v587, -inf
          %v8780 = vsel %vm7756, %v588, -inf
          %v8781 = vsel %vm7757, %v589, -inf
          %v8782 = vsel %vm7758, %v590, -inf
          %v8783 = vsel %vm7759, %v591, -inf
          %v8784 = vsel %vm7760, %v592, -inf
          %v8785 = vsel %vm7761, %v577, -inf
          %v8786 = vsel %vm7762, %v578, -inf
          %v8787 = vsel %vm7763, %v579, -inf
          %v8788 = vsel %vm7764, %v580, -inf
          %v8789 = vsel %vm7765, %v581, -inf
          %v8790 = vsel %vm7766, %v582, -inf
          %v8791 = vsel %vm7767, %v583, -inf
          %v8792 = vsel %vm7768, %v584, -inf
          %v8793 = vsel %vm7769, %v585, -inf
          %v8794 = vsel %vm7770, %v586, -inf
          %v8795 = vsel %vm7771, %v587, -inf
          %v8796 = vsel %vm7772, %v588, -inf
          %v8797 = vsel %vm7773, %v589, -inf
          %v8798 = vsel %vm7774, %v590, -inf
          %v8799 = vsel %vm7775, %v591, -inf
          %v8800 = vsel %vm7776, %v592, -inf
          %v8801 = vsel %vm7777, %v577, -inf
          %v8802 = vsel %vm7778, %v578, -inf
          %v8803 = vsel %vm7779, %v579, -inf
          %v8804 = vsel %vm7780, %v580, -inf
          %v8805 = vsel %vm7781, %v581, -inf
          %v8806 = vsel %vm7782, %v582, -inf
          %v8807 = vsel %vm7783, %v583, -inf
          %v8808 = vsel %vm7784, %v584, -inf
          %v8809 = vsel %vm7785, %v585, -inf
          %v8810 = vsel %vm7786, %v586, -inf
          %v8811 = vsel %vm7787, %v587, -inf
          %v8812 = vsel %vm7788, %v588, -inf
          %v8813 = vsel %vm7789, %v589, -inf
          %v8814 = vsel %vm7790, %v590, -inf
          %v8815 = vsel %vm7791, %v591, -inf
          %v8816 = vsel %vm7792, %v592, -inf
          %v8817 = vsel %vm7793, %v577, -inf
          %v8818 = vsel %vm7794, %v578, -inf
          %v8819 = vsel %vm7795, %v579, -inf
          %v8820 = vsel %vm7796, %v580, -inf
          %v8821 = vsel %vm7797, %v581, -inf
          %v8822 = vsel %vm7798, %v582, -inf
          %v8823 = vsel %vm7799, %v583, -inf
          %v8824 = vsel %vm7800, %v584, -inf
          %v8825 = vsel %vm7801, %v585, -inf
          %v8826 = vsel %vm7802, %v586, -inf
          %v8827 = vsel %vm7803, %v587, -inf
          %v8828 = vsel %vm7804, %v588, -inf
          %v8829 = vsel %vm7805, %v589, -inf
          %v8830 = vsel %vm7806, %v590, -inf
          %v8831 = vsel %vm7807, %v591, -inf
          %v8832 = vsel %vm7808, %v592, -inf
          %v8833 = vsel %vm7809, %v577, -inf
          %v8834 = vsel %vm7810, %v578, -inf
          %v8835 = vsel %vm7811, %v579, -inf
          %v8836 = vsel %vm7812, %v580, -inf
          %v8837 = vsel %vm7813, %v581, -inf
          %v8838 = vsel %vm7814, %v582, -inf
          %v8839 = vsel %vm7815, %v583, -inf
          %v8840 = vsel %vm7816, %v584, -inf
          %v8841 = vsel %vm7817, %v585, -inf
          %v8842 = vsel %vm7818, %v586, -inf
          %v8843 = vsel %vm7819, %v587, -inf
          %v8844 = vsel %vm7820, %v588, -inf
          %v8845 = vsel %vm7821, %v589, -inf
          %v8846 = vsel %vm7822, %v590, -inf
          %v8847 = vsel %vm7823, %v591, -inf
          %v8848 = vsel %vm7824, %v592, -inf
          %v8849 = vsel %vm7825, %v577, -inf
          %v8850 = vsel %vm7826, %v578, -inf
          %v8851 = vsel %vm7827, %v579, -inf
          %v8852 = vsel %vm7828, %v580, -inf
          %v8853 = vsel %vm7829, %v581, -inf
          %v8854 = vsel %vm7830, %v582, -inf
          %v8855 = vsel %vm7831, %v583, -inf
          %v8856 = vsel %vm7832, %v584, -inf
          %v8857 = vsel %vm7833, %v585, -inf
          %v8858 = vsel %vm7834, %v586, -inf
          %v8859 = vsel %vm7835, %v587, -inf
          %v8860 = vsel %vm7836, %v588, -inf
          %v8861 = vsel %vm7837, %v589, -inf
          %v8862 = vsel %vm7838, %v590, -inf
          %v8863 = vsel %vm7839, %v591, -inf
          %v8864 = vsel %vm7840, %v592, -inf
          %v8865 = vsel %vm7841, %v577, -inf
          %v8866 = vsel %vm7842, %v578, -inf
          %v8867 = vsel %vm7843, %v579, -inf
          %v8868 = vsel %vm7844, %v580, -inf
          %v8869 = vsel %vm7845, %v581, -inf
          %v8870 = vsel %vm7846, %v582, -inf
          %v8871 = vsel %vm7847, %v583, -inf
          %v8872 = vsel %vm7848, %v584, -inf
          %v8873 = vsel %vm7849, %v585, -inf
          %v8874 = vsel %vm7850, %v586, -inf
          %v8875 = vsel %vm7851, %v587, -inf
          %v8876 = vsel %vm7852, %v588, -inf
          %v8877 = vsel %vm7853, %v589, -inf
          %v8878 = vsel %vm7854, %v590, -inf
          %v8879 = vsel %vm7855, %v591, -inf
          %v8880 = vsel %vm7856, %v592, -inf
          %v8881 = vsel %vm7857, %v577, -inf
          %v8882 = vsel %vm7858, %v578, -inf
          %v8883 = vsel %vm7859, %v579, -inf
          %v8884 = vsel %vm7860, %v580, -inf
          %v8885 = vsel %vm7861, %v581, -inf
          %v8886 = vsel %vm7862, %v582, -inf
          %v8887 = vsel %vm7863, %v583, -inf
          %v8888 = vsel %vm7864, %v584, -inf
          %v8889 = vsel %vm7865, %v585, -inf
          %v8890 = vsel %vm7866, %v586, -inf
          %v8891 = vsel %vm7867, %v587, -inf
          %v8892 = vsel %vm7868, %v588, -inf
          %v8893 = vsel %vm7869, %v589, -inf
          %v8894 = vsel %vm7870, %v590, -inf
          %v8895 = vsel %vm7871, %v591, -inf
          %v8896 = vsel %vm7872, %v592, -inf
          %v8897 = vsel %vm7873, %v577, -inf
          %v8898 = vsel %vm7874, %v578, -inf
          %v8899 = vsel %vm7875, %v579, -inf
          %v8900 = vsel %vm7876, %v580, -inf
          %v8901 = vsel %vm7877, %v581, -inf
          %v8902 = vsel %vm7878, %v582, -inf
          %v8903 = vsel %vm7879, %v583, -inf
          %v8904 = vsel %vm7880, %v584, -inf
          %v8905 = vsel %vm7881, %v585, -inf
          %v8906 = vsel %vm7882, %v586, -inf
          %v8907 = vsel %vm7883, %v587, -inf
          %v8908 = vsel %vm7884, %v588, -inf
          %v8909 = vsel %vm7885, %v589, -inf
          %v8910 = vsel %vm7886, %v590, -inf
          %v8911 = vsel %vm7887, %v591, -inf
          %v8912 = vsel %vm7888, %v592, -inf
          %v8913 = vsel %vm7889, %v577, -inf
          %v8914 = vsel %vm7890, %v578, -inf
          %v8915 = vsel %vm7891, %v579, -inf
          %v8916 = vsel %vm7892, %v580, -inf
          %v8917 = vsel %vm7893, %v581, -inf
          %v8918 = vsel %vm7894, %v582, -inf
          %v8919 = vsel %vm7895, %v583, -inf
          %v8920 = vsel %vm7896, %v584, -inf
          %v8921 = vsel %vm7897, %v585, -inf
          %v8922 = vsel %vm7898, %v586, -inf
          %v8923 = vsel %vm7899, %v587, -inf
          %v8924 = vsel %vm7900, %v588, -inf
          %v8925 = vsel %vm7901, %v589, -inf
          %v8926 = vsel %vm7902, %v590, -inf
          %v8927 = vsel %vm7903, %v591, -inf
          %v8928 = vsel %vm7904, %v592, -inf
          %v8929 = vsel %vm7905, %v577, -inf
          %v8930 = vsel %vm7906, %v578, -inf
          %v8931 = vsel %vm7907, %v579, -inf
          %v8932 = vsel %vm7908, %v580, -inf
          %v8933 = vsel %vm7909, %v581, -inf
          %v8934 = vsel %vm7910, %v582, -inf
          %v8935 = vsel %vm7911, %v583, -inf
          %v8936 = vsel %vm7912, %v584, -inf
          %v8937 = vsel %vm7913, %v585, -inf
          %v8938 = vsel %vm7914, %v586, -inf
          %v8939 = vsel %vm7915, %v587, -inf
          %v8940 = vsel %vm7916, %v588, -inf
          %v8941 = vsel %vm7917, %v589, -inf
          %v8942 = vsel %vm7918, %v590, -inf
          %v8943 = vsel %vm7919, %v591, -inf
          %v8944 = vsel %vm7920, %v592, -inf
          %v8945 = vsel %vm7921, %v577, -inf
          %v8946 = vsel %vm7922, %v578, -inf
          %v8947 = vsel %vm7923, %v579, -inf
          %v8948 = vsel %vm7924, %v580, -inf
          %v8949 = vsel %vm7925, %v581, -inf
          %v8950 = vsel %vm7926, %v582, -inf
          %v8951 = vsel %vm7927, %v583, -inf
          %v8952 = vsel %vm7928, %v584, -inf
          %v8953 = vsel %vm7929, %v585, -inf
          %v8954 = vsel %vm7930, %v586, -inf
          %v8955 = vsel %vm7931, %v587, -inf
          %v8956 = vsel %vm7932, %v588, -inf
          %v8957 = vsel %vm7933, %v589, -inf
          %v8958 = vsel %vm7934, %v590, -inf
          %v8959 = vsel %vm7935, %v591, -inf
          %v8960 = vsel %vm7936, %v592, -inf
          %v8961 = vsel %vm7937, %v577, -inf
          %v8962 = vsel %vm7938, %v578, -inf
          %v8963 = vsel %vm7939, %v579, -inf
          %v8964 = vsel %vm7940, %v580, -inf
          %v8965 = vsel %vm7941, %v581, -inf
          %v8966 = vsel %vm7942, %v582, -inf
          %v8967 = vsel %vm7943, %v583, -inf
          %v8968 = vsel %vm7944, %v584, -inf
          %v8969 = vsel %vm7945, %v585, -inf
          %v8970 = vsel %vm7946, %v586, -inf
          %v8971 = vsel %vm7947, %v587, -inf
          %v8972 = vsel %vm7948, %v588, -inf
          %v8973 = vsel %vm7949, %v589, -inf
          %v8974 = vsel %vm7950, %v590, -inf
          %v8975 = vsel %vm7951, %v591, -inf
          %v8976 = vsel %vm7952, %v592, -inf
          %v8977 = vmax.f32 %v7953, %v7954
          %v8978 = vmax.f32 %v8977, %v7955
          %v8979 = vmax.f32 %v8978, %v7956
          %v8980 = vmax.f32 %v8979, %v7957
          %v8981 = vmax.f32 %v8980, %v7958
          %v8982 = vmax.f32 %v8981, %v7959
          %v8983 = vmax.f32 %v8982, %v7960
          %v8984 = vmax.f32 %v8983, %v7961
          %v8985 = vmax.f32 %v8984, %v7962
          %v8986 = vmax.f32 %v8985, %v7963
          %v8987 = vmax.f32 %v8986, %v7964
          %v8988 = vmax.f32 %v8987, %v7965
          %v8989 = vmax.f32 %v8988, %v7966
          %v8990 = vmax.f32 %v8989, %v7967
          %v8991 = vmax.f32 %v8990, %v7968
          %v8992 = vrot.slane %v8991, 4
          %v8993 = vmax.f32 %v8991, %v8992
          %v8994 = vrot.slane %v8993, 2
          %v8995 = vmax.f32 %v8993, %v8994
          %v8996 = vrot.slane %v8995, 1
          %v8997 = vmax.f32 %v8995, %v8996
          %v8998 = vmax.f32 %v7969, %v7970
          %v8999 = vmax.f32 %v8998, %v7971
          %v9000 = vmax.f32 %v8999, %v7972
          %v9001 = vmax.f32 %v9000, %v7973
          %v9002 = vmax.f32 %v9001, %v7974
          %v9003 = vmax.f32 %v9002, %v7975
          %v9004 = vmax.f32 %v9003, %v7976
          %v9005 = vmax.f32 %v9004, %v7977
          %v9006 = vmax.f32 %v9005, %v7978
          %v9007 = vmax.f32 %v9006, %v7979
          %v9008 = vmax.f32 %v9007, %v7980
          %v9009 = vmax.f32 %v9008, %v7981
          %v9010 = vmax.f32 %v9009, %v7982
          %v9011 = vmax.f32 %v9010, %v7983
          %v9012 = vmax.f32 %v9011, %v7984
          %v9013 = vrot.slane %v9012, 4
          %v9014 = vmax.f32 %v9012, %v9013
          %v9015 = vrot.slane %v9014, 2
          %v9016 = vmax.f32 %v9014, %v9015
          %v9017 = vrot.slane %v9016, 1
          %v9018 = vmax.f32 %v9016, %v9017
          %v9019 = vmax.f32 %v7985, %v7986
          %v9020 = vmax.f32 %v9019, %v7987
          %v9021 = vmax.f32 %v9020, %v7988
          %v9022 = vmax.f32 %v9021, %v7989
          %v9023 = vmax.f32 %v9022, %v7990
          %v9024 = vmax.f32 %v9023, %v7991
          %v9025 = vmax.f32 %v9024, %v7992
          %v9026 = vmax.f32 %v9025, %v7993
          %v9027 = vmax.f32 %v9026, %v7994
          %v9028 = vmax.f32 %v9027, %v7995
          %v9029 = vmax.f32 %v9028, %v7996
          %v9030 = vmax.f32 %v9029, %v7997
          %v9031 = vmax.f32 %v9030, %v7998
          %v9032 = vmax.f32 %v9031, %v7999
          %v9033 = vmax.f32 %v9032, %v8000
          %v9034 = vrot.slane %v9033, 4
          %v9035 = vmax.f32 %v9033, %v9034
          %v9036 = vrot.slane %v9035, 2
          %v9037 = vmax.f32 %v9035, %v9036
          %v9038 = vrot.slane %v9037, 1
          %v9039 = vmax.f32 %v9037, %v9038
          %v9040 = vmax.f32 %v8001, %v8002
          %v9041 = vmax.f32 %v9040, %v8003
          %v9042 = vmax.f32 %v9041, %v8004
          %v9043 = vmax.f32 %v9042, %v8005
          %v9044 = vmax.f32 %v9043, %v8006
          %v9045 = vmax.f32 %v9044, %v8007
          %v9046 = vmax.f32 %v9045, %v8008
          %v9047 = vmax.f32 %v9046, %v8009
          %v9048 = vmax.f32 %v9047, %v8010
          %v9049 = vmax.f32 %v9048, %v8011
          %v9050 = vmax.f32 %v9049, %v8012
          %v9051 = vmax.f32 %v9050, %v8013
          %v9052 = vmax.f32 %v9051, %v8014
          %v9053 = vmax.f32 %v9052, %v8015
          %v9054 = vmax.f32 %v9053, %v8016
          %v9055 = vrot.slane %v9054, 4
          %v9056 = vmax.f32 %v9054, %v9055
          %v9057 = vrot.slane %v9056, 2
          %v9058 = vmax.f32 %v9056, %v9057
          %v9059 = vrot.slane %v9058, 1
          %v9060 = vmax.f32 %v9058, %v9059
          %v9061 = vmax.f32 %v8017, %v8018
          %v9062 = vmax.f32 %v9061, %v8019
          %v9063 = vmax.f32 %v9062, %v8020
          %v9064 = vmax.f32 %v9063, %v8021
          %v9065 = vmax.f32 %v9064, %v8022
          %v9066 = vmax.f32 %v9065, %v8023
          %v9067 = vmax.f32 %v9066, %v8024
          %v9068 = vmax.f32 %v9067, %v8025
          %v9069 = vmax.f32 %v9068, %v8026
          %v9070 = vmax.f32 %v9069, %v8027
          %v9071 = vmax.f32 %v9070, %v8028
          %v9072 = vmax.f32 %v9071, %v8029
          %v9073 = vmax.f32 %v9072, %v8030
          %v9074 = vmax.f32 %v9073, %v8031
          %v9075 = vmax.f32 %v9074, %v8032
          %v9076 = vrot.slane %v9075, 4
          %v9077 = vmax.f32 %v9075, %v9076
          %v9078 = vrot.slane %v9077, 2
          %v9079 = vmax.f32 %v9077, %v9078
          %v9080 = vrot.slane %v9079, 1
          %v9081 = vmax.f32 %v9079, %v9080
          %v9082 = vmax.f32 %v8033, %v8034
          %v9083 = vmax.f32 %v9082, %v8035
          %v9084 = vmax.f32 %v9083, %v8036
          %v9085 = vmax.f32 %v9084, %v8037
          %v9086 = vmax.f32 %v9085, %v8038
          %v9087 = vmax.f32 %v9086, %v8039
          %v9088 = vmax.f32 %v9087, %v8040
          %v9089 = vmax.f32 %v9088, %v8041
          %v9090 = vmax.f32 %v9089, %v8042
          %v9091 = vmax.f32 %v9090, %v8043
          %v9092 = vmax.f32 %v9091, %v8044
          %v9093 = vmax.f32 %v9092, %v8045
          %v9094 = vmax.f32 %v9093, %v8046
          %v9095 = vmax.f32 %v9094, %v8047
          %v9096 = vmax.f32 %v9095, %v8048
          %v9097 = vrot.slane %v9096, 4
          %v9098 = vmax.f32 %v9096, %v9097
          %v9099 = vrot.slane %v9098, 2
          %v9100 = vmax.f32 %v9098, %v9099
          %v9101 = vrot.slane %v9100, 1
          %v9102 = vmax.f32 %v9100, %v9101
          %v9103 = vmax.f32 %v8049, %v8050
          %v9104 = vmax.f32 %v9103, %v8051
          %v9105 = vmax.f32 %v9104, %v8052
          %v9106 = vmax.f32 %v9105, %v8053
          %v9107 = vmax.f32 %v9106, %v8054
          %v9108 = vmax.f32 %v9107, %v8055
          %v9109 = vmax.f32 %v9108, %v8056
          %v9110 = vmax.f32 %v9109, %v8057
          %v9111 = vmax.f32 %v9110, %v8058
          %v9112 = vmax.f32 %v9111, %v8059
          %v9113 = vmax.f32 %v9112, %v8060
          %v9114 = vmax.f32 %v9113, %v8061
          %v9115 = vmax.f32 %v9114, %v8062
          %v9116 = vmax.f32 %v9115, %v8063
          %v9117 = vmax.f32 %v9116, %v8064
          %v9118 = vrot.slane %v9117, 4
          %v9119 = vmax.f32 %v9117, %v9118
          %v9120 = vrot.slane %v9119, 2
          %v9121 = vmax.f32 %v9119, %v9120
          %v9122 = vrot.slane %v9121, 1
          %v9123 = vmax.f32 %v9121, %v9122
          %v9124 = vmax.f32 %v8065, %v8066
          %v9125 = vmax.f32 %v9124, %v8067
          %v9126 = vmax.f32 %v9125, %v8068
          %v9127 = vmax.f32 %v9126, %v8069
          %v9128 = vmax.f32 %v9127, %v8070
          %v9129 = vmax.f32 %v9128, %v8071
          %v9130 = vmax.f32 %v9129, %v8072
          %v9131 = vmax.f32 %v9130, %v8073
          %v9132 = vmax.f32 %v9131, %v8074
          %v9133 = vmax.f32 %v9132, %v8075
          %v9134 = vmax.f32 %v9133, %v8076
          %v9135 = vmax.f32 %v9134, %v8077
          %v9136 = vmax.f32 %v9135, %v8078
          %v9137 = vmax.f32 %v9136, %v8079
          %v9138 = vmax.f32 %v9137, %v8080
          %v9139 = vrot.slane %v9138, 4
          %v9140 = vmax.f32 %v9138, %v9139
          %v9141 = vrot.slane %v9140, 2
          %v9142 = vmax.f32 %v9140, %v9141
          %v9143 = vrot.slane %v9142, 1
          %v9144 = vmax.f32 %v9142, %v9143
          %v9145 = vmax.f32 %v8081, %v8082
          %v9146 = vmax.f32 %v9145, %v8083
          %v9147 = vmax.f32 %v9146, %v8084
          %v9148 = vmax.f32 %v9147, %v8085
          %v9149 = vmax.f32 %v9148, %v8086
          %v9150 = vmax.f32 %v9149, %v8087
          %v9151 = vmax.f32 %v9150, %v8088
          %v9152 = vmax.f32 %v9151, %v8089
          %v9153 = vmax.f32 %v9152, %v8090
          %v9154 = vmax.f32 %v9153, %v8091
          %v9155 = vmax.f32 %v9154, %v8092
          %v9156 = vmax.f32 %v9155, %v8093
          %v9157 = vmax.f32 %v9156, %v8094
          %v9158 = vmax.f32 %v9157, %v8095
          %v9159 = vmax.f32 %v9158, %v8096
          %v9160 = vrot.slane %v9159, 4
          %v9161 = vmax.f32 %v9159, %v9160
          %v9162 = vrot.slane %v9161, 2
          %v9163 = vmax.f32 %v9161, %v9162
          %v9164 = vrot.slane %v9163, 1
          %v9165 = vmax.f32 %v9163, %v9164
          %v9166 = vmax.f32 %v8097, %v8098
          %v9167 = vmax.f32 %v9166, %v8099
          %v9168 = vmax.f32 %v9167, %v8100
          %v9169 = vmax.f32 %v9168, %v8101
          %v9170 = vmax.f32 %v9169, %v8102
          %v9171 = vmax.f32 %v9170, %v8103
          %v9172 = vmax.f32 %v9171, %v8104
          %v9173 = vmax.f32 %v9172, %v8105
          %v9174 = vmax.f32 %v9173, %v8106
          %v9175 = vmax.f32 %v9174, %v8107
          %v9176 = vmax.f32 %v9175, %v8108
          %v9177 = vmax.f32 %v9176, %v8109
          %v9178 = vmax.f32 %v9177, %v8110
          %v9179 = vmax.f32 %v9178, %v8111
          %v9180 = vmax.f32 %v9179, %v8112
          %v9181 = vrot.slane %v9180, 4
          %v9182 = vmax.f32 %v9180, %v9181
          %v9183 = vrot.slane %v9182, 2
          %v9184 = vmax.f32 %v9182, %v9183
          %v9185 = vrot.slane %v9184, 1
          %v9186 = vmax.f32 %v9184, %v9185
          %v9187 = vmax.f32 %v8113, %v8114
          %v9188 = vmax.f32 %v9187, %v8115
          %v9189 = vmax.f32 %v9188, %v8116
          %v9190 = vmax.f32 %v9189, %v8117
          %v9191 = vmax.f32 %v9190, %v8118
          %v9192 = vmax.f32 %v9191, %v8119
          %v9193 = vmax.f32 %v9192, %v8120
          %v9194 = vmax.f32 %v9193, %v8121
          %v9195 = vmax.f32 %v9194, %v8122
          %v9196 = vmax.f32 %v9195, %v8123
          %v9197 = vmax.f32 %v9196, %v8124
          %v9198 = vmax.f32 %v9197, %v8125
          %v9199 = vmax.f32 %v9198, %v8126
          %v9200 = vmax.f32 %v9199, %v8127
          %v9201 = vmax.f32 %v9200, %v8128
          %v9202 = vrot.slane %v9201, 4
          %v9203 = vmax.f32 %v9201, %v9202
          %v9204 = vrot.slane %v9203, 2
          %v9205 = vmax.f32 %v9203, %v9204
          %v9206 = vrot.slane %v9205, 1
          %v9207 = vmax.f32 %v9205, %v9206
          %v9208 = vmax.f32 %v8129, %v8130
          %v9209 = vmax.f32 %v9208, %v8131
          %v9210 = vmax.f32 %v9209, %v8132
          %v9211 = vmax.f32 %v9210, %v8133
          %v9212 = vmax.f32 %v9211, %v8134
          %v9213 = vmax.f32 %v9212, %v8135
          %v9214 = vmax.f32 %v9213, %v8136
          %v9215 = vmax.f32 %v9214, %v8137
          %v9216 = vmax.f32 %v9215, %v8138
          %v9217 = vmax.f32 %v9216, %v8139
          %v9218 = vmax.f32 %v9217, %v8140
          %v9219 = vmax.f32 %v9218, %v8141
          %v9220 = vmax.f32 %v9219, %v8142
          %v9221 = vmax.f32 %v9220, %v8143
          %v9222 = vmax.f32 %v9221, %v8144
          %v9223 = vrot.slane %v9222, 4
          %v9224 = vmax.f32 %v9222, %v9223
          %v9225 = vrot.slane %v9224, 2
          %v9226 = vmax.f32 %v9224, %v9225
          %v9227 = vrot.slane %v9226, 1
          %v9228 = vmax.f32 %v9226, %v9227
          %v9229 = vmax.f32 %v8145, %v8146
          %v9230 = vmax.f32 %v9229, %v8147
          %v9231 = vmax.f32 %v9230, %v8148
          %v9232 = vmax.f32 %v9231, %v8149
          %v9233 = vmax.f32 %v9232, %v8150
          %v9234 = vmax.f32 %v9233, %v8151
          %v9235 = vmax.f32 %v9234, %v8152
          %v9236 = vmax.f32 %v9235, %v8153
          %v9237 = vmax.f32 %v9236, %v8154
          %v9238 = vmax.f32 %v9237, %v8155
          %v9239 = vmax.f32 %v9238, %v8156
          %v9240 = vmax.f32 %v9239, %v8157
          %v9241 = vmax.f32 %v9240, %v8158
          %v9242 = vmax.f32 %v9241, %v8159
          %v9243 = vmax.f32 %v9242, %v8160
          %v9244 = vrot.slane %v9243, 4
          %v9245 = vmax.f32 %v9243, %v9244
          %v9246 = vrot.slane %v9245, 2
          %v9247 = vmax.f32 %v9245, %v9246
          %v9248 = vrot.slane %v9247, 1
          %v9249 = vmax.f32 %v9247, %v9248
          %v9250 = vmax.f32 %v8161, %v8162
          %v9251 = vmax.f32 %v9250, %v8163
          %v9252 = vmax.f32 %v9251, %v8164
          %v9253 = vmax.f32 %v9252, %v8165
          %v9254 = vmax.f32 %v9253, %v8166
          %v9255 = vmax.f32 %v9254, %v8167
          %v9256 = vmax.f32 %v9255, %v8168
          %v9257 = vmax.f32 %v9256, %v8169
          %v9258 = vmax.f32 %v9257, %v8170
          %v9259 = vmax.f32 %v9258, %v8171
          %v9260 = vmax.f32 %v9259, %v8172
          %v9261 = vmax.f32 %v9260, %v8173
          %v9262 = vmax.f32 %v9261, %v8174
          %v9263 = vmax.f32 %v9262, %v8175
          %v9264 = vmax.f32 %v9263, %v8176
          %v9265 = vrot.slane %v9264, 4
          %v9266 = vmax.f32 %v9264, %v9265
          %v9267 = vrot.slane %v9266, 2
          %v9268 = vmax.f32 %v9266, %v9267
          %v9269 = vrot.slane %v9268, 1
          %v9270 = vmax.f32 %v9268, %v9269
          %v9271 = vmax.f32 %v8177, %v8178
          %v9272 = vmax.f32 %v9271, %v8179
          %v9273 = vmax.f32 %v9272, %v8180
          %v9274 = vmax.f32 %v9273, %v8181
          %v9275 = vmax.f32 %v9274, %v8182
          %v9276 = vmax.f32 %v9275, %v8183
          %v9277 = vmax.f32 %v9276, %v8184
          %v9278 = vmax.f32 %v9277, %v8185
          %v9279 = vmax.f32 %v9278, %v8186
          %v9280 = vmax.f32 %v9279, %v8187
          %v9281 = vmax.f32 %v9280, %v8188
          %v9282 = vmax.f32 %v9281, %v8189
          %v9283 = vmax.f32 %v9282, %v8190
          %v9284 = vmax.f32 %v9283, %v8191
          %v9285 = vmax.f32 %v9284, %v8192
          %v9286 = vrot.slane %v9285, 4
          %v9287 = vmax.f32 %v9285, %v9286
          %v9288 = vrot.slane %v9287, 2
          %v9289 = vmax.f32 %v9287, %v9288
          %v9290 = vrot.slane %v9289, 1
          %v9291 = vmax.f32 %v9289, %v9290
          %v9292 = vmax.f32 %v8193, %v8194
          %v9293 = vmax.f32 %v9292, %v8195
          %v9294 = vmax.f32 %v9293, %v8196
          %v9295 = vmax.f32 %v9294, %v8197
          %v9296 = vmax.f32 %v9295, %v8198
          %v9297 = vmax.f32 %v9296, %v8199
          %v9298 = vmax.f32 %v9297, %v8200
          %v9299 = vmax.f32 %v9298, %v8201
          %v9300 = vmax.f32 %v9299, %v8202
          %v9301 = vmax.f32 %v9300, %v8203
          %v9302 = vmax.f32 %v9301, %v8204
          %v9303 = vmax.f32 %v9302, %v8205
          %v9304 = vmax.f32 %v9303, %v8206
          %v9305 = vmax.f32 %v9304, %v8207
          %v9306 = vmax.f32 %v9305, %v8208
          %v9307 = vrot.slane %v9306, 4
          %v9308 = vmax.f32 %v9306, %v9307
          %v9309 = vrot.slane %v9308, 2
          %v9310 = vmax.f32 %v9308, %v9309
          %v9311 = vrot.slane %v9310, 1
          %v9312 = vmax.f32 %v9310, %v9311
          %v9313 = vmax.f32 %v8209, %v8210
          %v9314 = vmax.f32 %v9313, %v8211
          %v9315 = vmax.f32 %v9314, %v8212
          %v9316 = vmax.f32 %v9315, %v8213
          %v9317 = vmax.f32 %v9316, %v8214
          %v9318 = vmax.f32 %v9317, %v8215
          %v9319 = vmax.f32 %v9318, %v8216
          %v9320 = vmax.f32 %v9319, %v8217
          %v9321 = vmax.f32 %v9320, %v8218
          %v9322 = vmax.f32 %v9321, %v8219
          %v9323 = vmax.f32 %v9322, %v8220
          %v9324 = vmax.f32 %v9323, %v8221
          %v9325 = vmax.f32 %v9324, %v8222
          %v9326 = vmax.f32 %v9325, %v8223
          %v9327 = vmax.f32 %v9326, %v8224
          %v9328 = vrot.slane %v9327, 4
          %v9329 = vmax.f32 %v9327, %v9328
          %v9330 = vrot.slane %v9329, 2
          %v9331 = vmax.f32 %v9329, %v9330
          %v9332 = vrot.slane %v9331, 1
          %v9333 = vmax.f32 %v9331, %v9332
          %v9334 = vmax.f32 %v8225, %v8226
          %v9335 = vmax.f32 %v9334, %v8227
          %v9336 = vmax.f32 %v9335, %v8228
          %v9337 = vmax.f32 %v9336, %v8229
          %v9338 = vmax.f32 %v9337, %v8230
          %v9339 = vmax.f32 %v9338, %v8231
          %v9340 = vmax.f32 %v9339, %v8232
          %v9341 = vmax.f32 %v9340, %v8233
          %v9342 = vmax.f32 %v9341, %v8234
          %v9343 = vmax.f32 %v9342, %v8235
          %v9344 = vmax.f32 %v9343, %v8236
          %v9345 = vmax.f32 %v9344, %v8237
          %v9346 = vmax.f32 %v9345, %v8238
          %v9347 = vmax.f32 %v9346, %v8239
          %v9348 = vmax.f32 %v9347, %v8240
          %v9349 = vrot.slane %v9348, 4
          %v9350 = vmax.f32 %v9348, %v9349
          %v9351 = vrot.slane %v9350, 2
          %v9352 = vmax.f32 %v9350, %v9351
          %v9353 = vrot.slane %v9352, 1
          %v9354 = vmax.f32 %v9352, %v9353
          %v9355 = vmax.f32 %v8241, %v8242
          %v9356 = vmax.f32 %v9355, %v8243
          %v9357 = vmax.f32 %v9356, %v8244
          %v9358 = vmax.f32 %v9357, %v8245
          %v9359 = vmax.f32 %v9358, %v8246
          %v9360 = vmax.f32 %v9359, %v8247
          %v9361 = vmax.f32 %v9360, %v8248
          %v9362 = vmax.f32 %v9361, %v8249
          %v9363 = vmax.f32 %v9362, %v8250
          %v9364 = vmax.f32 %v9363, %v8251
          %v9365 = vmax.f32 %v9364, %v8252
          %v9366 = vmax.f32 %v9365, %v8253
          %v9367 = vmax.f32 %v9366, %v8254
          %v9368 = vmax.f32 %v9367, %v8255
          %v9369 = vmax.f32 %v9368, %v8256
          %v9370 = vrot.slane %v9369, 4
          %v9371 = vmax.f32 %v9369, %v9370
          %v9372 = vrot.slane %v9371, 2
          %v9373 = vmax.f32 %v9371, %v9372
          %v9374 = vrot.slane %v9373, 1
          %v9375 = vmax.f32 %v9373, %v9374
          %v9376 = vmax.f32 %v8257, %v8258
          %v9377 = vmax.f32 %v9376, %v8259
          %v9378 = vmax.f32 %v9377, %v8260
          %v9379 = vmax.f32 %v9378, %v8261
          %v9380 = vmax.f32 %v9379, %v8262
          %v9381 = vmax.f32 %v9380, %v8263
          %v9382 = vmax.f32 %v9381, %v8264
          %v9383 = vmax.f32 %v9382, %v8265
          %v9384 = vmax.f32 %v9383, %v8266
          %v9385 = vmax.f32 %v9384, %v8267
          %v9386 = vmax.f32 %v9385, %v8268
          %v9387 = vmax.f32 %v9386, %v8269
          %v9388 = vmax.f32 %v9387, %v8270
          %v9389 = vmax.f32 %v9388, %v8271
          %v9390 = vmax.f32 %v9389, %v8272
          %v9391 = vrot.slane %v9390, 4
          %v9392 = vmax.f32 %v9390, %v9391
          %v9393 = vrot.slane %v9392, 2
          %v9394 = vmax.f32 %v9392, %v9393
          %v9395 = vrot.slane %v9394, 1
          %v9396 = vmax.f32 %v9394, %v9395
          %v9397 = vmax.f32 %v8273, %v8274
          %v9398 = vmax.f32 %v9397, %v8275
          %v9399 = vmax.f32 %v9398, %v8276
          %v9400 = vmax.f32 %v9399, %v8277
          %v9401 = vmax.f32 %v9400, %v8278
          %v9402 = vmax.f32 %v9401, %v8279
          %v9403 = vmax.f32 %v9402, %v8280
          %v9404 = vmax.f32 %v9403, %v8281
          %v9405 = vmax.f32 %v9404, %v8282
          %v9406 = vmax.f32 %v9405, %v8283
          %v9407 = vmax.f32 %v9406, %v8284
          %v9408 = vmax.f32 %v9407, %v8285
          %v9409 = vmax.f32 %v9408, %v8286
          %v9410 = vmax.f32 %v9409, %v8287
          %v9411 = vmax.f32 %v9410, %v8288
          %v9412 = vrot.slane %v9411, 4
          %v9413 = vmax.f32 %v9411, %v9412
          %v9414 = vrot.slane %v9413, 2
          %v9415 = vmax.f32 %v9413, %v9414
          %v9416 = vrot.slane %v9415, 1
          %v9417 = vmax.f32 %v9415, %v9416
          %v9418 = vmax.f32 %v8289, %v8290
          %v9419 = vmax.f32 %v9418, %v8291
          %v9420 = vmax.f32 %v9419, %v8292
          %v9421 = vmax.f32 %v9420, %v8293
          %v9422 = vmax.f32 %v9421, %v8294
          %v9423 = vmax.f32 %v9422, %v8295
          %v9424 = vmax.f32 %v9423, %v8296
          %v9425 = vmax.f32 %v9424, %v8297
          %v9426 = vmax.f32 %v9425, %v8298
          %v9427 = vmax.f32 %v9426, %v8299
          %v9428 = vmax.f32 %v9427, %v8300
          %v9429 = vmax.f32 %v9428, %v8301
          %v9430 = vmax.f32 %v9429, %v8302
          %v9431 = vmax.f32 %v9430, %v8303
          %v9432 = vmax.f32 %v9431, %v8304
          %v9433 = vrot.slane %v9432, 4
          %v9434 = vmax.f32 %v9432, %v9433
          %v9435 = vrot.slane %v9434, 2
          %v9436 = vmax.f32 %v9434, %v9435
          %v9437 = vrot.slane %v9436, 1
          %v9438 = vmax.f32 %v9436, %v9437
          %v9439 = vmax.f32 %v8305, %v8306
          %v9440 = vmax.f32 %v9439, %v8307
          %v9441 = vmax.f32 %v9440, %v8308
          %v9442 = vmax.f32 %v9441, %v8309
          %v9443 = vmax.f32 %v9442, %v8310
          %v9444 = vmax.f32 %v9443, %v8311
          %v9445 = vmax.f32 %v9444, %v8312
          %v9446 = vmax.f32 %v9445, %v8313
          %v9447 = vmax.f32 %v9446, %v8314
          %v9448 = vmax.f32 %v9447, %v8315
          %v9449 = vmax.f32 %v9448, %v8316
          %v9450 = vmax.f32 %v9449, %v8317
          %v9451 = vmax.f32 %v9450, %v8318
          %v9452 = vmax.f32 %v9451, %v8319
          %v9453 = vmax.f32 %v9452, %v8320
          %v9454 = vrot.slane %v9453, 4
          %v9455 = vmax.f32 %v9453, %v9454
          %v9456 = vrot.slane %v9455, 2
          %v9457 = vmax.f32 %v9455, %v9456
          %v9458 = vrot.slane %v9457, 1
          %v9459 = vmax.f32 %v9457, %v9458
          %v9460 = vmax.f32 %v8321, %v8322
          %v9461 = vmax.f32 %v9460, %v8323
          %v9462 = vmax.f32 %v9461, %v8324
          %v9463 = vmax.f32 %v9462, %v8325
          %v9464 = vmax.f32 %v9463, %v8326
          %v9465 = vmax.f32 %v9464, %v8327
          %v9466 = vmax.f32 %v9465, %v8328
          %v9467 = vmax.f32 %v9466, %v8329
          %v9468 = vmax.f32 %v9467, %v8330
          %v9469 = vmax.f32 %v9468, %v8331
          %v9470 = vmax.f32 %v9469, %v8332
          %v9471 = vmax.f32 %v9470, %v8333
          %v9472 = vmax.f32 %v9471, %v8334
          %v9473 = vmax.f32 %v9472, %v8335
          %v9474 = vmax.f32 %v9473, %v8336
          %v9475 = vrot.slane %v9474, 4
          %v9476 = vmax.f32 %v9474, %v9475
          %v9477 = vrot.slane %v9476, 2
          %v9478 = vmax.f32 %v9476, %v9477
          %v9479 = vrot.slane %v9478, 1
          %v9480 = vmax.f32 %v9478, %v9479
          %v9481 = vmax.f32 %v8337, %v8338
          %v9482 = vmax.f32 %v9481, %v8339
          %v9483 = vmax.f32 %v9482, %v8340
          %v9484 = vmax.f32 %v9483, %v8341
          %v9485 = vmax.f32 %v9484, %v8342
          %v9486 = vmax.f32 %v9485, %v8343
          %v9487 = vmax.f32 %v9486, %v8344
          %v9488 = vmax.f32 %v9487, %v8345
          %v9489 = vmax.f32 %v9488, %v8346
          %v9490 = vmax.f32 %v9489, %v8347
          %v9491 = vmax.f32 %v9490, %v8348
          %v9492 = vmax.f32 %v9491, %v8349
          %v9493 = vmax.f32 %v9492, %v8350
          %v9494 = vmax.f32 %v9493, %v8351
          %v9495 = vmax.f32 %v9494, %v8352
          %v9496 = vrot.slane %v9495, 4
          %v9497 = vmax.f32 %v9495, %v9496
          %v9498 = vrot.slane %v9497, 2
          %v9499 = vmax.f32 %v9497, %v9498
          %v9500 = vrot.slane %v9499, 1
          %v9501 = vmax.f32 %v9499, %v9500
          %v9502 = vmax.f32 %v8353, %v8354
          %v9503 = vmax.f32 %v9502, %v8355
          %v9504 = vmax.f32 %v9503, %v8356
          %v9505 = vmax.f32 %v9504, %v8357
          %v9506 = vmax.f32 %v9505, %v8358
          %v9507 = vmax.f32 %v9506, %v8359
          %v9508 = vmax.f32 %v9507, %v8360
          %v9509 = vmax.f32 %v9508, %v8361
          %v9510 = vmax.f32 %v9509, %v8362
          %v9511 = vmax.f32 %v9510, %v8363
          %v9512 = vmax.f32 %v9511, %v8364
          %v9513 = vmax.f32 %v9512, %v8365
          %v9514 = vmax.f32 %v9513, %v8366
          %v9515 = vmax.f32 %v9514, %v8367
          %v9516 = vmax.f32 %v9515, %v8368
          %v9517 = vrot.slane %v9516, 4
          %v9518 = vmax.f32 %v9516, %v9517
          %v9519 = vrot.slane %v9518, 2
          %v9520 = vmax.f32 %v9518, %v9519
          %v9521 = vrot.slane %v9520, 1
          %v9522 = vmax.f32 %v9520, %v9521
          %v9523 = vmax.f32 %v8369, %v8370
          %v9524 = vmax.f32 %v9523, %v8371
          %v9525 = vmax.f32 %v9524, %v8372
          %v9526 = vmax.f32 %v9525, %v8373
          %v9527 = vmax.f32 %v9526, %v8374
          %v9528 = vmax.f32 %v9527, %v8375
          %v9529 = vmax.f32 %v9528, %v8376
          %v9530 = vmax.f32 %v9529, %v8377
          %v9531 = vmax.f32 %v9530, %v8378
          %v9532 = vmax.f32 %v9531, %v8379
          %v9533 = vmax.f32 %v9532, %v8380
          %v9534 = vmax.f32 %v9533, %v8381
          %v9535 = vmax.f32 %v9534, %v8382
          %v9536 = vmax.f32 %v9535, %v8383
          %v9537 = vmax.f32 %v9536, %v8384
          %v9538 = vrot.slane %v9537, 4
          %v9539 = vmax.f32 %v9537, %v9538
          %v9540 = vrot.slane %v9539, 2
          %v9541 = vmax.f32 %v9539, %v9540
          %v9542 = vrot.slane %v9541, 1
          %v9543 = vmax.f32 %v9541, %v9542
          %v9544 = vmax.f32 %v8385, %v8386
          %v9545 = vmax.f32 %v9544, %v8387
          %v9546 = vmax.f32 %v9545, %v8388
          %v9547 = vmax.f32 %v9546, %v8389
          %v9548 = vmax.f32 %v9547, %v8390
          %v9549 = vmax.f32 %v9548, %v8391
          %v9550 = vmax.f32 %v9549, %v8392
          %v9551 = vmax.f32 %v9550, %v8393
          %v9552 = vmax.f32 %v9551, %v8394
          %v9553 = vmax.f32 %v9552, %v8395
          %v9554 = vmax.f32 %v9553, %v8396
          %v9555 = vmax.f32 %v9554, %v8397
          %v9556 = vmax.f32 %v9555, %v8398
          %v9557 = vmax.f32 %v9556, %v8399
          %v9558 = vmax.f32 %v9557, %v8400
          %v9559 = vrot.slane %v9558, 4
          %v9560 = vmax.f32 %v9558, %v9559
          %v9561 = vrot.slane %v9560, 2
          %v9562 = vmax.f32 %v9560, %v9561
          %v9563 = vrot.slane %v9562, 1
          %v9564 = vmax.f32 %v9562, %v9563
          %v9565 = vmax.f32 %v8401, %v8402
          %v9566 = vmax.f32 %v9565, %v8403
          %v9567 = vmax.f32 %v9566, %v8404
          %v9568 = vmax.f32 %v9567, %v8405
          %v9569 = vmax.f32 %v9568, %v8406
          %v9570 = vmax.f32 %v9569, %v8407
          %v9571 = vmax.f32 %v9570, %v8408
          %v9572 = vmax.f32 %v9571, %v8409
          %v9573 = vmax.f32 %v9572, %v8410
          %v9574 = vmax.f32 %v9573, %v8411
          %v9575 = vmax.f32 %v9574, %v8412
          %v9576 = vmax.f32 %v9575, %v8413
          %v9577 = vmax.f32 %v9576, %v8414
          %v9578 = vmax.f32 %v9577, %v8415
          %v9579 = vmax.f32 %v9578, %v8416
          %v9580 = vrot.slane %v9579, 4
          %v9581 = vmax.f32 %v9579, %v9580
          %v9582 = vrot.slane %v9581, 2
          %v9583 = vmax.f32 %v9581, %v9582
          %v9584 = vrot.slane %v9583, 1
          %v9585 = vmax.f32 %v9583, %v9584
          %v9586 = vmax.f32 %v8417, %v8418
          %v9587 = vmax.f32 %v9586, %v8419
          %v9588 = vmax.f32 %v9587, %v8420
          %v9589 = vmax.f32 %v9588, %v8421
          %v9590 = vmax.f32 %v9589, %v8422
          %v9591 = vmax.f32 %v9590, %v8423
          %v9592 = vmax.f32 %v9591, %v8424
          %v9593 = vmax.f32 %v9592, %v8425
          %v9594 = vmax.f32 %v9593, %v8426
          %v9595 = vmax.f32 %v9594, %v8427
          %v9596 = vmax.f32 %v9595, %v8428
          %v9597 = vmax.f32 %v9596, %v8429
          %v9598 = vmax.f32 %v9597, %v8430
          %v9599 = vmax.f32 %v9598, %v8431
          %v9600 = vmax.f32 %v9599, %v8432
          %v9601 = vrot.slane %v9600, 4
          %v9602 = vmax.f32 %v9600, %v9601
          %v9603 = vrot.slane %v9602, 2
          %v9604 = vmax.f32 %v9602, %v9603
          %v9605 = vrot.slane %v9604, 1
          %v9606 = vmax.f32 %v9604, %v9605
          %v9607 = vmax.f32 %v8433, %v8434
          %v9608 = vmax.f32 %v9607, %v8435
          %v9609 = vmax.f32 %v9608, %v8436
          %v9610 = vmax.f32 %v9609, %v8437
          %v9611 = vmax.f32 %v9610, %v8438
          %v9612 = vmax.f32 %v9611, %v8439
          %v9613 = vmax.f32 %v9612, %v8440
          %v9614 = vmax.f32 %v9613, %v8441
          %v9615 = vmax.f32 %v9614, %v8442
          %v9616 = vmax.f32 %v9615, %v8443
          %v9617 = vmax.f32 %v9616, %v8444
          %v9618 = vmax.f32 %v9617, %v8445
          %v9619 = vmax.f32 %v9618, %v8446
          %v9620 = vmax.f32 %v9619, %v8447
          %v9621 = vmax.f32 %v9620, %v8448
          %v9622 = vrot.slane %v9621, 4
          %v9623 = vmax.f32 %v9621, %v9622
          %v9624 = vrot.slane %v9623, 2
          %v9625 = vmax.f32 %v9623, %v9624
          %v9626 = vrot.slane %v9625, 1
          %v9627 = vmax.f32 %v9625, %v9626
          %v9628 = vmax.f32 %v8449, %v8450
          %v9629 = vmax.f32 %v9628, %v8451
          %v9630 = vmax.f32 %v9629, %v8452
          %v9631 = vmax.f32 %v9630, %v8453
          %v9632 = vmax.f32 %v9631, %v8454
          %v9633 = vmax.f32 %v9632, %v8455
          %v9634 = vmax.f32 %v9633, %v8456
          %v9635 = vmax.f32 %v9634, %v8457
          %v9636 = vmax.f32 %v9635, %v8458
          %v9637 = vmax.f32 %v9636, %v8459
          %v9638 = vmax.f32 %v9637, %v8460
          %v9639 = vmax.f32 %v9638, %v8461
          %v9640 = vmax.f32 %v9639, %v8462
          %v9641 = vmax.f32 %v9640, %v8463
          %v9642 = vmax.f32 %v9641, %v8464
          %v9643 = vrot.slane %v9642, 4
          %v9644 = vmax.f32 %v9642, %v9643
          %v9645 = vrot.slane %v9644, 2
          %v9646 = vmax.f32 %v9644, %v9645
          %v9647 = vrot.slane %v9646, 1
          %v9648 = vmax.f32 %v9646, %v9647
          %v9649 = vmax.f32 %v8465, %v8466
          %v9650 = vmax.f32 %v9649, %v8467
          %v9651 = vmax.f32 %v9650, %v8468
          %v9652 = vmax.f32 %v9651, %v8469
          %v9653 = vmax.f32 %v9652, %v8470
          %v9654 = vmax.f32 %v9653, %v8471
          %v9655 = vmax.f32 %v9654, %v8472
          %v9656 = vmax.f32 %v9655, %v8473
          %v9657 = vmax.f32 %v9656, %v8474
          %v9658 = vmax.f32 %v9657, %v8475
          %v9659 = vmax.f32 %v9658, %v8476
          %v9660 = vmax.f32 %v9659, %v8477
          %v9661 = vmax.f32 %v9660, %v8478
          %v9662 = vmax.f32 %v9661, %v8479
          %v9663 = vmax.f32 %v9662, %v8480
          %v9664 = vrot.slane %v9663, 4
          %v9665 = vmax.f32 %v9663, %v9664
          %v9666 = vrot.slane %v9665, 2
          %v9667 = vmax.f32 %v9665, %v9666
          %v9668 = vrot.slane %v9667, 1
          %v9669 = vmax.f32 %v9667, %v9668
          %v9670 = vmax.f32 %v8481, %v8482
          %v9671 = vmax.f32 %v9670, %v8483
          %v9672 = vmax.f32 %v9671, %v8484
          %v9673 = vmax.f32 %v9672, %v8485
          %v9674 = vmax.f32 %v9673, %v8486
          %v9675 = vmax.f32 %v9674, %v8487
          %v9676 = vmax.f32 %v9675, %v8488
          %v9677 = vmax.f32 %v9676, %v8489
          %v9678 = vmax.f32 %v9677, %v8490
          %v9679 = vmax.f32 %v9678, %v8491
          %v9680 = vmax.f32 %v9679, %v8492
          %v9681 = vmax.f32 %v9680, %v8493
          %v9682 = vmax.f32 %v9681, %v8494
          %v9683 = vmax.f32 %v9682, %v8495
          %v9684 = vmax.f32 %v9683, %v8496
          %v9685 = vrot.slane %v9684, 4
          %v9686 = vmax.f32 %v9684, %v9685
          %v9687 = vrot.slane %v9686, 2
          %v9688 = vmax.f32 %v9686, %v9687
          %v9689 = vrot.slane %v9688, 1
          %v9690 = vmax.f32 %v9688, %v9689
          %v9691 = vmax.f32 %v8497, %v8498
          %v9692 = vmax.f32 %v9691, %v8499
          %v9693 = vmax.f32 %v9692, %v8500
          %v9694 = vmax.f32 %v9693, %v8501
          %v9695 = vmax.f32 %v9694, %v8502
          %v9696 = vmax.f32 %v9695, %v8503
          %v9697 = vmax.f32 %v9696, %v8504
          %v9698 = vmax.f32 %v9697, %v8505
          %v9699 = vmax.f32 %v9698, %v8506
          %v9700 = vmax.f32 %v9699, %v8507
          %v9701 = vmax.f32 %v9700, %v8508
          %v9702 = vmax.f32 %v9701, %v8509
          %v9703 = vmax.f32 %v9702, %v8510
          %v9704 = vmax.f32 %v9703, %v8511
          %v9705 = vmax.f32 %v9704, %v8512
          %v9706 = vrot.slane %v9705, 4
          %v9707 = vmax.f32 %v9705, %v9706
          %v9708 = vrot.slane %v9707, 2
          %v9709 = vmax.f32 %v9707, %v9708
          %v9710 = vrot.slane %v9709, 1
          %v9711 = vmax.f32 %v9709, %v9710
          %v9712 = vmax.f32 %v8513, %v8514
          %v9713 = vmax.f32 %v9712, %v8515
          %v9714 = vmax.f32 %v9713, %v8516
          %v9715 = vmax.f32 %v9714, %v8517
          %v9716 = vmax.f32 %v9715, %v8518
          %v9717 = vmax.f32 %v9716, %v8519
          %v9718 = vmax.f32 %v9717, %v8520
          %v9719 = vmax.f32 %v9718, %v8521
          %v9720 = vmax.f32 %v9719, %v8522
          %v9721 = vmax.f32 %v9720, %v8523
          %v9722 = vmax.f32 %v9721, %v8524
          %v9723 = vmax.f32 %v9722, %v8525
          %v9724 = vmax.f32 %v9723, %v8526
          %v9725 = vmax.f32 %v9724, %v8527
          %v9726 = vmax.f32 %v9725, %v8528
          %v9727 = vrot.slane %v9726, 4
          %v9728 = vmax.f32 %v9726, %v9727
          %v9729 = vrot.slane %v9728, 2
          %v9730 = vmax.f32 %v9728, %v9729
          %v9731 = vrot.slane %v9730, 1
          %v9732 = vmax.f32 %v9730, %v9731
          %v9733 = vmax.f32 %v8529, %v8530
          %v9734 = vmax.f32 %v9733, %v8531
          %v9735 = vmax.f32 %v9734, %v8532
          %v9736 = vmax.f32 %v9735, %v8533
          %v9737 = vmax.f32 %v9736, %v8534
          %v9738 = vmax.f32 %v9737, %v8535
          %v9739 = vmax.f32 %v9738, %v8536
          %v9740 = vmax.f32 %v9739, %v8537
          %v9741 = vmax.f32 %v9740, %v8538
          %v9742 = vmax.f32 %v9741, %v8539
          %v9743 = vmax.f32 %v9742, %v8540
          %v9744 = vmax.f32 %v9743, %v8541
          %v9745 = vmax.f32 %v9744, %v8542
          %v9746 = vmax.f32 %v9745, %v8543
          %v9747 = vmax.f32 %v9746, %v8544
          %v9748 = vrot.slane %v9747, 4
          %v9749 = vmax.f32 %v9747, %v9748
          %v9750 = vrot.slane %v9749, 2
          %v9751 = vmax.f32 %v9749, %v9750
          %v9752 = vrot.slane %v9751, 1
          %v9753 = vmax.f32 %v9751, %v9752
          %v9754 = vmax.f32 %v8545, %v8546
          %v9755 = vmax.f32 %v9754, %v8547
          %v9756 = vmax.f32 %v9755, %v8548
          %v9757 = vmax.f32 %v9756, %v8549
          %v9758 = vmax.f32 %v9757, %v8550
          %v9759 = vmax.f32 %v9758, %v8551
          %v9760 = vmax.f32 %v9759, %v8552
          %v9761 = vmax.f32 %v9760, %v8553
          %v9762 = vmax.f32 %v9761, %v8554
          %v9763 = vmax.f32 %v9762, %v8555
          %v9764 = vmax.f32 %v9763, %v8556
          %v9765 = vmax.f32 %v9764, %v8557
          %v9766 = vmax.f32 %v9765, %v8558
          %v9767 = vmax.f32 %v9766, %v8559
          %v9768 = vmax.f32 %v9767, %v8560
          %v9769 = vrot.slane %v9768, 4
          %v9770 = vmax.f32 %v9768, %v9769
          %v9771 = vrot.slane %v9770, 2
          %v9772 = vmax.f32 %v9770, %v9771
          %v9773 = vrot.slane %v9772, 1
          %v9774 = vmax.f32 %v9772, %v9773
          %v9775 = vmax.f32 %v8561, %v8562
          %v9776 = vmax.f32 %v9775, %v8563
          %v9777 = vmax.f32 %v9776, %v8564
          %v9778 = vmax.f32 %v9777, %v8565
          %v9779 = vmax.f32 %v9778, %v8566
          %v9780 = vmax.f32 %v9779, %v8567
          %v9781 = vmax.f32 %v9780, %v8568
          %v9782 = vmax.f32 %v9781, %v8569
          %v9783 = vmax.f32 %v9782, %v8570
          %v9784 = vmax.f32 %v9783, %v8571
          %v9785 = vmax.f32 %v9784, %v8572
          %v9786 = vmax.f32 %v9785, %v8573
          %v9787 = vmax.f32 %v9786, %v8574
          %v9788 = vmax.f32 %v9787, %v8575
          %v9789 = vmax.f32 %v9788, %v8576
          %v9790 = vrot.slane %v9789, 4
          %v9791 = vmax.f32 %v9789, %v9790
          %v9792 = vrot.slane %v9791, 2
          %v9793 = vmax.f32 %v9791, %v9792
          %v9794 = vrot.slane %v9793, 1
          %v9795 = vmax.f32 %v9793, %v9794
          %v9796 = vmax.f32 %v8577, %v8578
          %v9797 = vmax.f32 %v9796, %v8579
          %v9798 = vmax.f32 %v9797, %v8580
          %v9799 = vmax.f32 %v9798, %v8581
          %v9800 = vmax.f32 %v9799, %v8582
          %v9801 = vmax.f32 %v9800, %v8583
          %v9802 = vmax.f32 %v9801, %v8584
          %v9803 = vmax.f32 %v9802, %v8585
          %v9804 = vmax.f32 %v9803, %v8586
          %v9805 = vmax.f32 %v9804, %v8587
          %v9806 = vmax.f32 %v9805, %v8588
          %v9807 = vmax.f32 %v9806, %v8589
          %v9808 = vmax.f32 %v9807, %v8590
          %v9809 = vmax.f32 %v9808, %v8591
          %v9810 = vmax.f32 %v9809, %v8592
          %v9811 = vrot.slane %v9810, 4
          %v9812 = vmax.f32 %v9810, %v9811
          %v9813 = vrot.slane %v9812, 2
          %v9814 = vmax.f32 %v9812, %v9813
          %v9815 = vrot.slane %v9814, 1
          %v9816 = vmax.f32 %v9814, %v9815
          %v9817 = vmax.f32 %v8593, %v8594
          %v9818 = vmax.f32 %v9817, %v8595
          %v9819 = vmax.f32 %v9818, %v8596
          %v9820 = vmax.f32 %v9819, %v8597
          %v9821 = vmax.f32 %v9820, %v8598
          %v9822 = vmax.f32 %v9821, %v8599
          %v9823 = vmax.f32 %v9822, %v8600
          %v9824 = vmax.f32 %v9823, %v8601
          %v9825 = vmax.f32 %v9824, %v8602
          %v9826 = vmax.f32 %v9825, %v8603
          %v9827 = vmax.f32 %v9826, %v8604
          %v9828 = vmax.f32 %v9827, %v8605
          %v9829 = vmax.f32 %v9828, %v8606
          %v9830 = vmax.f32 %v9829, %v8607
          %v9831 = vmax.f32 %v9830, %v8608
          %v9832 = vrot.slane %v9831, 4
          %v9833 = vmax.f32 %v9831, %v9832
          %v9834 = vrot.slane %v9833, 2
          %v9835 = vmax.f32 %v9833, %v9834
          %v9836 = vrot.slane %v9835, 1
          %v9837 = vmax.f32 %v9835, %v9836
          %v9838 = vmax.f32 %v8609, %v8610
          %v9839 = vmax.f32 %v9838, %v8611
          %v9840 = vmax.f32 %v9839, %v8612
          %v9841 = vmax.f32 %v9840, %v8613
          %v9842 = vmax.f32 %v9841, %v8614
          %v9843 = vmax.f32 %v9842, %v8615
          %v9844 = vmax.f32 %v9843, %v8616
          %v9845 = vmax.f32 %v9844, %v8617
          %v9846 = vmax.f32 %v9845, %v8618
          %v9847 = vmax.f32 %v9846, %v8619
          %v9848 = vmax.f32 %v9847, %v8620
          %v9849 = vmax.f32 %v9848, %v8621
          %v9850 = vmax.f32 %v9849, %v8622
          %v9851 = vmax.f32 %v9850, %v8623
          %v9852 = vmax.f32 %v9851, %v8624
          %v9853 = vrot.slane %v9852, 4
          %v9854 = vmax.f32 %v9852, %v9853
          %v9855 = vrot.slane %v9854, 2
          %v9856 = vmax.f32 %v9854, %v9855
          %v9857 = vrot.slane %v9856, 1
          %v9858 = vmax.f32 %v9856, %v9857
          %v9859 = vmax.f32 %v8625, %v8626
          %v9860 = vmax.f32 %v9859, %v8627
          %v9861 = vmax.f32 %v9860, %v8628
          %v9862 = vmax.f32 %v9861, %v8629
          %v9863 = vmax.f32 %v9862, %v8630
          %v9864 = vmax.f32 %v9863, %v8631
          %v9865 = vmax.f32 %v9864, %v8632
          %v9866 = vmax.f32 %v9865, %v8633
          %v9867 = vmax.f32 %v9866, %v8634
          %v9868 = vmax.f32 %v9867, %v8635
          %v9869 = vmax.f32 %v9868, %v8636
          %v9870 = vmax.f32 %v9869, %v8637
          %v9871 = vmax.f32 %v9870, %v8638
          %v9872 = vmax.f32 %v9871, %v8639
          %v9873 = vmax.f32 %v9872, %v8640
          %v9874 = vrot.slane %v9873, 4
          %v9875 = vmax.f32 %v9873, %v9874
          %v9876 = vrot.slane %v9875, 2
          %v9877 = vmax.f32 %v9875, %v9876
          %v9878 = vrot.slane %v9877, 1
          %v9879 = vmax.f32 %v9877, %v9878
          %v9880 = vmax.f32 %v8641, %v8642
          %v9881 = vmax.f32 %v9880, %v8643
          %v9882 = vmax.f32 %v9881, %v8644
          %v9883 = vmax.f32 %v9882, %v8645
          %v9884 = vmax.f32 %v9883, %v8646
          %v9885 = vmax.f32 %v9884, %v8647
          %v9886 = vmax.f32 %v9885, %v8648
          %v9887 = vmax.f32 %v9886, %v8649
          %v9888 = vmax.f32 %v9887, %v8650
          %v9889 = vmax.f32 %v9888, %v8651
          %v9890 = vmax.f32 %v9889, %v8652
          %v9891 = vmax.f32 %v9890, %v8653
          %v9892 = vmax.f32 %v9891, %v8654
          %v9893 = vmax.f32 %v9892, %v8655
          %v9894 = vmax.f32 %v9893, %v8656
          %v9895 = vrot.slane %v9894, 4
          %v9896 = vmax.f32 %v9894, %v9895
          %v9897 = vrot.slane %v9896, 2
          %v9898 = vmax.f32 %v9896, %v9897
          %v9899 = vrot.slane %v9898, 1
          %v9900 = vmax.f32 %v9898, %v9899
          %v9901 = vmax.f32 %v8657, %v8658
          %v9902 = vmax.f32 %v9901, %v8659
          %v9903 = vmax.f32 %v9902, %v8660
          %v9904 = vmax.f32 %v9903, %v8661
          %v9905 = vmax.f32 %v9904, %v8662
          %v9906 = vmax.f32 %v9905, %v8663
          %v9907 = vmax.f32 %v9906, %v8664
          %v9908 = vmax.f32 %v9907, %v8665
          %v9909 = vmax.f32 %v9908, %v8666
          %v9910 = vmax.f32 %v9909, %v8667
          %v9911 = vmax.f32 %v9910, %v8668
          %v9912 = vmax.f32 %v9911, %v8669
          %v9913 = vmax.f32 %v9912, %v8670
          %v9914 = vmax.f32 %v9913, %v8671
          %v9915 = vmax.f32 %v9914, %v8672
          %v9916 = vrot.slane %v9915, 4
          %v9917 = vmax.f32 %v9915, %v9916
          %v9918 = vrot.slane %v9917, 2
          %v9919 = vmax.f32 %v9917, %v9918
          %v9920 = vrot.slane %v9919, 1
          %v9921 = vmax.f32 %v9919, %v9920
          %v9922 = vmax.f32 %v8673, %v8674
          %v9923 = vmax.f32 %v9922, %v8675
          %v9924 = vmax.f32 %v9923, %v8676
          %v9925 = vmax.f32 %v9924, %v8677
          %v9926 = vmax.f32 %v9925, %v8678
          %v9927 = vmax.f32 %v9926, %v8679
          %v9928 = vmax.f32 %v9927, %v8680
          %v9929 = vmax.f32 %v9928, %v8681
          %v9930 = vmax.f32 %v9929, %v8682
          %v9931 = vmax.f32 %v9930, %v8683
          %v9932 = vmax.f32 %v9931, %v8684
          %v9933 = vmax.f32 %v9932, %v8685
          %v9934 = vmax.f32 %v9933, %v8686
          %v9935 = vmax.f32 %v9934, %v8687
          %v9936 = vmax.f32 %v9935, %v8688
          %v9937 = vrot.slane %v9936, 4
          %v9938 = vmax.f32 %v9936, %v9937
          %v9939 = vrot.slane %v9938, 2
          %v9940 = vmax.f32 %v9938, %v9939
          %v9941 = vrot.slane %v9940, 1
          %v9942 = vmax.f32 %v9940, %v9941
          %v9943 = vmax.f32 %v8689, %v8690
          %v9944 = vmax.f32 %v9943, %v8691
          %v9945 = vmax.f32 %v9944, %v8692
          %v9946 = vmax.f32 %v9945, %v8693
          %v9947 = vmax.f32 %v9946, %v8694
          %v9948 = vmax.f32 %v9947, %v8695
          %v9949 = vmax.f32 %v9948, %v8696
          %v9950 = vmax.f32 %v9949, %v8697
          %v9951 = vmax.f32 %v9950, %v8698
          %v9952 = vmax.f32 %v9951, %v8699
          %v9953 = vmax.f32 %v9952, %v8700
          %v9954 = vmax.f32 %v9953, %v8701
          %v9955 = vmax.f32 %v9954, %v8702
          %v9956 = vmax.f32 %v9955, %v8703
          %v9957 = vmax.f32 %v9956, %v8704
          %v9958 = vrot.slane %v9957, 4
          %v9959 = vmax.f32 %v9957, %v9958
          %v9960 = vrot.slane %v9959, 2
          %v9961 = vmax.f32 %v9959, %v9960
          %v9962 = vrot.slane %v9961, 1
          %v9963 = vmax.f32 %v9961, %v9962
          %v9964 = vmax.f32 %v8705, %v8706
          %v9965 = vmax.f32 %v9964, %v8707
          %v9966 = vmax.f32 %v9965, %v8708
          %v9967 = vmax.f32 %v9966, %v8709
          %v9968 = vmax.f32 %v9967, %v8710
          %v9969 = vmax.f32 %v9968, %v8711
          %v9970 = vmax.f32 %v9969, %v8712
          %v9971 = vmax.f32 %v9970, %v8713
          %v9972 = vmax.f32 %v9971, %v8714
          %v9973 = vmax.f32 %v9972, %v8715
          %v9974 = vmax.f32 %v9973, %v8716
          %v9975 = vmax.f32 %v9974, %v8717
          %v9976 = vmax.f32 %v9975, %v8718
          %v9977 = vmax.f32 %v9976, %v8719
          %v9978 = vmax.f32 %v9977, %v8720
          %v9979 = vrot.slane %v9978, 4
          %v9980 = vmax.f32 %v9978, %v9979
          %v9981 = vrot.slane %v9980, 2
          %v9982 = vmax.f32 %v9980, %v9981
          %v9983 = vrot.slane %v9982, 1
          %v9984 = vmax.f32 %v9982, %v9983
          %v9985 = vmax.f32 %v8721, %v8722
          %v9986 = vmax.f32 %v9985, %v8723
          %v9987 = vmax.f32 %v9986, %v8724
          %v9988 = vmax.f32 %v9987, %v8725
          %v9989 = vmax.f32 %v9988, %v8726
          %v9990 = vmax.f32 %v9989, %v8727
          %v9991 = vmax.f32 %v9990, %v8728
          %v9992 = vmax.f32 %v9991, %v8729
          %v9993 = vmax.f32 %v9992, %v8730
          %v9994 = vmax.f32 %v9993, %v8731
          %v9995 = vmax.f32 %v9994, %v8732
          %v9996 = vmax.f32 %v9995, %v8733
          %v9997 = vmax.f32 %v9996, %v8734
          %v9998 = vmax.f32 %v9997, %v8735
          %v9999 = vmax.f32 %v9998, %v8736
          %v10000 = vrot.slane %v9999, 4
          %v10001 = vmax.f32 %v9999, %v10000
          %v10002 = vrot.slane %v10001, 2
          %v10003 = vmax.f32 %v10001, %v10002
          %v10004 = vrot.slane %v10003, 1
          %v10005 = vmax.f32 %v10003, %v10004
          %v10006 = vmax.f32 %v8737, %v8738
          %v10007 = vmax.f32 %v10006, %v8739
          %v10008 = vmax.f32 %v10007, %v8740
          %v10009 = vmax.f32 %v10008, %v8741
          %v10010 = vmax.f32 %v10009, %v8742
          %v10011 = vmax.f32 %v10010, %v8743
          %v10012 = vmax.f32 %v10011, %v8744
          %v10013 = vmax.f32 %v10012, %v8745
          %v10014 = vmax.f32 %v10013, %v8746
          %v10015 = vmax.f32 %v10014, %v8747
          %v10016 = vmax.f32 %v10015, %v8748
          %v10017 = vmax.f32 %v10016, %v8749
          %v10018 = vmax.f32 %v10017, %v8750
          %v10019 = vmax.f32 %v10018, %v8751
          %v10020 = vmax.f32 %v10019, %v8752
          %v10021 = vrot.slane %v10020, 4
          %v10022 = vmax.f32 %v10020, %v10021
          %v10023 = vrot.slane %v10022, 2
          %v10024 = vmax.f32 %v10022, %v10023
          %v10025 = vrot.slane %v10024, 1
          %v10026 = vmax.f32 %v10024, %v10025
          %v10027 = vmax.f32 %v8753, %v8754
          %v10028 = vmax.f32 %v10027, %v8755
          %v10029 = vmax.f32 %v10028, %v8756
          %v10030 = vmax.f32 %v10029, %v8757
          %v10031 = vmax.f32 %v10030, %v8758
          %v10032 = vmax.f32 %v10031, %v8759
          %v10033 = vmax.f32 %v10032, %v8760
          %v10034 = vmax.f32 %v10033, %v8761
          %v10035 = vmax.f32 %v10034, %v8762
          %v10036 = vmax.f32 %v10035, %v8763
          %v10037 = vmax.f32 %v10036, %v8764
          %v10038 = vmax.f32 %v10037, %v8765
          %v10039 = vmax.f32 %v10038, %v8766
          %v10040 = vmax.f32 %v10039, %v8767
          %v10041 = vmax.f32 %v10040, %v8768
          %v10042 = vrot.slane %v10041, 4
          %v10043 = vmax.f32 %v10041, %v10042
          %v10044 = vrot.slane %v10043, 2
          %v10045 = vmax.f32 %v10043, %v10044
          %v10046 = vrot.slane %v10045, 1
          %v10047 = vmax.f32 %v10045, %v10046
          %v10048 = vmax.f32 %v8769, %v8770
          %v10049 = vmax.f32 %v10048, %v8771
          %v10050 = vmax.f32 %v10049, %v8772
          %v10051 = vmax.f32 %v10050, %v8773
          %v10052 = vmax.f32 %v10051, %v8774
          %v10053 = vmax.f32 %v10052, %v8775
          %v10054 = vmax.f32 %v10053, %v8776
          %v10055 = vmax.f32 %v10054, %v8777
          %v10056 = vmax.f32 %v10055, %v8778
          %v10057 = vmax.f32 %v10056, %v8779
          %v10058 = vmax.f32 %v10057, %v8780
          %v10059 = vmax.f32 %v10058, %v8781
          %v10060 = vmax.f32 %v10059, %v8782
          %v10061 = vmax.f32 %v10060, %v8783
          %v10062 = vmax.f32 %v10061, %v8784
          %v10063 = vrot.slane %v10062, 4
          %v10064 = vmax.f32 %v10062, %v10063
          %v10065 = vrot.slane %v10064, 2
          %v10066 = vmax.f32 %v10064, %v10065
          %v10067 = vrot.slane %v10066, 1
          %v10068 = vmax.f32 %v10066, %v10067
          %v10069 = vmax.f32 %v8785, %v8786
          %v10070 = vmax.f32 %v10069, %v8787
          %v10071 = vmax.f32 %v10070, %v8788
          %v10072 = vmax.f32 %v10071, %v8789
          %v10073 = vmax.f32 %v10072, %v8790
          %v10074 = vmax.f32 %v10073, %v8791
          %v10075 = vmax.f32 %v10074, %v8792
          %v10076 = vmax.f32 %v10075, %v8793
          %v10077 = vmax.f32 %v10076, %v8794
          %v10078 = vmax.f32 %v10077, %v8795
          %v10079 = vmax.f32 %v10078, %v8796
          %v10080 = vmax.f32 %v10079, %v8797
          %v10081 = vmax.f32 %v10080, %v8798
          %v10082 = vmax.f32 %v10081, %v8799
          %v10083 = vmax.f32 %v10082, %v8800
          %v10084 = vrot.slane %v10083, 4
          %v10085 = vmax.f32 %v10083, %v10084
          %v10086 = vrot.slane %v10085, 2
          %v10087 = vmax.f32 %v10085, %v10086
          %v10088 = vrot.slane %v10087, 1
          %v10089 = vmax.f32 %v10087, %v10088
          %v10090 = vmax.f32 %v8801, %v8802
          %v10091 = vmax.f32 %v10090, %v8803
          %v10092 = vmax.f32 %v10091, %v8804
          %v10093 = vmax.f32 %v10092, %v8805
          %v10094 = vmax.f32 %v10093, %v8806
          %v10095 = vmax.f32 %v10094, %v8807
          %v10096 = vmax.f32 %v10095, %v8808
          %v10097 = vmax.f32 %v10096, %v8809
          %v10098 = vmax.f32 %v10097, %v8810
          %v10099 = vmax.f32 %v10098, %v8811
          %v10100 = vmax.f32 %v10099, %v8812
          %v10101 = vmax.f32 %v10100, %v8813
          %v10102 = vmax.f32 %v10101, %v8814
          %v10103 = vmax.f32 %v10102, %v8815
          %v10104 = vmax.f32 %v10103, %v8816
          %v10105 = vrot.slane %v10104, 4
          %v10106 = vmax.f32 %v10104, %v10105
          %v10107 = vrot.slane %v10106, 2
          %v10108 = vmax.f32 %v10106, %v10107
          %v10109 = vrot.slane %v10108, 1
          %v10110 = vmax.f32 %v10108, %v10109
          %v10111 = vmax.f32 %v8817, %v8818
          %v10112 = vmax.f32 %v10111, %v8819
          %v10113 = vmax.f32 %v10112, %v8820
          %v10114 = vmax.f32 %v10113, %v8821
          %v10115 = vmax.f32 %v10114, %v8822
          %v10116 = vmax.f32 %v10115, %v8823
          %v10117 = vmax.f32 %v10116, %v8824
          %v10118 = vmax.f32 %v10117, %v8825
          %v10119 = vmax.f32 %v10118, %v8826
          %v10120 = vmax.f32 %v10119, %v8827
          %v10121 = vmax.f32 %v10120, %v8828
          %v10122 = vmax.f32 %v10121, %v8829
          %v10123 = vmax.f32 %v10122, %v8830
          %v10124 = vmax.f32 %v10123, %v8831
          %v10125 = vmax.f32 %v10124, %v8832
          %v10126 = vrot.slane %v10125, 4
          %v10127 = vmax.f32 %v10125, %v10126
          %v10128 = vrot.slane %v10127, 2
          %v10129 = vmax.f32 %v10127, %v10128
          %v10130 = vrot.slane %v10129, 1
          %v10131 = vmax.f32 %v10129, %v10130
          %v10132 = vmax.f32 %v8833, %v8834
          %v10133 = vmax.f32 %v10132, %v8835
          %v10134 = vmax.f32 %v10133, %v8836
          %v10135 = vmax.f32 %v10134, %v8837
          %v10136 = vmax.f32 %v10135, %v8838
          %v10137 = vmax.f32 %v10136, %v8839
          %v10138 = vmax.f32 %v10137, %v8840
          %v10139 = vmax.f32 %v10138, %v8841
          %v10140 = vmax.f32 %v10139, %v8842
          %v10141 = vmax.f32 %v10140, %v8843
          %v10142 = vmax.f32 %v10141, %v8844
          %v10143 = vmax.f32 %v10142, %v8845
          %v10144 = vmax.f32 %v10143, %v8846
          %v10145 = vmax.f32 %v10144, %v8847
          %v10146 = vmax.f32 %v10145, %v8848
          %v10147 = vrot.slane %v10146, 4
          %v10148 = vmax.f32 %v10146, %v10147
          %v10149 = vrot.slane %v10148, 2
          %v10150 = vmax.f32 %v10148, %v10149
          %v10151 = vrot.slane %v10150, 1
          %v10152 = vmax.f32 %v10150, %v10151
          %v10153 = vmax.f32 %v8849, %v8850
          %v10154 = vmax.f32 %v10153, %v8851
          %v10155 = vmax.f32 %v10154, %v8852
          %v10156 = vmax.f32 %v10155, %v8853
          %v10157 = vmax.f32 %v10156, %v8854
          %v10158 = vmax.f32 %v10157, %v8855
          %v10159 = vmax.f32 %v10158, %v8856
          %v10160 = vmax.f32 %v10159, %v8857
          %v10161 = vmax.f32 %v10160, %v8858
          %v10162 = vmax.f32 %v10161, %v8859
          %v10163 = vmax.f32 %v10162, %v8860
          %v10164 = vmax.f32 %v10163, %v8861
          %v10165 = vmax.f32 %v10164, %v8862
          %v10166 = vmax.f32 %v10165, %v8863
          %v10167 = vmax.f32 %v10166, %v8864
          %v10168 = vrot.slane %v10167, 4
          %v10169 = vmax.f32 %v10167, %v10168
          %v10170 = vrot.slane %v10169, 2
          %v10171 = vmax.f32 %v10169, %v10170
          %v10172 = vrot.slane %v10171, 1
          %v10173 = vmax.f32 %v10171, %v10172
          %v10174 = vmax.f32 %v8865, %v8866
          %v10175 = vmax.f32 %v10174, %v8867
          %v10176 = vmax.f32 %v10175, %v8868
          %v10177 = vmax.f32 %v10176, %v8869
          %v10178 = vmax.f32 %v10177, %v8870
          %v10179 = vmax.f32 %v10178, %v8871
          %v10180 = vmax.f32 %v10179, %v8872
          %v10181 = vmax.f32 %v10180, %v8873
          %v10182 = vmax.f32 %v10181, %v8874
          %v10183 = vmax.f32 %v10182, %v8875
          %v10184 = vmax.f32 %v10183, %v8876
          %v10185 = vmax.f32 %v10184, %v8877
          %v10186 = vmax.f32 %v10185, %v8878
          %v10187 = vmax.f32 %v10186, %v8879
          %v10188 = vmax.f32 %v10187, %v8880
          %v10189 = vrot.slane %v10188, 4
          %v10190 = vmax.f32 %v10188, %v10189
          %v10191 = vrot.slane %v10190, 2
          %v10192 = vmax.f32 %v10190, %v10191
          %v10193 = vrot.slane %v10192, 1
          %v10194 = vmax.f32 %v10192, %v10193
          %v10195 = vmax.f32 %v8881, %v8882
          %v10196 = vmax.f32 %v10195, %v8883
          %v10197 = vmax.f32 %v10196, %v8884
          %v10198 = vmax.f32 %v10197, %v8885
          %v10199 = vmax.f32 %v10198, %v8886
          %v10200 = vmax.f32 %v10199, %v8887
          %v10201 = vmax.f32 %v10200, %v8888
          %v10202 = vmax.f32 %v10201, %v8889
          %v10203 = vmax.f32 %v10202, %v8890
          %v10204 = vmax.f32 %v10203, %v8891
          %v10205 = vmax.f32 %v10204, %v8892
          %v10206 = vmax.f32 %v10205, %v8893
          %v10207 = vmax.f32 %v10206, %v8894
          %v10208 = vmax.f32 %v10207, %v8895
          %v10209 = vmax.f32 %v10208, %v8896
          %v10210 = vrot.slane %v10209, 4
          %v10211 = vmax.f32 %v10209, %v10210
          %v10212 = vrot.slane %v10211, 2
          %v10213 = vmax.f32 %v10211, %v10212
          %v10214 = vrot.slane %v10213, 1
          %v10215 = vmax.f32 %v10213, %v10214
          %v10216 = vmax.f32 %v8897, %v8898
          %v10217 = vmax.f32 %v10216, %v8899
          %v10218 = vmax.f32 %v10217, %v8900
          %v10219 = vmax.f32 %v10218, %v8901
          %v10220 = vmax.f32 %v10219, %v8902
          %v10221 = vmax.f32 %v10220, %v8903
          %v10222 = vmax.f32 %v10221, %v8904
          %v10223 = vmax.f32 %v10222, %v8905
          %v10224 = vmax.f32 %v10223, %v8906
          %v10225 = vmax.f32 %v10224, %v8907
          %v10226 = vmax.f32 %v10225, %v8908
          %v10227 = vmax.f32 %v10226, %v8909
          %v10228 = vmax.f32 %v10227, %v8910
          %v10229 = vmax.f32 %v10228, %v8911
          %v10230 = vmax.f32 %v10229, %v8912
          %v10231 = vrot.slane %v10230, 4
          %v10232 = vmax.f32 %v10230, %v10231
          %v10233 = vrot.slane %v10232, 2
          %v10234 = vmax.f32 %v10232, %v10233
          %v10235 = vrot.slane %v10234, 1
          %v10236 = vmax.f32 %v10234, %v10235
          %v10237 = vmax.f32 %v8913, %v8914
          %v10238 = vmax.f32 %v10237, %v8915
          %v10239 = vmax.f32 %v10238, %v8916
          %v10240 = vmax.f32 %v10239, %v8917
          %v10241 = vmax.f32 %v10240, %v8918
          %v10242 = vmax.f32 %v10241, %v8919
          %v10243 = vmax.f32 %v10242, %v8920
          %v10244 = vmax.f32 %v10243, %v8921
          %v10245 = vmax.f32 %v10244, %v8922
          %v10246 = vmax.f32 %v10245, %v8923
          %v10247 = vmax.f32 %v10246, %v8924
          %v10248 = vmax.f32 %v10247, %v8925
          %v10249 = vmax.f32 %v10248, %v8926
          %v10250 = vmax.f32 %v10249, %v8927
          %v10251 = vmax.f32 %v10250, %v8928
          %v10252 = vrot.slane %v10251, 4
          %v10253 = vmax.f32 %v10251, %v10252
          %v10254 = vrot.slane %v10253, 2
          %v10255 = vmax.f32 %v10253, %v10254
          %v10256 = vrot.slane %v10255, 1
          %v10257 = vmax.f32 %v10255, %v10256
          %v10258 = vmax.f32 %v8929, %v8930
          %v10259 = vmax.f32 %v10258, %v8931
          %v10260 = vmax.f32 %v10259, %v8932
          %v10261 = vmax.f32 %v10260, %v8933
          %v10262 = vmax.f32 %v10261, %v8934
          %v10263 = vmax.f32 %v10262, %v8935
          %v10264 = vmax.f32 %v10263, %v8936
          %v10265 = vmax.f32 %v10264, %v8937
          %v10266 = vmax.f32 %v10265, %v8938
          %v10267 = vmax.f32 %v10266, %v8939
          %v10268 = vmax.f32 %v10267, %v8940
          %v10269 = vmax.f32 %v10268, %v8941
          %v10270 = vmax.f32 %v10269, %v8942
          %v10271 = vmax.f32 %v10270, %v8943
          %v10272 = vmax.f32 %v10271, %v8944
          %v10273 = vrot.slane %v10272, 4
          %v10274 = vmax.f32 %v10272, %v10273
          %v10275 = vrot.slane %v10274, 2
          %v10276 = vmax.f32 %v10274, %v10275
          %v10277 = vrot.slane %v10276, 1
          %v10278 = vmax.f32 %v10276, %v10277
          %v10279 = vmax.f32 %v8945, %v8946
          %v10280 = vmax.f32 %v10279, %v8947
          %v10281 = vmax.f32 %v10280, %v8948
          %v10282 = vmax.f32 %v10281, %v8949
          %v10283 = vmax.f32 %v10282, %v8950
          %v10284 = vmax.f32 %v10283, %v8951
          %v10285 = vmax.f32 %v10284, %v8952
          %v10286 = vmax.f32 %v10285, %v8953
          %v10287 = vmax.f32 %v10286, %v8954
          %v10288 = vmax.f32 %v10287, %v8955
          %v10289 = vmax.f32 %v10288, %v8956
          %v10290 = vmax.f32 %v10289, %v8957
          %v10291 = vmax.f32 %v10290, %v8958
          %v10292 = vmax.f32 %v10291, %v8959
          %v10293 = vmax.f32 %v10292, %v8960
          %v10294 = vrot.slane %v10293, 4
          %v10295 = vmax.f32 %v10293, %v10294
          %v10296 = vrot.slane %v10295, 2
          %v10297 = vmax.f32 %v10295, %v10296
          %v10298 = vrot.slane %v10297, 1
          %v10299 = vmax.f32 %v10297, %v10298
          %v10300 = vmax.f32 %v8961, %v8962
          %v10301 = vmax.f32 %v10300, %v8963
          %v10302 = vmax.f32 %v10301, %v8964
          %v10303 = vmax.f32 %v10302, %v8965
          %v10304 = vmax.f32 %v10303, %v8966
          %v10305 = vmax.f32 %v10304, %v8967
          %v10306 = vmax.f32 %v10305, %v8968
          %v10307 = vmax.f32 %v10306, %v8969
          %v10308 = vmax.f32 %v10307, %v8970
          %v10309 = vmax.f32 %v10308, %v8971
          %v10310 = vmax.f32 %v10309, %v8972
          %v10311 = vmax.f32 %v10310, %v8973
          %v10312 = vmax.f32 %v10311, %v8974
          %v10313 = vmax.f32 %v10312, %v8975
          %v10314 = vmax.f32 %v10313, %v8976
          %v10315 = vrot.slane %v10314, 4
          %v10316 = vmax.f32 %v10314, %v10315
          %v10317 = vrot.slane %v10316, 2
          %v10318 = vmax.f32 %v10316, %v10317
          %v10319 = vrot.slane %v10318, 1
          %v10320 = vmax.f32 %v10318, %v10319
          %v10321 = vmax.f32 %v497, %v8997
          %v10322 = vmax.f32 %v498, %v9018
          %v10323 = vmax.f32 %v499, %v9039
          %v10324 = vmax.f32 %v500, %v9060
          %v10325 = vmax.f32 %v501, %v9081
          %v10326 = vmax.f32 %v502, %v9102
          %v10327 = vmax.f32 %v503, %v9123
          %v10328 = vmax.f32 %v504, %v9144
          %v10329 = vmax.f32 %v505, %v9165
          %v10330 = vmax.f32 %v506, %v9186
          %v10331 = vmax.f32 %v507, %v9207
          %v10332 = vmax.f32 %v508, %v9228
          %v10333 = vmax.f32 %v509, %v9249
          %v10334 = vmax.f32 %v510, %v9270
          %v10335 = vmax.f32 %v511, %v9291
          %v10336 = vmax.f32 %v512, %v9312
          %v10337 = vmax.f32 %v513, %v9333
          %v10338 = vmax.f32 %v514, %v9354
          %v10339 = vmax.f32 %v515, %v9375
          %v10340 = vmax.f32 %v516, %v9396
          %v10341 = vmax.f32 %v517, %v9417
          %v10342 = vmax.f32 %v518, %v9438
          %v10343 = vmax.f32 %v519, %v9459
          %v10344 = vmax.f32 %v520, %v9480
          %v10345 = vmax.f32 %v521, %v9501
          %v10346 = vmax.f32 %v522, %v9522
          %v10347 = vmax.f32 %v523, %v9543
          %v10348 = vmax.f32 %v524, %v9564
          %v10349 = vmax.f32 %v525, %v9585
          %v10350 = vmax.f32 %v526, %v9606
          %v10351 = vmax.f32 %v527, %v9627
          %v10352 = vmax.f32 %v528, %v9648
          %v10353 = vmax.f32 %v529, %v9669
          %v10354 = vmax.f32 %v530, %v9690
          %v10355 = vmax.f32 %v531, %v9711
          %v10356 = vmax.f32 %v532, %v9732
          %v10357 = vmax.f32 %v533, %v9753
          %v10358 = vmax.f32 %v534, %v9774
          %v10359 = vmax.f32 %v535, %v9795
          %v10360 = vmax.f32 %v536, %v9816
          %v10361 = vmax.f32 %v537, %v9837
          %v10362 = vmax.f32 %v538, %v9858
          %v10363 = vmax.f32 %v539, %v9879
          %v10364 = vmax.f32 %v540, %v9900
          %v10365 = vmax.f32 %v541, %v9921
          %v10366 = vmax.f32 %v542, %v9942
          %v10367 = vmax.f32 %v543, %v9963
          %v10368 = vmax.f32 %v544, %v9984
          %v10369 = vmax.f32 %v545, %v10005
          %v10370 = vmax.f32 %v546, %v10026
          %v10371 = vmax.f32 %v547, %v10047
          %v10372 = vmax.f32 %v548, %v10068
          %v10373 = vmax.f32 %v549, %v10089
          %v10374 = vmax.f32 %v550, %v10110
          %v10375 = vmax.f32 %v551, %v10131
          %v10376 = vmax.f32 %v552, %v10152
          %v10377 = vmax.f32 %v553, %v10173
          %v10378 = vmax.f32 %v554, %v10194
          %v10379 = vmax.f32 %v555, %v10215
          %v10380 = vmax.f32 %v556, %v10236
          %v10381 = vmax.f32 %v557, %v10257
          %v10382 = vmax.f32 %v558, %v10278
          %v10383 = vmax.f32 %v559, %v10299
          %v10384 = vmax.f32 %v560, %v10320
        $region65: #{tpu_custom_call.1} parent=39 // loop_footer
          %s496 = sadd.s32 1, %s492
        $region66: #{tpu_custom_call.1} parent=39 // loop_footer_branch
          %491 = sbr.rel target = $region62
        $region67: #{tpu_custom_call.1} parent=39 // loop_exit
          _
        %vm10385 = vcmp.eq.f32.partialorder %v497, -inf
        %vm10386 = vcmp.eq.f32.partialorder %v498, -inf
        %vm10387 = vcmp.eq.f32.partialorder %v499, -inf
        %vm10388 = vcmp.eq.f32.partialorder %v500, -inf
        %vm10389 = vcmp.eq.f32.partialorder %v501, -inf
        %vm10390 = vcmp.eq.f32.partialorder %v502, -inf
        %vm10391 = vcmp.eq.f32.partialorder %v503, -inf
        %vm10392 = vcmp.eq.f32.partialorder %v504, -inf
        %vm10393 = vcmp.eq.f32.partialorder %v505, -inf
        %vm10394 = vcmp.eq.f32.partialorder %v506, -inf
        %vm10395 = vcmp.eq.f32.partialorder %v507, -inf
        %vm10396 = vcmp.eq.f32.partialorder %v508, -inf
        %vm10397 = vcmp.eq.f32.partialorder %v509, -inf
        %vm10398 = vcmp.eq.f32.partialorder %v510, -inf
        %vm10399 = vcmp.eq.f32.partialorder %v511, -inf
        %vm10400 = vcmp.eq.f32.partialorder %v512, -inf
        %vm10401 = vcmp.eq.f32.partialorder %v513, -inf
        %vm10402 = vcmp.eq.f32.partialorder %v514, -inf
        %vm10403 = vcmp.eq.f32.partialorder %v515, -inf
        %vm10404 = vcmp.eq.f32.partialorder %v516, -inf
        %vm10405 = vcmp.eq.f32.partialorder %v517, -inf
        %vm10406 = vcmp.eq.f32.partialorder %v518, -inf
        %vm10407 = vcmp.eq.f32.partialorder %v519, -inf
        %vm10408 = vcmp.eq.f32.partialorder %v520, -inf
        %vm10409 = vcmp.eq.f32.partialorder %v521, -inf
        %vm10410 = vcmp.eq.f32.partialorder %v522, -inf
        %vm10411 = vcmp.eq.f32.partialorder %v523, -inf
        %vm10412 = vcmp.eq.f32.partialorder %v524, -inf
        %vm10413 = vcmp.eq.f32.partialorder %v525, -inf
        %vm10414 = vcmp.eq.f32.partialorder %v526, -inf
        %vm10415 = vcmp.eq.f32.partialorder %v527, -inf
        %vm10416 = vcmp.eq.f32.partialorder %v528, -inf
        %vm10417 = vcmp.eq.f32.partialorder %v529, -inf
        %vm10418 = vcmp.eq.f32.partialorder %v530, -inf
        %vm10419 = vcmp.eq.f32.partialorder %v531, -inf
        %vm10420 = vcmp.eq.f32.partialorder %v532, -inf
        %vm10421 = vcmp.eq.f32.partialorder %v533, -inf
        %vm10422 = vcmp.eq.f32.partialorder %v534, -inf
        %vm10423 = vcmp.eq.f32.partialorder %v535, -inf
        %vm10424 = vcmp.eq.f32.partialorder %v536, -inf
        %vm10425 = vcmp.eq.f32.partialorder %v537, -inf
        %vm10426 = vcmp.eq.f32.partialorder %v538, -inf
        %vm10427 = vcmp.eq.f32.partialorder %v539, -inf
        %vm10428 = vcmp.eq.f32.partialorder %v540, -inf
        %vm10429 = vcmp.eq.f32.partialorder %v541, -inf
        %vm10430 = vcmp.eq.f32.partialorder %v542, -inf
        %vm10431 = vcmp.eq.f32.partialorder %v543, -inf
        %vm10432 = vcmp.eq.f32.partialorder %v544, -inf
        %vm10433 = vcmp.eq.f32.partialorder %v545, -inf
        %vm10434 = vcmp.eq.f32.partialorder %v546, -inf
        %vm10435 = vcmp.eq.f32.partialorder %v547, -inf
        %vm10436 = vcmp.eq.f32.partialorder %v548, -inf
        %vm10437 = vcmp.eq.f32.partialorder %v549, -inf
        %vm10438 = vcmp.eq.f32.partialorder %v550, -inf
        %vm10439 = vcmp.eq.f32.partialorder %v551, -inf
        %vm10440 = vcmp.eq.f32.partialorder %v552, -inf
        %vm10441 = vcmp.eq.f32.partialorder %v553, -inf
        %vm10442 = vcmp.eq.f32.partialorder %v554, -inf
        %vm10443 = vcmp.eq.f32.partialorder %v555, -inf
        %vm10444 = vcmp.eq.f32.partialorder %v556, -inf
        %vm10445 = vcmp.eq.f32.partialorder %v557, -inf
        %vm10446 = vcmp.eq.f32.partialorder %v558, -inf
        %vm10447 = vcmp.eq.f32.partialorder %v559, -inf
        %vm10448 = vcmp.eq.f32.partialorder %v560, -inf
        %v10449 = vsel %vm10385, 0.0, %v497
        %v10450 = vsel %vm10386, 0.0, %v498
        %v10451 = vsel %vm10387, 0.0, %v499
        %v10452 = vsel %vm10388, 0.0, %v500
        %v10453 = vsel %vm10389, 0.0, %v501
        %v10454 = vsel %vm10390, 0.0, %v502
        %v10455 = vsel %vm10391, 0.0, %v503
        %v10456 = vsel %vm10392, 0.0, %v504
        %v10457 = vsel %vm10393, 0.0, %v505
        %v10458 = vsel %vm10394, 0.0, %v506
        %v10459 = vsel %vm10395, 0.0, %v507
        %v10460 = vsel %vm10396, 0.0, %v508
        %v10461 = vsel %vm10397, 0.0, %v509
        %v10462 = vsel %vm10398, 0.0, %v510
        %v10463 = vsel %vm10399, 0.0, %v511
        %v10464 = vsel %vm10400, 0.0, %v512
        %v10465 = vsel %vm10401, 0.0, %v513
        %v10466 = vsel %vm10402, 0.0, %v514
        %v10467 = vsel %vm10403, 0.0, %v515
        %v10468 = vsel %vm10404, 0.0, %v516
        %v10469 = vsel %vm10405, 0.0, %v517
        %v10470 = vsel %vm10406, 0.0, %v518
        %v10471 = vsel %vm10407, 0.0, %v519
        %v10472 = vsel %vm10408, 0.0, %v520
        %v10473 = vsel %vm10409, 0.0, %v521
        %v10474 = vsel %vm10410, 0.0, %v522
        %v10475 = vsel %vm10411, 0.0, %v523
        %v10476 = vsel %vm10412, 0.0, %v524
        %v10477 = vsel %vm10413, 0.0, %v525
        %v10478 = vsel %vm10414, 0.0, %v526
        %v10479 = vsel %vm10415, 0.0, %v527
        %v10480 = vsel %vm10416, 0.0, %v528
        %v10481 = vsel %vm10417, 0.0, %v529
        %v10482 = vsel %vm10418, 0.0, %v530
        %v10483 = vsel %vm10419, 0.0, %v531
        %v10484 = vsel %vm10420, 0.0, %v532
        %v10485 = vsel %vm10421, 0.0, %v533
        %v10486 = vsel %vm10422, 0.0, %v534
        %v10487 = vsel %vm10423, 0.0, %v535
        %v10488 = vsel %vm10424, 0.0, %v536
        %v10489 = vsel %vm10425, 0.0, %v537
        %v10490 = vsel %vm10426, 0.0, %v538
        %v10491 = vsel %vm10427, 0.0, %v539
        %v10492 = vsel %vm10428, 0.0, %v540
        %v10493 = vsel %vm10429, 0.0, %v541
        %v10494 = vsel %vm10430, 0.0, %v542
        %v10495 = vsel %vm10431, 0.0, %v543
        %v10496 = vsel %vm10432, 0.0, %v544
        %v10497 = vsel %vm10433, 0.0, %v545
        %v10498 = vsel %vm10434, 0.0, %v546
        %v10499 = vsel %vm10435, 0.0, %v547
        %v10500 = vsel %vm10436, 0.0, %v548
        %v10501 = vsel %vm10437, 0.0, %v549
        %v10502 = vsel %vm10438, 0.0, %v550
        %v10503 = vsel %vm10439, 0.0, %v551
        %v10504 = vsel %vm10440, 0.0, %v552
        %v10505 = vsel %vm10441, 0.0, %v553
        %v10506 = vsel %vm10442, 0.0, %v554
        %v10507 = vsel %vm10443, 0.0, %v555
        %v10508 = vsel %vm10444, 0.0, %v556
        %v10509 = vsel %vm10445, 0.0, %v557
        %v10510 = vsel %vm10446, 0.0, %v558
        %v10511 = vsel %vm10447, 0.0, %v559
        %v10512 = vsel %vm10448, 0.0, %v560
        %v10513 = vld [vmem:[%s325] sm:$0xff]
        %v10514 = vld [vmem:[%s325 + $0x8] sm:$0xff]
        %v10515 = vld [vmem:[%s325 + $0x10] sm:$0xff]
        %v10516 = vld [vmem:[%s325 + $0x18] sm:$0xff]
        %v10517 = vld [vmem:[%s325 + $0x20] sm:$0xff]
        %v10518 = vld [vmem:[%s325 + $0x28] sm:$0xff]
        %v10519 = vld [vmem:[%s325 + $0x30] sm:$0xff]
        %v10520 = vld [vmem:[%s325 + $0x38] sm:$0xff]
        %v10521 = vpack.c.bf16 %v10449, %v10449
        %v10522 = vpack.c.bf16 %v10450, %v10450
        %v10523 = vpack.c.bf16 %v10451, %v10451
        %v10524 = vpack.c.bf16 %v10452, %v10452
        %v10525 = vpack.c.bf16 %v10453, %v10453
        %v10526 = vpack.c.bf16 %v10454, %v10454
        %v10527 = vpack.c.bf16 %v10455, %v10455
        %v10528 = vpack.c.bf16 %v10456, %v10456
        %v10529 = vpack.c.bf16 %v10457, %v10457
        %v10530 = vpack.c.bf16 %v10458, %v10458
        %v10531 = vpack.c.bf16 %v10459, %v10459
        %v10532 = vpack.c.bf16 %v10460, %v10460
        %v10533 = vpack.c.bf16 %v10461, %v10461
        %v10534 = vpack.c.bf16 %v10462, %v10462
        %v10535 = vpack.c.bf16 %v10463, %v10463
        %v10536 = vpack.c.bf16 %v10464, %v10464
        %v10537 = vpack.c.bf16 %v10465, %v10465
        %v10538 = vpack.c.bf16 %v10466, %v10466
        %v10539 = vpack.c.bf16 %v10467, %v10467
        %v10540 = vpack.c.bf16 %v10468, %v10468
        %v10541 = vpack.c.bf16 %v10469, %v10469
        %v10542 = vpack.c.bf16 %v10470, %v10470
        %v10543 = vpack.c.bf16 %v10471, %v10471
        %v10544 = vpack.c.bf16 %v10472, %v10472
        %v10545 = vpack.c.bf16 %v10473, %v10473
        %v10546 = vpack.c.bf16 %v10474, %v10474
        %v10547 = vpack.c.bf16 %v10475, %v10475
        %v10548 = vpack.c.bf16 %v10476, %v10476
        %v10549 = vpack.c.bf16 %v10477, %v10477
        %v10550 = vpack.c.bf16 %v10478, %v10478
        %v10551 = vpack.c.bf16 %v10479, %v10479
        %v10552 = vpack.c.bf16 %v10480, %v10480
        %v10553 = vpack.c.bf16 %v10481, %v10481
        %v10554 = vpack.c.bf16 %v10482, %v10482
        %v10555 = vpack.c.bf16 %v10483, %v10483
        %v10556 = vpack.c.bf16 %v10484, %v10484
        %v10557 = vpack.c.bf16 %v10485, %v10485
        %v10558 = vpack.c.bf16 %v10486, %v10486
        %v10559 = vpack.c.bf16 %v10487, %v10487
        %v10560 = vpack.c.bf16 %v10488, %v10488
        %v10561 = vpack.c.bf16 %v10489, %v10489
        %v10562 = vpack.c.bf16 %v10490, %v10490
        %v10563 = vpack.c.bf16 %v10491, %v10491
        %v10564 = vpack.c.bf16 %v10492, %v10492
        %v10565 = vpack.c.bf16 %v10493, %v10493
        %v10566 = vpack.c.bf16 %v10494, %v10494
        %v10567 = vpack.c.bf16 %v10495, %v10495
        %v10568 = vpack.c.bf16 %v10496, %v10496
        %v10569 = vpack.c.bf16 %v10497, %v10497
        %v10570 = vpack.c.bf16 %v10498, %v10498
        %v10571 = vpack.c.bf16 %v10499, %v10499
        %v10572 = vpack.c.bf16 %v10500, %v10500
        %v10573 = vpack.c.bf16 %v10501, %v10501
        %v10574 = vpack.c.bf16 %v10502, %v10502
        %v10575 = vpack.c.bf16 %v10503, %v10503
        %v10576 = vpack.c.bf16 %v10504, %v10504
        %v10577 = vpack.c.bf16 %v10505, %v10505
        %v10578 = vpack.c.bf16 %v10506, %v10506
        %v10579 = vpack.c.bf16 %v10507, %v10507
        %v10580 = vpack.c.bf16 %v10508, %v10508
        %v10581 = vpack.c.bf16 %v10509, %v10509
        %v10582 = vpack.c.bf16 %v10510, %v10510
        %v10583 = vpack.c.bf16 %v10511, %v10511
        %v10584 = vpack.c.bf16 %v10512, %v10512
        %v10585 = vld [vmem:[%s290] sm:$0xf]
        %v10586 = vld [vmem:[%s290 + $0x4] sm:$0xf]
        %v10587 = vld [vmem:[%s290 + $0x8] sm:$0xf]
        %v10588 = vld [vmem:[%s290 + $0xc] sm:$0xf]
        %v10589 = vld [vmem:[%s290 + $0x10] sm:$0xf]
        %v10590 = vld [vmem:[%s290 + $0x14] sm:$0xf]
        %v10591 = vld [vmem:[%s290 + $0x18] sm:$0xf]
        %v10592 = vld [vmem:[%s290 + $0x1c] sm:$0xf]
        %v10593 = vld [vmem:[%s290 + $0x20] sm:$0xf]
        %v10594 = vld [vmem:[%s290 + $0x24] sm:$0xf]
        %v10595 = vld [vmem:[%s290 + $0x28] sm:$0xf]
        %v10596 = vld [vmem:[%s290 + $0x2c] sm:$0xf]
        %v10597 = vld [vmem:[%s290 + $0x30] sm:$0xf]
        %v10598 = vld [vmem:[%s290 + $0x34] sm:$0xf]
        %v10599 = vld [vmem:[%s290 + $0x38] sm:$0xf]
        %v10600 = vld [vmem:[%s290 + $0x3c] sm:$0xf]
        %v10665 = vunpack.c.l.b16 %v10521
        %v10666 = vunpack.c.l.b16 %v10522
        %v10667 = vunpack.c.l.b16 %v10523
        %v10668 = vunpack.c.l.b16 %v10524
        %v10669 = vunpack.c.l.b16 %v10525
        %v10670 = vunpack.c.l.b16 %v10526
        %v10671 = vunpack.c.l.b16 %v10527
        %v10672 = vunpack.c.l.b16 %v10528
        %v10673 = vunpack.c.l.b16 %v10529
        %v10674 = vunpack.c.l.b16 %v10530
        %v10675 = vunpack.c.l.b16 %v10531
        %v10676 = vunpack.c.l.b16 %v10532
        %v10677 = vunpack.c.l.b16 %v10533
        %v10678 = vunpack.c.l.b16 %v10534
        %v10679 = vunpack.c.l.b16 %v10535
        %v10680 = vunpack.c.l.b16 %v10536
        %v10681 = vunpack.c.l.b16 %v10537
        %v10682 = vunpack.c.l.b16 %v10538
        %v10683 = vunpack.c.l.b16 %v10539
        %v10684 = vunpack.c.l.b16 %v10540
        %v10685 = vunpack.c.l.b16 %v10541
        %v10686 = vunpack.c.l.b16 %v10542
        %v10687 = vunpack.c.l.b16 %v10543
        %v10688 = vunpack.c.l.b16 %v10544
        %v10689 = vunpack.c.l.b16 %v10545
        %v10690 = vunpack.c.l.b16 %v10546
        %v10691 = vunpack.c.l.b16 %v10547
        %v10692 = vunpack.c.l.b16 %v10548
        %v10693 = vunpack.c.l.b16 %v10549
        %v10694 = vunpack.c.l.b16 %v10550
        %v10695 = vunpack.c.l.b16 %v10551
        %v10696 = vunpack.c.l.b16 %v10552
        %v10697 = vunpack.c.l.b16 %v10553
        %v10698 = vunpack.c.l.b16 %v10554
        %v10699 = vunpack.c.l.b16 %v10555
        %v10700 = vunpack.c.l.b16 %v10556
        %v10701 = vunpack.c.l.b16 %v10557
        %v10702 = vunpack.c.l.b16 %v10558
        %v10703 = vunpack.c.l.b16 %v10559
        %v10704 = vunpack.c.l.b16 %v10560
        %v10705 = vunpack.c.l.b16 %v10561
        %v10706 = vunpack.c.l.b16 %v10562
        %v10707 = vunpack.c.l.b16 %v10563
        %v10708 = vunpack.c.l.b16 %v10564
        %v10709 = vunpack.c.l.b16 %v10565
        %v10710 = vunpack.c.l.b16 %v10566
        %v10711 = vunpack.c.l.b16 %v10567
        %v10712 = vunpack.c.l.b16 %v10568
        %v10713 = vunpack.c.l.b16 %v10569
        %v10714 = vunpack.c.l.b16 %v10570
        %v10715 = vunpack.c.l.b16 %v10571
        %v10716 = vunpack.c.l.b16 %v10572
        %v10717 = vunpack.c.l.b16 %v10573
        %v10718 = vunpack.c.l.b16 %v10574
        %v10719 = vunpack.c.l.b16 %v10575
        %v10720 = vunpack.c.l.b16 %v10576
        %v10721 = vunpack.c.l.b16 %v10577
        %v10722 = vunpack.c.l.b16 %v10578
        %v10723 = vunpack.c.l.b16 %v10579
        %v10724 = vunpack.c.l.b16 %v10580
        %v10725 = vunpack.c.l.b16 %v10581
        %v10726 = vunpack.c.l.b16 %v10582
        %v10727 = vunpack.c.l.b16 %v10583
        %v10728 = vunpack.c.l.b16 %v10584
        %vm10729 = vcmask 1041409
        %v10730 = vsel %vm10729, %v10666, %v10665
        %vm10731 = vcmask 1042434
        %v10732 = vsel %vm10731, %v10667, %v10730
        %vm10733 = vcmask 1043459
        %v10734 = vsel %vm10733, %v10668, %v10732
        %vm10735 = vcmask 1044484
        %v10736 = vsel %vm10735, %v10669, %v10734
        %vm10737 = vcmask 1045509
        %v10738 = vsel %vm10737, %v10670, %v10736
        %vm10739 = vcmask 1046534
        %v10740 = vsel %vm10739, %v10671, %v10738
        %vm10741 = vcmask 1047559
        %v10742 = vsel %vm10741, %v10672, %v10740
        %v10743 = vsel %vm10729, %v10674, %v10673
        %v10744 = vsel %vm10731, %v10675, %v10743
        %v10745 = vsel %vm10733, %v10676, %v10744
        %v10746 = vsel %vm10735, %v10677, %v10745
        %v10747 = vsel %vm10737, %v10678, %v10746
        %v10748 = vsel %vm10739, %v10679, %v10747
        %v10749 = vsel %vm10741, %v10680, %v10748
        %v10750 = vsel %vm10729, %v10682, %v10681
        %v10751 = vsel %vm10731, %v10683, %v10750
        %v10752 = vsel %vm10733, %v10684, %v10751
        %v10753 = vsel %vm10735, %v10685, %v10752
        %v10754 = vsel %vm10737, %v10686, %v10753
        %v10755 = vsel %vm10739, %v10687, %v10754
        %v10756 = vsel %vm10741, %v10688, %v10755
        %v10757 = vsel %vm10729, %v10690, %v10689
        %v10758 = vsel %vm10731, %v10691, %v10757
        %v10759 = vsel %vm10733, %v10692, %v10758
        %v10760 = vsel %vm10735, %v10693, %v10759
        %v10761 = vsel %vm10737, %v10694, %v10760
        %v10762 = vsel %vm10739, %v10695, %v10761
        %v10763 = vsel %vm10741, %v10696, %v10762
        %v10764 = vsel %vm10729, %v10698, %v10697
        %v10765 = vsel %vm10731, %v10699, %v10764
        %v10766 = vsel %vm10733, %v10700, %v10765
        %v10767 = vsel %vm10735, %v10701, %v10766
        %v10768 = vsel %vm10737, %v10702, %v10767
        %v10769 = vsel %vm10739, %v10703, %v10768
        %v10770 = vsel %vm10741, %v10704, %v10769
        %v10771 = vsel %vm10729, %v10706, %v10705
        %v10772 = vsel %vm10731, %v10707, %v10771
        %v10773 = vsel %vm10733, %v10708, %v10772
        %v10774 = vsel %vm10735, %v10709, %v10773
        %v10775 = vsel %vm10737, %v10710, %v10774
        %v10776 = vsel %vm10739, %v10711, %v10775
        %v10777 = vsel %vm10741, %v10712, %v10776
        %v10778 = vsel %vm10729, %v10714, %v10713
        %v10779 = vsel %vm10731, %v10715, %v10778
        %v10780 = vsel %vm10733, %v10716, %v10779
        %v10781 = vsel %vm10735, %v10717, %v10780
        %v10782 = vsel %vm10737, %v10718, %v10781
        %v10783 = vsel %vm10739, %v10719, %v10782
        %v10784 = vsel %vm10741, %v10720, %v10783
        %v10785 = vsel %vm10729, %v10722, %v10721
        %v10786 = vsel %vm10731, %v10723, %v10785
        %v10787 = vsel %vm10733, %v10724, %v10786
        %v10788 = vsel %vm10735, %v10725, %v10787
        %v10789 = vsel %vm10737, %v10726, %v10788
        %v10790 = vsel %vm10739, %v10727, %v10789
        %v10791 = vsel %vm10741, %v10728, %v10790
        %v10792 = vpack.c.b16 %v10749, %v10742
        %v10793 = vpack.c.b16 %v10763, %v10756
        %v10794 = vpack.c.b16 %v10777, %v10770
        %v10795 = vpack.c.b16 %v10791, %v10784
        %v10816 = vunpack.c.l.b16 %v10585
        %v10817 = vunpack.c.l.b16 %v10586
        %v10818 = vunpack.c.l.b16 %v10587
        %v10819 = vunpack.c.l.b16 %v10588
        %v10820 = vunpack.c.l.b16 %v10589
        %v10821 = vunpack.c.l.b16 %v10590
        %v10822 = vunpack.c.l.b16 %v10591
        %v10823 = vunpack.c.l.b16 %v10592
        %v10824 = vunpack.c.l.b16 %v10593
        %v10825 = vunpack.c.l.b16 %v10594
        %v10826 = vunpack.c.l.b16 %v10595
        %v10827 = vunpack.c.l.b16 %v10596
        %v10828 = vunpack.c.l.b16 %v10597
        %v10829 = vunpack.c.l.b16 %v10598
        %v10830 = vunpack.c.l.b16 %v10599
        %v10831 = vunpack.c.l.b16 %v10600
        %v10832 = vpack.c.b16 %v10817, %v10816
        %v10833 = vpack.c.b16 %v10819, %v10818
        %v10834 = vpack.c.b16 %v10821, %v10820
        %v10835 = vpack.c.b16 %v10823, %v10822
        %v10836 = vpack.c.b16 %v10825, %v10824
        %v10837 = vpack.c.b16 %v10827, %v10826
        %v10838 = vpack.c.b16 %v10829, %v10828
        %v10839 = vpack.c.b16 %v10831, %v10830
        %10848 = vmatprep.subr.bf16.mxu0 0
        %10849 = vmatpush1.bf16.msra.mxu0 %v10839
        %10850 = vmatprep.subr.bf16.mxu0 0
        %10851 = vmatpush1.bf16.msra.mxu0 %v10838
        %10852 = vmatprep.subr.bf16.mxu0 0
        %10853 = vmatpush1.bf16.msra.mxu0 %v10837
        %10854 = vmatprep.subr.bf16.mxu0 0
        %10855 = vmatpush1.bf16.msra.mxu0 %v10836
        %10856 = vmatprep.subr.bf16.mxu0 0
        %10857 = vmatpush1.bf16.msra.mxu0 %v10835
        %10858 = vmatprep.subr.bf16.mxu0 0
        %10859 = vmatpush1.bf16.msra.mxu0 %v10834
        %10860 = vmatprep.subr.bf16.mxu0 0
        %10861 = vmatpush1.bf16.msra.mxu0 %v10833
        %10862 = vmatprep.subr.bf16.mxu0 0
        %10863 = vmatpush1.bf16.msra.mxu0 %v10832
        %10864 = vmatprep.subr.bf16.mxu0 0
        %10865 = vmatpush2.bf16.msra.mxu0 0
        %10866 = vmatprep.subr.bf16.mxu0 0
        %10867 = vmatpush2.bf16.msra.mxu0 0
        %10868 = vmatprep.subr.bf16.mxu0 0
        %10869 = vmatpush2.bf16.msra.mxu0 0
        %10870 = vmatprep.subr.bf16.mxu0 0
        %10871 = vmatpush2.bf16.msra.mxu0 0
        %10872 = vmatprep.subr.bf16.mxu0 0
        %10873 = vmatpush2.bf16.msra.mxu0 0
        %10874 = vmatprep.subr.bf16.mxu0 0
        %10875 = vmatpush2.bf16.msra.mxu0 0
        %10876 = vmatprep.subr.bf16.mxu0 0
        %10877 = vmatpush2.bf16.msra.mxu0 0
        %10878 = vmatprep.subr.bf16.mxu0 0
        %10879 = vmatpush2.bf16.msra.mxu0 0
        %10880 = vmatprep.mubr.bf16.mxu0 0
        %10881 = vmatmul.mubr.bf16.gmra.mxu0 %v10792
        %v10882 = vpop.f32.mrf.mxu0
        %v10883 = vadd.f32 0.0, %v10882
        %v10884 = vpop.f32.mrf.mxu0
        %v10885 = vpop.f32.mrf.mxu0
        %v10886 = vadd.f32 0.0, %v10885
        %v10887 = vpop.f32.mrf.mxu0
        %10888 = vmatprep.mubr.bf16.mxu0 0
        %10889 = vmatmul.mubr.bf16.gmra.mxu0 %v10793
        %v10890 = vpop.f32.mrf.mxu0
        %v10891 = vadd.f32 0.0, %v10890
        %v10892 = vpop.f32.mrf.mxu0
        %v10893 = vpop.f32.mrf.mxu0
        %v10894 = vadd.f32 0.0, %v10893
        %v10895 = vpop.f32.mrf.mxu0
        %10896 = vmatprep.mubr.bf16.mxu0 0
        %10897 = vmatmul.mubr.bf16.gmra.mxu0 %v10794
        %v10898 = vpop.f32.mrf.mxu0
        %v10899 = vadd.f32 0.0, %v10898
        %v10900 = vpop.f32.mrf.mxu0
        %v10901 = vpop.f32.mrf.mxu0
        %v10902 = vadd.f32 0.0, %v10901
        %v10903 = vpop.f32.mrf.mxu0
        %10904 = vmatprep.mubr.bf16.mxu0 0
        %10905 = vmatmul.mubr.bf16.gmra.mxu0 %v10795
        %v10906 = vpop.f32.mrf.mxu0
        %v10907 = vadd.f32 0.0, %v10906
        %v10908 = vpop.f32.mrf.mxu0
        %v10909 = vpop.f32.mrf.mxu0
        %v10910 = vadd.f32 0.0, %v10909
        %v10911 = vpop.f32.mrf.mxu0
        %10912 = vdwg.mxu0
        %v10913 = vadd.f32 %v10513, %v10883
        %v10914 = vadd.f32 %v10514, %v10886
        %v10915 = vadd.f32 %v10515, %v10891
        %v10916 = vadd.f32 %v10516, %v10894
        %v10917 = vadd.f32 %v10517, %v10899
        %v10918 = vadd.f32 %v10518, %v10902
        %v10919 = vadd.f32 %v10519, %v10907
        %v10920 = vadd.f32 %v10520, %v10910
        %10921 = vst [vmem:[%s325] sm:$0xff] %v10913
        %10922 = vst [vmem:[%s325 + $0x8] sm:$0xff] %v10914
        %10923 = vst [vmem:[%s325 + $0x10] sm:$0xff] %v10915
        %10924 = vst [vmem:[%s325 + $0x18] sm:$0xff] %v10916
        %10925 = vst [vmem:[%s325 + $0x20] sm:$0xff] %v10917
        %10926 = vst [vmem:[%s325 + $0x28] sm:$0xff] %v10918
        %10927 = vst [vmem:[%s325 + $0x30] sm:$0xff] %v10919
        %10928 = vst [vmem:[%s325 + $0x38] sm:$0xff] %v10920
        %p10929 = scmp.eq.s32.totalorder %s28, 2
        // Predicated region
        $region68: #{tpu_custom_call.1} parent=39 // pred_check
          %p10930 = pneg %p10929
        $region69: #{tpu_custom_call.1} parent=39 // pred_check_branch
          %10932 = sbr.rel (%p10930) target = $region71
        $region70: #{tpu_custom_call.1} parent=39 // pred_region
          %v10933 = vld [vmem:[%s325] sm:$0xff]
          %v10934 = vld [vmem:[%s325 + $0x8] sm:$0xff]
          %v10935 = vld [vmem:[%s325 + $0x10] sm:$0xff]
          %v10936 = vld [vmem:[%s325 + $0x18] sm:$0xff]
          %v10937 = vld [vmem:[%s325 + $0x20] sm:$0xff]
          %v10938 = vld [vmem:[%s325 + $0x28] sm:$0xff]
          %v10939 = vld [vmem:[%s325 + $0x30] sm:$0xff]
          %v10940 = vld [vmem:[%s325 + $0x38] sm:$0xff]
          %v10941 = vmax.f32 %v10933, 0.0
          %v10942 = vmax.f32 %v10934, 0.0
          %v10943 = vmax.f32 %v10935, 0.0
          %v10944 = vmax.f32 %v10936, 0.0
          %v10945 = vmax.f32 %v10937, 0.0
          %v10946 = vmax.f32 %v10938, 0.0
          %v10947 = vmax.f32 %v10939, 0.0
          %v10948 = vmax.f32 %v10940, 0.0
          %10949 = vst [vmem:[%s325] sm:$0xff] %v10941
          %10950 = vst [vmem:[%s325 + $0x8] sm:$0xff] %v10942
          %10951 = vst [vmem:[%s325 + $0x10] sm:$0xff] %v10943
          %10952 = vst [vmem:[%s325 + $0x18] sm:$0xff] %v10944
          %10953 = vst [vmem:[%s325 + $0x20] sm:$0xff] %v10945
          %10954 = vst [vmem:[%s325 + $0x28] sm:$0xff] %v10946
          %10955 = vst [vmem:[%s325 + $0x30] sm:$0xff] %v10947
          %10956 = vst [vmem:[%s325 + $0x38] sm:$0xff] %v10948
        $region71: #{tpu_custom_call.1} parent=39 // pred_fallthru
          _
        %s10957 = sand.u32 %s160, 1
        %s10958 = scalar_lea.sflag [#allocation4], %s10957
        %s10959 = sand.u32 %s160, 1
        %s10960 = smul.addr %s10959, 64
        %s10961 = scalar_lea.vmem [#allocation9], %s10960
        // Predicated region
        $region72: #{tpu_custom_call.1} parent=39 // pred_check
          %p10962 = pneg %p170
        $region73: #{tpu_custom_call.1} parent=39 // pred_check_branch
          %10964 = sbr.rel (%p10962) target = $region75
        $region74: #{tpu_custom_call.1} parent=39 // pred_region
          %s10965 = smul.u32 8, %s27
          %s10967 = ssub.s32 1024, 1024
          %10968 = vsyncadd %s10958, %s10967
          %s10969 = smul.addr %s10965, 128
          %s10970 = scalar_lea.hbm %s5, %s10969
          %s10971 = sshll.u32 %s10961, 4
          %s10972 = int_to_ptr.vmem [resolvable:$true] %s10971
          %10977 = dma.vmem_to_hbm [thread:$0]  %s10972, 1024, %s10970, %s10958, 128, 128, 8
        $region75: #{tpu_custom_call.1} parent=39 // pred_fallthru
          _
      $region40: #{tpu_custom_call.1} parent=5 // pred_fallthru
        _
      %p10978 = scmp.le.s32.totalorder 2, %s18
      // Predicated region
      $region76: #{tpu_custom_call.1} parent=5 // pred_check
        %p10979 = pneg %p10978
      $region77: #{tpu_custom_call.1} parent=5 // pred_check_branch
        %10981 = sbr.rel (%p10979) target = $region79
      $region78: #{tpu_custom_call.1} parent=5 // pred_region
        %s10982 = ssub.s32 %s18, 2
        // Predicated region
        $region80: #{tpu_custom_call.1} parent=78 // pred_check
          %p10983 = pneg %p176
        $region81: #{tpu_custom_call.1} parent=78 // pred_check_branch
          %10985 = sbr.rel (%p10983) target = $region83
        $region82: #{tpu_custom_call.1} parent=78 // pred_region
          %s10986 = sand.u32 %s161, 1
          %s10987 = scalar_lea.sflag [#allocation4], %s10986
          %s10988 = sand.u32 %s161, 1
          %s10989 = smul.addr %s10988, 64
          %s10990 = scalar_lea.vmem [#allocation9], %s10989
          %10991 = dma.done %s10987, 1024
        $region83: #{tpu_custom_call.1} parent=78 // pred_fallthru
          _
      $region79: #{tpu_custom_call.1} parent=5 // pred_fallthru
        _
    $region6: #{tpu_custom_call.1} parent=1 // loop_footer
      %s22 = sadd.s32 1, %s18
    $region7: #{tpu_custom_call.1} parent=1 // loop_footer_branch
      %17 = sbr.rel target = $region3
    $region8: #{tpu_custom_call.1} parent=1 // loop_exit
      _
    %10992 = vsyncpa [#allocation3], 1
    %s10993 = scalar_lea.sflag [#allocation3], 1
    %10994 = vsyncpa %s10993, 1
    %10995 = vsyncpa [#allocation6], 1
    %10996 = vsyncpa [#allocation4], 1
    %s10997 = scalar_lea.sflag [#allocation4], 1
    %10998 = vsyncpa %s10997, 1

</llo_original>
